<compile_context>
chip_gen: v7x
topology: tpu7x:2x2x1
jax: 0.10.0
libtpu: 0.0.40
codegen_flags: <defaults>
</compile_context>

<pallas_src>
import jax
import jax.numpy as jnp
from jax.experimental import pallas as pl
from jax.experimental.pallas import tpu as pltpu

N, H, W = 1, 7, 7
HW = H * W
CIN, CMID, COUT = 960, 128, 32
EPS = 1e-5


def fused_kernel(x_ref, w1_ref, gamma_ref, beta_ref, w2_ref, o_ref, pad_ref):
    # x_ref:     [49, CIN]            flattened HWC input
    # w1_ref:    [CIN, CMID]          1x1 conv weight (transposed)
    # gamma_ref: [1, CMID]            BN scale
    # beta_ref:  [1, CMID]            BN shift
    # w2_ref:    [9*CMID, COUT]       3x3 conv weight, (tap, cin) major -> cout
    # o_ref:     [49, COUT]           flattened HWC output
    # pad_ref:   [H+2, W+2, CMID]     VMEM scratch, spatially zero-padded mid act

    # Zero the padded scratch once (~41 KB); the zero border implements the
    # padding=1 that in PyTorch is applied AFTER BN+ReLU.
    pad_ref[...] = jnp.zeros_like(pad_ref)

    # ---- 1x1 conv: one MXU matmul over all 49 spatial positions ----
    y = jnp.dot(x_ref[...], w1_ref[...],
                preferred_element_type=jnp.float32)              # [49, CMID]

    # ---- BatchNorm (training mode: biased batch variance) + ReLU ----
    # TODO(synk): single-pass E[y^2]-E[y]^2 variance can lose precision when
    # |mean| >> std; acceptable at this tolerance, switch to two-pass if reused.
    cnt = float(N * HW)
    mean = jnp.sum(y, axis=0, keepdims=True) / cnt               # [1, CMID]
    var = jnp.sum(y * y, axis=0, keepdims=True) / cnt - mean * mean
    scale = gamma_ref[...] * jax.lax.rsqrt(var + EPS)            # [1, CMID]
    shift = beta_ref[...] - mean * scale                         # [1, CMID]
    yn = jnp.maximum(y * scale + shift, 0.0)                     # [49, CMID]

    # Single store of the padded interior.
    pad_ref[1:1 + H, 1:1 + W, :] = yn.reshape(H, W, CMID)

    # ---- 3x3 conv, padding=1, via im2col ----
    # Concatenate the 9 shifted [49, CMID] windows along lanes -> [49, 9*CMID],
    # then a single dot against the [9*CMID, COUT] weight.
    windows = [
        pad_ref[kh:kh + H, kw:kw + W, :].reshape(HW, CMID)
        for kh in range(3) for kw in range(3)
    ]
    lhs = jnp.concatenate(windows, axis=-1)                      # [49, 9*CMID]
    o_ref[...] = jnp.dot(lhs, w2_ref[...],
                         preferred_element_type=jnp.float32)     # [49, COUT]


def fused_forward(x_nchw, w1_oihw, gamma, beta, w2_oihw):
    """x_nchw: [1, 960, 7, 7] -> returns [1, 32, 7, 7]."""
    # Host-side layout plumbing: give the kernel clean 2D operands.
    x_flat = jnp.transpose(x_nchw[0], (1, 2, 0)).reshape(HW, CIN)            # [49, CIN]
    x_flat = x_flat.astype(jnp.float32)
    w1_t = jnp.transpose(w1_oihw[:, :, 0, 0], (1, 0)).astype(jnp.float32)    # [CIN, CMID]
    # w2: OIHW [COUT, CMID, 3, 3] -> [kh, kw, cin, cout] -> [9*CMID, COUT]
    # (tap major, matching the lane-concatenation order of the 9 windows).
    w2_t = jnp.transpose(w2_oihw, (2, 3, 1, 0)).reshape(9 * CMID, COUT)
    w2_t = w2_t.astype(jnp.float32)

    out_flat = pl.pallas_call(
        fused_kernel,
        out_shape=jax.ShapeDtypeStruct((HW, COUT), jnp.float32),
        in_specs=[pl.BlockSpec(memory_space=pltpu.MemorySpace.VMEM)] * 5,
        out_specs=pl.BlockSpec(memory_space=pltpu.MemorySpace.VMEM),
        scratch_shapes=[pltpu.VMEM((H + 2, W + 2, CMID), jnp.float32)],
    )(x_flat, w1_t,
      gamma.reshape(1, CMID).astype(jnp.float32),
      beta.reshape(1, CMID).astype(jnp.float32),
      w2_t)

    out_hwc = out_flat.reshape(H, W, COUT)
    return jnp.transpose(out_hwc, (2, 0, 1))[None]                            # [1, COUT, H, W]


def reference_forward(x, w1, gamma, beta, w2):
    """Plain-JAX reference replicating the PyTorch forward (training-mode BN)."""
    y = jax.lax.conv_general_dilated(
        x, w1, window_strides=(1, 1), padding='VALID',
        dimension_numbers=('NCHW', 'OIHW', 'NCHW'))
    mean = jnp.mean(y, axis=(0, 2, 3), keepdims=True)
    var = jnp.mean((y - mean) ** 2, axis=(0, 2, 3), keepdims=True)
    yn = (y - mean) * jax.lax.rsqrt(var + EPS)
    yn = yn * gamma.reshape(1, -1, 1, 1) + beta.reshape(1, -1, 1, 1)
    yr = jnp.maximum(yn, 0.0)
    out = jax.lax.conv_general_dilated(
        yr, w2, window_strides=(1, 1), padding=((1, 1), (1, 1)),
        dimension_numbers=('NCHW', 'OIHW', 'NCHW'))
    return out


if __name__ == "__main__":
    key = jax.random.PRNGKey(0)
    kx, k1, k2, kg, kb = jax.random.split(key, 5)

    x = jax.random.normal(kx, (N, CIN, H, W), dtype=jnp.float32)
    w1 = jax.random.normal(k1, (CMID, CIN, 1, 1), dtype=jnp.float32) * 0.02
    w2 = jax.random.normal(k2, (COUT, CMID, 3, 3), dtype=jnp.float32) * 0.05
    gamma = jax.random.uniform(kg, (CMID,), dtype=jnp.float32,
                               minval=0.5, maxval=1.5)
    beta = jax.random.normal(kb, (CMID,), dtype=jnp.float32) * 0.1

    out = jax.block_until_ready(fused_forward(x, w1, gamma, beta, w2))
    ref = jax.block_until_ready(reference_forward(x, w1, gamma, beta, w2))

    assert out.shape == (N, COUT, H, W), out.shape
    assert jnp.allclose(out, ref, rtol=2e-3, atol=2e-3), (
        float(jnp.max(jnp.abs(out - ref))))

    print("KERNEL_OK")
</pallas_src>

<mosaic_0001>
module attributes {stable_mosaic.version = 11 : i64} {
  func.func @fused_kernel(%arg0: memref<49x960xf32, #tpu.memory_space<vmem>>, %arg1: memref<960x128xf32, #tpu.memory_space<vmem>>, %arg2: memref<1x128xf32, #tpu.memory_space<vmem>>, %arg3: memref<1x128xf32, #tpu.memory_space<vmem>>, %arg4: memref<1152x32xf32, #tpu.memory_space<vmem>>, %arg5: memref<49x32xf32, #tpu.memory_space<vmem>>, %arg6: memref<9x9x128xf32, #tpu.memory_space<vmem>>) attributes {dimension_semantics = [], scalar_prefetch = 0 : i64, scratch_operands = 1 : i64, tpu.core_type = #tpu.core_type<tc>} {
    %cst = arith.constant 0.000000e+00 : f32
    %0 = vector.broadcast %cst : f32 to vector<9x9x128xf32>
    %c0 = arith.constant 0 : index
    %c0_0 = arith.constant 0 : index
    %c0_1 = arith.constant 0 : index
    %1 = vector.load %arg6[%c0, %c0_0, %c0_1] : memref<9x9x128xf32, #tpu.memory_space<vmem>>, vector<9x9x128xf32>
    tpu.vector_store %arg6[%c0, %c0_0, %c0_1], %0 {strides = array<i32>} : memref<9x9x128xf32, #tpu.memory_space<vmem>>, vector<9x9x128xf32>,
    %c0_2 = arith.constant 0 : index
    %c0_3 = arith.constant 0 : index
    %2 = vector.load %arg0[%c0_2, %c0_3] : memref<49x960xf32, #tpu.memory_space<vmem>>, vector<49x960xf32>
    %c0_4 = arith.constant 0 : index
    %c0_5 = arith.constant 0 : index
    %3 = vector.load %arg1[%c0_4, %c0_5] : memref<960x128xf32, #tpu.memory_space<vmem>>, vector<960x128xf32>
    %cst_6 = arith.constant dense<0.000000e+00> : vector<49x128xf32>
    %4 = tpu.matmul %2, %3, %cst_6 {dimension_numbers = #tpu.dot_dimension_numbers<[1], [0], [0], [1], [0, 0, 1, 1], [], []>} : vector<49x960xf32>, vector<960x128xf32>, vector<49x128xf32> -> vector<49x128xf32>
    %cst_7 = arith.constant dense<0.000000e+00> : vector<128xf32>
    %5 = vector.multi_reduction <add>, %4, %cst_7 [0] : vector<49x128xf32> to vector<128xf32>
    %6 = vector.shape_cast %5 : vector<128xf32> to vector<1x128xf32>
    %cst_8 = arith.constant 4.900000e+01 : f32
    %7 = vector.broadcast %cst_8 : f32 to vector<1x128xf32>
    %8 = arith.divf %6, %7 : vector<1x128xf32>
    %9 = arith.mulf %4, %4 : vector<49x128xf32>
    %cst_9 = arith.constant dense<0.000000e+00> : vector<128xf32>
    %10 = vector.multi_reduction <add>, %9, %cst_9 [0] : vector<49x128xf32> to vector<128xf32>
    %11 = vector.shape_cast %10 : vector<128xf32> to vector<1x128xf32>
    %cst_10 = arith.constant 4.900000e+01 : f32
    %12 = vector.broadcast %cst_10 : f32 to vector<1x128xf32>
    %13 = arith.divf %11, %12 : vector<1x128xf32>
    %14 = arith.mulf %8, %8 : vector<1x128xf32>
    %15 = arith.subf %13, %14 : vector<1x128xf32>
    %c0_11 = arith.constant 0 : index
    %c0_12 = arith.constant 0 : index
    %16 = vector.load %arg2[%c0_11, %c0_12] : memref<1x128xf32, #tpu.memory_space<vmem>>, vector<1x128xf32>
    %cst_13 = arith.constant 9.99999974E-6 : f32
    %17 = vector.broadcast %cst_13 : f32 to vector<1x128xf32>
    %18 = arith.addf %15, %17 : vector<1x128xf32>
    %19 = math.rsqrt %18 : vector<1x128xf32>
    %20 = arith.mulf %16, %19 : vector<1x128xf32>
    %c0_14 = arith.constant 0 : index
    %c0_15 = arith.constant 0 : index
    %21 = vector.load %arg3[%c0_14, %c0_15] : memref<1x128xf32, #tpu.memory_space<vmem>>, vector<1x128xf32>
    %22 = arith.mulf %8, %20 : vector<1x128xf32>
    %23 = arith.subf %21, %22 : vector<1x128xf32>
    %24 = vector.broadcast %20 : vector<1x128xf32> to vector<49x128xf32>
    %25 = arith.mulf %4, %24 : vector<49x128xf32>
    %26 = vector.broadcast %23 : vector<1x128xf32> to vector<49x128xf32>
    %27 = arith.addf %25, %26 : vector<49x128xf32>
    %cst_16 = arith.constant 0.000000e+00 : f32
    %28 = vector.broadcast %cst_16 : f32 to vector<49x128xf32>
    %29 = arith.maximumf %27, %28 : vector<49x128xf32>
    %30 = vector.shape_cast %29 : vector<49x128xf32> to vector<7x7x128xf32>
    %c1 = arith.constant 1 : index
    %c1_17 = arith.constant 1 : index
    %c0_18 = arith.constant 0 : index
    %31 = vector.load %arg6[%c1, %c1_17, %c0_18] : memref<9x9x128xf32, #tpu.memory_space<vmem>>, vector<7x7x128xf32>
    tpu.vector_store %arg6[%c1, %c1_17, %c0_18], %30 {strides = array<i32>} : memref<9x9x128xf32, #tpu.memory_space<vmem>>, vector<7x7x128xf32>,
    %c0_19 = arith.constant 0 : index
    %c0_20 = arith.constant 0 : index
    %c0_21 = arith.constant 0 : index
    %32 = vector.load %arg6[%c0_19, %c0_20, %c0_21] : memref<9x9x128xf32, #tpu.memory_space<vmem>>, vector<7x7x128xf32>
    %33 = vector.shape_cast %32 : vector<7x7x128xf32> to vector<49x128xf32>
    %c0_22 = arith.constant 0 : index
    %c1_23 = arith.constant 1 : index
    %c0_24 = arith.constant 0 : index
    %34 = vector.load %arg6[%c0_22, %c1_23, %c0_24] : memref<9x9x128xf32, #tpu.memory_space<vmem>>, vector<7x7x128xf32>
    %35 = vector.shape_cast %34 : vector<7x7x128xf32> to vector<49x128xf32>
    %c0_25 = arith.constant 0 : index
    %c2 = arith.constant 2 : index
    %c0_26 = arith.constant 0 : index
    %36 = vector.load %arg6[%c0_25, %c2, %c0_26] : memref<9x9x128xf32, #tpu.memory_space<vmem>>, vector<7x7x128xf32>
    %37 = vector.shape_cast %36 : vector<7x7x128xf32> to vector<49x128xf32>
    %c1_27 = arith.constant 1 : index
    %c0_28 = arith.constant 0 : index
    %c0_29 = arith.constant 0 : index
    %38 = vector.load %arg6[%c1_27, %c0_28, %c0_29] : memref<9x9x128xf32, #tpu.memory_space<vmem>>, vector<7x7x128xf32>
    %39 = vector.shape_cast %38 : vector<7x7x128xf32> to vector<49x128xf32>
    %c1_30 = arith.constant 1 : index
    %c1_31 = arith.constant 1 : index
    %c0_32 = arith.constant 0 : index
    %40 = vector.load %arg6[%c1_30, %c1_31, %c0_32] : memref<9x9x128xf32, #tpu.memory_space<vmem>>, vector<7x7x128xf32>
    %41 = vector.shape_cast %40 : vector<7x7x128xf32> to vector<49x128xf32>
    %c1_33 = arith.constant 1 : index
    %c2_34 = arith.constant 2 : index
    %c0_35 = arith.constant 0 : index
    %42 = vector.load %arg6[%c1_33, %c2_34, %c0_35] : memref<9x9x128xf32, #tpu.memory_space<vmem>>, vector<7x7x128xf32>
    %43 = vector.shape_cast %42 : vector<7x7x128xf32> to vector<49x128xf32>
    %c2_36 = arith.constant 2 : index
    %c0_37 = arith.constant 0 : index
    %c0_38 = arith.constant 0 : index
    %44 = vector.load %arg6[%c2_36, %c0_37, %c0_38] : memref<9x9x128xf32, #tpu.memory_space<vmem>>, vector<7x7x128xf32>
    %45 = vector.shape_cast %44 : vector<7x7x128xf32> to vector<49x128xf32>
    %c2_39 = arith.constant 2 : index
    %c1_40 = arith.constant 1 : index
    %c0_41 = arith.constant 0 : index
    %46 = vector.load %arg6[%c2_39, %c1_40, %c0_41] : memref<9x9x128xf32, #tpu.memory_space<vmem>>, vector<7x7x128xf32>
    %47 = vector.shape_cast %46 : vector<7x7x128xf32> to vector<49x128xf32>
    %c2_42 = arith.constant 2 : index
    %c2_43 = arith.constant 2 : index
    %c0_44 = arith.constant 0 : index
    %48 = vector.load %arg6[%c2_42, %c2_43, %c0_44] : memref<9x9x128xf32, #tpu.memory_space<vmem>>, vector<7x7x128xf32>
    %49 = vector.shape_cast %48 : vector<7x7x128xf32> to vector<49x128xf32>
    %50 = tpu.concatenate %33, %35, %37, %39, %41, %43, %45, %47, %49 in 1 : vector<49x128xf32>, vector<49x128xf32>, vector<49x128xf32>, vector<49x128xf32>, vector<49x128xf32>, vector<49x128xf32>, vector<49x128xf32>, vector<49x128xf32>, vector<49x128xf32> -> vector<49x1152xf32>
    %c0_45 = arith.constant 0 : index
    %c0_46 = arith.constant 0 : index
    %51 = vector.load %arg4[%c0_45, %c0_46] : memref<1152x32xf32, #tpu.memory_space<vmem>>, vector<1152x32xf32>
    %cst_47 = arith.constant dense<0.000000e+00> : vector<49x32xf32>
    %52 = tpu.matmul %50, %51, %cst_47 {dimension_numbers = #tpu.dot_dimension_numbers<[1], [0], [0], [1], [0, 0, 1, 1], [], []>} : vector<49x1152xf32>, vector<1152x32xf32>, vector<49x32xf32> -> vector<49x32xf32>
    %c0_48 = arith.constant 0 : index
    %c0_49 = arith.constant 0 : index
    %53 = vector.load %arg5[%c0_48, %c0_49] : memref<49x32xf32, #tpu.memory_space<vmem>>, vector<49x32xf32>
    tpu.vector_store %arg5[%c0_48, %c0_49], %52 {strides = array<i32>} : memref<49x32xf32, #tpu.memory_space<vmem>>, vector<49x32xf32>,
    return
  }
}

</mosaic_0001>

<llo_original>
// kernel: tpu_custom_call.1
$region0: #{tpu_custom_call.1}
  #allocation0 [shape = 'u32[]', space=smem, size = 0x4, offset = 0x4, fixed_abs, tag = 'smem constant byte address 0x4 - core index']
  #allocation1 [shape = 'u32[144,128]{1,0:T(1,128)}', space=vmem, size = 0x12000, scoped, tag = 'internal scratch']
  #allocation2 [shape = 'f32[9,9,128]{2,1,0:T(8,128)}', space=vmem, size = 0x12000, scoped, tag = 'scratch operand']
  %s0 = inlined_call_operand.vmem [shape: f32[49,960], index: 0, kind: input, shape index: {}]
  %s1 = inlined_call_operand.vmem [shape: f32[960,128], index: 1, kind: input, shape index: {}]
  %s2 = inlined_call_operand.vmem [shape: f32[1,128], index: 2, kind: input, shape index: {}]
  %s3 = inlined_call_operand.vmem [shape: f32[1,128], index: 3, kind: input, shape index: {}]
  %s4 = inlined_call_operand.vmem [shape: f32[1152,32], index: 4, kind: input, shape index: {}]
  %s5 = inlined_call_operand.vmem [shape: f32[49,32], index: 5, kind: output, shape index: {}]
  %s6 = sld [smem:[#allocation0]]
  $region30: #{tpu_custom_call.1} parent=0
    _
  %s8 = ssub.s32 1, %s6
  %s9 = scalar_select 0, %s8, %s6
  // Predicated region
  $region2: #{tpu_custom_call.1} parent=0 // pred_check
    _
  $region3: #{tpu_custom_call.1} parent=0 // pred_check_branch
    %11 = sbr.rel (0) target = $region5
  $region4: #{tpu_custom_call.1} parent=0 // pred_region
    _
  $region5: #{tpu_custom_call.1} parent=0 // pred_fallthru
    _
  // Predicated region
  $region6: #{tpu_custom_call.1} parent=0 // pred_check
    _
  $region7: #{tpu_custom_call.1} parent=0 // pred_check_branch
    %13 = sbr.rel (0) target = $region9
  $region8: #{tpu_custom_call.1} parent=0 // pred_region
    _
  $region9: #{tpu_custom_call.1} parent=0 // pred_fallthru
    _
  // Predicated region
  $region10: #{tpu_custom_call.1} parent=0 // pred_check
    _
  $region11: #{tpu_custom_call.1} parent=0 // pred_check_branch
    %15 = sbr.rel (0) target = $region13
  $region12: #{tpu_custom_call.1} parent=0 // pred_region
    _
  $region13: #{tpu_custom_call.1} parent=0 // pred_fallthru
    _
  // Predicated region
  $region14: #{tpu_custom_call.1} parent=0 // pred_check
    _
  $region15: #{tpu_custom_call.1} parent=0 // pred_check_branch
    %17 = sbr.rel (0) target = $region17
  $region16: #{tpu_custom_call.1} parent=0 // pred_region
    _
  $region17: #{tpu_custom_call.1} parent=0 // pred_fallthru
    _
  // Predicated region
  $region18: #{tpu_custom_call.1} parent=0 // pred_check
    _
  $region19: #{tpu_custom_call.1} parent=0 // pred_check_branch
    %19 = sbr.rel (0) target = $region21
  $region20: #{tpu_custom_call.1} parent=0 // pred_region
    _
  $region21: #{tpu_custom_call.1} parent=0 // pred_fallthru
    _
  %20 = vst [vmem:[#allocation2] sm:$0xff] 0.0
  %21 = vst [vmem:[#allocation2 + $0x8] sm:$0x1] 0.0
  %22 = vst [vmem:[#allocation2 + $0x10] sm:$0xff] 0.0
  %23 = vst [vmem:[#allocation2 + $0x18] sm:$0x1] 0.0
  %24 = vst [vmem:[#allocation2 + $0x20] sm:$0xff] 0.0
  %25 = vst [vmem:[#allocation2 + $0x28] sm:$0x1] 0.0
  %26 = vst [vmem:[#allocation2 + $0x30] sm:$0xff] 0.0
  %27 = vst [vmem:[#allocation2 + $0x38] sm:$0x1] 0.0
  %28 = vst [vmem:[#allocation2 + $0x40] sm:$0xff] 0.0
  %29 = vst [vmem:[#allocation2 + $0x48] sm:$0x1] 0.0
  %30 = vst [vmem:[#allocation2 + $0x50] sm:$0xff] 0.0
  %31 = vst [vmem:[#allocation2 + $0x58] sm:$0x1] 0.0
  %32 = vst [vmem:[#allocation2 + $0x60] sm:$0xff] 0.0
  %33 = vst [vmem:[#allocation2 + $0x68] sm:$0x1] 0.0
  %34 = vst [vmem:[#allocation2 + $0x70] sm:$0xff] 0.0
  %35 = vst [vmem:[#allocation2 + $0x78] sm:$0x1] 0.0
  %36 = vst [vmem:[#allocation2 + $0x80] sm:$0xff] 0.0
  %37 = vst [vmem:[#allocation2 + $0x88] sm:$0x1] 0.0
  %v38 = vld [vmem:[%s0] sm:$0xff]
  %v39 = vld [vmem:[%s0 + $0x8] sm:$0xff]
  %v40 = vld [vmem:[%s0 + $0x10] sm:$0xff]
  %v41 = vld [vmem:[%s0 + $0x18] sm:$0xff]
  %v42 = vld [vmem:[%s0 + $0x20] sm:$0xff]
  %v43 = vld [vmem:[%s0 + $0x28] sm:$0xff]
  %v44 = vld [vmem:[%s0 + $0x30] sm:$0xff]
  %v45 = vld [vmem:[%s0 + $0x38] sm:$0xff]
  %v46 = vld [vmem:[%s0 + $0x40] sm:$0xff]
  %v47 = vld [vmem:[%s0 + $0x48] sm:$0xff]
  %v48 = vld [vmem:[%s0 + $0x50] sm:$0xff]
  %v49 = vld [vmem:[%s0 + $0x58] sm:$0xff]
  %v50 = vld [vmem:[%s0 + $0x60] sm:$0xff]
  %v51 = vld [vmem:[%s0 + $0x68] sm:$0xff]
  %v52 = vld [vmem:[%s0 + $0x70] sm:$0xff]
  %v53 = vld [vmem:[%s0 + $0x78] sm:$0xff]
  %v54 = vld [vmem:[%s0 + $0x80] sm:$0xff]
  %v55 = vld [vmem:[%s0 + $0x88] sm:$0xff]
  %v56 = vld [vmem:[%s0 + $0x90] sm:$0xff]
  %v57 = vld [vmem:[%s0 + $0x98] sm:$0xff]
  %v58 = vld [vmem:[%s0 + $0xa0] sm:$0xff]
  %v59 = vld [vmem:[%s0 + $0xa8] sm:$0xff]
  %v60 = vld [vmem:[%s0 + $0xb0] sm:$0xff]
  %v61 = vld [vmem:[%s0 + $0xb8] sm:$0xff]
  %v62 = vld [vmem:[%s0 + $0xc0] sm:$0xff]
  %v63 = vld [vmem:[%s0 + $0xc8] sm:$0xff]
  %v64 = vld [vmem:[%s0 + $0xd0] sm:$0xff]
  %v65 = vld [vmem:[%s0 + $0xd8] sm:$0xff]
  %v66 = vld [vmem:[%s0 + $0xe0] sm:$0xff]
  %v67 = vld [vmem:[%s0 + $0xe8] sm:$0xff]
  %v68 = vld [vmem:[%s0 + $0xf0] sm:$0xff]
  %v69 = vld [vmem:[%s0 + $0xf8] sm:$0xff]
  %v70 = vld [vmem:[%s0 + $0x100] sm:$0xff]
  %v71 = vld [vmem:[%s0 + $0x108] sm:$0xff]
  %v72 = vld [vmem:[%s0 + $0x110] sm:$0xff]
  %v73 = vld [vmem:[%s0 + $0x118] sm:$0xff]
  %v74 = vld [vmem:[%s0 + $0x120] sm:$0xff]
  %v75 = vld [vmem:[%s0 + $0x128] sm:$0xff]
  %v76 = vld [vmem:[%s0 + $0x130] sm:$0xff]
  %v77 = vld [vmem:[%s0 + $0x138] sm:$0xff]
  %v78 = vld [vmem:[%s0 + $0x140] sm:$0xff]
  %v79 = vld [vmem:[%s0 + $0x148] sm:$0xff]
  %v80 = vld [vmem:[%s0 + $0x150] sm:$0xff]
  %v81 = vld [vmem:[%s0 + $0x158] sm:$0xff]
  %v82 = vld [vmem:[%s0 + $0x160] sm:$0xff]
  %v83 = vld [vmem:[%s0 + $0x168] sm:$0xff]
  %v84 = vld [vmem:[%s0 + $0x170] sm:$0xff]
  %v85 = vld [vmem:[%s0 + $0x178] sm:$0xff]
  %v86 = vld [vmem:[%s0 + $0x180] sm:$0x1]
  %v87 = vld [vmem:[%s0 + $0x188] sm:$0x1]
  %v88 = vld [vmem:[%s0 + $0x190] sm:$0x1]
  %v89 = vld [vmem:[%s0 + $0x198] sm:$0x1]
  %v90 = vld [vmem:[%s0 + $0x1a0] sm:$0x1]
  %v91 = vld [vmem:[%s0 + $0x1a8] sm:$0x1]
  %v92 = vld [vmem:[%s0 + $0x1b0] sm:$0x1]
  %v93 = vld [vmem:[%s0 + $0x1b8] sm:$0x1]
  %v94 = vld [vmem:[%s1] sm:$0xff]
  %v95 = vld [vmem:[%s1 + $0x8] sm:$0xff]
  %v96 = vld [vmem:[%s1 + $0x10] sm:$0xff]
  %v97 = vld [vmem:[%s1 + $0x18] sm:$0xff]
  %v98 = vld [vmem:[%s1 + $0x20] sm:$0xff]
  %v99 = vld [vmem:[%s1 + $0x28] sm:$0xff]
  %v100 = vld [vmem:[%s1 + $0x30] sm:$0xff]
  %v101 = vld [vmem:[%s1 + $0x38] sm:$0xff]
  %v102 = vld [vmem:[%s1 + $0x40] sm:$0xff]
  %v103 = vld [vmem:[%s1 + $0x48] sm:$0xff]
  %v104 = vld [vmem:[%s1 + $0x50] sm:$0xff]
  %v105 = vld [vmem:[%s1 + $0x58] sm:$0xff]
  %v106 = vld [vmem:[%s1 + $0x60] sm:$0xff]
  %v107 = vld [vmem:[%s1 + $0x68] sm:$0xff]
  %v108 = vld [vmem:[%s1 + $0x70] sm:$0xff]
  %v109 = vld [vmem:[%s1 + $0x78] sm:$0xff]
  %v110 = vld [vmem:[%s1 + $0x80] sm:$0xff]
  %v111 = vld [vmem:[%s1 + $0x88] sm:$0xff]
  %v112 = vld [vmem:[%s1 + $0x90] sm:$0xff]
  %v113 = vld [vmem:[%s1 + $0x98] sm:$0xff]
  %v114 = vld [vmem:[%s1 + $0xa0] sm:$0xff]
  %v115 = vld [vmem:[%s1 + $0xa8] sm:$0xff]
  %v116 = vld [vmem:[%s1 + $0xb0] sm:$0xff]
  %v117 = vld [vmem:[%s1 + $0xb8] sm:$0xff]
  %v118 = vld [vmem:[%s1 + $0xc0] sm:$0xff]
  %v119 = vld [vmem:[%s1 + $0xc8] sm:$0xff]
  %v120 = vld [vmem:[%s1 + $0xd0] sm:$0xff]
  %v121 = vld [vmem:[%s1 + $0xd8] sm:$0xff]
  %v122 = vld [vmem:[%s1 + $0xe0] sm:$0xff]
  %v123 = vld [vmem:[%s1 + $0xe8] sm:$0xff]
  %v124 = vld [vmem:[%s1 + $0xf0] sm:$0xff]
  %v125 = vld [vmem:[%s1 + $0xf8] sm:$0xff]
  %v126 = vld [vmem:[%s1 + $0x100] sm:$0xff]
  %v127 = vld [vmem:[%s1 + $0x108] sm:$0xff]
  %v128 = vld [vmem:[%s1 + $0x110] sm:$0xff]
  %v129 = vld [vmem:[%s1 + $0x118] sm:$0xff]
  %v130 = vld [vmem:[%s1 + $0x120] sm:$0xff]
  %v131 = vld [vmem:[%s1 + $0x128] sm:$0xff]
  %v132 = vld [vmem:[%s1 + $0x130] sm:$0xff]
  %v133 = vld [vmem:[%s1 + $0x138] sm:$0xff]
  %v134 = vld [vmem:[%s1 + $0x140] sm:$0xff]
  %v135 = vld [vmem:[%s1 + $0x148] sm:$0xff]
  %v136 = vld [vmem:[%s1 + $0x150] sm:$0xff]
  %v137 = vld [vmem:[%s1 + $0x158] sm:$0xff]
  %v138 = vld [vmem:[%s1 + $0x160] sm:$0xff]
  %v139 = vld [vmem:[%s1 + $0x168] sm:$0xff]
  %v140 = vld [vmem:[%s1 + $0x170] sm:$0xff]
  %v141 = vld [vmem:[%s1 + $0x178] sm:$0xff]
  %v142 = vld [vmem:[%s1 + $0x180] sm:$0xff]
  %v143 = vld [vmem:[%s1 + $0x188] sm:$0xff]
  %v144 = vld [vmem:[%s1 + $0x190] sm:$0xff]
  %v145 = vld [vmem:[%s1 + $0x198] sm:$0xff]
  %v146 = vld [vmem:[%s1 + $0x1a0] sm:$0xff]
  %v147 = vld [vmem:[%s1 + $0x1a8] sm:$0xff]
  %v148 = vld [vmem:[%s1 + $0x1b0] sm:$0xff]
  %v149 = vld [vmem:[%s1 + $0x1b8] sm:$0xff]
  %v150 = vld [vmem:[%s1 + $0x1c0] sm:$0xff]
  %v151 = vld [vmem:[%s1 + $0x1c8] sm:$0xff]
  %v152 = vld [vmem:[%s1 + $0x1d0] sm:$0xff]
  %v153 = vld [vmem:[%s1 + $0x1d8] sm:$0xff]
  %v154 = vld [vmem:[%s1 + $0x1e0] sm:$0xff]
  %v155 = vld [vmem:[%s1 + $0x1e8] sm:$0xff]
  %v156 = vld [vmem:[%s1 + $0x1f0] sm:$0xff]
  %v157 = vld [vmem:[%s1 + $0x1f8] sm:$0xff]
  %v158 = vld [vmem:[%s1 + $0x200] sm:$0xff]
  %v159 = vld [vmem:[%s1 + $0x208] sm:$0xff]
  %v160 = vld [vmem:[%s1 + $0x210] sm:$0xff]
  %v161 = vld [vmem:[%s1 + $0x218] sm:$0xff]
  %v162 = vld [vmem:[%s1 + $0x220] sm:$0xff]
  %v163 = vld [vmem:[%s1 + $0x228] sm:$0xff]
  %v164 = vld [vmem:[%s1 + $0x230] sm:$0xff]
  %v165 = vld [vmem:[%s1 + $0x238] sm:$0xff]
  %v166 = vld [vmem:[%s1 + $0x240] sm:$0xff]
  %v167 = vld [vmem:[%s1 + $0x248] sm:$0xff]
  %v168 = vld [vmem:[%s1 + $0x250] sm:$0xff]
  %v169 = vld [vmem:[%s1 + $0x258] sm:$0xff]
  %v170 = vld [vmem:[%s1 + $0x260] sm:$0xff]
  %v171 = vld [vmem:[%s1 + $0x268] sm:$0xff]
  %v172 = vld [vmem:[%s1 + $0x270] sm:$0xff]
  %v173 = vld [vmem:[%s1 + $0x278] sm:$0xff]
  %v174 = vld [vmem:[%s1 + $0x280] sm:$0xff]
  %v175 = vld [vmem:[%s1 + $0x288] sm:$0xff]
  %v176 = vld [vmem:[%s1 + $0x290] sm:$0xff]
  %v177 = vld [vmem:[%s1 + $0x298] sm:$0xff]
  %v178 = vld [vmem:[%s1 + $0x2a0] sm:$0xff]
  %v179 = vld [vmem:[%s1 + $0x2a8] sm:$0xff]
  %v180 = vld [vmem:[%s1 + $0x2b0] sm:$0xff]
  %v181 = vld [vmem:[%s1 + $0x2b8] sm:$0xff]
  %v182 = vld [vmem:[%s1 + $0x2c0] sm:$0xff]
  %v183 = vld [vmem:[%s1 + $0x2c8] sm:$0xff]
  %v184 = vld [vmem:[%s1 + $0x2d0] sm:$0xff]
  %v185 = vld [vmem:[%s1 + $0x2d8] sm:$0xff]
  %v186 = vld [vmem:[%s1 + $0x2e0] sm:$0xff]
  %v187 = vld [vmem:[%s1 + $0x2e8] sm:$0xff]
  %v188 = vld [vmem:[%s1 + $0x2f0] sm:$0xff]
  %v189 = vld [vmem:[%s1 + $0x2f8] sm:$0xff]
  %v190 = vld [vmem:[%s1 + $0x300] sm:$0xff]
  %v191 = vld [vmem:[%s1 + $0x308] sm:$0xff]
  %v192 = vld [vmem:[%s1 + $0x310] sm:$0xff]
  %v193 = vld [vmem:[%s1 + $0x318] sm:$0xff]
  %v194 = vld [vmem:[%s1 + $0x320] sm:$0xff]
  %v195 = vld [vmem:[%s1 + $0x328] sm:$0xff]
  %v196 = vld [vmem:[%s1 + $0x330] sm:$0xff]
  %v197 = vld [vmem:[%s1 + $0x338] sm:$0xff]
  %v198 = vld [vmem:[%s1 + $0x340] sm:$0xff]
  %v199 = vld [vmem:[%s1 + $0x348] sm:$0xff]
  %v200 = vld [vmem:[%s1 + $0x350] sm:$0xff]
  %v201 = vld [vmem:[%s1 + $0x358] sm:$0xff]
  %v202 = vld [vmem:[%s1 + $0x360] sm:$0xff]
  %v203 = vld [vmem:[%s1 + $0x368] sm:$0xff]
  %v204 = vld [vmem:[%s1 + $0x370] sm:$0xff]
  %v205 = vld [vmem:[%s1 + $0x378] sm:$0xff]
  %v206 = vld [vmem:[%s1 + $0x380] sm:$0xff]
  %v207 = vld [vmem:[%s1 + $0x388] sm:$0xff]
  %v208 = vld [vmem:[%s1 + $0x390] sm:$0xff]
  %v209 = vld [vmem:[%s1 + $0x398] sm:$0xff]
  %v210 = vld [vmem:[%s1 + $0x3a0] sm:$0xff]
  %v211 = vld [vmem:[%s1 + $0x3a8] sm:$0xff]
  %v212 = vld [vmem:[%s1 + $0x3b0] sm:$0xff]
  %v213 = vld [vmem:[%s1 + $0x3b8] sm:$0xff]
  %vm214 = vcmask 523264
  %v216 = vsel %vm214, %v45, 0
  %v219 = vsel %vm214, %v53, 0
  %v222 = vsel %vm214, %v61, 0
  %v225 = vsel %vm214, %v69, 0
  %v228 = vsel %vm214, %v77, 0
  %v231 = vsel %vm214, %v85, 0
  %v234 = vsel %vm214, %v93, 0
  %236 = vmatprep.subr.mxu0 0.0
  %237 = vmatpush1.msra.mxu0 %v94
  %238 = vmatprep.subr.mxu0 0.0
  %239 = vmatpush1.msra.mxu0 %v95
  %240 = vmatprep.subr.mxu0 0.0
  %241 = vmatpush1.msra.mxu0 %v96
  %242 = vmatprep.subr.mxu0 0.0
  %243 = vmatpush1.msra.mxu0 %v97
  %244 = vmatprep.subr.mxu0 0.0
  %245 = vmatpush1.msra.mxu0 %v98
  %246 = vmatprep.subr.mxu0 0.0
  %247 = vmatpush1.msra.mxu0 %v99
  %248 = vmatprep.subr.mxu0 0.0
  %249 = vmatpush1.msra.mxu0 %v100
  %250 = vmatprep.subr.mxu0 0.0
  %251 = vmatpush1.msra.mxu0 %v101
  %252 = vmatprep.subr.mxu0 0.0
  %253 = vmatpush1.msra.mxu0 %v102
  %254 = vmatprep.subr.mxu0 0.0
  %255 = vmatpush1.msra.mxu0 %v103
  %256 = vmatprep.subr.mxu0 0.0
  %257 = vmatpush1.msra.mxu0 %v104
  %258 = vmatprep.subr.mxu0 0.0
  %259 = vmatpush1.msra.mxu0 %v105
  %260 = vmatprep.subr.mxu0 0.0
  %261 = vmatpush1.msra.mxu0 %v106
  %262 = vmatprep.subr.mxu0 0.0
  %263 = vmatpush1.msra.mxu0 %v107
  %264 = vmatprep.subr.mxu0 0.0
  %265 = vmatpush1.msra.mxu0 %v108
  %266 = vmatprep.subr.mxu0 0.0
  %267 = vmatpush1.msra.mxu0 %v109
  %268 = vmatprep.subr.mxu0 0.0
  %269 = vmatpush1.msra.mxu0 %v110
  %270 = vmatprep.subr.mxu0 0.0
  %271 = vmatpush1.msra.mxu0 %v111
  %272 = vmatprep.subr.mxu0 0.0
  %273 = vmatpush1.msra.mxu0 %v112
  %274 = vmatprep.subr.mxu0 0.0
  %275 = vmatpush1.msra.mxu0 %v113
  %276 = vmatprep.subr.mxu0 0.0
  %277 = vmatpush1.msra.mxu0 %v114
  %278 = vmatprep.subr.mxu0 0.0
  %279 = vmatpush1.msra.mxu0 %v115
  %280 = vmatprep.subr.mxu0 0.0
  %281 = vmatpush1.msra.mxu0 %v116
  %282 = vmatprep.subr.mxu0 0.0
  %283 = vmatpush1.msra.mxu0 %v117
  %284 = vmatprep.subr.mxu0 0.0
  %285 = vmatpush1.msra.mxu0 %v118
  %286 = vmatprep.subr.mxu0 0.0
  %287 = vmatpush1.msra.mxu0 %v119
  %288 = vmatprep.subr.mxu0 0.0
  %289 = vmatpush1.msra.mxu0 %v120
  %290 = vmatprep.subr.mxu0 0.0
  %291 = vmatpush1.msra.mxu0 %v121
  %292 = vmatprep.subr.mxu0 0.0
  %293 = vmatpush1.msra.mxu0 %v122
  %294 = vmatprep.subr.mxu0 0.0
  %295 = vmatpush1.msra.mxu0 %v123
  %296 = vmatprep.subr.mxu0 0.0
  %297 = vmatpush1.msra.mxu0 %v124
  %298 = vmatprep.subr.mxu0 0.0
  %299 = vmatpush1.msra.mxu0 %v125
  %300 = vmatprep.mubr.f32.mxu0 %v39
  %301 = vmatmul.mubr.f32.gmra.mrb[0].mxu0 %v38
  %v302 = vpop.f32.mrb[0].mxu0
  %v303 = vadd.f32 0.0, %v302
  %v304 = vpop.f32.mrb[0].mxu0
  %305 = vmatprep.mubr.f32.mxu0 %v47
  %306 = vmatmul.mubr.f32.gmra.mrb[0].mxu0 %v46
  %v307 = vpop.f32.mrb[0].mxu0
  %v308 = vadd.f32 0.0, %v307
  %v309 = vpop.f32.mrb[0].mxu0
  %310 = vmatprep.mubr.f32.mxu0 %v55
  %311 = vmatmul.mubr.f32.gmra.mrb[0].mxu0 %v54
  %v312 = vpop.f32.mrb[0].mxu0
  %v313 = vadd.f32 0.0, %v312
  %v314 = vpop.f32.mrb[0].mxu0
  %315 = vmatprep.mubr.f32.mxu0 %v63
  %316 = vmatmul.mubr.f32.gmra.mrb[0].mxu0 %v62
  %v317 = vpop.f32.mrb[0].mxu0
  %v318 = vadd.f32 0.0, %v317
  %v319 = vpop.f32.mrb[0].mxu0
  %320 = vmatprep.mubr.f32.mxu0 %v71
  %321 = vmatmul.mubr.f32.gmra.mrb[0].mxu0 %v70
  %v322 = vpop.f32.mrb[0].mxu0
  %v323 = vadd.f32 0.0, %v322
  %v324 = vpop.f32.mrb[0].mxu0
  %325 = vmatprep.mubr.f32.mxu0 %v79
  %326 = vmatmul.mubr.f32.gmra.mrb[0].mxu0 %v78
  %v327 = vpop.f32.mrb[0].mxu0
  %v328 = vadd.f32 0.0, %v327
  %v329 = vpop.f32.mrb[0].mxu0
  %330 = vmatprep.mubr.f32.mxu0 %v87
  %331 = vmatmul.mubr.f32.gmra.mrb[0].mxu0 %v86
  %v332 = vpop.f32.mrb[0].mxu0
  %v333 = vadd.f32 0.0, %v332
  %v334 = vpop.f32.mrb[0].mxu0
  %335 = vdwg.mxu0
  %336 = vmatprep.subr.mxu0 0.0
  %337 = vmatpush1.msra.mxu0 %v126
  %338 = vmatprep.subr.mxu0 0.0
  %339 = vmatpush1.msra.mxu0 %v127
  %340 = vmatprep.subr.mxu0 0.0
  %341 = vmatpush1.msra.mxu0 %v128
  %342 = vmatprep.subr.mxu0 0.0
  %343 = vmatpush1.msra.mxu0 %v129
  %344 = vmatprep.subr.mxu0 0.0
  %345 = vmatpush1.msra.mxu0 %v130
  %346 = vmatprep.subr.mxu0 0.0
  %347 = vmatpush1.msra.mxu0 %v131
  %348 = vmatprep.subr.mxu0 0.0
  %349 = vmatpush1.msra.mxu0 %v132
  %350 = vmatprep.subr.mxu0 0.0
  %351 = vmatpush1.msra.mxu0 %v133
  %352 = vmatprep.subr.mxu0 0.0
  %353 = vmatpush1.msra.mxu0 %v134
  %354 = vmatprep.subr.mxu0 0.0
  %355 = vmatpush1.msra.mxu0 %v135
  %356 = vmatprep.subr.mxu0 0.0
  %357 = vmatpush1.msra.mxu0 %v136
  %358 = vmatprep.subr.mxu0 0.0
  %359 = vmatpush1.msra.mxu0 %v137
  %360 = vmatprep.subr.mxu0 0.0
  %361 = vmatpush1.msra.mxu0 %v138
  %362 = vmatprep.subr.mxu0 0.0
  %363 = vmatpush1.msra.mxu0 %v139
  %364 = vmatprep.subr.mxu0 0.0
  %365 = vmatpush1.msra.mxu0 %v140
  %366 = vmatprep.subr.mxu0 0.0
  %367 = vmatpush1.msra.mxu0 %v141
  %368 = vmatprep.subr.mxu0 0.0
  %369 = vmatpush1.msra.mxu0 %v142
  %370 = vmatprep.subr.mxu0 0.0
  %371 = vmatpush1.msra.mxu0 %v143
  %372 = vmatprep.subr.mxu0 0.0
  %373 = vmatpush1.msra.mxu0 %v144
  %374 = vmatprep.subr.mxu0 0.0
  %375 = vmatpush1.msra.mxu0 %v145
  %376 = vmatprep.subr.mxu0 0.0
  %377 = vmatpush1.msra.mxu0 %v146
  %378 = vmatprep.subr.mxu0 0.0
  %379 = vmatpush1.msra.mxu0 %v147
  %380 = vmatprep.subr.mxu0 0.0
  %381 = vmatpush1.msra.mxu0 %v148
  %382 = vmatprep.subr.mxu0 0.0
  %383 = vmatpush1.msra.mxu0 %v149
  %384 = vmatprep.subr.mxu0 0.0
  %385 = vmatpush1.msra.mxu0 %v150
  %386 = vmatprep.subr.mxu0 0.0
  %387 = vmatpush1.msra.mxu0 %v151
  %388 = vmatprep.subr.mxu0 0.0
  %389 = vmatpush1.msra.mxu0 %v152
  %390 = vmatprep.subr.mxu0 0.0
  %391 = vmatpush1.msra.mxu0 %v153
  %392 = vmatprep.subr.mxu0 0.0
  %393 = vmatpush1.msra.mxu0 %v154
  %394 = vmatprep.subr.mxu0 0.0
  %395 = vmatpush1.msra.mxu0 %v155
  %396 = vmatprep.subr.mxu0 0.0
  %397 = vmatpush1.msra.mxu0 %v156
  %398 = vmatprep.subr.mxu0 0.0
  %399 = vmatpush1.msra.mxu0 %v157
  %400 = vmatprep.mubr.f32.mxu0 %v41
  %401 = vmatmul.mubr.f32.gmra.mrb[0].mxu0 %v40
  %v402 = vpop.f32.mrb[0].mxu0
  %v403 = vadd.f32 %v303, %v402
  %v404 = vpop.f32.mrb[0].mxu0
  %405 = vmatprep.mubr.f32.mxu0 %v49
  %406 = vmatmul.mubr.f32.gmra.mrb[0].mxu0 %v48
  %v407 = vpop.f32.mrb[0].mxu0
  %v408 = vadd.f32 %v308, %v407
  %v409 = vpop.f32.mrb[0].mxu0
  %410 = vmatprep.mubr.f32.mxu0 %v57
  %411 = vmatmul.mubr.f32.gmra.mrb[0].mxu0 %v56
  %v412 = vpop.f32.mrb[0].mxu0
  %v413 = vadd.f32 %v313, %v412
  %v414 = vpop.f32.mrb[0].mxu0
  %415 = vmatprep.mubr.f32.mxu0 %v65
  %416 = vmatmul.mubr.f32.gmra.mrb[0].mxu0 %v64
  %v417 = vpop.f32.mrb[0].mxu0
  %v418 = vadd.f32 %v318, %v417
  %v419 = vpop.f32.mrb[0].mxu0
  %420 = vmatprep.mubr.f32.mxu0 %v73
  %421 = vmatmul.mubr.f32.gmra.mrb[0].mxu0 %v72
  %v422 = vpop.f32.mrb[0].mxu0
  %v423 = vadd.f32 %v323, %v422
  %v424 = vpop.f32.mrb[0].mxu0
  %425 = vmatprep.mubr.f32.mxu0 %v81
  %426 = vmatmul.mubr.f32.gmra.mrb[0].mxu0 %v80
  %v427 = vpop.f32.mrb[0].mxu0
  %v428 = vadd.f32 %v328, %v427
  %v429 = vpop.f32.mrb[0].mxu0
  %430 = vmatprep.mubr.f32.mxu0 %v89
  %431 = vmatmul.mubr.f32.gmra.mrb[0].mxu0 %v88
  %v432 = vpop.f32.mrb[0].mxu0
  %v433 = vadd.f32 %v333, %v432
  %v434 = vpop.f32.mrb[0].mxu0
  %435 = vdwg.mxu0
  %436 = vmatprep.subr.mxu0 0.0
  %437 = vmatpush1.msra.mxu0 %v158
  %438 = vmatprep.subr.mxu0 0.0
  %439 = vmatpush1.msra.mxu0 %v159
  %440 = vmatprep.subr.mxu0 0.0
  %441 = vmatpush1.msra.mxu0 %v160
  %442 = vmatprep.subr.mxu0 0.0
  %443 = vmatpush1.msra.mxu0 %v161
  %444 = vmatprep.subr.mxu0 0.0
  %445 = vmatpush1.msra.mxu0 %v162
  %446 = vmatprep.subr.mxu0 0.0
  %447 = vmatpush1.msra.mxu0 %v163
  %448 = vmatprep.subr.mxu0 0.0
  %449 = vmatpush1.msra.mxu0 %v164
  %450 = vmatprep.subr.mxu0 0.0
  %451 = vmatpush1.msra.mxu0 %v165
  %452 = vmatprep.subr.mxu0 0.0
  %453 = vmatpush1.msra.mxu0 %v166
  %454 = vmatprep.subr.mxu0 0.0
  %455 = vmatpush1.msra.mxu0 %v167
  %456 = vmatprep.subr.mxu0 0.0
  %457 = vmatpush1.msra.mxu0 %v168
  %458 = vmatprep.subr.mxu0 0.0
  %459 = vmatpush1.msra.mxu0 %v169
  %460 = vmatprep.subr.mxu0 0.0
  %461 = vmatpush1.msra.mxu0 %v170
  %462 = vmatprep.subr.mxu0 0.0
  %463 = vmatpush1.msra.mxu0 %v171
  %464 = vmatprep.subr.mxu0 0.0
  %465 = vmatpush1.msra.mxu0 %v172
  %466 = vmatprep.subr.mxu0 0.0
  %467 = vmatpush1.msra.mxu0 %v173
  %468 = vmatprep.subr.mxu0 0.0
  %469 = vmatpush1.msra.mxu0 %v174
  %470 = vmatprep.subr.mxu0 0.0
  %471 = vmatpush1.msra.mxu0 %v175
  %472 = vmatprep.subr.mxu0 0.0
  %473 = vmatpush1.msra.mxu0 %v176
  %474 = vmatprep.subr.mxu0 0.0
  %475 = vmatpush1.msra.mxu0 %v177
  %476 = vmatprep.subr.mxu0 0.0
  %477 = vmatpush1.msra.mxu0 %v178
  %478 = vmatprep.subr.mxu0 0.0
  %479 = vmatpush1.msra.mxu0 %v179
  %480 = vmatprep.subr.mxu0 0.0
  %481 = vmatpush1.msra.mxu0 %v180
  %482 = vmatprep.subr.mxu0 0.0
  %483 = vmatpush1.msra.mxu0 %v181
  %484 = vmatprep.subr.mxu0 0.0
  %485 = vmatpush1.msra.mxu0 %v182
  %486 = vmatprep.subr.mxu0 0.0
  %487 = vmatpush1.msra.mxu0 %v183
  %488 = vmatprep.subr.mxu0 0.0
  %489 = vmatpush1.msra.mxu0 %v184
  %490 = vmatprep.subr.mxu0 0.0
  %491 = vmatpush1.msra.mxu0 %v185
  %492 = vmatprep.subr.mxu0 0.0
  %493 = vmatpush1.msra.mxu0 %v186
  %494 = vmatprep.subr.mxu0 0.0
  %495 = vmatpush1.msra.mxu0 %v187
  %496 = vmatprep.subr.mxu0 0.0
  %497 = vmatpush1.msra.mxu0 %v188
  %498 = vmatprep.subr.mxu0 0.0
  %499 = vmatpush1.msra.mxu0 %v189
  %500 = vmatprep.mubr.f32.mxu0 %v43
  %501 = vmatmul.mubr.f32.gmra.mrb[0].mxu0 %v42
  %v502 = vpop.f32.mrb[0].mxu0
  %v503 = vadd.f32 %v403, %v502
  %v504 = vpop.f32.mrb[0].mxu0
  %505 = vmatprep.mubr.f32.mxu0 %v51
  %506 = vmatmul.mubr.f32.gmra.mrb[0].mxu0 %v50
  %v507 = vpop.f32.mrb[0].mxu0
  %v508 = vadd.f32 %v408, %v507
  %v509 = vpop.f32.mrb[0].mxu0
  %510 = vmatprep.mubr.f32.mxu0 %v59
  %511 = vmatmul.mubr.f32.gmra.mrb[0].mxu0 %v58
  %v512 = vpop.f32.mrb[0].mxu0
  %v513 = vadd.f32 %v413, %v512
  %v514 = vpop.f32.mrb[0].mxu0
  %515 = vmatprep.mubr.f32.mxu0 %v67
  %516 = vmatmul.mubr.f32.gmra.mrb[0].mxu0 %v66
  %v517 = vpop.f32.mrb[0].mxu0
  %v518 = vadd.f32 %v418, %v517
  %v519 = vpop.f32.mrb[0].mxu0
  %520 = vmatprep.mubr.f32.mxu0 %v75
  %521 = vmatmul.mubr.f32.gmra.mrb[0].mxu0 %v74
  %v522 = vpop.f32.mrb[0].mxu0
  %v523 = vadd.f32 %v423, %v522
  %v524 = vpop.f32.mrb[0].mxu0
  %525 = vmatprep.mubr.f32.mxu0 %v83
  %526 = vmatmul.mubr.f32.gmra.mrb[0].mxu0 %v82
  %v527 = vpop.f32.mrb[0].mxu0
  %v528 = vadd.f32 %v428, %v527
  %v529 = vpop.f32.mrb[0].mxu0
  %530 = vmatprep.mubr.f32.mxu0 %v91
  %531 = vmatmul.mubr.f32.gmra.mrb[0].mxu0 %v90
  %v532 = vpop.f32.mrb[0].mxu0
  %v533 = vadd.f32 %v433, %v532
  %v534 = vpop.f32.mrb[0].mxu0
  %535 = vdwg.mxu0
  %536 = vmatprep.subr.mxu0 0.0
  %537 = vmatpush1.msra.mxu0 %v190
  %538 = vmatprep.subr.mxu0 0.0
  %539 = vmatpush1.msra.mxu0 %v191
  %540 = vmatprep.subr.mxu0 0.0
  %541 = vmatpush1.msra.mxu0 %v192
  %542 = vmatprep.subr.mxu0 0.0
  %543 = vmatpush1.msra.mxu0 %v193
  %544 = vmatprep.subr.mxu0 0.0
  %545 = vmatpush1.msra.mxu0 %v194
  %546 = vmatprep.subr.mxu0 0.0
  %547 = vmatpush1.msra.mxu0 %v195
  %548 = vmatprep.subr.mxu0 0.0
  %549 = vmatpush1.msra.mxu0 %v196
  %550 = vmatprep.subr.mxu0 0.0
  %551 = vmatpush1.msra.mxu0 %v197
  %552 = vmatprep.subr.mxu0 0.0
  %553 = vmatpush1.msra.mxu0 %v198
  %554 = vmatprep.subr.mxu0 0.0
  %555 = vmatpush1.msra.mxu0 %v199
  %556 = vmatprep.subr.mxu0 0.0
  %557 = vmatpush1.msra.mxu0 %v200
  %558 = vmatprep.subr.mxu0 0.0
  %559 = vmatpush1.msra.mxu0 %v201
  %560 = vmatprep.subr.mxu0 0.0
  %561 = vmatpush1.msra.mxu0 %v202
  %562 = vmatprep.subr.mxu0 0.0
  %563 = vmatpush1.msra.mxu0 %v203
  %564 = vmatprep.subr.mxu0 0.0
  %565 = vmatpush1.msra.mxu0 %v204
  %566 = vmatprep.subr.mxu0 0.0
  %567 = vmatpush1.msra.mxu0 %v205
  %568 = vmatprep.subr.mxu0 0.0
  %569 = vmatpush1.msra.mxu0 %v206
  %570 = vmatprep.subr.mxu0 0.0
  %571 = vmatpush1.msra.mxu0 %v207
  %572 = vmatprep.subr.mxu0 0.0
  %573 = vmatpush1.msra.mxu0 %v208
  %574 = vmatprep.subr.mxu0 0.0
  %575 = vmatpush1.msra.mxu0 %v209
  %576 = vmatprep.subr.mxu0 0.0
  %577 = vmatpush1.msra.mxu0 %v210
  %578 = vmatprep.subr.mxu0 0.0
  %579 = vmatpush1.msra.mxu0 %v211
  %580 = vmatprep.subr.mxu0 0.0
  %581 = vmatpush1.msra.mxu0 %v212
  %582 = vmatprep.subr.mxu0 0.0
  %583 = vmatpush1.msra.mxu0 %v213
  %584 = vmatprep.subr.mxu0 0.0
  %585 = vmatpush1.msra.mxu0 0.0
  %586 = vmatprep.subr.mxu0 0.0
  %587 = vmatpush1.msra.mxu0 0.0
  %588 = vmatprep.subr.mxu0 0.0
  %589 = vmatpush1.msra.mxu0 0.0
  %590 = vmatprep.subr.mxu0 0.0
  %591 = vmatpush1.msra.mxu0 0.0
  %592 = vmatprep.subr.mxu0 0.0
  %593 = vmatpush1.msra.mxu0 0.0
  %594 = vmatprep.subr.mxu0 0.0
  %595 = vmatpush1.msra.mxu0 0.0
  %596 = vmatprep.subr.mxu0 0.0
  %597 = vmatpush1.msra.mxu0 0.0
  %598 = vmatprep.subr.mxu0 0.0
  %599 = vmatpush1.msra.mxu0 0.0
  %600 = vmatprep.mubr.f32.mxu0 %v216
  %601 = vmatmul.mubr.f32.gmra.mrb[0].mxu0 %v44
  %v602 = vpop.f32.mrb[0].mxu0
  %v603 = vadd.f32 %v503, %v602
  %v604 = vpop.f32.mrb[0].mxu0
  %605 = vmatprep.mubr.f32.mxu0 %v219
  %606 = vmatmul.mubr.f32.gmra.mrb[0].mxu0 %v52
  %v607 = vpop.f32.mrb[0].mxu0
  %v608 = vadd.f32 %v508, %v607
  %v609 = vpop.f32.mrb[0].mxu0
  %610 = vmatprep.mubr.f32.mxu0 %v222
  %611 = vmatmul.mubr.f32.gmra.mrb[0].mxu0 %v60
  %v612 = vpop.f32.mrb[0].mxu0
  %v613 = vadd.f32 %v513, %v612
  %v614 = vpop.f32.mrb[0].mxu0
  %615 = vmatprep.mubr.f32.mxu0 %v225
  %616 = vmatmul.mubr.f32.gmra.mrb[0].mxu0 %v68
  %v617 = vpop.f32.mrb[0].mxu0
  %v618 = vadd.f32 %v518, %v617
  %v619 = vpop.f32.mrb[0].mxu0
  %620 = vmatprep.mubr.f32.mxu0 %v228
  %621 = vmatmul.mubr.f32.gmra.mrb[0].mxu0 %v76
  %v622 = vpop.f32.mrb[0].mxu0
  %v623 = vadd.f32 %v523, %v622
  %v624 = vpop.f32.mrb[0].mxu0
  %625 = vmatprep.mubr.f32.mxu0 %v231
  %626 = vmatmul.mubr.f32.gmra.mrb[0].mxu0 %v84
  %v627 = vpop.f32.mrb[0].mxu0
  %v628 = vadd.f32 %v528, %v627
  %v629 = vpop.f32.mrb[0].mxu0
  %630 = vmatprep.mubr.f32.mxu0 %v234
  %631 = vmatmul.mubr.f32.gmra.mrb[0].mxu0 %v92
  %v632 = vpop.f32.mrb[0].mxu0
  %v633 = vadd.f32 %v533, %v632
  %v634 = vpop.f32.mrb[0].mxu0
  %635 = vdwg.mxu0
  %v636 = vadd.f32 %v603, %v608
  %v637 = vadd.f32 %v636, %v613
  %v638 = vadd.f32 %v637, %v618
  %v639 = vadd.f32 %v638, %v623
  %v640 = vadd.f32 %v639, %v628
  %vm641 = vcmask 1040384
  %v642 = vsel %vm641, %v633, 0.0
  %v643 = vadd.f32 %v640, %v642
  %v644 = vrot.slane %v643, 4
  %v645 = vadd.f32 %v643, %v644
  %v646 = vrot.slane %v645, 2
  %v647 = vadd.f32 %v645, %v646
  %v648 = vrot.slane %v647, 1
  %v649 = vadd.f32 %v647, %v648
  %v650 = vrcp.pop 49.0
  %v651 = vmul.f32 %v649, %v650
  %v652 = vmul.f32 %v603, %v603
  %v653 = vmul.f32 %v608, %v608
  %v654 = vmul.f32 %v613, %v613
  %v655 = vmul.f32 %v618, %v618
  %v656 = vmul.f32 %v623, %v623
  %v657 = vmul.f32 %v628, %v628
  %v658 = vmul.f32 %v633, %v633
  %v659 = vadd.f32 %v652, %v653
  %v660 = vadd.f32 %v659, %v654
  %v661 = vadd.f32 %v660, %v655
  %v662 = vadd.f32 %v661, %v656
  %v663 = vadd.f32 %v662, %v657
  %v664 = vsel %vm641, %v658, 0.0
  %v665 = vadd.f32 %v663, %v664
  %v666 = vrot.slane %v665, 4
  %v667 = vadd.f32 %v665, %v666
  %v668 = vrot.slane %v667, 2
  %v669 = vadd.f32 %v667, %v668
  %v670 = vrot.slane %v669, 1
  %v671 = vadd.f32 %v669, %v670
  %v672 = vmul.f32 %v671, %v650
  %v673 = vmul.f32 %v651, %v651
  %v674 = vsub.f32 %v672, %v673
  %v675 = vld [vmem:[%s2] sm:$0x1]
  %v676 = vadd.f32 %v674, 1e-05
  %v677 = vrsqrt.pop %v676
  %v678 = vmul.f32 %v675, %v677
  %v679 = vld [vmem:[%s3] sm:$0x1]
  %v680 = vmul.f32 %v651, %v678
  %v681 = vsub.f32 %v679, %v680
  %v683 = vlaneseq
  %v684 = vshrl.u32 %v683, 7
  %v685 = vsub.s32 0, %v684
  %v686 = vrot.slane %v678, %v685
  %v688 = vmul.f32 %v603, %v686
  %v689 = vmul.f32 %v608, %v686
  %v690 = vmul.f32 %v613, %v686
  %v691 = vmul.f32 %v618, %v686
  %v692 = vmul.f32 %v623, %v686
  %v693 = vmul.f32 %v628, %v686
  %v694 = vmul.f32 %v633, %v686
  %v696 = vlaneseq
  %v697 = vshrl.u32 %v696, 7
  %v698 = vsub.s32 0, %v697
  %v699 = vrot.slane %v681, %v698
  %v701 = vadd.f32 %v688, %v699
  %v702 = vadd.f32 %v689, %v699
  %v703 = vadd.f32 %v690, %v699
  %v704 = vadd.f32 %v691, %v699
  %v705 = vadd.f32 %v692, %v699
  %v706 = vadd.f32 %v693, %v699
  %v707 = vadd.f32 %v694, %v699
  %v708 = vmax.f32 %v701, 0.0
  %v709 = vmax.f32 %v702, 0.0
  %v710 = vmax.f32 %v703, 0.0
  %v711 = vmax.f32 %v704, 0.0
  %v712 = vmax.f32 %v705, 0.0
  %v713 = vmax.f32 %v706, 0.0
  %v714 = vmax.f32 %v707, 0.0
  %v722 = vcombine.high %v708, %v708
  %v724 = vunpack.c.l.s4 1966171168
  %v725 = vunpack.c.0.s8 %v724
  %v726 = vlaneseq
  %v727 = vshrl.u32 %v726, 7
  %v728 = vsub.s32 %v725, %v727
  %v729 = vrot.slane %v708, %v728
  %v731 = vunpack.c.l.s4 1966171168
  %v732 = vunpack.c.0.s8 %v731
  %v733 = vlaneseq
  %v734 = vshrl.u32 %v733, 7
  %v735 = vsub.s32 %v732, %v734
  %v736 = vrot.slane %v722, %v735
  %v737 = vcombine.high %v729, %v729
  %v738 = vcombine.high %v736, %v736
  %v740 = vunpack.c.l.s4 1966171168
  %v741 = vunpack.c.0.s8 %v740
  %v742 = vlaneseq
  %v743 = vshrl.u32 %v742, 7
  %v744 = vsub.s32 %v741, %v743
  %v745 = vrot.slane %v729, %v744
  %v747 = vunpack.c.l.s4 1966171168
  %v748 = vunpack.c.0.s8 %v747
  %v749 = vlaneseq
  %v750 = vshrl.u32 %v749, 7
  %v751 = vsub.s32 %v748, %v750
  %v752 = vrot.slane %v736, %v751
  %v754 = vunpack.c.l.s4 1966171168
  %v755 = vunpack.c.0.s8 %v754
  %v756 = vlaneseq
  %v757 = vshrl.u32 %v756, 7
  %v758 = vsub.s32 %v755, %v757
  %v759 = vrot.slane %v737, %v758
  %v761 = vunpack.c.l.s4 1966171168
  %v762 = vunpack.c.0.s8 %v761
  %v763 = vlaneseq
  %v764 = vshrl.u32 %v763, 7
  %v765 = vsub.s32 %v762, %v764
  %v766 = vrot.slane %v738, %v765
  %v767 = vcombine.high %v745, %v745
  %v768 = vcombine.high %v752, %v752
  %v769 = vcombine.high %v759, %v759
  %v770 = vcombine.high %v766, %v766
  %v771 = vcombine.high %v709, %v709
  %v773 = vunpack.c.l.s4 1966171168
  %v774 = vunpack.c.0.s8 %v773
  %v775 = vlaneseq
  %v776 = vshrl.u32 %v775, 7
  %v777 = vsub.s32 %v774, %v776
  %v778 = vrot.slane %v709, %v777
  %v780 = vunpack.c.l.s4 1966171168
  %v781 = vunpack.c.0.s8 %v780
  %v782 = vlaneseq
  %v783 = vshrl.u32 %v782, 7
  %v784 = vsub.s32 %v781, %v783
  %v785 = vrot.slane %v771, %v784
  %v786 = vcombine.high %v778, %v778
  %v787 = vcombine.high %v785, %v785
  %v789 = vunpack.c.l.s4 1966171168
  %v790 = vunpack.c.0.s8 %v789
  %v791 = vlaneseq
  %v792 = vshrl.u32 %v791, 7
  %v793 = vsub.s32 %v790, %v792
  %v794 = vrot.slane %v778, %v793
  %v796 = vunpack.c.l.s4 1966171168
  %v797 = vunpack.c.0.s8 %v796
  %v798 = vlaneseq
  %v799 = vshrl.u32 %v798, 7
  %v800 = vsub.s32 %v797, %v799
  %v801 = vrot.slane %v785, %v800
  %v803 = vunpack.c.l.s4 1966171168
  %v804 = vunpack.c.0.s8 %v803
  %v805 = vlaneseq
  %v806 = vshrl.u32 %v805, 7
  %v807 = vsub.s32 %v804, %v806
  %v808 = vrot.slane %v786, %v807
  %v810 = vunpack.c.l.s4 1966171168
  %v811 = vunpack.c.0.s8 %v810
  %v812 = vlaneseq
  %v813 = vshrl.u32 %v812, 7
  %v814 = vsub.s32 %v811, %v813
  %v815 = vrot.slane %v787, %v814
  %v816 = vcombine.high %v794, %v794
  %v817 = vcombine.high %v801, %v801
  %v818 = vcombine.high %v808, %v808
  %v819 = vcombine.high %v815, %v815
  %v820 = vcombine.high %v710, %v710
  %v822 = vunpack.c.l.s4 1966171168
  %v823 = vunpack.c.0.s8 %v822
  %v824 = vlaneseq
  %v825 = vshrl.u32 %v824, 7
  %v826 = vsub.s32 %v823, %v825
  %v827 = vrot.slane %v710, %v826
  %v829 = vunpack.c.l.s4 1966171168
  %v830 = vunpack.c.0.s8 %v829
  %v831 = vlaneseq
  %v832 = vshrl.u32 %v831, 7
  %v833 = vsub.s32 %v830, %v832
  %v834 = vrot.slane %v820, %v833
  %v835 = vcombine.high %v827, %v827
  %v836 = vcombine.high %v834, %v834
  %v838 = vunpack.c.l.s4 1966171168
  %v839 = vunpack.c.0.s8 %v838
  %v840 = vlaneseq
  %v841 = vshrl.u32 %v840, 7
  %v842 = vsub.s32 %v839, %v841
  %v843 = vrot.slane %v827, %v842
  %v845 = vunpack.c.l.s4 1966171168
  %v846 = vunpack.c.0.s8 %v845
  %v847 = vlaneseq
  %v848 = vshrl.u32 %v847, 7
  %v849 = vsub.s32 %v846, %v848
  %v850 = vrot.slane %v834, %v849
  %v852 = vunpack.c.l.s4 1966171168
  %v853 = vunpack.c.0.s8 %v852
  %v854 = vlaneseq
  %v855 = vshrl.u32 %v854, 7
  %v856 = vsub.s32 %v853, %v855
  %v857 = vrot.slane %v835, %v856
  %v859 = vunpack.c.l.s4 1966171168
  %v860 = vunpack.c.0.s8 %v859
  %v861 = vlaneseq
  %v862 = vshrl.u32 %v861, 7
  %v863 = vsub.s32 %v860, %v862
  %v864 = vrot.slane %v836, %v863
  %v865 = vcombine.high %v843, %v843
  %v866 = vcombine.high %v850, %v850
  %v867 = vcombine.high %v857, %v857
  %v868 = vcombine.high %v864, %v864
  %v869 = vcombine.high %v711, %v711
  %v871 = vunpack.c.l.s4 1966171168
  %v872 = vunpack.c.0.s8 %v871
  %v873 = vlaneseq
  %v874 = vshrl.u32 %v873, 7
  %v875 = vsub.s32 %v872, %v874
  %v876 = vrot.slane %v711, %v875
  %v878 = vunpack.c.l.s4 1966171168
  %v879 = vunpack.c.0.s8 %v878
  %v880 = vlaneseq
  %v881 = vshrl.u32 %v880, 7
  %v882 = vsub.s32 %v879, %v881
  %v883 = vrot.slane %v869, %v882
  %v884 = vcombine.high %v876, %v876
  %v885 = vcombine.high %v883, %v883
  %v887 = vunpack.c.l.s4 1966171168
  %v888 = vunpack.c.0.s8 %v887
  %v889 = vlaneseq
  %v890 = vshrl.u32 %v889, 7
  %v891 = vsub.s32 %v888, %v890
  %v892 = vrot.slane %v876, %v891
  %v894 = vunpack.c.l.s4 1966171168
  %v895 = vunpack.c.0.s8 %v894
  %v896 = vlaneseq
  %v897 = vshrl.u32 %v896, 7
  %v898 = vsub.s32 %v895, %v897
  %v899 = vrot.slane %v883, %v898
  %v901 = vunpack.c.l.s4 1966171168
  %v902 = vunpack.c.0.s8 %v901
  %v903 = vlaneseq
  %v904 = vshrl.u32 %v903, 7
  %v905 = vsub.s32 %v902, %v904
  %v906 = vrot.slane %v884, %v905
  %v908 = vunpack.c.l.s4 1966171168
  %v909 = vunpack.c.0.s8 %v908
  %v910 = vlaneseq
  %v911 = vshrl.u32 %v910, 7
  %v912 = vsub.s32 %v909, %v911
  %v913 = vrot.slane %v885, %v912
  %v914 = vcombine.high %v892, %v892
  %v915 = vcombine.high %v899, %v899
  %v916 = vcombine.high %v906, %v906
  %v917 = vcombine.high %v913, %v913
  %v918 = vcombine.high %v712, %v712
  %v920 = vunpack.c.l.s4 1966171168
  %v921 = vunpack.c.0.s8 %v920
  %v922 = vlaneseq
  %v923 = vshrl.u32 %v922, 7
  %v924 = vsub.s32 %v921, %v923
  %v925 = vrot.slane %v712, %v924
  %v927 = vunpack.c.l.s4 1966171168
  %v928 = vunpack.c.0.s8 %v927
  %v929 = vlaneseq
  %v930 = vshrl.u32 %v929, 7
  %v931 = vsub.s32 %v928, %v930
  %v932 = vrot.slane %v918, %v931
  %v933 = vcombine.high %v925, %v925
  %v934 = vcombine.high %v932, %v932
  %v936 = vunpack.c.l.s4 1966171168
  %v937 = vunpack.c.0.s8 %v936
  %v938 = vlaneseq
  %v939 = vshrl.u32 %v938, 7
  %v940 = vsub.s32 %v937, %v939
  %v941 = vrot.slane %v925, %v940
  %v943 = vunpack.c.l.s4 1966171168
  %v944 = vunpack.c.0.s8 %v943
  %v945 = vlaneseq
  %v946 = vshrl.u32 %v945, 7
  %v947 = vsub.s32 %v944, %v946
  %v948 = vrot.slane %v932, %v947
  %v950 = vunpack.c.l.s4 1966171168
  %v951 = vunpack.c.0.s8 %v950
  %v952 = vlaneseq
  %v953 = vshrl.u32 %v952, 7
  %v954 = vsub.s32 %v951, %v953
  %v955 = vrot.slane %v933, %v954
  %v957 = vunpack.c.l.s4 1966171168
  %v958 = vunpack.c.0.s8 %v957
  %v959 = vlaneseq
  %v960 = vshrl.u32 %v959, 7
  %v961 = vsub.s32 %v958, %v960
  %v962 = vrot.slane %v934, %v961
  %v963 = vcombine.high %v941, %v941
  %v964 = vcombine.high %v948, %v948
  %v965 = vcombine.high %v955, %v955
  %v966 = vcombine.high %v962, %v962
  %v967 = vcombine.high %v713, %v713
  %v969 = vunpack.c.l.s4 1966171168
  %v970 = vunpack.c.0.s8 %v969
  %v971 = vlaneseq
  %v972 = vshrl.u32 %v971, 7
  %v973 = vsub.s32 %v970, %v972
  %v974 = vrot.slane %v713, %v973
  %v976 = vunpack.c.l.s4 1966171168
  %v977 = vunpack.c.0.s8 %v976
  %v978 = vlaneseq
  %v979 = vshrl.u32 %v978, 7
  %v980 = vsub.s32 %v977, %v979
  %v981 = vrot.slane %v967, %v980
  %v982 = vcombine.high %v974, %v974
  %v983 = vcombine.high %v981, %v981
  %v985 = vunpack.c.l.s4 1966171168
  %v986 = vunpack.c.0.s8 %v985
  %v987 = vlaneseq
  %v988 = vshrl.u32 %v987, 7
  %v989 = vsub.s32 %v986, %v988
  %v990 = vrot.slane %v974, %v989
  %v992 = vunpack.c.l.s4 1966171168
  %v993 = vunpack.c.0.s8 %v992
  %v994 = vlaneseq
  %v995 = vshrl.u32 %v994, 7
  %v996 = vsub.s32 %v993, %v995
  %v997 = vrot.slane %v981, %v996
  %v999 = vunpack.c.l.s4 1966171168
  %v1000 = vunpack.c.0.s8 %v999
  %v1001 = vlaneseq
  %v1002 = vshrl.u32 %v1001, 7
  %v1003 = vsub.s32 %v1000, %v1002
  %v1004 = vrot.slane %v982, %v1003
  %v1006 = vunpack.c.l.s4 1966171168
  %v1007 = vunpack.c.0.s8 %v1006
  %v1008 = vlaneseq
  %v1009 = vshrl.u32 %v1008, 7
  %v1010 = vsub.s32 %v1007, %v1009
  %v1011 = vrot.slane %v983, %v1010
  %v1012 = vcombine.high %v990, %v990
  %v1013 = vcombine.high %v997, %v997
  %v1014 = vcombine.high %v1004, %v1004
  %v1015 = vcombine.high %v1011, %v1011
  %v1017 = vunpack.c.l.s4 1966171168
  %v1018 = vunpack.c.0.s8 %v1017
  %v1019 = vlaneseq
  %v1020 = vshrl.u32 %v1019, 7
  %v1021 = vsub.s32 %v1018, %v1020
  %v1022 = vrot.slane %v714, %v1021
  %v1024 = vunpack.c.l.s4 1966171168
  %v1025 = vunpack.c.0.s8 %v1024
  %v1026 = vlaneseq
  %v1027 = vshrl.u32 %v1026, 7
  %v1028 = vsub.s32 %v1025, %v1027
  %v1029 = vrot.slane %v1022, %v1028
  %v1030 = vcombine.low %v745, %v759
  %v1031 = vcombine.low %v767, %v769
  %v1032 = vcombine.low %v752, %v766
  %v1034 = vunpack.c.l.s4 1966171168
  %v1035 = vunpack.c.0.s8 %v1034
  %v1036 = vlaneseq
  %v1037 = vshrl.u32 %v1036, 7
  %v1038 = vsub.s32 %v1035, %v1037
  %v1039 = vrot.slane %v1030, %v1038
  %v1041 = vunpack.c.l.s4 1966171168
  %v1042 = vunpack.c.0.s8 %v1041
  %v1043 = vlaneseq
  %v1044 = vshrl.u32 %v1043, 7
  %v1045 = vsub.s32 %v1042, %v1044
  %v1046 = vrot.slane %v1031, %v1045
  %v1048 = vunpack.c.l.s4 1966171168
  %v1049 = vunpack.c.0.s8 %v1048
  %v1050 = vlaneseq
  %v1051 = vshrl.u32 %v1050, 7
  %v1052 = vsub.s32 %v1049, %v1051
  %v1053 = vrot.slane %v1032, %v1052
  %v1055 = vunpack.c.l.s4 1966171168
  %v1056 = vunpack.c.0.s8 %v1055
  %v1057 = vlaneseq
  %v1058 = vshrl.u32 %v1057, 7
  %v1059 = vsub.s32 %v1056, %v1058
  %v1060 = vrot.slane %v768, %v1059
  %v1061 = vcombine.low %v1039, %v1046
  %v1062 = vcombine.low %v1053, %v1060
  %v1064 = vunpack.c.l.s4 1966171168
  %v1065 = vunpack.c.0.s8 %v1064
  %v1066 = vlaneseq
  %v1067 = vshrl.u32 %v1066, 7
  %v1068 = vsub.s32 %v1065, %v1067
  %v1069 = vrot.slane %v1061, %v1068
  %v1071 = vunpack.c.l.s4 1966171168
  %v1072 = vunpack.c.0.s8 %v1071
  %v1073 = vlaneseq
  %v1074 = vshrl.u32 %v1073, 7
  %v1075 = vsub.s32 %v1072, %v1074
  %v1076 = vrot.slane %v1062, %v1075
  %v1077 = vcombine.low %v1069, %v1076
  %v1078 = vcombine.low %v770, %v794
  %v1079 = vcombine.low %v808, %v816
  %v1080 = vcombine.low %v818, %v801
  %v1082 = vunpack.c.l.s4 1966171168
  %v1083 = vunpack.c.0.s8 %v1082
  %v1084 = vlaneseq
  %v1085 = vshrl.u32 %v1084, 7
  %v1086 = vsub.s32 %v1083, %v1085
  %v1087 = vrot.slane %v1078, %v1086
  %v1089 = vunpack.c.l.s4 1966171168
  %v1090 = vunpack.c.0.s8 %v1089
  %v1091 = vlaneseq
  %v1092 = vshrl.u32 %v1091, 7
  %v1093 = vsub.s32 %v1090, %v1092
  %v1094 = vrot.slane %v1079, %v1093
  %v1096 = vunpack.c.l.s4 1966171168
  %v1097 = vunpack.c.0.s8 %v1096
  %v1098 = vlaneseq
  %v1099 = vshrl.u32 %v1098, 7
  %v1100 = vsub.s32 %v1097, %v1099
  %v1101 = vrot.slane %v1080, %v1100
  %v1103 = vunpack.c.l.s4 1966171168
  %v1104 = vunpack.c.0.s8 %v1103
  %v1105 = vlaneseq
  %v1106 = vshrl.u32 %v1105, 7
  %v1107 = vsub.s32 %v1104, %v1106
  %v1108 = vrot.slane %v815, %v1107
  %v1109 = vcombine.low %v1087, %v1094
  %v1110 = vcombine.low %v1101, %v1108
  %v1112 = vunpack.c.l.s4 1966171168
  %v1113 = vunpack.c.0.s8 %v1112
  %v1114 = vlaneseq
  %v1115 = vshrl.u32 %v1114, 7
  %v1116 = vsub.s32 %v1113, %v1115
  %v1117 = vrot.slane %v1109, %v1116
  %v1119 = vunpack.c.l.s4 1966171168
  %v1120 = vunpack.c.0.s8 %v1119
  %v1121 = vlaneseq
  %v1122 = vshrl.u32 %v1121, 7
  %v1123 = vsub.s32 %v1120, %v1122
  %v1124 = vrot.slane %v1110, %v1123
  %v1125 = vcombine.low %v1117, %v1124
  %v1126 = vcombine.low %v817, %v819
  %v1127 = vcombine.low %v843, %v857
  %v1128 = vcombine.low %v865, %v867
  %v1130 = vunpack.c.l.s4 1966171168
  %v1131 = vunpack.c.0.s8 %v1130
  %v1132 = vlaneseq
  %v1133 = vshrl.u32 %v1132, 7
  %v1134 = vsub.s32 %v1131, %v1133
  %v1135 = vrot.slane %v1126, %v1134
  %v1137 = vunpack.c.l.s4 1966171168
  %v1138 = vunpack.c.0.s8 %v1137
  %v1139 = vlaneseq
  %v1140 = vshrl.u32 %v1139, 7
  %v1141 = vsub.s32 %v1138, %v1140
  %v1142 = vrot.slane %v1127, %v1141
  %v1144 = vunpack.c.l.s4 1966171168
  %v1145 = vunpack.c.0.s8 %v1144
  %v1146 = vlaneseq
  %v1147 = vshrl.u32 %v1146, 7
  %v1148 = vsub.s32 %v1145, %v1147
  %v1149 = vrot.slane %v1128, %v1148
  %v1151 = vunpack.c.l.s4 1966171168
  %v1152 = vunpack.c.0.s8 %v1151
  %v1153 = vlaneseq
  %v1154 = vshrl.u32 %v1153, 7
  %v1155 = vsub.s32 %v1152, %v1154
  %v1156 = vrot.slane %v850, %v1155
  %v1157 = vcombine.low %v1135, %v1142
  %v1158 = vcombine.low %v1149, %v1156
  %v1160 = vunpack.c.l.s4 1966171168
  %v1161 = vunpack.c.0.s8 %v1160
  %v1162 = vlaneseq
  %v1163 = vshrl.u32 %v1162, 7
  %v1164 = vsub.s32 %v1161, %v1163
  %v1165 = vrot.slane %v1157, %v1164
  %v1167 = vunpack.c.l.s4 1966171168
  %v1168 = vunpack.c.0.s8 %v1167
  %v1169 = vlaneseq
  %v1170 = vshrl.u32 %v1169, 7
  %v1171 = vsub.s32 %v1168, %v1170
  %v1172 = vrot.slane %v1158, %v1171
  %v1173 = vcombine.low %v1165, %v1172
  %v1174 = vcombine.low %v864, %v866
  %v1175 = vcombine.low %v868, %v892
  %v1176 = vcombine.low %v906, %v914
  %v1178 = vunpack.c.l.s4 1966171168
  %v1179 = vunpack.c.0.s8 %v1178
  %v1180 = vlaneseq
  %v1181 = vshrl.u32 %v1180, 7
  %v1182 = vsub.s32 %v1179, %v1181
  %v1183 = vrot.slane %v1174, %v1182
  %v1185 = vunpack.c.l.s4 1966171168
  %v1186 = vunpack.c.0.s8 %v1185
  %v1187 = vlaneseq
  %v1188 = vshrl.u32 %v1187, 7
  %v1189 = vsub.s32 %v1186, %v1188
  %v1190 = vrot.slane %v1175, %v1189
  %v1192 = vunpack.c.l.s4 1966171168
  %v1193 = vunpack.c.0.s8 %v1192
  %v1194 = vlaneseq
  %v1195 = vshrl.u32 %v1194, 7
  %v1196 = vsub.s32 %v1193, %v1195
  %v1197 = vrot.slane %v1176, %v1196
  %v1199 = vunpack.c.l.s4 1966171168
  %v1200 = vunpack.c.0.s8 %v1199
  %v1201 = vlaneseq
  %v1202 = vshrl.u32 %v1201, 7
  %v1203 = vsub.s32 %v1200, %v1202
  %v1204 = vrot.slane %v916, %v1203
  %v1205 = vcombine.low %v1183, %v1190
  %v1206 = vcombine.low %v1197, %v1204
  %v1208 = vunpack.c.l.s4 1966171168
  %v1209 = vunpack.c.0.s8 %v1208
  %v1210 = vlaneseq
  %v1211 = vshrl.u32 %v1210, 7
  %v1212 = vsub.s32 %v1209, %v1211
  %v1213 = vrot.slane %v1205, %v1212
  %v1215 = vunpack.c.l.s4 1966171168
  %v1216 = vunpack.c.0.s8 %v1215
  %v1217 = vlaneseq
  %v1218 = vshrl.u32 %v1217, 7
  %v1219 = vsub.s32 %v1216, %v1218
  %v1220 = vrot.slane %v1206, %v1219
  %v1221 = vcombine.low %v1213, %v1220
  %v1222 = vcombine.low %v899, %v913
  %v1223 = vcombine.low %v915, %v917
  %v1224 = vcombine.low %v941, %v955
  %v1226 = vunpack.c.l.s4 1966171168
  %v1227 = vunpack.c.0.s8 %v1226
  %v1228 = vlaneseq
  %v1229 = vshrl.u32 %v1228, 7
  %v1230 = vsub.s32 %v1227, %v1229
  %v1231 = vrot.slane %v1222, %v1230
  %v1233 = vunpack.c.l.s4 1966171168
  %v1234 = vunpack.c.0.s8 %v1233
  %v1235 = vlaneseq
  %v1236 = vshrl.u32 %v1235, 7
  %v1237 = vsub.s32 %v1234, %v1236
  %v1238 = vrot.slane %v1223, %v1237
  %v1240 = vunpack.c.l.s4 1966171168
  %v1241 = vunpack.c.0.s8 %v1240
  %v1242 = vlaneseq
  %v1243 = vshrl.u32 %v1242, 7
  %v1244 = vsub.s32 %v1241, %v1243
  %v1245 = vrot.slane %v1224, %v1244
  %v1247 = vunpack.c.l.s4 1966171168
  %v1248 = vunpack.c.0.s8 %v1247
  %v1249 = vlaneseq
  %v1250 = vshrl.u32 %v1249, 7
  %v1251 = vsub.s32 %v1248, %v1250
  %v1252 = vrot.slane %v963, %v1251
  %v1253 = vcombine.low %v1231, %v1238
  %v1254 = vcombine.low %v1245, %v1252
  %v1256 = vunpack.c.l.s4 1966171168
  %v1257 = vunpack.c.0.s8 %v1256
  %v1258 = vlaneseq
  %v1259 = vshrl.u32 %v1258, 7
  %v1260 = vsub.s32 %v1257, %v1259
  %v1261 = vrot.slane %v1253, %v1260
  %v1263 = vunpack.c.l.s4 1966171168
  %v1264 = vunpack.c.0.s8 %v1263
  %v1265 = vlaneseq
  %v1266 = vshrl.u32 %v1265, 7
  %v1267 = vsub.s32 %v1264, %v1266
  %v1268 = vrot.slane %v1254, %v1267
  %v1269 = vcombine.low %v1261, %v1268
  %v1270 = vcombine.low %v965, %v948
  %v1271 = vcombine.low %v962, %v964
  %v1272 = vcombine.low %v966, %v990
  %v1274 = vunpack.c.l.s4 1966171168
  %v1275 = vunpack.c.0.s8 %v1274
  %v1276 = vlaneseq
  %v1277 = vshrl.u32 %v1276, 7
  %v1278 = vsub.s32 %v1275, %v1277
  %v1279 = vrot.slane %v1270, %v1278
  %v1281 = vunpack.c.l.s4 1966171168
  %v1282 = vunpack.c.0.s8 %v1281
  %v1283 = vlaneseq
  %v1284 = vshrl.u32 %v1283, 7
  %v1285 = vsub.s32 %v1282, %v1284
  %v1286 = vrot.slane %v1271, %v1285
  %v1288 = vunpack.c.l.s4 1966171168
  %v1289 = vunpack.c.0.s8 %v1288
  %v1290 = vlaneseq
  %v1291 = vshrl.u32 %v1290, 7
  %v1292 = vsub.s32 %v1289, %v1291
  %v1293 = vrot.slane %v1272, %v1292
  %v1295 = vunpack.c.l.s4 1966171168
  %v1296 = vunpack.c.0.s8 %v1295
  %v1297 = vlaneseq
  %v1298 = vshrl.u32 %v1297, 7
  %v1299 = vsub.s32 %v1296, %v1298
  %v1300 = vrot.slane %v1004, %v1299
  %v1301 = vcombine.low %v1279, %v1286
  %v1302 = vcombine.low %v1293, %v1300
  %v1304 = vunpack.c.l.s4 1966171168
  %v1305 = vunpack.c.0.s8 %v1304
  %v1306 = vlaneseq
  %v1307 = vshrl.u32 %v1306, 7
  %v1308 = vsub.s32 %v1305, %v1307
  %v1309 = vrot.slane %v1301, %v1308
  %v1311 = vunpack.c.l.s4 1966171168
  %v1312 = vunpack.c.0.s8 %v1311
  %v1313 = vlaneseq
  %v1314 = vshrl.u32 %v1313, 7
  %v1315 = vsub.s32 %v1312, %v1314
  %v1316 = vrot.slane %v1302, %v1315
  %v1317 = vcombine.low %v1309, %v1316
  %v1318 = vcombine.low %v1012, %v1014
  %v1319 = vcombine.low %v997, %v1011
  %v1320 = vcombine.low %v1013, %v1015
  %v1322 = vunpack.c.l.s4 1966171168
  %v1323 = vunpack.c.0.s8 %v1322
  %v1324 = vlaneseq
  %v1325 = vshrl.u32 %v1324, 7
  %v1326 = vsub.s32 %v1323, %v1325
  %v1327 = vrot.slane %v1318, %v1326
  %v1329 = vunpack.c.l.s4 1966171168
  %v1330 = vunpack.c.0.s8 %v1329
  %v1331 = vlaneseq
  %v1332 = vshrl.u32 %v1331, 7
  %v1333 = vsub.s32 %v1330, %v1332
  %v1334 = vrot.slane %v1319, %v1333
  %v1336 = vunpack.c.l.s4 1966171168
  %v1337 = vunpack.c.0.s8 %v1336
  %v1338 = vlaneseq
  %v1339 = vshrl.u32 %v1338, 7
  %v1340 = vsub.s32 %v1337, %v1339
  %v1341 = vrot.slane %v1320, %v1340
  %v1343 = vunpack.c.l.s4 1966171168
  %v1344 = vunpack.c.0.s8 %v1343
  %v1345 = vlaneseq
  %v1346 = vshrl.u32 %v1345, 7
  %v1347 = vsub.s32 %v1344, %v1346
  %v1348 = vrot.slane %v1029, %v1347
  %v1349 = vcombine.low %v1327, %v1334
  %v1350 = vcombine.low %v1341, %v1348
  %v1352 = vunpack.c.l.s4 1966171168
  %v1353 = vunpack.c.0.s8 %v1352
  %v1354 = vlaneseq
  %v1355 = vshrl.u32 %v1354, 7
  %v1356 = vsub.s32 %v1353, %v1355
  %v1357 = vrot.slane %v1349, %v1356
  %v1359 = vunpack.c.l.s4 1966171168
  %v1360 = vunpack.c.0.s8 %v1359
  %v1361 = vlaneseq
  %v1362 = vshrl.u32 %v1361, 7
  %v1363 = vsub.s32 %v1360, %v1362
  %v1364 = vrot.slane %v1350, %v1363
  %v1365 = vcombine.low %v1357, %v1364
  %s1373 = scalar_lea.vmem [#allocation2], 16
  %1374 = vst [vmem:[%s1373 + $0x1] sm:$0x7f] %v1077
  %1375 = vst [vmem:[%s1373 + $0x11] sm:$0x7f] %v1125
  %1376 = vst [vmem:[%s1373 + $0x21] sm:$0x7f] %v1173
  %1377 = vst [vmem:[%s1373 + $0x31] sm:$0x7f] %v1221
  %1378 = vst [vmem:[%s1373 + $0x41] sm:$0x7f] %v1269
  %1379 = vst [vmem:[%s1373 + $0x51] sm:$0x7f] %v1317
  %1380 = vst [vmem:[%s1373 + $0x61] sm:$0x7f] %v1365
  %v1381 = vld [vmem:[#allocation2] sm:$0x7f]
  %v1382 = vld [vmem:[#allocation2 + $0x10] sm:$0x7f]
  %v1383 = vld [vmem:[#allocation2 + $0x20] sm:$0x7f]
  %v1384 = vld [vmem:[#allocation2 + $0x30] sm:$0x7f]
  %v1385 = vld [vmem:[#allocation2 + $0x40] sm:$0x7f]
  %v1386 = vld [vmem:[#allocation2 + $0x50] sm:$0x7f]
  %v1387 = vld [vmem:[#allocation2 + $0x60] sm:$0x7f]
  %v1395 = vcombine.high %v1381, %v1381
  %v1397 = vunpack.c.l.s4 1966171168
  %v1398 = vunpack.c.0.s8 %v1397
  %v1399 = vlaneseq
  %v1400 = vshrl.u32 %v1399, 7
  %v1401 = vsub.s32 %v1398, %v1400
  %v1402 = vrot.slane %v1381, %v1401
  %v1404 = vunpack.c.l.s4 1966171168
  %v1405 = vunpack.c.0.s8 %v1404
  %v1406 = vlaneseq
  %v1407 = vshrl.u32 %v1406, 7
  %v1408 = vsub.s32 %v1405, %v1407
  %v1409 = vrot.slane %v1395, %v1408
  %v1410 = vcombine.high %v1402, %v1402
  %v1411 = vcombine.high %v1409, %v1409
  %v1413 = vunpack.c.l.s4 1966171168
  %v1414 = vunpack.c.0.s8 %v1413
  %v1415 = vlaneseq
  %v1416 = vshrl.u32 %v1415, 7
  %v1417 = vsub.s32 %v1414, %v1416
  %v1418 = vrot.slane %v1402, %v1417
  %v1420 = vunpack.c.l.s4 1966171168
  %v1421 = vunpack.c.0.s8 %v1420
  %v1422 = vlaneseq
  %v1423 = vshrl.u32 %v1422, 7
  %v1424 = vsub.s32 %v1421, %v1423
  %v1425 = vrot.slane %v1409, %v1424
  %v1427 = vunpack.c.l.s4 1966171168
  %v1428 = vunpack.c.0.s8 %v1427
  %v1429 = vlaneseq
  %v1430 = vshrl.u32 %v1429, 7
  %v1431 = vsub.s32 %v1428, %v1430
  %v1432 = vrot.slane %v1410, %v1431
  %v1434 = vunpack.c.l.s4 1966171168
  %v1435 = vunpack.c.0.s8 %v1434
  %v1436 = vlaneseq
  %v1437 = vshrl.u32 %v1436, 7
  %v1438 = vsub.s32 %v1435, %v1437
  %v1439 = vrot.slane %v1411, %v1438
  %v1440 = vcombine.high %v1418, %v1418
  %v1441 = vcombine.high %v1425, %v1425
  %v1442 = vcombine.high %v1432, %v1432
  %v1443 = vcombine.high %v1382, %v1382
  %v1445 = vunpack.c.l.s4 1966171168
  %v1446 = vunpack.c.0.s8 %v1445
  %v1447 = vlaneseq
  %v1448 = vshrl.u32 %v1447, 7
  %v1449 = vsub.s32 %v1446, %v1448
  %v1450 = vrot.slane %v1382, %v1449
  %v1452 = vunpack.c.l.s4 1966171168
  %v1453 = vunpack.c.0.s8 %v1452
  %v1454 = vlaneseq
  %v1455 = vshrl.u32 %v1454, 7
  %v1456 = vsub.s32 %v1453, %v1455
  %v1457 = vrot.slane %v1443, %v1456
  %v1458 = vcombine.high %v1450, %v1450
  %v1459 = vcombine.high %v1457, %v1457
  %v1461 = vunpack.c.l.s4 1966171168
  %v1462 = vunpack.c.0.s8 %v1461
  %v1463 = vlaneseq
  %v1464 = vshrl.u32 %v1463, 7
  %v1465 = vsub.s32 %v1462, %v1464
  %v1466 = vrot.slane %v1450, %v1465
  %v1468 = vunpack.c.l.s4 1966171168
  %v1469 = vunpack.c.0.s8 %v1468
  %v1470 = vlaneseq
  %v1471 = vshrl.u32 %v1470, 7
  %v1472 = vsub.s32 %v1469, %v1471
  %v1473 = vrot.slane %v1457, %v1472
  %v1475 = vunpack.c.l.s4 1966171168
  %v1476 = vunpack.c.0.s8 %v1475
  %v1477 = vlaneseq
  %v1478 = vshrl.u32 %v1477, 7
  %v1479 = vsub.s32 %v1476, %v1478
  %v1480 = vrot.slane %v1458, %v1479
  %v1482 = vunpack.c.l.s4 1966171168
  %v1483 = vunpack.c.0.s8 %v1482
  %v1484 = vlaneseq
  %v1485 = vshrl.u32 %v1484, 7
  %v1486 = vsub.s32 %v1483, %v1485
  %v1487 = vrot.slane %v1459, %v1486
  %v1488 = vcombine.high %v1466, %v1466
  %v1489 = vcombine.high %v1473, %v1473
  %v1490 = vcombine.high %v1480, %v1480
  %v1491 = vcombine.high %v1383, %v1383
  %v1493 = vunpack.c.l.s4 1966171168
  %v1494 = vunpack.c.0.s8 %v1493
  %v1495 = vlaneseq
  %v1496 = vshrl.u32 %v1495, 7
  %v1497 = vsub.s32 %v1494, %v1496
  %v1498 = vrot.slane %v1383, %v1497
  %v1500 = vunpack.c.l.s4 1966171168
  %v1501 = vunpack.c.0.s8 %v1500
  %v1502 = vlaneseq
  %v1503 = vshrl.u32 %v1502, 7
  %v1504 = vsub.s32 %v1501, %v1503
  %v1505 = vrot.slane %v1491, %v1504
  %v1506 = vcombine.high %v1498, %v1498
  %v1507 = vcombine.high %v1505, %v1505
  %v1509 = vunpack.c.l.s4 1966171168
  %v1510 = vunpack.c.0.s8 %v1509
  %v1511 = vlaneseq
  %v1512 = vshrl.u32 %v1511, 7
  %v1513 = vsub.s32 %v1510, %v1512
  %v1514 = vrot.slane %v1498, %v1513
  %v1516 = vunpack.c.l.s4 1966171168
  %v1517 = vunpack.c.0.s8 %v1516
  %v1518 = vlaneseq
  %v1519 = vshrl.u32 %v1518, 7
  %v1520 = vsub.s32 %v1517, %v1519
  %v1521 = vrot.slane %v1505, %v1520
  %v1523 = vunpack.c.l.s4 1966171168
  %v1524 = vunpack.c.0.s8 %v1523
  %v1525 = vlaneseq
  %v1526 = vshrl.u32 %v1525, 7
  %v1527 = vsub.s32 %v1524, %v1526
  %v1528 = vrot.slane %v1506, %v1527
  %v1530 = vunpack.c.l.s4 1966171168
  %v1531 = vunpack.c.0.s8 %v1530
  %v1532 = vlaneseq
  %v1533 = vshrl.u32 %v1532, 7
  %v1534 = vsub.s32 %v1531, %v1533
  %v1535 = vrot.slane %v1507, %v1534
  %v1536 = vcombine.high %v1514, %v1514
  %v1537 = vcombine.high %v1521, %v1521
  %v1538 = vcombine.high %v1528, %v1528
  %v1539 = vcombine.high %v1384, %v1384
  %v1541 = vunpack.c.l.s4 1966171168
  %v1542 = vunpack.c.0.s8 %v1541
  %v1543 = vlaneseq
  %v1544 = vshrl.u32 %v1543, 7
  %v1545 = vsub.s32 %v1542, %v1544
  %v1546 = vrot.slane %v1384, %v1545
  %v1548 = vunpack.c.l.s4 1966171168
  %v1549 = vunpack.c.0.s8 %v1548
  %v1550 = vlaneseq
  %v1551 = vshrl.u32 %v1550, 7
  %v1552 = vsub.s32 %v1549, %v1551
  %v1553 = vrot.slane %v1539, %v1552
  %v1554 = vcombine.high %v1546, %v1546
  %v1555 = vcombine.high %v1553, %v1553
  %v1557 = vunpack.c.l.s4 1966171168
  %v1558 = vunpack.c.0.s8 %v1557
  %v1559 = vlaneseq
  %v1560 = vshrl.u32 %v1559, 7
  %v1561 = vsub.s32 %v1558, %v1560
  %v1562 = vrot.slane %v1546, %v1561
  %v1564 = vunpack.c.l.s4 1966171168
  %v1565 = vunpack.c.0.s8 %v1564
  %v1566 = vlaneseq
  %v1567 = vshrl.u32 %v1566, 7
  %v1568 = vsub.s32 %v1565, %v1567
  %v1569 = vrot.slane %v1553, %v1568
  %v1571 = vunpack.c.l.s4 1966171168
  %v1572 = vunpack.c.0.s8 %v1571
  %v1573 = vlaneseq
  %v1574 = vshrl.u32 %v1573, 7
  %v1575 = vsub.s32 %v1572, %v1574
  %v1576 = vrot.slane %v1554, %v1575
  %v1578 = vunpack.c.l.s4 1966171168
  %v1579 = vunpack.c.0.s8 %v1578
  %v1580 = vlaneseq
  %v1581 = vshrl.u32 %v1580, 7
  %v1582 = vsub.s32 %v1579, %v1581
  %v1583 = vrot.slane %v1555, %v1582
  %v1584 = vcombine.high %v1562, %v1562
  %v1585 = vcombine.high %v1569, %v1569
  %v1586 = vcombine.high %v1576, %v1576
  %v1587 = vcombine.high %v1385, %v1385
  %v1589 = vunpack.c.l.s4 1966171168
  %v1590 = vunpack.c.0.s8 %v1589
  %v1591 = vlaneseq
  %v1592 = vshrl.u32 %v1591, 7
  %v1593 = vsub.s32 %v1590, %v1592
  %v1594 = vrot.slane %v1385, %v1593
  %v1596 = vunpack.c.l.s4 1966171168
  %v1597 = vunpack.c.0.s8 %v1596
  %v1598 = vlaneseq
  %v1599 = vshrl.u32 %v1598, 7
  %v1600 = vsub.s32 %v1597, %v1599
  %v1601 = vrot.slane %v1587, %v1600
  %v1602 = vcombine.high %v1594, %v1594
  %v1603 = vcombine.high %v1601, %v1601
  %v1605 = vunpack.c.l.s4 1966171168
  %v1606 = vunpack.c.0.s8 %v1605
  %v1607 = vlaneseq
  %v1608 = vshrl.u32 %v1607, 7
  %v1609 = vsub.s32 %v1606, %v1608
  %v1610 = vrot.slane %v1594, %v1609
  %v1612 = vunpack.c.l.s4 1966171168
  %v1613 = vunpack.c.0.s8 %v1612
  %v1614 = vlaneseq
  %v1615 = vshrl.u32 %v1614, 7
  %v1616 = vsub.s32 %v1613, %v1615
  %v1617 = vrot.slane %v1601, %v1616
  %v1619 = vunpack.c.l.s4 1966171168
  %v1620 = vunpack.c.0.s8 %v1619
  %v1621 = vlaneseq
  %v1622 = vshrl.u32 %v1621, 7
  %v1623 = vsub.s32 %v1620, %v1622
  %v1624 = vrot.slane %v1602, %v1623
  %v1626 = vunpack.c.l.s4 1966171168
  %v1627 = vunpack.c.0.s8 %v1626
  %v1628 = vlaneseq
  %v1629 = vshrl.u32 %v1628, 7
  %v1630 = vsub.s32 %v1627, %v1629
  %v1631 = vrot.slane %v1603, %v1630
  %v1632 = vcombine.high %v1610, %v1610
  %v1633 = vcombine.high %v1617, %v1617
  %v1634 = vcombine.high %v1624, %v1624
  %v1635 = vcombine.high %v1386, %v1386
  %v1637 = vunpack.c.l.s4 1966171168
  %v1638 = vunpack.c.0.s8 %v1637
  %v1639 = vlaneseq
  %v1640 = vshrl.u32 %v1639, 7
  %v1641 = vsub.s32 %v1638, %v1640
  %v1642 = vrot.slane %v1386, %v1641
  %v1644 = vunpack.c.l.s4 1966171168
  %v1645 = vunpack.c.0.s8 %v1644
  %v1646 = vlaneseq
  %v1647 = vshrl.u32 %v1646, 7
  %v1648 = vsub.s32 %v1645, %v1647
  %v1649 = vrot.slane %v1635, %v1648
  %v1650 = vcombine.high %v1642, %v1642
  %v1651 = vcombine.high %v1649, %v1649
  %v1653 = vunpack.c.l.s4 1966171168
  %v1654 = vunpack.c.0.s8 %v1653
  %v1655 = vlaneseq
  %v1656 = vshrl.u32 %v1655, 7
  %v1657 = vsub.s32 %v1654, %v1656
  %v1658 = vrot.slane %v1642, %v1657
  %v1660 = vunpack.c.l.s4 1966171168
  %v1661 = vunpack.c.0.s8 %v1660
  %v1662 = vlaneseq
  %v1663 = vshrl.u32 %v1662, 7
  %v1664 = vsub.s32 %v1661, %v1663
  %v1665 = vrot.slane %v1649, %v1664
  %v1667 = vunpack.c.l.s4 1966171168
  %v1668 = vunpack.c.0.s8 %v1667
  %v1669 = vlaneseq
  %v1670 = vshrl.u32 %v1669, 7
  %v1671 = vsub.s32 %v1668, %v1670
  %v1672 = vrot.slane %v1650, %v1671
  %v1674 = vunpack.c.l.s4 1966171168
  %v1675 = vunpack.c.0.s8 %v1674
  %v1676 = vlaneseq
  %v1677 = vshrl.u32 %v1676, 7
  %v1678 = vsub.s32 %v1675, %v1677
  %v1679 = vrot.slane %v1651, %v1678
  %v1680 = vcombine.high %v1658, %v1658
  %v1681 = vcombine.high %v1665, %v1665
  %v1682 = vcombine.high %v1672, %v1672
  %v1683 = vcombine.high %v1387, %v1387
  %v1685 = vunpack.c.l.s4 1966171168
  %v1686 = vunpack.c.0.s8 %v1685
  %v1687 = vlaneseq
  %v1688 = vshrl.u32 %v1687, 7
  %v1689 = vsub.s32 %v1686, %v1688
  %v1690 = vrot.slane %v1387, %v1689
  %v1692 = vunpack.c.l.s4 1966171168
  %v1693 = vunpack.c.0.s8 %v1692
  %v1694 = vlaneseq
  %v1695 = vshrl.u32 %v1694, 7
  %v1696 = vsub.s32 %v1693, %v1695
  %v1697 = vrot.slane %v1683, %v1696
  %v1698 = vcombine.high %v1690, %v1690
  %v1699 = vcombine.high %v1697, %v1697
  %v1701 = vunpack.c.l.s4 1966171168
  %v1702 = vunpack.c.0.s8 %v1701
  %v1703 = vlaneseq
  %v1704 = vshrl.u32 %v1703, 7
  %v1705 = vsub.s32 %v1702, %v1704
  %v1706 = vrot.slane %v1690, %v1705
  %v1708 = vunpack.c.l.s4 1966171168
  %v1709 = vunpack.c.0.s8 %v1708
  %v1710 = vlaneseq
  %v1711 = vshrl.u32 %v1710, 7
  %v1712 = vsub.s32 %v1709, %v1711
  %v1713 = vrot.slane %v1697, %v1712
  %v1715 = vunpack.c.l.s4 1966171168
  %v1716 = vunpack.c.0.s8 %v1715
  %v1717 = vlaneseq
  %v1718 = vshrl.u32 %v1717, 7
  %v1719 = vsub.s32 %v1716, %v1718
  %v1720 = vrot.slane %v1698, %v1719
  %v1722 = vunpack.c.l.s4 1966171168
  %v1723 = vunpack.c.0.s8 %v1722
  %v1724 = vlaneseq
  %v1725 = vshrl.u32 %v1724, 7
  %v1726 = vsub.s32 %v1723, %v1725
  %v1727 = vrot.slane %v1699, %v1726
  %v1728 = vcombine.high %v1706, %v1706
  %v1729 = vcombine.high %v1713, %v1713
  %v1730 = vcombine.high %v1720, %v1720
  %v1731 = vld [vmem:[#allocation2 + $0x1] sm:$0x7f]
  %v1732 = vld [vmem:[#allocation2 + $0x11] sm:$0x7f]
  %v1733 = vld [vmem:[#allocation2 + $0x21] sm:$0x7f]
  %v1734 = vld [vmem:[#allocation2 + $0x31] sm:$0x7f]
  %v1735 = vld [vmem:[#allocation2 + $0x41] sm:$0x7f]
  %v1736 = vld [vmem:[#allocation2 + $0x51] sm:$0x7f]
  %v1737 = vld [vmem:[#allocation2 + $0x61] sm:$0x7f]
  %v1745 = vcombine.high %v1731, %v1731
  %v1747 = vunpack.c.l.s4 1966171168
  %v1748 = vunpack.c.0.s8 %v1747
  %v1749 = vlaneseq
  %v1750 = vshrl.u32 %v1749, 7
  %v1751 = vsub.s32 %v1748, %v1750
  %v1752 = vrot.slane %v1731, %v1751
  %v1754 = vunpack.c.l.s4 1966171168
  %v1755 = vunpack.c.0.s8 %v1754
  %v1756 = vlaneseq
  %v1757 = vshrl.u32 %v1756, 7
  %v1758 = vsub.s32 %v1755, %v1757
  %v1759 = vrot.slane %v1745, %v1758
  %v1760 = vcombine.high %v1752, %v1752
  %v1761 = vcombine.high %v1759, %v1759
  %v1763 = vunpack.c.l.s4 1966171168
  %v1764 = vunpack.c.0.s8 %v1763
  %v1765 = vlaneseq
  %v1766 = vshrl.u32 %v1765, 7
  %v1767 = vsub.s32 %v1764, %v1766
  %v1768 = vrot.slane %v1752, %v1767
  %v1770 = vunpack.c.l.s4 1966171168
  %v1771 = vunpack.c.0.s8 %v1770
  %v1772 = vlaneseq
  %v1773 = vshrl.u32 %v1772, 7
  %v1774 = vsub.s32 %v1771, %v1773
  %v1775 = vrot.slane %v1759, %v1774
  %v1777 = vunpack.c.l.s4 1966171168
  %v1778 = vunpack.c.0.s8 %v1777
  %v1779 = vlaneseq
  %v1780 = vshrl.u32 %v1779, 7
  %v1781 = vsub.s32 %v1778, %v1780
  %v1782 = vrot.slane %v1760, %v1781
  %v1784 = vunpack.c.l.s4 1966171168
  %v1785 = vunpack.c.0.s8 %v1784
  %v1786 = vlaneseq
  %v1787 = vshrl.u32 %v1786, 7
  %v1788 = vsub.s32 %v1785, %v1787
  %v1789 = vrot.slane %v1761, %v1788
  %v1790 = vcombine.high %v1768, %v1768
  %v1791 = vcombine.high %v1775, %v1775
  %v1792 = vcombine.high %v1782, %v1782
  %v1793 = vcombine.high %v1732, %v1732
  %v1795 = vunpack.c.l.s4 1966171168
  %v1796 = vunpack.c.0.s8 %v1795
  %v1797 = vlaneseq
  %v1798 = vshrl.u32 %v1797, 7
  %v1799 = vsub.s32 %v1796, %v1798
  %v1800 = vrot.slane %v1732, %v1799
  %v1802 = vunpack.c.l.s4 1966171168
  %v1803 = vunpack.c.0.s8 %v1802
  %v1804 = vlaneseq
  %v1805 = vshrl.u32 %v1804, 7
  %v1806 = vsub.s32 %v1803, %v1805
  %v1807 = vrot.slane %v1793, %v1806
  %v1808 = vcombine.high %v1800, %v1800
  %v1809 = vcombine.high %v1807, %v1807
  %v1811 = vunpack.c.l.s4 1966171168
  %v1812 = vunpack.c.0.s8 %v1811
  %v1813 = vlaneseq
  %v1814 = vshrl.u32 %v1813, 7
  %v1815 = vsub.s32 %v1812, %v1814
  %v1816 = vrot.slane %v1800, %v1815
  %v1818 = vunpack.c.l.s4 1966171168
  %v1819 = vunpack.c.0.s8 %v1818
  %v1820 = vlaneseq
  %v1821 = vshrl.u32 %v1820, 7
  %v1822 = vsub.s32 %v1819, %v1821
  %v1823 = vrot.slane %v1807, %v1822
  %v1825 = vunpack.c.l.s4 1966171168
  %v1826 = vunpack.c.0.s8 %v1825
  %v1827 = vlaneseq
  %v1828 = vshrl.u32 %v1827, 7
  %v1829 = vsub.s32 %v1826, %v1828
  %v1830 = vrot.slane %v1808, %v1829
  %v1832 = vunpack.c.l.s4 1966171168
  %v1833 = vunpack.c.0.s8 %v1832
  %v1834 = vlaneseq
  %v1835 = vshrl.u32 %v1834, 7
  %v1836 = vsub.s32 %v1833, %v1835
  %v1837 = vrot.slane %v1809, %v1836
  %v1838 = vcombine.high %v1816, %v1816
  %v1839 = vcombine.high %v1823, %v1823
  %v1840 = vcombine.high %v1830, %v1830
  %v1841 = vcombine.high %v1733, %v1733
  %v1843 = vunpack.c.l.s4 1966171168
  %v1844 = vunpack.c.0.s8 %v1843
  %v1845 = vlaneseq
  %v1846 = vshrl.u32 %v1845, 7
  %v1847 = vsub.s32 %v1844, %v1846
  %v1848 = vrot.slane %v1733, %v1847
  %v1850 = vunpack.c.l.s4 1966171168
  %v1851 = vunpack.c.0.s8 %v1850
  %v1852 = vlaneseq
  %v1853 = vshrl.u32 %v1852, 7
  %v1854 = vsub.s32 %v1851, %v1853
  %v1855 = vrot.slane %v1841, %v1854
  %v1856 = vcombine.high %v1848, %v1848
  %v1857 = vcombine.high %v1855, %v1855
  %v1859 = vunpack.c.l.s4 1966171168
  %v1860 = vunpack.c.0.s8 %v1859
  %v1861 = vlaneseq
  %v1862 = vshrl.u32 %v1861, 7
  %v1863 = vsub.s32 %v1860, %v1862
  %v1864 = vrot.slane %v1848, %v1863
  %v1866 = vunpack.c.l.s4 1966171168
  %v1867 = vunpack.c.0.s8 %v1866
  %v1868 = vlaneseq
  %v1869 = vshrl.u32 %v1868, 7
  %v1870 = vsub.s32 %v1867, %v1869
  %v1871 = vrot.slane %v1855, %v1870
  %v1873 = vunpack.c.l.s4 1966171168
  %v1874 = vunpack.c.0.s8 %v1873
  %v1875 = vlaneseq
  %v1876 = vshrl.u32 %v1875, 7
  %v1877 = vsub.s32 %v1874, %v1876
  %v1878 = vrot.slane %v1856, %v1877
  %v1880 = vunpack.c.l.s4 1966171168
  %v1881 = vunpack.c.0.s8 %v1880
  %v1882 = vlaneseq
  %v1883 = vshrl.u32 %v1882, 7
  %v1884 = vsub.s32 %v1881, %v1883
  %v1885 = vrot.slane %v1857, %v1884
  %v1886 = vcombine.high %v1864, %v1864
  %v1887 = vcombine.high %v1871, %v1871
  %v1888 = vcombine.high %v1878, %v1878
  %v1889 = vcombine.high %v1734, %v1734
  %v1891 = vunpack.c.l.s4 1966171168
  %v1892 = vunpack.c.0.s8 %v1891
  %v1893 = vlaneseq
  %v1894 = vshrl.u32 %v1893, 7
  %v1895 = vsub.s32 %v1892, %v1894
  %v1896 = vrot.slane %v1734, %v1895
  %v1898 = vunpack.c.l.s4 1966171168
  %v1899 = vunpack.c.0.s8 %v1898
  %v1900 = vlaneseq
  %v1901 = vshrl.u32 %v1900, 7
  %v1902 = vsub.s32 %v1899, %v1901
  %v1903 = vrot.slane %v1889, %v1902
  %v1904 = vcombine.high %v1896, %v1896
  %v1905 = vcombine.high %v1903, %v1903
  %v1907 = vunpack.c.l.s4 1966171168
  %v1908 = vunpack.c.0.s8 %v1907
  %v1909 = vlaneseq
  %v1910 = vshrl.u32 %v1909, 7
  %v1911 = vsub.s32 %v1908, %v1910
  %v1912 = vrot.slane %v1896, %v1911
  %v1914 = vunpack.c.l.s4 1966171168
  %v1915 = vunpack.c.0.s8 %v1914
  %v1916 = vlaneseq
  %v1917 = vshrl.u32 %v1916, 7
  %v1918 = vsub.s32 %v1915, %v1917
  %v1919 = vrot.slane %v1903, %v1918
  %v1921 = vunpack.c.l.s4 1966171168
  %v1922 = vunpack.c.0.s8 %v1921
  %v1923 = vlaneseq
  %v1924 = vshrl.u32 %v1923, 7
  %v1925 = vsub.s32 %v1922, %v1924
  %v1926 = vrot.slane %v1904, %v1925
  %v1928 = vunpack.c.l.s4 1966171168
  %v1929 = vunpack.c.0.s8 %v1928
  %v1930 = vlaneseq
  %v1931 = vshrl.u32 %v1930, 7
  %v1932 = vsub.s32 %v1929, %v1931
  %v1933 = vrot.slane %v1905, %v1932
  %v1934 = vcombine.high %v1912, %v1912
  %v1935 = vcombine.high %v1919, %v1919
  %v1936 = vcombine.high %v1926, %v1926
  %v1937 = vcombine.high %v1735, %v1735
  %v1939 = vunpack.c.l.s4 1966171168
  %v1940 = vunpack.c.0.s8 %v1939
  %v1941 = vlaneseq
  %v1942 = vshrl.u32 %v1941, 7
  %v1943 = vsub.s32 %v1940, %v1942
  %v1944 = vrot.slane %v1735, %v1943
  %v1946 = vunpack.c.l.s4 1966171168
  %v1947 = vunpack.c.0.s8 %v1946
  %v1948 = vlaneseq
  %v1949 = vshrl.u32 %v1948, 7
  %v1950 = vsub.s32 %v1947, %v1949
  %v1951 = vrot.slane %v1937, %v1950
  %v1952 = vcombine.high %v1944, %v1944
  %v1953 = vcombine.high %v1951, %v1951
  %v1955 = vunpack.c.l.s4 1966171168
  %v1956 = vunpack.c.0.s8 %v1955
  %v1957 = vlaneseq
  %v1958 = vshrl.u32 %v1957, 7
  %v1959 = vsub.s32 %v1956, %v1958
  %v1960 = vrot.slane %v1944, %v1959
  %v1962 = vunpack.c.l.s4 1966171168
  %v1963 = vunpack.c.0.s8 %v1962
  %v1964 = vlaneseq
  %v1965 = vshrl.u32 %v1964, 7
  %v1966 = vsub.s32 %v1963, %v1965
  %v1967 = vrot.slane %v1951, %v1966
  %v1969 = vunpack.c.l.s4 1966171168
  %v1970 = vunpack.c.0.s8 %v1969
  %v1971 = vlaneseq
  %v1972 = vshrl.u32 %v1971, 7
  %v1973 = vsub.s32 %v1970, %v1972
  %v1974 = vrot.slane %v1952, %v1973
  %v1976 = vunpack.c.l.s4 1966171168
  %v1977 = vunpack.c.0.s8 %v1976
  %v1978 = vlaneseq
  %v1979 = vshrl.u32 %v1978, 7
  %v1980 = vsub.s32 %v1977, %v1979
  %v1981 = vrot.slane %v1953, %v1980
  %v1982 = vcombine.high %v1960, %v1960
  %v1983 = vcombine.high %v1967, %v1967
  %v1984 = vcombine.high %v1974, %v1974
  %v1985 = vcombine.high %v1736, %v1736
  %v1987 = vunpack.c.l.s4 1966171168
  %v1988 = vunpack.c.0.s8 %v1987
  %v1989 = vlaneseq
  %v1990 = vshrl.u32 %v1989, 7
  %v1991 = vsub.s32 %v1988, %v1990
  %v1992 = vrot.slane %v1736, %v1991
  %v1994 = vunpack.c.l.s4 1966171168
  %v1995 = vunpack.c.0.s8 %v1994
  %v1996 = vlaneseq
  %v1997 = vshrl.u32 %v1996, 7
  %v1998 = vsub.s32 %v1995, %v1997
  %v1999 = vrot.slane %v1985, %v1998
  %v2000 = vcombine.high %v1992, %v1992
  %v2001 = vcombine.high %v1999, %v1999
  %v2003 = vunpack.c.l.s4 1966171168
  %v2004 = vunpack.c.0.s8 %v2003
  %v2005 = vlaneseq
  %v2006 = vshrl.u32 %v2005, 7
  %v2007 = vsub.s32 %v2004, %v2006
  %v2008 = vrot.slane %v1992, %v2007
  %v2010 = vunpack.c.l.s4 1966171168
  %v2011 = vunpack.c.0.s8 %v2010
  %v2012 = vlaneseq
  %v2013 = vshrl.u32 %v2012, 7
  %v2014 = vsub.s32 %v2011, %v2013
  %v2015 = vrot.slane %v1999, %v2014
  %v2017 = vunpack.c.l.s4 1966171168
  %v2018 = vunpack.c.0.s8 %v2017
  %v2019 = vlaneseq
  %v2020 = vshrl.u32 %v2019, 7
  %v2021 = vsub.s32 %v2018, %v2020
  %v2022 = vrot.slane %v2000, %v2021
  %v2024 = vunpack.c.l.s4 1966171168
  %v2025 = vunpack.c.0.s8 %v2024
  %v2026 = vlaneseq
  %v2027 = vshrl.u32 %v2026, 7
  %v2028 = vsub.s32 %v2025, %v2027
  %v2029 = vrot.slane %v2001, %v2028
  %v2030 = vcombine.high %v2008, %v2008
  %v2031 = vcombine.high %v2015, %v2015
  %v2032 = vcombine.high %v2022, %v2022
  %v2033 = vcombine.high %v1737, %v1737
  %v2035 = vunpack.c.l.s4 1966171168
  %v2036 = vunpack.c.0.s8 %v2035
  %v2037 = vlaneseq
  %v2038 = vshrl.u32 %v2037, 7
  %v2039 = vsub.s32 %v2036, %v2038
  %v2040 = vrot.slane %v1737, %v2039
  %v2042 = vunpack.c.l.s4 1966171168
  %v2043 = vunpack.c.0.s8 %v2042
  %v2044 = vlaneseq
  %v2045 = vshrl.u32 %v2044, 7
  %v2046 = vsub.s32 %v2043, %v2045
  %v2047 = vrot.slane %v2033, %v2046
  %v2048 = vcombine.high %v2040, %v2040
  %v2049 = vcombine.high %v2047, %v2047
  %v2051 = vunpack.c.l.s4 1966171168
  %v2052 = vunpack.c.0.s8 %v2051
  %v2053 = vlaneseq
  %v2054 = vshrl.u32 %v2053, 7
  %v2055 = vsub.s32 %v2052, %v2054
  %v2056 = vrot.slane %v2040, %v2055
  %v2058 = vunpack.c.l.s4 1966171168
  %v2059 = vunpack.c.0.s8 %v2058
  %v2060 = vlaneseq
  %v2061 = vshrl.u32 %v2060, 7
  %v2062 = vsub.s32 %v2059, %v2061
  %v2063 = vrot.slane %v2047, %v2062
  %v2065 = vunpack.c.l.s4 1966171168
  %v2066 = vunpack.c.0.s8 %v2065
  %v2067 = vlaneseq
  %v2068 = vshrl.u32 %v2067, 7
  %v2069 = vsub.s32 %v2066, %v2068
  %v2070 = vrot.slane %v2048, %v2069
  %v2072 = vunpack.c.l.s4 1966171168
  %v2073 = vunpack.c.0.s8 %v2072
  %v2074 = vlaneseq
  %v2075 = vshrl.u32 %v2074, 7
  %v2076 = vsub.s32 %v2073, %v2075
  %v2077 = vrot.slane %v2049, %v2076
  %v2078 = vcombine.high %v2056, %v2056
  %v2079 = vcombine.high %v2063, %v2063
  %v2080 = vcombine.high %v2070, %v2070
  %v2081 = vld [vmem:[#allocation2 + $0x2] sm:$0x7f]
  %v2082 = vld [vmem:[#allocation2 + $0x12] sm:$0x7f]
  %v2083 = vld [vmem:[#allocation2 + $0x22] sm:$0x7f]
  %v2084 = vld [vmem:[#allocation2 + $0x32] sm:$0x7f]
  %v2085 = vld [vmem:[#allocation2 + $0x42] sm:$0x7f]
  %v2086 = vld [vmem:[#allocation2 + $0x52] sm:$0x7f]
  %v2087 = vld [vmem:[#allocation2 + $0x62] sm:$0x7f]
  %v2095 = vcombine.high %v2081, %v2081
  %v2097 = vunpack.c.l.s4 1966171168
  %v2098 = vunpack.c.0.s8 %v2097
  %v2099 = vlaneseq
  %v2100 = vshrl.u32 %v2099, 7
  %v2101 = vsub.s32 %v2098, %v2100
  %v2102 = vrot.slane %v2081, %v2101
  %v2104 = vunpack.c.l.s4 1966171168
  %v2105 = vunpack.c.0.s8 %v2104
  %v2106 = vlaneseq
  %v2107 = vshrl.u32 %v2106, 7
  %v2108 = vsub.s32 %v2105, %v2107
  %v2109 = vrot.slane %v2095, %v2108
  %v2110 = vcombine.high %v2102, %v2102
  %v2111 = vcombine.high %v2109, %v2109
  %v2113 = vunpack.c.l.s4 1966171168
  %v2114 = vunpack.c.0.s8 %v2113
  %v2115 = vlaneseq
  %v2116 = vshrl.u32 %v2115, 7
  %v2117 = vsub.s32 %v2114, %v2116
  %v2118 = vrot.slane %v2102, %v2117
  %v2120 = vunpack.c.l.s4 1966171168
  %v2121 = vunpack.c.0.s8 %v2120
  %v2122 = vlaneseq
  %v2123 = vshrl.u32 %v2122, 7
  %v2124 = vsub.s32 %v2121, %v2123
  %v2125 = vrot.slane %v2109, %v2124
  %v2127 = vunpack.c.l.s4 1966171168
  %v2128 = vunpack.c.0.s8 %v2127
  %v2129 = vlaneseq
  %v2130 = vshrl.u32 %v2129, 7
  %v2131 = vsub.s32 %v2128, %v2130
  %v2132 = vrot.slane %v2110, %v2131
  %v2134 = vunpack.c.l.s4 1966171168
  %v2135 = vunpack.c.0.s8 %v2134
  %v2136 = vlaneseq
  %v2137 = vshrl.u32 %v2136, 7
  %v2138 = vsub.s32 %v2135, %v2137
  %v2139 = vrot.slane %v2111, %v2138
  %v2140 = vcombine.high %v2118, %v2118
  %v2141 = vcombine.high %v2125, %v2125
  %v2142 = vcombine.high %v2132, %v2132
  %v2143 = vcombine.high %v2082, %v2082
  %v2145 = vunpack.c.l.s4 1966171168
  %v2146 = vunpack.c.0.s8 %v2145
  %v2147 = vlaneseq
  %v2148 = vshrl.u32 %v2147, 7
  %v2149 = vsub.s32 %v2146, %v2148
  %v2150 = vrot.slane %v2082, %v2149
  %v2152 = vunpack.c.l.s4 1966171168
  %v2153 = vunpack.c.0.s8 %v2152
  %v2154 = vlaneseq
  %v2155 = vshrl.u32 %v2154, 7
  %v2156 = vsub.s32 %v2153, %v2155
  %v2157 = vrot.slane %v2143, %v2156
  %v2158 = vcombine.high %v2150, %v2150
  %v2159 = vcombine.high %v2157, %v2157
  %v2161 = vunpack.c.l.s4 1966171168
  %v2162 = vunpack.c.0.s8 %v2161
  %v2163 = vlaneseq
  %v2164 = vshrl.u32 %v2163, 7
  %v2165 = vsub.s32 %v2162, %v2164
  %v2166 = vrot.slane %v2150, %v2165
  %v2168 = vunpack.c.l.s4 1966171168
  %v2169 = vunpack.c.0.s8 %v2168
  %v2170 = vlaneseq
  %v2171 = vshrl.u32 %v2170, 7
  %v2172 = vsub.s32 %v2169, %v2171
  %v2173 = vrot.slane %v2157, %v2172
  %v2175 = vunpack.c.l.s4 1966171168
  %v2176 = vunpack.c.0.s8 %v2175
  %v2177 = vlaneseq
  %v2178 = vshrl.u32 %v2177, 7
  %v2179 = vsub.s32 %v2176, %v2178
  %v2180 = vrot.slane %v2158, %v2179
  %v2182 = vunpack.c.l.s4 1966171168
  %v2183 = vunpack.c.0.s8 %v2182
  %v2184 = vlaneseq
  %v2185 = vshrl.u32 %v2184, 7
  %v2186 = vsub.s32 %v2183, %v2185
  %v2187 = vrot.slane %v2159, %v2186
  %v2188 = vcombine.high %v2166, %v2166
  %v2189 = vcombine.high %v2173, %v2173
  %v2190 = vcombine.high %v2180, %v2180
  %v2191 = vcombine.high %v2083, %v2083
  %v2193 = vunpack.c.l.s4 1966171168
  %v2194 = vunpack.c.0.s8 %v2193
  %v2195 = vlaneseq
  %v2196 = vshrl.u32 %v2195, 7
  %v2197 = vsub.s32 %v2194, %v2196
  %v2198 = vrot.slane %v2083, %v2197
  %v2200 = vunpack.c.l.s4 1966171168
  %v2201 = vunpack.c.0.s8 %v2200
  %v2202 = vlaneseq
  %v2203 = vshrl.u32 %v2202, 7
  %v2204 = vsub.s32 %v2201, %v2203
  %v2205 = vrot.slane %v2191, %v2204
  %v2206 = vcombine.high %v2198, %v2198
  %v2207 = vcombine.high %v2205, %v2205
  %v2209 = vunpack.c.l.s4 1966171168
  %v2210 = vunpack.c.0.s8 %v2209
  %v2211 = vlaneseq
  %v2212 = vshrl.u32 %v2211, 7
  %v2213 = vsub.s32 %v2210, %v2212
  %v2214 = vrot.slane %v2198, %v2213
  %v2216 = vunpack.c.l.s4 1966171168
  %v2217 = vunpack.c.0.s8 %v2216
  %v2218 = vlaneseq
  %v2219 = vshrl.u32 %v2218, 7
  %v2220 = vsub.s32 %v2217, %v2219
  %v2221 = vrot.slane %v2205, %v2220
  %v2223 = vunpack.c.l.s4 1966171168
  %v2224 = vunpack.c.0.s8 %v2223
  %v2225 = vlaneseq
  %v2226 = vshrl.u32 %v2225, 7
  %v2227 = vsub.s32 %v2224, %v2226
  %v2228 = vrot.slane %v2206, %v2227
  %v2230 = vunpack.c.l.s4 1966171168
  %v2231 = vunpack.c.0.s8 %v2230
  %v2232 = vlaneseq
  %v2233 = vshrl.u32 %v2232, 7
  %v2234 = vsub.s32 %v2231, %v2233
  %v2235 = vrot.slane %v2207, %v2234
  %v2236 = vcombine.high %v2214, %v2214
  %v2237 = vcombine.high %v2221, %v2221
  %v2238 = vcombine.high %v2228, %v2228
  %v2239 = vcombine.high %v2084, %v2084
  %v2241 = vunpack.c.l.s4 1966171168
  %v2242 = vunpack.c.0.s8 %v2241
  %v2243 = vlaneseq
  %v2244 = vshrl.u32 %v2243, 7
  %v2245 = vsub.s32 %v2242, %v2244
  %v2246 = vrot.slane %v2084, %v2245
  %v2248 = vunpack.c.l.s4 1966171168
  %v2249 = vunpack.c.0.s8 %v2248
  %v2250 = vlaneseq
  %v2251 = vshrl.u32 %v2250, 7
  %v2252 = vsub.s32 %v2249, %v2251
  %v2253 = vrot.slane %v2239, %v2252
  %v2254 = vcombine.high %v2246, %v2246
  %v2255 = vcombine.high %v2253, %v2253
  %v2257 = vunpack.c.l.s4 1966171168
  %v2258 = vunpack.c.0.s8 %v2257
  %v2259 = vlaneseq
  %v2260 = vshrl.u32 %v2259, 7
  %v2261 = vsub.s32 %v2258, %v2260
  %v2262 = vrot.slane %v2246, %v2261
  %v2264 = vunpack.c.l.s4 1966171168
  %v2265 = vunpack.c.0.s8 %v2264
  %v2266 = vlaneseq
  %v2267 = vshrl.u32 %v2266, 7
  %v2268 = vsub.s32 %v2265, %v2267
  %v2269 = vrot.slane %v2253, %v2268
  %v2271 = vunpack.c.l.s4 1966171168
  %v2272 = vunpack.c.0.s8 %v2271
  %v2273 = vlaneseq
  %v2274 = vshrl.u32 %v2273, 7
  %v2275 = vsub.s32 %v2272, %v2274
  %v2276 = vrot.slane %v2254, %v2275
  %v2278 = vunpack.c.l.s4 1966171168
  %v2279 = vunpack.c.0.s8 %v2278
  %v2280 = vlaneseq
  %v2281 = vshrl.u32 %v2280, 7
  %v2282 = vsub.s32 %v2279, %v2281
  %v2283 = vrot.slane %v2255, %v2282
  %v2284 = vcombine.high %v2262, %v2262
  %v2285 = vcombine.high %v2269, %v2269
  %v2286 = vcombine.high %v2276, %v2276
  %v2287 = vcombine.high %v2085, %v2085
  %v2289 = vunpack.c.l.s4 1966171168
  %v2290 = vunpack.c.0.s8 %v2289
  %v2291 = vlaneseq
  %v2292 = vshrl.u32 %v2291, 7
  %v2293 = vsub.s32 %v2290, %v2292
  %v2294 = vrot.slane %v2085, %v2293
  %v2296 = vunpack.c.l.s4 1966171168
  %v2297 = vunpack.c.0.s8 %v2296
  %v2298 = vlaneseq
  %v2299 = vshrl.u32 %v2298, 7
  %v2300 = vsub.s32 %v2297, %v2299
  %v2301 = vrot.slane %v2287, %v2300
  %v2302 = vcombine.high %v2294, %v2294
  %v2303 = vcombine.high %v2301, %v2301
  %v2305 = vunpack.c.l.s4 1966171168
  %v2306 = vunpack.c.0.s8 %v2305
  %v2307 = vlaneseq
  %v2308 = vshrl.u32 %v2307, 7
  %v2309 = vsub.s32 %v2306, %v2308
  %v2310 = vrot.slane %v2294, %v2309
  %v2312 = vunpack.c.l.s4 1966171168
  %v2313 = vunpack.c.0.s8 %v2312
  %v2314 = vlaneseq
  %v2315 = vshrl.u32 %v2314, 7
  %v2316 = vsub.s32 %v2313, %v2315
  %v2317 = vrot.slane %v2301, %v2316
  %v2319 = vunpack.c.l.s4 1966171168
  %v2320 = vunpack.c.0.s8 %v2319
  %v2321 = vlaneseq
  %v2322 = vshrl.u32 %v2321, 7
  %v2323 = vsub.s32 %v2320, %v2322
  %v2324 = vrot.slane %v2302, %v2323
  %v2326 = vunpack.c.l.s4 1966171168
  %v2327 = vunpack.c.0.s8 %v2326
  %v2328 = vlaneseq
  %v2329 = vshrl.u32 %v2328, 7
  %v2330 = vsub.s32 %v2327, %v2329
  %v2331 = vrot.slane %v2303, %v2330
  %v2332 = vcombine.high %v2310, %v2310
  %v2333 = vcombine.high %v2317, %v2317
  %v2334 = vcombine.high %v2324, %v2324
  %v2335 = vcombine.high %v2086, %v2086
  %v2337 = vunpack.c.l.s4 1966171168
  %v2338 = vunpack.c.0.s8 %v2337
  %v2339 = vlaneseq
  %v2340 = vshrl.u32 %v2339, 7
  %v2341 = vsub.s32 %v2338, %v2340
  %v2342 = vrot.slane %v2086, %v2341
  %v2344 = vunpack.c.l.s4 1966171168
  %v2345 = vunpack.c.0.s8 %v2344
  %v2346 = vlaneseq
  %v2347 = vshrl.u32 %v2346, 7
  %v2348 = vsub.s32 %v2345, %v2347
  %v2349 = vrot.slane %v2335, %v2348
  %v2350 = vcombine.high %v2342, %v2342
  %v2351 = vcombine.high %v2349, %v2349
  %v2353 = vunpack.c.l.s4 1966171168
  %v2354 = vunpack.c.0.s8 %v2353
  %v2355 = vlaneseq
  %v2356 = vshrl.u32 %v2355, 7
  %v2357 = vsub.s32 %v2354, %v2356
  %v2358 = vrot.slane %v2342, %v2357
  %v2360 = vunpack.c.l.s4 1966171168
  %v2361 = vunpack.c.0.s8 %v2360
  %v2362 = vlaneseq
  %v2363 = vshrl.u32 %v2362, 7
  %v2364 = vsub.s32 %v2361, %v2363
  %v2365 = vrot.slane %v2349, %v2364
  %v2367 = vunpack.c.l.s4 1966171168
  %v2368 = vunpack.c.0.s8 %v2367
  %v2369 = vlaneseq
  %v2370 = vshrl.u32 %v2369, 7
  %v2371 = vsub.s32 %v2368, %v2370
  %v2372 = vrot.slane %v2350, %v2371
  %v2374 = vunpack.c.l.s4 1966171168
  %v2375 = vunpack.c.0.s8 %v2374
  %v2376 = vlaneseq
  %v2377 = vshrl.u32 %v2376, 7
  %v2378 = vsub.s32 %v2375, %v2377
  %v2379 = vrot.slane %v2351, %v2378
  %v2380 = vcombine.high %v2358, %v2358
  %v2381 = vcombine.high %v2365, %v2365
  %v2382 = vcombine.high %v2372, %v2372
  %v2383 = vcombine.high %v2087, %v2087
  %v2385 = vunpack.c.l.s4 1966171168
  %v2386 = vunpack.c.0.s8 %v2385
  %v2387 = vlaneseq
  %v2388 = vshrl.u32 %v2387, 7
  %v2389 = vsub.s32 %v2386, %v2388
  %v2390 = vrot.slane %v2087, %v2389
  %v2392 = vunpack.c.l.s4 1966171168
  %v2393 = vunpack.c.0.s8 %v2392
  %v2394 = vlaneseq
  %v2395 = vshrl.u32 %v2394, 7
  %v2396 = vsub.s32 %v2393, %v2395
  %v2397 = vrot.slane %v2383, %v2396
  %v2398 = vcombine.high %v2390, %v2390
  %v2399 = vcombine.high %v2397, %v2397
  %v2401 = vunpack.c.l.s4 1966171168
  %v2402 = vunpack.c.0.s8 %v2401
  %v2403 = vlaneseq
  %v2404 = vshrl.u32 %v2403, 7
  %v2405 = vsub.s32 %v2402, %v2404
  %v2406 = vrot.slane %v2390, %v2405
  %v2408 = vunpack.c.l.s4 1966171168
  %v2409 = vunpack.c.0.s8 %v2408
  %v2410 = vlaneseq
  %v2411 = vshrl.u32 %v2410, 7
  %v2412 = vsub.s32 %v2409, %v2411
  %v2413 = vrot.slane %v2397, %v2412
  %v2415 = vunpack.c.l.s4 1966171168
  %v2416 = vunpack.c.0.s8 %v2415
  %v2417 = vlaneseq
  %v2418 = vshrl.u32 %v2417, 7
  %v2419 = vsub.s32 %v2416, %v2418
  %v2420 = vrot.slane %v2398, %v2419
  %v2422 = vunpack.c.l.s4 1966171168
  %v2423 = vunpack.c.0.s8 %v2422
  %v2424 = vlaneseq
  %v2425 = vshrl.u32 %v2424, 7
  %v2426 = vsub.s32 %v2423, %v2425
  %v2427 = vrot.slane %v2399, %v2426
  %v2428 = vcombine.high %v2406, %v2406
  %v2429 = vcombine.high %v2413, %v2413
  %v2430 = vcombine.high %v2420, %v2420
  %v2431 = vld [vmem:[%s1373] sm:$0x7f]
  %v2432 = vld [vmem:[%s1373 + $0x10] sm:$0x7f]
  %v2433 = vld [vmem:[%s1373 + $0x20] sm:$0x7f]
  %v2434 = vld [vmem:[%s1373 + $0x30] sm:$0x7f]
  %v2435 = vld [vmem:[%s1373 + $0x40] sm:$0x7f]
  %v2436 = vld [vmem:[%s1373 + $0x50] sm:$0x7f]
  %v2437 = vld [vmem:[%s1373 + $0x60] sm:$0x7f]
  %v2445 = vcombine.high %v2431, %v2431
  %v2447 = vunpack.c.l.s4 1966171168
  %v2448 = vunpack.c.0.s8 %v2447
  %v2449 = vlaneseq
  %v2450 = vshrl.u32 %v2449, 7
  %v2451 = vsub.s32 %v2448, %v2450
  %v2452 = vrot.slane %v2431, %v2451
  %v2454 = vunpack.c.l.s4 1966171168
  %v2455 = vunpack.c.0.s8 %v2454
  %v2456 = vlaneseq
  %v2457 = vshrl.u32 %v2456, 7
  %v2458 = vsub.s32 %v2455, %v2457
  %v2459 = vrot.slane %v2445, %v2458
  %v2460 = vcombine.high %v2452, %v2452
  %v2461 = vcombine.high %v2459, %v2459
  %v2463 = vunpack.c.l.s4 1966171168
  %v2464 = vunpack.c.0.s8 %v2463
  %v2465 = vlaneseq
  %v2466 = vshrl.u32 %v2465, 7
  %v2467 = vsub.s32 %v2464, %v2466
  %v2468 = vrot.slane %v2452, %v2467
  %v2470 = vunpack.c.l.s4 1966171168
  %v2471 = vunpack.c.0.s8 %v2470
  %v2472 = vlaneseq
  %v2473 = vshrl.u32 %v2472, 7
  %v2474 = vsub.s32 %v2471, %v2473
  %v2475 = vrot.slane %v2459, %v2474
  %v2477 = vunpack.c.l.s4 1966171168
  %v2478 = vunpack.c.0.s8 %v2477
  %v2479 = vlaneseq
  %v2480 = vshrl.u32 %v2479, 7
  %v2481 = vsub.s32 %v2478, %v2480
  %v2482 = vrot.slane %v2460, %v2481
  %v2484 = vunpack.c.l.s4 1966171168
  %v2485 = vunpack.c.0.s8 %v2484
  %v2486 = vlaneseq
  %v2487 = vshrl.u32 %v2486, 7
  %v2488 = vsub.s32 %v2485, %v2487
  %v2489 = vrot.slane %v2461, %v2488
  %v2490 = vcombine.high %v2468, %v2468
  %v2491 = vcombine.high %v2475, %v2475
  %v2492 = vcombine.high %v2482, %v2482
  %v2493 = vcombine.high %v2432, %v2432
  %v2495 = vunpack.c.l.s4 1966171168
  %v2496 = vunpack.c.0.s8 %v2495
  %v2497 = vlaneseq
  %v2498 = vshrl.u32 %v2497, 7
  %v2499 = vsub.s32 %v2496, %v2498
  %v2500 = vrot.slane %v2432, %v2499
  %v2502 = vunpack.c.l.s4 1966171168
  %v2503 = vunpack.c.0.s8 %v2502
  %v2504 = vlaneseq
  %v2505 = vshrl.u32 %v2504, 7
  %v2506 = vsub.s32 %v2503, %v2505
  %v2507 = vrot.slane %v2493, %v2506
  %v2508 = vcombine.high %v2500, %v2500
  %v2509 = vcombine.high %v2507, %v2507
  %v2511 = vunpack.c.l.s4 1966171168
  %v2512 = vunpack.c.0.s8 %v2511
  %v2513 = vlaneseq
  %v2514 = vshrl.u32 %v2513, 7
  %v2515 = vsub.s32 %v2512, %v2514
  %v2516 = vrot.slane %v2500, %v2515
  %v2518 = vunpack.c.l.s4 1966171168
  %v2519 = vunpack.c.0.s8 %v2518
  %v2520 = vlaneseq
  %v2521 = vshrl.u32 %v2520, 7
  %v2522 = vsub.s32 %v2519, %v2521
  %v2523 = vrot.slane %v2507, %v2522
  %v2525 = vunpack.c.l.s4 1966171168
  %v2526 = vunpack.c.0.s8 %v2525
  %v2527 = vlaneseq
  %v2528 = vshrl.u32 %v2527, 7
  %v2529 = vsub.s32 %v2526, %v2528
  %v2530 = vrot.slane %v2508, %v2529
  %v2532 = vunpack.c.l.s4 1966171168
  %v2533 = vunpack.c.0.s8 %v2532
  %v2534 = vlaneseq
  %v2535 = vshrl.u32 %v2534, 7
  %v2536 = vsub.s32 %v2533, %v2535
  %v2537 = vrot.slane %v2509, %v2536
  %v2538 = vcombine.high %v2516, %v2516
  %v2539 = vcombine.high %v2523, %v2523
  %v2540 = vcombine.high %v2530, %v2530
  %v2541 = vcombine.high %v2433, %v2433
  %v2543 = vunpack.c.l.s4 1966171168
  %v2544 = vunpack.c.0.s8 %v2543
  %v2545 = vlaneseq
  %v2546 = vshrl.u32 %v2545, 7
  %v2547 = vsub.s32 %v2544, %v2546
  %v2548 = vrot.slane %v2433, %v2547
  %v2550 = vunpack.c.l.s4 1966171168
  %v2551 = vunpack.c.0.s8 %v2550
  %v2552 = vlaneseq
  %v2553 = vshrl.u32 %v2552, 7
  %v2554 = vsub.s32 %v2551, %v2553
  %v2555 = vrot.slane %v2541, %v2554
  %v2556 = vcombine.high %v2548, %v2548
  %v2557 = vcombine.high %v2555, %v2555
  %v2559 = vunpack.c.l.s4 1966171168
  %v2560 = vunpack.c.0.s8 %v2559
  %v2561 = vlaneseq
  %v2562 = vshrl.u32 %v2561, 7
  %v2563 = vsub.s32 %v2560, %v2562
  %v2564 = vrot.slane %v2548, %v2563
  %v2566 = vunpack.c.l.s4 1966171168
  %v2567 = vunpack.c.0.s8 %v2566
  %v2568 = vlaneseq
  %v2569 = vshrl.u32 %v2568, 7
  %v2570 = vsub.s32 %v2567, %v2569
  %v2571 = vrot.slane %v2555, %v2570
  %v2573 = vunpack.c.l.s4 1966171168
  %v2574 = vunpack.c.0.s8 %v2573
  %v2575 = vlaneseq
  %v2576 = vshrl.u32 %v2575, 7
  %v2577 = vsub.s32 %v2574, %v2576
  %v2578 = vrot.slane %v2556, %v2577
  %v2580 = vunpack.c.l.s4 1966171168
  %v2581 = vunpack.c.0.s8 %v2580
  %v2582 = vlaneseq
  %v2583 = vshrl.u32 %v2582, 7
  %v2584 = vsub.s32 %v2581, %v2583
  %v2585 = vrot.slane %v2557, %v2584
  %v2586 = vcombine.high %v2564, %v2564
  %v2587 = vcombine.high %v2571, %v2571
  %v2588 = vcombine.high %v2578, %v2578
  %v2589 = vcombine.high %v2434, %v2434
  %v2591 = vunpack.c.l.s4 1966171168
  %v2592 = vunpack.c.0.s8 %v2591
  %v2593 = vlaneseq
  %v2594 = vshrl.u32 %v2593, 7
  %v2595 = vsub.s32 %v2592, %v2594
  %v2596 = vrot.slane %v2434, %v2595
  %v2598 = vunpack.c.l.s4 1966171168
  %v2599 = vunpack.c.0.s8 %v2598
  %v2600 = vlaneseq
  %v2601 = vshrl.u32 %v2600, 7
  %v2602 = vsub.s32 %v2599, %v2601
  %v2603 = vrot.slane %v2589, %v2602
  %v2604 = vcombine.high %v2596, %v2596
  %v2605 = vcombine.high %v2603, %v2603
  %v2607 = vunpack.c.l.s4 1966171168
  %v2608 = vunpack.c.0.s8 %v2607
  %v2609 = vlaneseq
  %v2610 = vshrl.u32 %v2609, 7
  %v2611 = vsub.s32 %v2608, %v2610
  %v2612 = vrot.slane %v2596, %v2611
  %v2614 = vunpack.c.l.s4 1966171168
  %v2615 = vunpack.c.0.s8 %v2614
  %v2616 = vlaneseq
  %v2617 = vshrl.u32 %v2616, 7
  %v2618 = vsub.s32 %v2615, %v2617
  %v2619 = vrot.slane %v2603, %v2618
  %v2621 = vunpack.c.l.s4 1966171168
  %v2622 = vunpack.c.0.s8 %v2621
  %v2623 = vlaneseq
  %v2624 = vshrl.u32 %v2623, 7
  %v2625 = vsub.s32 %v2622, %v2624
  %v2626 = vrot.slane %v2604, %v2625
  %v2628 = vunpack.c.l.s4 1966171168
  %v2629 = vunpack.c.0.s8 %v2628
  %v2630 = vlaneseq
  %v2631 = vshrl.u32 %v2630, 7
  %v2632 = vsub.s32 %v2629, %v2631
  %v2633 = vrot.slane %v2605, %v2632
  %v2634 = vcombine.high %v2612, %v2612
  %v2635 = vcombine.high %v2619, %v2619
  %v2636 = vcombine.high %v2626, %v2626
  %v2637 = vcombine.high %v2435, %v2435
  %v2639 = vunpack.c.l.s4 1966171168
  %v2640 = vunpack.c.0.s8 %v2639
  %v2641 = vlaneseq
  %v2642 = vshrl.u32 %v2641, 7
  %v2643 = vsub.s32 %v2640, %v2642
  %v2644 = vrot.slane %v2435, %v2643
  %v2646 = vunpack.c.l.s4 1966171168
  %v2647 = vunpack.c.0.s8 %v2646
  %v2648 = vlaneseq
  %v2649 = vshrl.u32 %v2648, 7
  %v2650 = vsub.s32 %v2647, %v2649
  %v2651 = vrot.slane %v2637, %v2650
  %v2652 = vcombine.high %v2644, %v2644
  %v2653 = vcombine.high %v2651, %v2651
  %v2655 = vunpack.c.l.s4 1966171168
  %v2656 = vunpack.c.0.s8 %v2655
  %v2657 = vlaneseq
  %v2658 = vshrl.u32 %v2657, 7
  %v2659 = vsub.s32 %v2656, %v2658
  %v2660 = vrot.slane %v2644, %v2659
  %v2662 = vunpack.c.l.s4 1966171168
  %v2663 = vunpack.c.0.s8 %v2662
  %v2664 = vlaneseq
  %v2665 = vshrl.u32 %v2664, 7
  %v2666 = vsub.s32 %v2663, %v2665
  %v2667 = vrot.slane %v2651, %v2666
  %v2669 = vunpack.c.l.s4 1966171168
  %v2670 = vunpack.c.0.s8 %v2669
  %v2671 = vlaneseq
  %v2672 = vshrl.u32 %v2671, 7
  %v2673 = vsub.s32 %v2670, %v2672
  %v2674 = vrot.slane %v2652, %v2673
  %v2676 = vunpack.c.l.s4 1966171168
  %v2677 = vunpack.c.0.s8 %v2676
  %v2678 = vlaneseq
  %v2679 = vshrl.u32 %v2678, 7
  %v2680 = vsub.s32 %v2677, %v2679
  %v2681 = vrot.slane %v2653, %v2680
  %v2682 = vcombine.high %v2660, %v2660
  %v2683 = vcombine.high %v2667, %v2667
  %v2684 = vcombine.high %v2674, %v2674
  %v2685 = vcombine.high %v2436, %v2436
  %v2687 = vunpack.c.l.s4 1966171168
  %v2688 = vunpack.c.0.s8 %v2687
  %v2689 = vlaneseq
  %v2690 = vshrl.u32 %v2689, 7
  %v2691 = vsub.s32 %v2688, %v2690
  %v2692 = vrot.slane %v2436, %v2691
  %v2694 = vunpack.c.l.s4 1966171168
  %v2695 = vunpack.c.0.s8 %v2694
  %v2696 = vlaneseq
  %v2697 = vshrl.u32 %v2696, 7
  %v2698 = vsub.s32 %v2695, %v2697
  %v2699 = vrot.slane %v2685, %v2698
  %v2700 = vcombine.high %v2692, %v2692
  %v2701 = vcombine.high %v2699, %v2699
  %v2703 = vunpack.c.l.s4 1966171168
  %v2704 = vunpack.c.0.s8 %v2703
  %v2705 = vlaneseq
  %v2706 = vshrl.u32 %v2705, 7
  %v2707 = vsub.s32 %v2704, %v2706
  %v2708 = vrot.slane %v2692, %v2707
  %v2710 = vunpack.c.l.s4 1966171168
  %v2711 = vunpack.c.0.s8 %v2710
  %v2712 = vlaneseq
  %v2713 = vshrl.u32 %v2712, 7
  %v2714 = vsub.s32 %v2711, %v2713
  %v2715 = vrot.slane %v2699, %v2714
  %v2717 = vunpack.c.l.s4 1966171168
  %v2718 = vunpack.c.0.s8 %v2717
  %v2719 = vlaneseq
  %v2720 = vshrl.u32 %v2719, 7
  %v2721 = vsub.s32 %v2718, %v2720
  %v2722 = vrot.slane %v2700, %v2721
  %v2724 = vunpack.c.l.s4 1966171168
  %v2725 = vunpack.c.0.s8 %v2724
  %v2726 = vlaneseq
  %v2727 = vshrl.u32 %v2726, 7
  %v2728 = vsub.s32 %v2725, %v2727
  %v2729 = vrot.slane %v2701, %v2728
  %v2730 = vcombine.high %v2708, %v2708
  %v2731 = vcombine.high %v2715, %v2715
  %v2732 = vcombine.high %v2722, %v2722
  %v2733 = vcombine.high %v2437, %v2437
  %v2735 = vunpack.c.l.s4 1966171168
  %v2736 = vunpack.c.0.s8 %v2735
  %v2737 = vlaneseq
  %v2738 = vshrl.u32 %v2737, 7
  %v2739 = vsub.s32 %v2736, %v2738
  %v2740 = vrot.slane %v2437, %v2739
  %v2742 = vunpack.c.l.s4 1966171168
  %v2743 = vunpack.c.0.s8 %v2742
  %v2744 = vlaneseq
  %v2745 = vshrl.u32 %v2744, 7
  %v2746 = vsub.s32 %v2743, %v2745
  %v2747 = vrot.slane %v2733, %v2746
  %v2748 = vcombine.high %v2740, %v2740
  %v2749 = vcombine.high %v2747, %v2747
  %v2751 = vunpack.c.l.s4 1966171168
  %v2752 = vunpack.c.0.s8 %v2751
  %v2753 = vlaneseq
  %v2754 = vshrl.u32 %v2753, 7
  %v2755 = vsub.s32 %v2752, %v2754
  %v2756 = vrot.slane %v2740, %v2755
  %v2758 = vunpack.c.l.s4 1966171168
  %v2759 = vunpack.c.0.s8 %v2758
  %v2760 = vlaneseq
  %v2761 = vshrl.u32 %v2760, 7
  %v2762 = vsub.s32 %v2759, %v2761
  %v2763 = vrot.slane %v2747, %v2762
  %v2765 = vunpack.c.l.s4 1966171168
  %v2766 = vunpack.c.0.s8 %v2765
  %v2767 = vlaneseq
  %v2768 = vshrl.u32 %v2767, 7
  %v2769 = vsub.s32 %v2766, %v2768
  %v2770 = vrot.slane %v2748, %v2769
  %v2772 = vunpack.c.l.s4 1966171168
  %v2773 = vunpack.c.0.s8 %v2772
  %v2774 = vlaneseq
  %v2775 = vshrl.u32 %v2774, 7
  %v2776 = vsub.s32 %v2773, %v2775
  %v2777 = vrot.slane %v2749, %v2776
  %v2778 = vcombine.high %v2756, %v2756
  %v2779 = vcombine.high %v2763, %v2763
  %v2780 = vcombine.high %v2770, %v2770
  %v2781 = vld [vmem:[%s1373 + $0x1] sm:$0x7f]
  %v2782 = vld [vmem:[%s1373 + $0x11] sm:$0x7f]
  %v2783 = vld [vmem:[%s1373 + $0x21] sm:$0x7f]
  %v2784 = vld [vmem:[%s1373 + $0x31] sm:$0x7f]
  %v2785 = vld [vmem:[%s1373 + $0x41] sm:$0x7f]
  %v2786 = vld [vmem:[%s1373 + $0x51] sm:$0x7f]
  %v2787 = vld [vmem:[%s1373 + $0x61] sm:$0x7f]
  %v2795 = vcombine.high %v2781, %v2781
  %v2797 = vunpack.c.l.s4 1966171168
  %v2798 = vunpack.c.0.s8 %v2797
  %v2799 = vlaneseq
  %v2800 = vshrl.u32 %v2799, 7
  %v2801 = vsub.s32 %v2798, %v2800
  %v2802 = vrot.slane %v2781, %v2801
  %v2804 = vunpack.c.l.s4 1966171168
  %v2805 = vunpack.c.0.s8 %v2804
  %v2806 = vlaneseq
  %v2807 = vshrl.u32 %v2806, 7
  %v2808 = vsub.s32 %v2805, %v2807
  %v2809 = vrot.slane %v2795, %v2808
  %v2810 = vcombine.high %v2802, %v2802
  %v2811 = vcombine.high %v2809, %v2809
  %v2813 = vunpack.c.l.s4 1966171168
  %v2814 = vunpack.c.0.s8 %v2813
  %v2815 = vlaneseq
  %v2816 = vshrl.u32 %v2815, 7
  %v2817 = vsub.s32 %v2814, %v2816
  %v2818 = vrot.slane %v2802, %v2817
  %v2820 = vunpack.c.l.s4 1966171168
  %v2821 = vunpack.c.0.s8 %v2820
  %v2822 = vlaneseq
  %v2823 = vshrl.u32 %v2822, 7
  %v2824 = vsub.s32 %v2821, %v2823
  %v2825 = vrot.slane %v2809, %v2824
  %v2827 = vunpack.c.l.s4 1966171168
  %v2828 = vunpack.c.0.s8 %v2827
  %v2829 = vlaneseq
  %v2830 = vshrl.u32 %v2829, 7
  %v2831 = vsub.s32 %v2828, %v2830
  %v2832 = vrot.slane %v2810, %v2831
  %v2834 = vunpack.c.l.s4 1966171168
  %v2835 = vunpack.c.0.s8 %v2834
  %v2836 = vlaneseq
  %v2837 = vshrl.u32 %v2836, 7
  %v2838 = vsub.s32 %v2835, %v2837
  %v2839 = vrot.slane %v2811, %v2838
  %v2840 = vcombine.high %v2818, %v2818
  %v2841 = vcombine.high %v2825, %v2825
  %v2842 = vcombine.high %v2832, %v2832
  %v2843 = vcombine.high %v2782, %v2782
  %v2845 = vunpack.c.l.s4 1966171168
  %v2846 = vunpack.c.0.s8 %v2845
  %v2847 = vlaneseq
  %v2848 = vshrl.u32 %v2847, 7
  %v2849 = vsub.s32 %v2846, %v2848
  %v2850 = vrot.slane %v2782, %v2849
  %v2852 = vunpack.c.l.s4 1966171168
  %v2853 = vunpack.c.0.s8 %v2852
  %v2854 = vlaneseq
  %v2855 = vshrl.u32 %v2854, 7
  %v2856 = vsub.s32 %v2853, %v2855
  %v2857 = vrot.slane %v2843, %v2856
  %v2858 = vcombine.high %v2850, %v2850
  %v2859 = vcombine.high %v2857, %v2857
  %v2861 = vunpack.c.l.s4 1966171168
  %v2862 = vunpack.c.0.s8 %v2861
  %v2863 = vlaneseq
  %v2864 = vshrl.u32 %v2863, 7
  %v2865 = vsub.s32 %v2862, %v2864
  %v2866 = vrot.slane %v2850, %v2865
  %v2868 = vunpack.c.l.s4 1966171168
  %v2869 = vunpack.c.0.s8 %v2868
  %v2870 = vlaneseq
  %v2871 = vshrl.u32 %v2870, 7
  %v2872 = vsub.s32 %v2869, %v2871
  %v2873 = vrot.slane %v2857, %v2872
  %v2875 = vunpack.c.l.s4 1966171168
  %v2876 = vunpack.c.0.s8 %v2875
  %v2877 = vlaneseq
  %v2878 = vshrl.u32 %v2877, 7
  %v2879 = vsub.s32 %v2876, %v2878
  %v2880 = vrot.slane %v2858, %v2879
  %v2882 = vunpack.c.l.s4 1966171168
  %v2883 = vunpack.c.0.s8 %v2882
  %v2884 = vlaneseq
  %v2885 = vshrl.u32 %v2884, 7
  %v2886 = vsub.s32 %v2883, %v2885
  %v2887 = vrot.slane %v2859, %v2886
  %v2888 = vcombine.high %v2866, %v2866
  %v2889 = vcombine.high %v2873, %v2873
  %v2890 = vcombine.high %v2880, %v2880
  %v2891 = vcombine.high %v2783, %v2783
  %v2893 = vunpack.c.l.s4 1966171168
  %v2894 = vunpack.c.0.s8 %v2893
  %v2895 = vlaneseq
  %v2896 = vshrl.u32 %v2895, 7
  %v2897 = vsub.s32 %v2894, %v2896
  %v2898 = vrot.slane %v2783, %v2897
  %v2900 = vunpack.c.l.s4 1966171168
  %v2901 = vunpack.c.0.s8 %v2900
  %v2902 = vlaneseq
  %v2903 = vshrl.u32 %v2902, 7
  %v2904 = vsub.s32 %v2901, %v2903
  %v2905 = vrot.slane %v2891, %v2904
  %v2906 = vcombine.high %v2898, %v2898
  %v2907 = vcombine.high %v2905, %v2905
  %v2909 = vunpack.c.l.s4 1966171168
  %v2910 = vunpack.c.0.s8 %v2909
  %v2911 = vlaneseq
  %v2912 = vshrl.u32 %v2911, 7
  %v2913 = vsub.s32 %v2910, %v2912
  %v2914 = vrot.slane %v2898, %v2913
  %v2916 = vunpack.c.l.s4 1966171168
  %v2917 = vunpack.c.0.s8 %v2916
  %v2918 = vlaneseq
  %v2919 = vshrl.u32 %v2918, 7
  %v2920 = vsub.s32 %v2917, %v2919
  %v2921 = vrot.slane %v2905, %v2920
  %v2923 = vunpack.c.l.s4 1966171168
  %v2924 = vunpack.c.0.s8 %v2923
  %v2925 = vlaneseq
  %v2926 = vshrl.u32 %v2925, 7
  %v2927 = vsub.s32 %v2924, %v2926
  %v2928 = vrot.slane %v2906, %v2927
  %v2930 = vunpack.c.l.s4 1966171168
  %v2931 = vunpack.c.0.s8 %v2930
  %v2932 = vlaneseq
  %v2933 = vshrl.u32 %v2932, 7
  %v2934 = vsub.s32 %v2931, %v2933
  %v2935 = vrot.slane %v2907, %v2934
  %v2936 = vcombine.high %v2914, %v2914
  %v2937 = vcombine.high %v2921, %v2921
  %v2938 = vcombine.high %v2928, %v2928
  %v2939 = vcombine.high %v2784, %v2784
  %v2941 = vunpack.c.l.s4 1966171168
  %v2942 = vunpack.c.0.s8 %v2941
  %v2943 = vlaneseq
  %v2944 = vshrl.u32 %v2943, 7
  %v2945 = vsub.s32 %v2942, %v2944
  %v2946 = vrot.slane %v2784, %v2945
  %v2948 = vunpack.c.l.s4 1966171168
  %v2949 = vunpack.c.0.s8 %v2948
  %v2950 = vlaneseq
  %v2951 = vshrl.u32 %v2950, 7
  %v2952 = vsub.s32 %v2949, %v2951
  %v2953 = vrot.slane %v2939, %v2952
  %v2954 = vcombine.high %v2946, %v2946
  %v2955 = vcombine.high %v2953, %v2953
  %v2957 = vunpack.c.l.s4 1966171168
  %v2958 = vunpack.c.0.s8 %v2957
  %v2959 = vlaneseq
  %v2960 = vshrl.u32 %v2959, 7
  %v2961 = vsub.s32 %v2958, %v2960
  %v2962 = vrot.slane %v2946, %v2961
  %v2964 = vunpack.c.l.s4 1966171168
  %v2965 = vunpack.c.0.s8 %v2964
  %v2966 = vlaneseq
  %v2967 = vshrl.u32 %v2966, 7
  %v2968 = vsub.s32 %v2965, %v2967
  %v2969 = vrot.slane %v2953, %v2968
  %v2971 = vunpack.c.l.s4 1966171168
  %v2972 = vunpack.c.0.s8 %v2971
  %v2973 = vlaneseq
  %v2974 = vshrl.u32 %v2973, 7
  %v2975 = vsub.s32 %v2972, %v2974
  %v2976 = vrot.slane %v2954, %v2975
  %v2978 = vunpack.c.l.s4 1966171168
  %v2979 = vunpack.c.0.s8 %v2978
  %v2980 = vlaneseq
  %v2981 = vshrl.u32 %v2980, 7
  %v2982 = vsub.s32 %v2979, %v2981
  %v2983 = vrot.slane %v2955, %v2982
  %v2984 = vcombine.high %v2962, %v2962
  %v2985 = vcombine.high %v2969, %v2969
  %v2986 = vcombine.high %v2976, %v2976
  %v2987 = vcombine.high %v2785, %v2785
  %v2989 = vunpack.c.l.s4 1966171168
  %v2990 = vunpack.c.0.s8 %v2989
  %v2991 = vlaneseq
  %v2992 = vshrl.u32 %v2991, 7
  %v2993 = vsub.s32 %v2990, %v2992
  %v2994 = vrot.slane %v2785, %v2993
  %v2996 = vunpack.c.l.s4 1966171168
  %v2997 = vunpack.c.0.s8 %v2996
  %v2998 = vlaneseq
  %v2999 = vshrl.u32 %v2998, 7
  %v3000 = vsub.s32 %v2997, %v2999
  %v3001 = vrot.slane %v2987, %v3000
  %v3002 = vcombine.high %v2994, %v2994
  %v3003 = vcombine.high %v3001, %v3001
  %v3005 = vunpack.c.l.s4 1966171168
  %v3006 = vunpack.c.0.s8 %v3005
  %v3007 = vlaneseq
  %v3008 = vshrl.u32 %v3007, 7
  %v3009 = vsub.s32 %v3006, %v3008
  %v3010 = vrot.slane %v2994, %v3009
  %v3012 = vunpack.c.l.s4 1966171168
  %v3013 = vunpack.c.0.s8 %v3012
  %v3014 = vlaneseq
  %v3015 = vshrl.u32 %v3014, 7
  %v3016 = vsub.s32 %v3013, %v3015
  %v3017 = vrot.slane %v3001, %v3016
  %v3019 = vunpack.c.l.s4 1966171168
  %v3020 = vunpack.c.0.s8 %v3019
  %v3021 = vlaneseq
  %v3022 = vshrl.u32 %v3021, 7
  %v3023 = vsub.s32 %v3020, %v3022
  %v3024 = vrot.slane %v3002, %v3023
  %v3026 = vunpack.c.l.s4 1966171168
  %v3027 = vunpack.c.0.s8 %v3026
  %v3028 = vlaneseq
  %v3029 = vshrl.u32 %v3028, 7
  %v3030 = vsub.s32 %v3027, %v3029
  %v3031 = vrot.slane %v3003, %v3030
  %v3032 = vcombine.high %v3010, %v3010
  %v3033 = vcombine.high %v3017, %v3017
  %v3034 = vcombine.high %v3024, %v3024
  %v3035 = vcombine.high %v2786, %v2786
  %v3037 = vunpack.c.l.s4 1966171168
  %v3038 = vunpack.c.0.s8 %v3037
  %v3039 = vlaneseq
  %v3040 = vshrl.u32 %v3039, 7
  %v3041 = vsub.s32 %v3038, %v3040
  %v3042 = vrot.slane %v2786, %v3041
  %v3044 = vunpack.c.l.s4 1966171168
  %v3045 = vunpack.c.0.s8 %v3044
  %v3046 = vlaneseq
  %v3047 = vshrl.u32 %v3046, 7
  %v3048 = vsub.s32 %v3045, %v3047
  %v3049 = vrot.slane %v3035, %v3048
  %v3050 = vcombine.high %v3042, %v3042
  %v3051 = vcombine.high %v3049, %v3049
  %v3053 = vunpack.c.l.s4 1966171168
  %v3054 = vunpack.c.0.s8 %v3053
  %v3055 = vlaneseq
  %v3056 = vshrl.u32 %v3055, 7
  %v3057 = vsub.s32 %v3054, %v3056
  %v3058 = vrot.slane %v3042, %v3057
  %v3060 = vunpack.c.l.s4 1966171168
  %v3061 = vunpack.c.0.s8 %v3060
  %v3062 = vlaneseq
  %v3063 = vshrl.u32 %v3062, 7
  %v3064 = vsub.s32 %v3061, %v3063
  %v3065 = vrot.slane %v3049, %v3064
  %v3067 = vunpack.c.l.s4 1966171168
  %v3068 = vunpack.c.0.s8 %v3067
  %v3069 = vlaneseq
  %v3070 = vshrl.u32 %v3069, 7
  %v3071 = vsub.s32 %v3068, %v3070
  %v3072 = vrot.slane %v3050, %v3071
  %v3074 = vunpack.c.l.s4 1966171168
  %v3075 = vunpack.c.0.s8 %v3074
  %v3076 = vlaneseq
  %v3077 = vshrl.u32 %v3076, 7
  %v3078 = vsub.s32 %v3075, %v3077
  %v3079 = vrot.slane %v3051, %v3078
  %v3080 = vcombine.high %v3058, %v3058
  %v3081 = vcombine.high %v3065, %v3065
  %v3082 = vcombine.high %v3072, %v3072
  %v3083 = vcombine.high %v2787, %v2787
  %v3085 = vunpack.c.l.s4 1966171168
  %v3086 = vunpack.c.0.s8 %v3085
  %v3087 = vlaneseq
  %v3088 = vshrl.u32 %v3087, 7
  %v3089 = vsub.s32 %v3086, %v3088
  %v3090 = vrot.slane %v2787, %v3089
  %v3092 = vunpack.c.l.s4 1966171168
  %v3093 = vunpack.c.0.s8 %v3092
  %v3094 = vlaneseq
  %v3095 = vshrl.u32 %v3094, 7
  %v3096 = vsub.s32 %v3093, %v3095
  %v3097 = vrot.slane %v3083, %v3096
  %v3098 = vcombine.high %v3090, %v3090
  %v3099 = vcombine.high %v3097, %v3097
  %v3101 = vunpack.c.l.s4 1966171168
  %v3102 = vunpack.c.0.s8 %v3101
  %v3103 = vlaneseq
  %v3104 = vshrl.u32 %v3103, 7
  %v3105 = vsub.s32 %v3102, %v3104
  %v3106 = vrot.slane %v3090, %v3105
  %v3108 = vunpack.c.l.s4 1966171168
  %v3109 = vunpack.c.0.s8 %v3108
  %v3110 = vlaneseq
  %v3111 = vshrl.u32 %v3110, 7
  %v3112 = vsub.s32 %v3109, %v3111
  %v3113 = vrot.slane %v3097, %v3112
  %v3115 = vunpack.c.l.s4 1966171168
  %v3116 = vunpack.c.0.s8 %v3115
  %v3117 = vlaneseq
  %v3118 = vshrl.u32 %v3117, 7
  %v3119 = vsub.s32 %v3116, %v3118
  %v3120 = vrot.slane %v3098, %v3119
  %v3122 = vunpack.c.l.s4 1966171168
  %v3123 = vunpack.c.0.s8 %v3122
  %v3124 = vlaneseq
  %v3125 = vshrl.u32 %v3124, 7
  %v3126 = vsub.s32 %v3123, %v3125
  %v3127 = vrot.slane %v3099, %v3126
  %v3128 = vcombine.high %v3106, %v3106
  %v3129 = vcombine.high %v3113, %v3113
  %v3130 = vcombine.high %v3120, %v3120
  %v3131 = vld [vmem:[%s1373 + $0x2] sm:$0x7f]
  %v3132 = vld [vmem:[%s1373 + $0x12] sm:$0x7f]
  %v3133 = vld [vmem:[%s1373 + $0x22] sm:$0x7f]
  %v3134 = vld [vmem:[%s1373 + $0x32] sm:$0x7f]
  %v3135 = vld [vmem:[%s1373 + $0x42] sm:$0x7f]
  %v3136 = vld [vmem:[%s1373 + $0x52] sm:$0x7f]
  %v3137 = vld [vmem:[%s1373 + $0x62] sm:$0x7f]
  %v3145 = vcombine.high %v3131, %v3131
  %v3147 = vunpack.c.l.s4 1966171168
  %v3148 = vunpack.c.0.s8 %v3147
  %v3149 = vlaneseq
  %v3150 = vshrl.u32 %v3149, 7
  %v3151 = vsub.s32 %v3148, %v3150
  %v3152 = vrot.slane %v3131, %v3151
  %v3154 = vunpack.c.l.s4 1966171168
  %v3155 = vunpack.c.0.s8 %v3154
  %v3156 = vlaneseq
  %v3157 = vshrl.u32 %v3156, 7
  %v3158 = vsub.s32 %v3155, %v3157
  %v3159 = vrot.slane %v3145, %v3158
  %v3160 = vcombine.high %v3152, %v3152
  %v3161 = vcombine.high %v3159, %v3159
  %v3163 = vunpack.c.l.s4 1966171168
  %v3164 = vunpack.c.0.s8 %v3163
  %v3165 = vlaneseq
  %v3166 = vshrl.u32 %v3165, 7
  %v3167 = vsub.s32 %v3164, %v3166
  %v3168 = vrot.slane %v3152, %v3167
  %v3170 = vunpack.c.l.s4 1966171168
  %v3171 = vunpack.c.0.s8 %v3170
  %v3172 = vlaneseq
  %v3173 = vshrl.u32 %v3172, 7
  %v3174 = vsub.s32 %v3171, %v3173
  %v3175 = vrot.slane %v3159, %v3174
  %v3177 = vunpack.c.l.s4 1966171168
  %v3178 = vunpack.c.0.s8 %v3177
  %v3179 = vlaneseq
  %v3180 = vshrl.u32 %v3179, 7
  %v3181 = vsub.s32 %v3178, %v3180
  %v3182 = vrot.slane %v3160, %v3181
  %v3184 = vunpack.c.l.s4 1966171168
  %v3185 = vunpack.c.0.s8 %v3184
  %v3186 = vlaneseq
  %v3187 = vshrl.u32 %v3186, 7
  %v3188 = vsub.s32 %v3185, %v3187
  %v3189 = vrot.slane %v3161, %v3188
  %v3190 = vcombine.high %v3168, %v3168
  %v3191 = vcombine.high %v3175, %v3175
  %v3192 = vcombine.high %v3182, %v3182
  %v3193 = vcombine.high %v3132, %v3132
  %v3195 = vunpack.c.l.s4 1966171168
  %v3196 = vunpack.c.0.s8 %v3195
  %v3197 = vlaneseq
  %v3198 = vshrl.u32 %v3197, 7
  %v3199 = vsub.s32 %v3196, %v3198
  %v3200 = vrot.slane %v3132, %v3199
  %v3202 = vunpack.c.l.s4 1966171168
  %v3203 = vunpack.c.0.s8 %v3202
  %v3204 = vlaneseq
  %v3205 = vshrl.u32 %v3204, 7
  %v3206 = vsub.s32 %v3203, %v3205
  %v3207 = vrot.slane %v3193, %v3206
  %v3208 = vcombine.high %v3200, %v3200
  %v3209 = vcombine.high %v3207, %v3207
  %v3211 = vunpack.c.l.s4 1966171168
  %v3212 = vunpack.c.0.s8 %v3211
  %v3213 = vlaneseq
  %v3214 = vshrl.u32 %v3213, 7
  %v3215 = vsub.s32 %v3212, %v3214
  %v3216 = vrot.slane %v3200, %v3215
  %v3218 = vunpack.c.l.s4 1966171168
  %v3219 = vunpack.c.0.s8 %v3218
  %v3220 = vlaneseq
  %v3221 = vshrl.u32 %v3220, 7
  %v3222 = vsub.s32 %v3219, %v3221
  %v3223 = vrot.slane %v3207, %v3222
  %v3225 = vunpack.c.l.s4 1966171168
  %v3226 = vunpack.c.0.s8 %v3225
  %v3227 = vlaneseq
  %v3228 = vshrl.u32 %v3227, 7
  %v3229 = vsub.s32 %v3226, %v3228
  %v3230 = vrot.slane %v3208, %v3229
  %v3232 = vunpack.c.l.s4 1966171168
  %v3233 = vunpack.c.0.s8 %v3232
  %v3234 = vlaneseq
  %v3235 = vshrl.u32 %v3234, 7
  %v3236 = vsub.s32 %v3233, %v3235
  %v3237 = vrot.slane %v3209, %v3236
  %v3238 = vcombine.high %v3216, %v3216
  %v3239 = vcombine.high %v3223, %v3223
  %v3240 = vcombine.high %v3230, %v3230
  %v3241 = vcombine.high %v3133, %v3133
  %v3243 = vunpack.c.l.s4 1966171168
  %v3244 = vunpack.c.0.s8 %v3243
  %v3245 = vlaneseq
  %v3246 = vshrl.u32 %v3245, 7
  %v3247 = vsub.s32 %v3244, %v3246
  %v3248 = vrot.slane %v3133, %v3247
  %v3250 = vunpack.c.l.s4 1966171168
  %v3251 = vunpack.c.0.s8 %v3250
  %v3252 = vlaneseq
  %v3253 = vshrl.u32 %v3252, 7
  %v3254 = vsub.s32 %v3251, %v3253
  %v3255 = vrot.slane %v3241, %v3254
  %v3256 = vcombine.high %v3248, %v3248
  %v3257 = vcombine.high %v3255, %v3255
  %v3259 = vunpack.c.l.s4 1966171168
  %v3260 = vunpack.c.0.s8 %v3259
  %v3261 = vlaneseq
  %v3262 = vshrl.u32 %v3261, 7
  %v3263 = vsub.s32 %v3260, %v3262
  %v3264 = vrot.slane %v3248, %v3263
  %v3266 = vunpack.c.l.s4 1966171168
  %v3267 = vunpack.c.0.s8 %v3266
  %v3268 = vlaneseq
  %v3269 = vshrl.u32 %v3268, 7
  %v3270 = vsub.s32 %v3267, %v3269
  %v3271 = vrot.slane %v3255, %v3270
  %v3273 = vunpack.c.l.s4 1966171168
  %v3274 = vunpack.c.0.s8 %v3273
  %v3275 = vlaneseq
  %v3276 = vshrl.u32 %v3275, 7
  %v3277 = vsub.s32 %v3274, %v3276
  %v3278 = vrot.slane %v3256, %v3277
  %v3280 = vunpack.c.l.s4 1966171168
  %v3281 = vunpack.c.0.s8 %v3280
  %v3282 = vlaneseq
  %v3283 = vshrl.u32 %v3282, 7
  %v3284 = vsub.s32 %v3281, %v3283
  %v3285 = vrot.slane %v3257, %v3284
  %v3286 = vcombine.high %v3264, %v3264
  %v3287 = vcombine.high %v3271, %v3271
  %v3288 = vcombine.high %v3278, %v3278
  %v3289 = vcombine.high %v3134, %v3134
  %v3291 = vunpack.c.l.s4 1966171168
  %v3292 = vunpack.c.0.s8 %v3291
  %v3293 = vlaneseq
  %v3294 = vshrl.u32 %v3293, 7
  %v3295 = vsub.s32 %v3292, %v3294
  %v3296 = vrot.slane %v3134, %v3295
  %v3298 = vunpack.c.l.s4 1966171168
  %v3299 = vunpack.c.0.s8 %v3298
  %v3300 = vlaneseq
  %v3301 = vshrl.u32 %v3300, 7
  %v3302 = vsub.s32 %v3299, %v3301
  %v3303 = vrot.slane %v3289, %v3302
  %v3304 = vcombine.high %v3296, %v3296
  %v3305 = vcombine.high %v3303, %v3303
  %v3307 = vunpack.c.l.s4 1966171168
  %v3308 = vunpack.c.0.s8 %v3307
  %v3309 = vlaneseq
  %v3310 = vshrl.u32 %v3309, 7
  %v3311 = vsub.s32 %v3308, %v3310
  %v3312 = vrot.slane %v3296, %v3311
  %v3314 = vunpack.c.l.s4 1966171168
  %v3315 = vunpack.c.0.s8 %v3314
  %v3316 = vlaneseq
  %v3317 = vshrl.u32 %v3316, 7
  %v3318 = vsub.s32 %v3315, %v3317
  %v3319 = vrot.slane %v3303, %v3318
  %v3321 = vunpack.c.l.s4 1966171168
  %v3322 = vunpack.c.0.s8 %v3321
  %v3323 = vlaneseq
  %v3324 = vshrl.u32 %v3323, 7
  %v3325 = vsub.s32 %v3322, %v3324
  %v3326 = vrot.slane %v3304, %v3325
  %v3328 = vunpack.c.l.s4 1966171168
  %v3329 = vunpack.c.0.s8 %v3328
  %v3330 = vlaneseq
  %v3331 = vshrl.u32 %v3330, 7
  %v3332 = vsub.s32 %v3329, %v3331
  %v3333 = vrot.slane %v3305, %v3332
  %v3334 = vcombine.high %v3312, %v3312
  %v3335 = vcombine.high %v3319, %v3319
  %v3336 = vcombine.high %v3326, %v3326
  %v3337 = vcombine.high %v3135, %v3135
  %v3339 = vunpack.c.l.s4 1966171168
  %v3340 = vunpack.c.0.s8 %v3339
  %v3341 = vlaneseq
  %v3342 = vshrl.u32 %v3341, 7
  %v3343 = vsub.s32 %v3340, %v3342
  %v3344 = vrot.slane %v3135, %v3343
  %v3346 = vunpack.c.l.s4 1966171168
  %v3347 = vunpack.c.0.s8 %v3346
  %v3348 = vlaneseq
  %v3349 = vshrl.u32 %v3348, 7
  %v3350 = vsub.s32 %v3347, %v3349
  %v3351 = vrot.slane %v3337, %v3350
  %v3352 = vcombine.high %v3344, %v3344
  %v3353 = vcombine.high %v3351, %v3351
  %v3355 = vunpack.c.l.s4 1966171168
  %v3356 = vunpack.c.0.s8 %v3355
  %v3357 = vlaneseq
  %v3358 = vshrl.u32 %v3357, 7
  %v3359 = vsub.s32 %v3356, %v3358
  %v3360 = vrot.slane %v3344, %v3359
  %v3362 = vunpack.c.l.s4 1966171168
  %v3363 = vunpack.c.0.s8 %v3362
  %v3364 = vlaneseq
  %v3365 = vshrl.u32 %v3364, 7
  %v3366 = vsub.s32 %v3363, %v3365
  %v3367 = vrot.slane %v3351, %v3366
  %v3369 = vunpack.c.l.s4 1966171168
  %v3370 = vunpack.c.0.s8 %v3369
  %v3371 = vlaneseq
  %v3372 = vshrl.u32 %v3371, 7
  %v3373 = vsub.s32 %v3370, %v3372
  %v3374 = vrot.slane %v3352, %v3373
  %v3376 = vunpack.c.l.s4 1966171168
  %v3377 = vunpack.c.0.s8 %v3376
  %v3378 = vlaneseq
  %v3379 = vshrl.u32 %v3378, 7
  %v3380 = vsub.s32 %v3377, %v3379
  %v3381 = vrot.slane %v3353, %v3380
  %v3382 = vcombine.high %v3360, %v3360
  %v3383 = vcombine.high %v3367, %v3367
  %v3384 = vcombine.high %v3374, %v3374
  %v3385 = vcombine.high %v3136, %v3136
  %v3387 = vunpack.c.l.s4 1966171168
  %v3388 = vunpack.c.0.s8 %v3387
  %v3389 = vlaneseq
  %v3390 = vshrl.u32 %v3389, 7
  %v3391 = vsub.s32 %v3388, %v3390
  %v3392 = vrot.slane %v3136, %v3391
  %v3394 = vunpack.c.l.s4 1966171168
  %v3395 = vunpack.c.0.s8 %v3394
  %v3396 = vlaneseq
  %v3397 = vshrl.u32 %v3396, 7
  %v3398 = vsub.s32 %v3395, %v3397
  %v3399 = vrot.slane %v3385, %v3398
  %v3400 = vcombine.high %v3392, %v3392
  %v3401 = vcombine.high %v3399, %v3399
  %v3403 = vunpack.c.l.s4 1966171168
  %v3404 = vunpack.c.0.s8 %v3403
  %v3405 = vlaneseq
  %v3406 = vshrl.u32 %v3405, 7
  %v3407 = vsub.s32 %v3404, %v3406
  %v3408 = vrot.slane %v3392, %v3407
  %v3410 = vunpack.c.l.s4 1966171168
  %v3411 = vunpack.c.0.s8 %v3410
  %v3412 = vlaneseq
  %v3413 = vshrl.u32 %v3412, 7
  %v3414 = vsub.s32 %v3411, %v3413
  %v3415 = vrot.slane %v3399, %v3414
  %v3417 = vunpack.c.l.s4 1966171168
  %v3418 = vunpack.c.0.s8 %v3417
  %v3419 = vlaneseq
  %v3420 = vshrl.u32 %v3419, 7
  %v3421 = vsub.s32 %v3418, %v3420
  %v3422 = vrot.slane %v3400, %v3421
  %v3424 = vunpack.c.l.s4 1966171168
  %v3425 = vunpack.c.0.s8 %v3424
  %v3426 = vlaneseq
  %v3427 = vshrl.u32 %v3426, 7
  %v3428 = vsub.s32 %v3425, %v3427
  %v3429 = vrot.slane %v3401, %v3428
  %v3430 = vcombine.high %v3408, %v3408
  %v3431 = vcombine.high %v3415, %v3415
  %v3432 = vcombine.high %v3422, %v3422
  %v3433 = vcombine.high %v3137, %v3137
  %v3435 = vunpack.c.l.s4 1966171168
  %v3436 = vunpack.c.0.s8 %v3435
  %v3437 = vlaneseq
  %v3438 = vshrl.u32 %v3437, 7
  %v3439 = vsub.s32 %v3436, %v3438
  %v3440 = vrot.slane %v3137, %v3439
  %v3442 = vunpack.c.l.s4 1966171168
  %v3443 = vunpack.c.0.s8 %v3442
  %v3444 = vlaneseq
  %v3445 = vshrl.u32 %v3444, 7
  %v3446 = vsub.s32 %v3443, %v3445
  %v3447 = vrot.slane %v3433, %v3446
  %v3448 = vcombine.high %v3440, %v3440
  %v3449 = vcombine.high %v3447, %v3447
  %v3451 = vunpack.c.l.s4 1966171168
  %v3452 = vunpack.c.0.s8 %v3451
  %v3453 = vlaneseq
  %v3454 = vshrl.u32 %v3453, 7
  %v3455 = vsub.s32 %v3452, %v3454
  %v3456 = vrot.slane %v3440, %v3455
  %v3458 = vunpack.c.l.s4 1966171168
  %v3459 = vunpack.c.0.s8 %v3458
  %v3460 = vlaneseq
  %v3461 = vshrl.u32 %v3460, 7
  %v3462 = vsub.s32 %v3459, %v3461
  %v3463 = vrot.slane %v3447, %v3462
  %v3465 = vunpack.c.l.s4 1966171168
  %v3466 = vunpack.c.0.s8 %v3465
  %v3467 = vlaneseq
  %v3468 = vshrl.u32 %v3467, 7
  %v3469 = vsub.s32 %v3466, %v3468
  %v3470 = vrot.slane %v3448, %v3469
  %v3472 = vunpack.c.l.s4 1966171168
  %v3473 = vunpack.c.0.s8 %v3472
  %v3474 = vlaneseq
  %v3475 = vshrl.u32 %v3474, 7
  %v3476 = vsub.s32 %v3473, %v3475
  %v3477 = vrot.slane %v3449, %v3476
  %v3478 = vcombine.high %v3456, %v3456
  %v3479 = vcombine.high %v3463, %v3463
  %v3480 = vcombine.high %v3470, %v3470
  %s3481 = scalar_lea.vmem [#allocation2], 32
  %v3482 = vld [vmem:[%s3481] sm:$0x7f]
  %v3483 = vld [vmem:[%s3481 + $0x10] sm:$0x7f]
  %v3484 = vld [vmem:[%s3481 + $0x20] sm:$0x7f]
  %v3485 = vld [vmem:[%s3481 + $0x30] sm:$0x7f]
  %v3486 = vld [vmem:[%s3481 + $0x40] sm:$0x7f]
  %v3487 = vld [vmem:[%s3481 + $0x50] sm:$0x7f]
  %v3488 = vld [vmem:[%s3481 + $0x60] sm:$0x7f]
  %v3496 = vcombine.high %v3482, %v3482
  %v3498 = vunpack.c.l.s4 1966171168
  %v3499 = vunpack.c.0.s8 %v3498
  %v3500 = vlaneseq
  %v3501 = vshrl.u32 %v3500, 7
  %v3502 = vsub.s32 %v3499, %v3501
  %v3503 = vrot.slane %v3482, %v3502
  %v3505 = vunpack.c.l.s4 1966171168
  %v3506 = vunpack.c.0.s8 %v3505
  %v3507 = vlaneseq
  %v3508 = vshrl.u32 %v3507, 7
  %v3509 = vsub.s32 %v3506, %v3508
  %v3510 = vrot.slane %v3496, %v3509
  %v3511 = vcombine.high %v3503, %v3503
  %v3512 = vcombine.high %v3510, %v3510
  %v3514 = vunpack.c.l.s4 1966171168
  %v3515 = vunpack.c.0.s8 %v3514
  %v3516 = vlaneseq
  %v3517 = vshrl.u32 %v3516, 7
  %v3518 = vsub.s32 %v3515, %v3517
  %v3519 = vrot.slane %v3503, %v3518
  %v3521 = vunpack.c.l.s4 1966171168
  %v3522 = vunpack.c.0.s8 %v3521
  %v3523 = vlaneseq
  %v3524 = vshrl.u32 %v3523, 7
  %v3525 = vsub.s32 %v3522, %v3524
  %v3526 = vrot.slane %v3510, %v3525
  %v3528 = vunpack.c.l.s4 1966171168
  %v3529 = vunpack.c.0.s8 %v3528
  %v3530 = vlaneseq
  %v3531 = vshrl.u32 %v3530, 7
  %v3532 = vsub.s32 %v3529, %v3531
  %v3533 = vrot.slane %v3511, %v3532
  %v3535 = vunpack.c.l.s4 1966171168
  %v3536 = vunpack.c.0.s8 %v3535
  %v3537 = vlaneseq
  %v3538 = vshrl.u32 %v3537, 7
  %v3539 = vsub.s32 %v3536, %v3538
  %v3540 = vrot.slane %v3512, %v3539
  %v3541 = vcombine.high %v3519, %v3519
  %v3542 = vcombine.high %v3526, %v3526
  %v3543 = vcombine.high %v3533, %v3533
  %v3544 = vcombine.high %v3483, %v3483
  %v3546 = vunpack.c.l.s4 1966171168
  %v3547 = vunpack.c.0.s8 %v3546
  %v3548 = vlaneseq
  %v3549 = vshrl.u32 %v3548, 7
  %v3550 = vsub.s32 %v3547, %v3549
  %v3551 = vrot.slane %v3483, %v3550
  %v3553 = vunpack.c.l.s4 1966171168
  %v3554 = vunpack.c.0.s8 %v3553
  %v3555 = vlaneseq
  %v3556 = vshrl.u32 %v3555, 7
  %v3557 = vsub.s32 %v3554, %v3556
  %v3558 = vrot.slane %v3544, %v3557
  %v3559 = vcombine.high %v3551, %v3551
  %v3560 = vcombine.high %v3558, %v3558
  %v3562 = vunpack.c.l.s4 1966171168
  %v3563 = vunpack.c.0.s8 %v3562
  %v3564 = vlaneseq
  %v3565 = vshrl.u32 %v3564, 7
  %v3566 = vsub.s32 %v3563, %v3565
  %v3567 = vrot.slane %v3551, %v3566
  %v3569 = vunpack.c.l.s4 1966171168
  %v3570 = vunpack.c.0.s8 %v3569
  %v3571 = vlaneseq
  %v3572 = vshrl.u32 %v3571, 7
  %v3573 = vsub.s32 %v3570, %v3572
  %v3574 = vrot.slane %v3558, %v3573
  %v3576 = vunpack.c.l.s4 1966171168
  %v3577 = vunpack.c.0.s8 %v3576
  %v3578 = vlaneseq
  %v3579 = vshrl.u32 %v3578, 7
  %v3580 = vsub.s32 %v3577, %v3579
  %v3581 = vrot.slane %v3559, %v3580
  %v3583 = vunpack.c.l.s4 1966171168
  %v3584 = vunpack.c.0.s8 %v3583
  %v3585 = vlaneseq
  %v3586 = vshrl.u32 %v3585, 7
  %v3587 = vsub.s32 %v3584, %v3586
  %v3588 = vrot.slane %v3560, %v3587
  %v3589 = vcombine.high %v3567, %v3567
  %v3590 = vcombine.high %v3574, %v3574
  %v3591 = vcombine.high %v3581, %v3581
  %v3592 = vcombine.high %v3484, %v3484
  %v3594 = vunpack.c.l.s4 1966171168
  %v3595 = vunpack.c.0.s8 %v3594
  %v3596 = vlaneseq
  %v3597 = vshrl.u32 %v3596, 7
  %v3598 = vsub.s32 %v3595, %v3597
  %v3599 = vrot.slane %v3484, %v3598
  %v3601 = vunpack.c.l.s4 1966171168
  %v3602 = vunpack.c.0.s8 %v3601
  %v3603 = vlaneseq
  %v3604 = vshrl.u32 %v3603, 7
  %v3605 = vsub.s32 %v3602, %v3604
  %v3606 = vrot.slane %v3592, %v3605
  %v3607 = vcombine.high %v3599, %v3599
  %v3608 = vcombine.high %v3606, %v3606
  %v3610 = vunpack.c.l.s4 1966171168
  %v3611 = vunpack.c.0.s8 %v3610
  %v3612 = vlaneseq
  %v3613 = vshrl.u32 %v3612, 7
  %v3614 = vsub.s32 %v3611, %v3613
  %v3615 = vrot.slane %v3599, %v3614
  %v3617 = vunpack.c.l.s4 1966171168
  %v3618 = vunpack.c.0.s8 %v3617
  %v3619 = vlaneseq
  %v3620 = vshrl.u32 %v3619, 7
  %v3621 = vsub.s32 %v3618, %v3620
  %v3622 = vrot.slane %v3606, %v3621
  %v3624 = vunpack.c.l.s4 1966171168
  %v3625 = vunpack.c.0.s8 %v3624
  %v3626 = vlaneseq
  %v3627 = vshrl.u32 %v3626, 7
  %v3628 = vsub.s32 %v3625, %v3627
  %v3629 = vrot.slane %v3607, %v3628
  %v3631 = vunpack.c.l.s4 1966171168
  %v3632 = vunpack.c.0.s8 %v3631
  %v3633 = vlaneseq
  %v3634 = vshrl.u32 %v3633, 7
  %v3635 = vsub.s32 %v3632, %v3634
  %v3636 = vrot.slane %v3608, %v3635
  %v3637 = vcombine.high %v3615, %v3615
  %v3638 = vcombine.high %v3622, %v3622
  %v3639 = vcombine.high %v3629, %v3629
  %v3640 = vcombine.high %v3485, %v3485
  %v3642 = vunpack.c.l.s4 1966171168
  %v3643 = vunpack.c.0.s8 %v3642
  %v3644 = vlaneseq
  %v3645 = vshrl.u32 %v3644, 7
  %v3646 = vsub.s32 %v3643, %v3645
  %v3647 = vrot.slane %v3485, %v3646
  %v3649 = vunpack.c.l.s4 1966171168
  %v3650 = vunpack.c.0.s8 %v3649
  %v3651 = vlaneseq
  %v3652 = vshrl.u32 %v3651, 7
  %v3653 = vsub.s32 %v3650, %v3652
  %v3654 = vrot.slane %v3640, %v3653
  %v3655 = vcombine.high %v3647, %v3647
  %v3656 = vcombine.high %v3654, %v3654
  %v3658 = vunpack.c.l.s4 1966171168
  %v3659 = vunpack.c.0.s8 %v3658
  %v3660 = vlaneseq
  %v3661 = vshrl.u32 %v3660, 7
  %v3662 = vsub.s32 %v3659, %v3661
  %v3663 = vrot.slane %v3647, %v3662
  %v3665 = vunpack.c.l.s4 1966171168
  %v3666 = vunpack.c.0.s8 %v3665
  %v3667 = vlaneseq
  %v3668 = vshrl.u32 %v3667, 7
  %v3669 = vsub.s32 %v3666, %v3668
  %v3670 = vrot.slane %v3654, %v3669
  %v3672 = vunpack.c.l.s4 1966171168
  %v3673 = vunpack.c.0.s8 %v3672
  %v3674 = vlaneseq
  %v3675 = vshrl.u32 %v3674, 7
  %v3676 = vsub.s32 %v3673, %v3675
  %v3677 = vrot.slane %v3655, %v3676
  %v3679 = vunpack.c.l.s4 1966171168
  %v3680 = vunpack.c.0.s8 %v3679
  %v3681 = vlaneseq
  %v3682 = vshrl.u32 %v3681, 7
  %v3683 = vsub.s32 %v3680, %v3682
  %v3684 = vrot.slane %v3656, %v3683
  %v3685 = vcombine.high %v3663, %v3663
  %v3686 = vcombine.high %v3670, %v3670
  %v3687 = vcombine.high %v3677, %v3677
  %v3688 = vcombine.high %v3486, %v3486
  %v3690 = vunpack.c.l.s4 1966171168
  %v3691 = vunpack.c.0.s8 %v3690
  %v3692 = vlaneseq
  %v3693 = vshrl.u32 %v3692, 7
  %v3694 = vsub.s32 %v3691, %v3693
  %v3695 = vrot.slane %v3486, %v3694
  %v3697 = vunpack.c.l.s4 1966171168
  %v3698 = vunpack.c.0.s8 %v3697
  %v3699 = vlaneseq
  %v3700 = vshrl.u32 %v3699, 7
  %v3701 = vsub.s32 %v3698, %v3700
  %v3702 = vrot.slane %v3688, %v3701
  %v3703 = vcombine.high %v3695, %v3695
  %v3704 = vcombine.high %v3702, %v3702
  %v3706 = vunpack.c.l.s4 1966171168
  %v3707 = vunpack.c.0.s8 %v3706
  %v3708 = vlaneseq
  %v3709 = vshrl.u32 %v3708, 7
  %v3710 = vsub.s32 %v3707, %v3709
  %v3711 = vrot.slane %v3695, %v3710
  %v3713 = vunpack.c.l.s4 1966171168
  %v3714 = vunpack.c.0.s8 %v3713
  %v3715 = vlaneseq
  %v3716 = vshrl.u32 %v3715, 7
  %v3717 = vsub.s32 %v3714, %v3716
  %v3718 = vrot.slane %v3702, %v3717
  %v3720 = vunpack.c.l.s4 1966171168
  %v3721 = vunpack.c.0.s8 %v3720
  %v3722 = vlaneseq
  %v3723 = vshrl.u32 %v3722, 7
  %v3724 = vsub.s32 %v3721, %v3723
  %v3725 = vrot.slane %v3703, %v3724
  %v3727 = vunpack.c.l.s4 1966171168
  %v3728 = vunpack.c.0.s8 %v3727
  %v3729 = vlaneseq
  %v3730 = vshrl.u32 %v3729, 7
  %v3731 = vsub.s32 %v3728, %v3730
  %v3732 = vrot.slane %v3704, %v3731
  %v3733 = vcombine.high %v3711, %v3711
  %v3734 = vcombine.high %v3718, %v3718
  %v3735 = vcombine.high %v3725, %v3725
  %v3736 = vcombine.high %v3487, %v3487
  %v3738 = vunpack.c.l.s4 1966171168
  %v3739 = vunpack.c.0.s8 %v3738
  %v3740 = vlaneseq
  %v3741 = vshrl.u32 %v3740, 7
  %v3742 = vsub.s32 %v3739, %v3741
  %v3743 = vrot.slane %v3487, %v3742
  %v3745 = vunpack.c.l.s4 1966171168
  %v3746 = vunpack.c.0.s8 %v3745
  %v3747 = vlaneseq
  %v3748 = vshrl.u32 %v3747, 7
  %v3749 = vsub.s32 %v3746, %v3748
  %v3750 = vrot.slane %v3736, %v3749
  %v3751 = vcombine.high %v3743, %v3743
  %v3752 = vcombine.high %v3750, %v3750
  %v3754 = vunpack.c.l.s4 1966171168
  %v3755 = vunpack.c.0.s8 %v3754
  %v3756 = vlaneseq
  %v3757 = vshrl.u32 %v3756, 7
  %v3758 = vsub.s32 %v3755, %v3757
  %v3759 = vrot.slane %v3743, %v3758
  %v3761 = vunpack.c.l.s4 1966171168
  %v3762 = vunpack.c.0.s8 %v3761
  %v3763 = vlaneseq
  %v3764 = vshrl.u32 %v3763, 7
  %v3765 = vsub.s32 %v3762, %v3764
  %v3766 = vrot.slane %v3750, %v3765
  %v3768 = vunpack.c.l.s4 1966171168
  %v3769 = vunpack.c.0.s8 %v3768
  %v3770 = vlaneseq
  %v3771 = vshrl.u32 %v3770, 7
  %v3772 = vsub.s32 %v3769, %v3771
  %v3773 = vrot.slane %v3751, %v3772
  %v3775 = vunpack.c.l.s4 1966171168
  %v3776 = vunpack.c.0.s8 %v3775
  %v3777 = vlaneseq
  %v3778 = vshrl.u32 %v3777, 7
  %v3779 = vsub.s32 %v3776, %v3778
  %v3780 = vrot.slane %v3752, %v3779
  %v3781 = vcombine.high %v3759, %v3759
  %v3782 = vcombine.high %v3766, %v3766
  %v3783 = vcombine.high %v3773, %v3773
  %v3784 = vcombine.high %v3488, %v3488
  %v3786 = vunpack.c.l.s4 1966171168
  %v3787 = vunpack.c.0.s8 %v3786
  %v3788 = vlaneseq
  %v3789 = vshrl.u32 %v3788, 7
  %v3790 = vsub.s32 %v3787, %v3789
  %v3791 = vrot.slane %v3488, %v3790
  %v3793 = vunpack.c.l.s4 1966171168
  %v3794 = vunpack.c.0.s8 %v3793
  %v3795 = vlaneseq
  %v3796 = vshrl.u32 %v3795, 7
  %v3797 = vsub.s32 %v3794, %v3796
  %v3798 = vrot.slane %v3784, %v3797
  %v3799 = vcombine.high %v3791, %v3791
  %v3800 = vcombine.high %v3798, %v3798
  %v3802 = vunpack.c.l.s4 1966171168
  %v3803 = vunpack.c.0.s8 %v3802
  %v3804 = vlaneseq
  %v3805 = vshrl.u32 %v3804, 7
  %v3806 = vsub.s32 %v3803, %v3805
  %v3807 = vrot.slane %v3791, %v3806
  %v3809 = vunpack.c.l.s4 1966171168
  %v3810 = vunpack.c.0.s8 %v3809
  %v3811 = vlaneseq
  %v3812 = vshrl.u32 %v3811, 7
  %v3813 = vsub.s32 %v3810, %v3812
  %v3814 = vrot.slane %v3798, %v3813
  %v3816 = vunpack.c.l.s4 1966171168
  %v3817 = vunpack.c.0.s8 %v3816
  %v3818 = vlaneseq
  %v3819 = vshrl.u32 %v3818, 7
  %v3820 = vsub.s32 %v3817, %v3819
  %v3821 = vrot.slane %v3799, %v3820
  %v3823 = vunpack.c.l.s4 1966171168
  %v3824 = vunpack.c.0.s8 %v3823
  %v3825 = vlaneseq
  %v3826 = vshrl.u32 %v3825, 7
  %v3827 = vsub.s32 %v3824, %v3826
  %v3828 = vrot.slane %v3800, %v3827
  %v3829 = vcombine.high %v3807, %v3807
  %v3830 = vcombine.high %v3814, %v3814
  %v3831 = vcombine.high %v3821, %v3821
  %v3832 = vld [vmem:[%s3481 + $0x1] sm:$0x7f]
  %v3833 = vld [vmem:[%s3481 + $0x11] sm:$0x7f]
  %v3834 = vld [vmem:[%s3481 + $0x21] sm:$0x7f]
  %v3835 = vld [vmem:[%s3481 + $0x31] sm:$0x7f]
  %v3836 = vld [vmem:[%s3481 + $0x41] sm:$0x7f]
  %v3837 = vld [vmem:[%s3481 + $0x51] sm:$0x7f]
  %v3838 = vld [vmem:[%s3481 + $0x61] sm:$0x7f]
  %v3846 = vcombine.high %v3832, %v3832
  %v3848 = vunpack.c.l.s4 1966171168
  %v3849 = vunpack.c.0.s8 %v3848
  %v3850 = vlaneseq
  %v3851 = vshrl.u32 %v3850, 7
  %v3852 = vsub.s32 %v3849, %v3851
  %v3853 = vrot.slane %v3832, %v3852
  %v3855 = vunpack.c.l.s4 1966171168
  %v3856 = vunpack.c.0.s8 %v3855
  %v3857 = vlaneseq
  %v3858 = vshrl.u32 %v3857, 7
  %v3859 = vsub.s32 %v3856, %v3858
  %v3860 = vrot.slane %v3846, %v3859
  %v3861 = vcombine.high %v3853, %v3853
  %v3862 = vcombine.high %v3860, %v3860
  %v3864 = vunpack.c.l.s4 1966171168
  %v3865 = vunpack.c.0.s8 %v3864
  %v3866 = vlaneseq
  %v3867 = vshrl.u32 %v3866, 7
  %v3868 = vsub.s32 %v3865, %v3867
  %v3869 = vrot.slane %v3853, %v3868
  %v3871 = vunpack.c.l.s4 1966171168
  %v3872 = vunpack.c.0.s8 %v3871
  %v3873 = vlaneseq
  %v3874 = vshrl.u32 %v3873, 7
  %v3875 = vsub.s32 %v3872, %v3874
  %v3876 = vrot.slane %v3860, %v3875
  %v3878 = vunpack.c.l.s4 1966171168
  %v3879 = vunpack.c.0.s8 %v3878
  %v3880 = vlaneseq
  %v3881 = vshrl.u32 %v3880, 7
  %v3882 = vsub.s32 %v3879, %v3881
  %v3883 = vrot.slane %v3861, %v3882
  %v3885 = vunpack.c.l.s4 1966171168
  %v3886 = vunpack.c.0.s8 %v3885
  %v3887 = vlaneseq
  %v3888 = vshrl.u32 %v3887, 7
  %v3889 = vsub.s32 %v3886, %v3888
  %v3890 = vrot.slane %v3862, %v3889
  %v3891 = vcombine.high %v3869, %v3869
  %v3892 = vcombine.high %v3876, %v3876
  %v3893 = vcombine.high %v3883, %v3883
  %v3894 = vcombine.high %v3833, %v3833
  %v3896 = vunpack.c.l.s4 1966171168
  %v3897 = vunpack.c.0.s8 %v3896
  %v3898 = vlaneseq
  %v3899 = vshrl.u32 %v3898, 7
  %v3900 = vsub.s32 %v3897, %v3899
  %v3901 = vrot.slane %v3833, %v3900
  %v3903 = vunpack.c.l.s4 1966171168
  %v3904 = vunpack.c.0.s8 %v3903
  %v3905 = vlaneseq
  %v3906 = vshrl.u32 %v3905, 7
  %v3907 = vsub.s32 %v3904, %v3906
  %v3908 = vrot.slane %v3894, %v3907
  %v3909 = vcombine.high %v3901, %v3901
  %v3910 = vcombine.high %v3908, %v3908
  %v3912 = vunpack.c.l.s4 1966171168
  %v3913 = vunpack.c.0.s8 %v3912
  %v3914 = vlaneseq
  %v3915 = vshrl.u32 %v3914, 7
  %v3916 = vsub.s32 %v3913, %v3915
  %v3917 = vrot.slane %v3901, %v3916
  %v3919 = vunpack.c.l.s4 1966171168
  %v3920 = vunpack.c.0.s8 %v3919
  %v3921 = vlaneseq
  %v3922 = vshrl.u32 %v3921, 7
  %v3923 = vsub.s32 %v3920, %v3922
  %v3924 = vrot.slane %v3908, %v3923
  %v3926 = vunpack.c.l.s4 1966171168
  %v3927 = vunpack.c.0.s8 %v3926
  %v3928 = vlaneseq
  %v3929 = vshrl.u32 %v3928, 7
  %v3930 = vsub.s32 %v3927, %v3929
  %v3931 = vrot.slane %v3909, %v3930
  %v3933 = vunpack.c.l.s4 1966171168
  %v3934 = vunpack.c.0.s8 %v3933
  %v3935 = vlaneseq
  %v3936 = vshrl.u32 %v3935, 7
  %v3937 = vsub.s32 %v3934, %v3936
  %v3938 = vrot.slane %v3910, %v3937
  %v3939 = vcombine.high %v3917, %v3917
  %v3940 = vcombine.high %v3924, %v3924
  %v3941 = vcombine.high %v3931, %v3931
  %v3942 = vcombine.high %v3834, %v3834
  %v3944 = vunpack.c.l.s4 1966171168
  %v3945 = vunpack.c.0.s8 %v3944
  %v3946 = vlaneseq
  %v3947 = vshrl.u32 %v3946, 7
  %v3948 = vsub.s32 %v3945, %v3947
  %v3949 = vrot.slane %v3834, %v3948
  %v3951 = vunpack.c.l.s4 1966171168
  %v3952 = vunpack.c.0.s8 %v3951
  %v3953 = vlaneseq
  %v3954 = vshrl.u32 %v3953, 7
  %v3955 = vsub.s32 %v3952, %v3954
  %v3956 = vrot.slane %v3942, %v3955
  %v3957 = vcombine.high %v3949, %v3949
  %v3958 = vcombine.high %v3956, %v3956
  %v3960 = vunpack.c.l.s4 1966171168
  %v3961 = vunpack.c.0.s8 %v3960
  %v3962 = vlaneseq
  %v3963 = vshrl.u32 %v3962, 7
  %v3964 = vsub.s32 %v3961, %v3963
  %v3965 = vrot.slane %v3949, %v3964
  %v3967 = vunpack.c.l.s4 1966171168
  %v3968 = vunpack.c.0.s8 %v3967
  %v3969 = vlaneseq
  %v3970 = vshrl.u32 %v3969, 7
  %v3971 = vsub.s32 %v3968, %v3970
  %v3972 = vrot.slane %v3956, %v3971
  %v3974 = vunpack.c.l.s4 1966171168
  %v3975 = vunpack.c.0.s8 %v3974
  %v3976 = vlaneseq
  %v3977 = vshrl.u32 %v3976, 7
  %v3978 = vsub.s32 %v3975, %v3977
  %v3979 = vrot.slane %v3957, %v3978
  %v3981 = vunpack.c.l.s4 1966171168
  %v3982 = vunpack.c.0.s8 %v3981
  %v3983 = vlaneseq
  %v3984 = vshrl.u32 %v3983, 7
  %v3985 = vsub.s32 %v3982, %v3984
  %v3986 = vrot.slane %v3958, %v3985
  %v3987 = vcombine.high %v3965, %v3965
  %v3988 = vcombine.high %v3972, %v3972
  %v3989 = vcombine.high %v3979, %v3979
  %v3990 = vcombine.high %v3835, %v3835
  %v3992 = vunpack.c.l.s4 1966171168
  %v3993 = vunpack.c.0.s8 %v3992
  %v3994 = vlaneseq
  %v3995 = vshrl.u32 %v3994, 7
  %v3996 = vsub.s32 %v3993, %v3995
  %v3997 = vrot.slane %v3835, %v3996
  %v3999 = vunpack.c.l.s4 1966171168
  %v4000 = vunpack.c.0.s8 %v3999
  %v4001 = vlaneseq
  %v4002 = vshrl.u32 %v4001, 7
  %v4003 = vsub.s32 %v4000, %v4002
  %v4004 = vrot.slane %v3990, %v4003
  %v4005 = vcombine.high %v3997, %v3997
  %v4006 = vcombine.high %v4004, %v4004
  %v4008 = vunpack.c.l.s4 1966171168
  %v4009 = vunpack.c.0.s8 %v4008
  %v4010 = vlaneseq
  %v4011 = vshrl.u32 %v4010, 7
  %v4012 = vsub.s32 %v4009, %v4011
  %v4013 = vrot.slane %v3997, %v4012
  %v4015 = vunpack.c.l.s4 1966171168
  %v4016 = vunpack.c.0.s8 %v4015
  %v4017 = vlaneseq
  %v4018 = vshrl.u32 %v4017, 7
  %v4019 = vsub.s32 %v4016, %v4018
  %v4020 = vrot.slane %v4004, %v4019
  %v4022 = vunpack.c.l.s4 1966171168
  %v4023 = vunpack.c.0.s8 %v4022
  %v4024 = vlaneseq
  %v4025 = vshrl.u32 %v4024, 7
  %v4026 = vsub.s32 %v4023, %v4025
  %v4027 = vrot.slane %v4005, %v4026
  %v4029 = vunpack.c.l.s4 1966171168
  %v4030 = vunpack.c.0.s8 %v4029
  %v4031 = vlaneseq
  %v4032 = vshrl.u32 %v4031, 7
  %v4033 = vsub.s32 %v4030, %v4032
  %v4034 = vrot.slane %v4006, %v4033
  %v4035 = vcombine.high %v4013, %v4013
  %v4036 = vcombine.high %v4020, %v4020
  %v4037 = vcombine.high %v4027, %v4027
  %v4038 = vcombine.high %v3836, %v3836
  %v4040 = vunpack.c.l.s4 1966171168
  %v4041 = vunpack.c.0.s8 %v4040
  %v4042 = vlaneseq
  %v4043 = vshrl.u32 %v4042, 7
  %v4044 = vsub.s32 %v4041, %v4043
  %v4045 = vrot.slane %v3836, %v4044
  %v4047 = vunpack.c.l.s4 1966171168
  %v4048 = vunpack.c.0.s8 %v4047
  %v4049 = vlaneseq
  %v4050 = vshrl.u32 %v4049, 7
  %v4051 = vsub.s32 %v4048, %v4050
  %v4052 = vrot.slane %v4038, %v4051
  %v4053 = vcombine.high %v4045, %v4045
  %v4054 = vcombine.high %v4052, %v4052
  %v4056 = vunpack.c.l.s4 1966171168
  %v4057 = vunpack.c.0.s8 %v4056
  %v4058 = vlaneseq
  %v4059 = vshrl.u32 %v4058, 7
  %v4060 = vsub.s32 %v4057, %v4059
  %v4061 = vrot.slane %v4045, %v4060
  %v4063 = vunpack.c.l.s4 1966171168
  %v4064 = vunpack.c.0.s8 %v4063
  %v4065 = vlaneseq
  %v4066 = vshrl.u32 %v4065, 7
  %v4067 = vsub.s32 %v4064, %v4066
  %v4068 = vrot.slane %v4052, %v4067
  %v4070 = vunpack.c.l.s4 1966171168
  %v4071 = vunpack.c.0.s8 %v4070
  %v4072 = vlaneseq
  %v4073 = vshrl.u32 %v4072, 7
  %v4074 = vsub.s32 %v4071, %v4073
  %v4075 = vrot.slane %v4053, %v4074
  %v4077 = vunpack.c.l.s4 1966171168
  %v4078 = vunpack.c.0.s8 %v4077
  %v4079 = vlaneseq
  %v4080 = vshrl.u32 %v4079, 7
  %v4081 = vsub.s32 %v4078, %v4080
  %v4082 = vrot.slane %v4054, %v4081
  %v4083 = vcombine.high %v4061, %v4061
  %v4084 = vcombine.high %v4068, %v4068
  %v4085 = vcombine.high %v4075, %v4075
  %v4086 = vcombine.high %v3837, %v3837
  %v4088 = vunpack.c.l.s4 1966171168
  %v4089 = vunpack.c.0.s8 %v4088
  %v4090 = vlaneseq
  %v4091 = vshrl.u32 %v4090, 7
  %v4092 = vsub.s32 %v4089, %v4091
  %v4093 = vrot.slane %v3837, %v4092
  %v4095 = vunpack.c.l.s4 1966171168
  %v4096 = vunpack.c.0.s8 %v4095
  %v4097 = vlaneseq
  %v4098 = vshrl.u32 %v4097, 7
  %v4099 = vsub.s32 %v4096, %v4098
  %v4100 = vrot.slane %v4086, %v4099
  %v4101 = vcombine.high %v4093, %v4093
  %v4102 = vcombine.high %v4100, %v4100
  %v4104 = vunpack.c.l.s4 1966171168
  %v4105 = vunpack.c.0.s8 %v4104
  %v4106 = vlaneseq
  %v4107 = vshrl.u32 %v4106, 7
  %v4108 = vsub.s32 %v4105, %v4107
  %v4109 = vrot.slane %v4093, %v4108
  %v4111 = vunpack.c.l.s4 1966171168
  %v4112 = vunpack.c.0.s8 %v4111
  %v4113 = vlaneseq
  %v4114 = vshrl.u32 %v4113, 7
  %v4115 = vsub.s32 %v4112, %v4114
  %v4116 = vrot.slane %v4100, %v4115
  %v4118 = vunpack.c.l.s4 1966171168
  %v4119 = vunpack.c.0.s8 %v4118
  %v4120 = vlaneseq
  %v4121 = vshrl.u32 %v4120, 7
  %v4122 = vsub.s32 %v4119, %v4121
  %v4123 = vrot.slane %v4101, %v4122
  %v4125 = vunpack.c.l.s4 1966171168
  %v4126 = vunpack.c.0.s8 %v4125
  %v4127 = vlaneseq
  %v4128 = vshrl.u32 %v4127, 7
  %v4129 = vsub.s32 %v4126, %v4128
  %v4130 = vrot.slane %v4102, %v4129
  %v4131 = vcombine.high %v4109, %v4109
  %v4132 = vcombine.high %v4116, %v4116
  %v4133 = vcombine.high %v4123, %v4123
  %v4134 = vcombine.high %v3838, %v3838
  %v4136 = vunpack.c.l.s4 1966171168
  %v4137 = vunpack.c.0.s8 %v4136
  %v4138 = vlaneseq
  %v4139 = vshrl.u32 %v4138, 7
  %v4140 = vsub.s32 %v4137, %v4139
  %v4141 = vrot.slane %v3838, %v4140
  %v4143 = vunpack.c.l.s4 1966171168
  %v4144 = vunpack.c.0.s8 %v4143
  %v4145 = vlaneseq
  %v4146 = vshrl.u32 %v4145, 7
  %v4147 = vsub.s32 %v4144, %v4146
  %v4148 = vrot.slane %v4134, %v4147
  %v4149 = vcombine.high %v4141, %v4141
  %v4150 = vcombine.high %v4148, %v4148
  %v4152 = vunpack.c.l.s4 1966171168
  %v4153 = vunpack.c.0.s8 %v4152
  %v4154 = vlaneseq
  %v4155 = vshrl.u32 %v4154, 7
  %v4156 = vsub.s32 %v4153, %v4155
  %v4157 = vrot.slane %v4141, %v4156
  %v4159 = vunpack.c.l.s4 1966171168
  %v4160 = vunpack.c.0.s8 %v4159
  %v4161 = vlaneseq
  %v4162 = vshrl.u32 %v4161, 7
  %v4163 = vsub.s32 %v4160, %v4162
  %v4164 = vrot.slane %v4148, %v4163
  %v4166 = vunpack.c.l.s4 1966171168
  %v4167 = vunpack.c.0.s8 %v4166
  %v4168 = vlaneseq
  %v4169 = vshrl.u32 %v4168, 7
  %v4170 = vsub.s32 %v4167, %v4169
  %v4171 = vrot.slane %v4149, %v4170
  %v4173 = vunpack.c.l.s4 1966171168
  %v4174 = vunpack.c.0.s8 %v4173
  %v4175 = vlaneseq
  %v4176 = vshrl.u32 %v4175, 7
  %v4177 = vsub.s32 %v4174, %v4176
  %v4178 = vrot.slane %v4150, %v4177
  %v4179 = vcombine.high %v4157, %v4157
  %v4180 = vcombine.high %v4164, %v4164
  %v4181 = vcombine.high %v4171, %v4171
  %v4182 = vld [vmem:[%s3481 + $0x2] sm:$0x7f]
  %v4183 = vld [vmem:[%s3481 + $0x12] sm:$0x7f]
  %v4184 = vld [vmem:[%s3481 + $0x22] sm:$0x7f]
  %v4185 = vld [vmem:[%s3481 + $0x32] sm:$0x7f]
  %v4186 = vld [vmem:[%s3481 + $0x42] sm:$0x7f]
  %v4187 = vld [vmem:[%s3481 + $0x52] sm:$0x7f]
  %v4188 = vld [vmem:[%s3481 + $0x62] sm:$0x7f]
  %v4196 = vcombine.high %v4182, %v4182
  %v4198 = vunpack.c.l.s4 1966171168
  %v4199 = vunpack.c.0.s8 %v4198
  %v4200 = vlaneseq
  %v4201 = vshrl.u32 %v4200, 7
  %v4202 = vsub.s32 %v4199, %v4201
  %v4203 = vrot.slane %v4182, %v4202
  %v4205 = vunpack.c.l.s4 1966171168
  %v4206 = vunpack.c.0.s8 %v4205
  %v4207 = vlaneseq
  %v4208 = vshrl.u32 %v4207, 7
  %v4209 = vsub.s32 %v4206, %v4208
  %v4210 = vrot.slane %v4196, %v4209
  %v4211 = vcombine.high %v4203, %v4203
  %v4212 = vcombine.high %v4210, %v4210
  %v4214 = vunpack.c.l.s4 1966171168
  %v4215 = vunpack.c.0.s8 %v4214
  %v4216 = vlaneseq
  %v4217 = vshrl.u32 %v4216, 7
  %v4218 = vsub.s32 %v4215, %v4217
  %v4219 = vrot.slane %v4203, %v4218
  %v4221 = vunpack.c.l.s4 1966171168
  %v4222 = vunpack.c.0.s8 %v4221
  %v4223 = vlaneseq
  %v4224 = vshrl.u32 %v4223, 7
  %v4225 = vsub.s32 %v4222, %v4224
  %v4226 = vrot.slane %v4210, %v4225
  %v4228 = vunpack.c.l.s4 1966171168
  %v4229 = vunpack.c.0.s8 %v4228
  %v4230 = vlaneseq
  %v4231 = vshrl.u32 %v4230, 7
  %v4232 = vsub.s32 %v4229, %v4231
  %v4233 = vrot.slane %v4211, %v4232
  %v4235 = vunpack.c.l.s4 1966171168
  %v4236 = vunpack.c.0.s8 %v4235
  %v4237 = vlaneseq
  %v4238 = vshrl.u32 %v4237, 7
  %v4239 = vsub.s32 %v4236, %v4238
  %v4240 = vrot.slane %v4212, %v4239
  %v4241 = vcombine.high %v4219, %v4219
  %v4242 = vcombine.high %v4226, %v4226
  %v4243 = vcombine.high %v4233, %v4233
  %v4244 = vcombine.high %v4183, %v4183
  %v4246 = vunpack.c.l.s4 1966171168
  %v4247 = vunpack.c.0.s8 %v4246
  %v4248 = vlaneseq
  %v4249 = vshrl.u32 %v4248, 7
  %v4250 = vsub.s32 %v4247, %v4249
  %v4251 = vrot.slane %v4183, %v4250
  %v4253 = vunpack.c.l.s4 1966171168
  %v4254 = vunpack.c.0.s8 %v4253
  %v4255 = vlaneseq
  %v4256 = vshrl.u32 %v4255, 7
  %v4257 = vsub.s32 %v4254, %v4256
  %v4258 = vrot.slane %v4244, %v4257
  %v4259 = vcombine.high %v4251, %v4251
  %v4260 = vcombine.high %v4258, %v4258
  %v4262 = vunpack.c.l.s4 1966171168
  %v4263 = vunpack.c.0.s8 %v4262
  %v4264 = vlaneseq
  %v4265 = vshrl.u32 %v4264, 7
  %v4266 = vsub.s32 %v4263, %v4265
  %v4267 = vrot.slane %v4251, %v4266
  %v4269 = vunpack.c.l.s4 1966171168
  %v4270 = vunpack.c.0.s8 %v4269
  %v4271 = vlaneseq
  %v4272 = vshrl.u32 %v4271, 7
  %v4273 = vsub.s32 %v4270, %v4272
  %v4274 = vrot.slane %v4258, %v4273
  %v4276 = vunpack.c.l.s4 1966171168
  %v4277 = vunpack.c.0.s8 %v4276
  %v4278 = vlaneseq
  %v4279 = vshrl.u32 %v4278, 7
  %v4280 = vsub.s32 %v4277, %v4279
  %v4281 = vrot.slane %v4259, %v4280
  %v4283 = vunpack.c.l.s4 1966171168
  %v4284 = vunpack.c.0.s8 %v4283
  %v4285 = vlaneseq
  %v4286 = vshrl.u32 %v4285, 7
  %v4287 = vsub.s32 %v4284, %v4286
  %v4288 = vrot.slane %v4260, %v4287
  %v4289 = vcombine.high %v4267, %v4267
  %v4290 = vcombine.high %v4274, %v4274
  %v4291 = vcombine.high %v4281, %v4281
  %v4292 = vcombine.high %v4184, %v4184
  %v4294 = vunpack.c.l.s4 1966171168
  %v4295 = vunpack.c.0.s8 %v4294
  %v4296 = vlaneseq
  %v4297 = vshrl.u32 %v4296, 7
  %v4298 = vsub.s32 %v4295, %v4297
  %v4299 = vrot.slane %v4184, %v4298
  %v4301 = vunpack.c.l.s4 1966171168
  %v4302 = vunpack.c.0.s8 %v4301
  %v4303 = vlaneseq
  %v4304 = vshrl.u32 %v4303, 7
  %v4305 = vsub.s32 %v4302, %v4304
  %v4306 = vrot.slane %v4292, %v4305
  %v4307 = vcombine.high %v4299, %v4299
  %v4308 = vcombine.high %v4306, %v4306
  %v4310 = vunpack.c.l.s4 1966171168
  %v4311 = vunpack.c.0.s8 %v4310
  %v4312 = vlaneseq
  %v4313 = vshrl.u32 %v4312, 7
  %v4314 = vsub.s32 %v4311, %v4313
  %v4315 = vrot.slane %v4299, %v4314
  %v4317 = vunpack.c.l.s4 1966171168
  %v4318 = vunpack.c.0.s8 %v4317
  %v4319 = vlaneseq
  %v4320 = vshrl.u32 %v4319, 7
  %v4321 = vsub.s32 %v4318, %v4320
  %v4322 = vrot.slane %v4306, %v4321
  %v4324 = vunpack.c.l.s4 1966171168
  %v4325 = vunpack.c.0.s8 %v4324
  %v4326 = vlaneseq
  %v4327 = vshrl.u32 %v4326, 7
  %v4328 = vsub.s32 %v4325, %v4327
  %v4329 = vrot.slane %v4307, %v4328
  %v4331 = vunpack.c.l.s4 1966171168
  %v4332 = vunpack.c.0.s8 %v4331
  %v4333 = vlaneseq
  %v4334 = vshrl.u32 %v4333, 7
  %v4335 = vsub.s32 %v4332, %v4334
  %v4336 = vrot.slane %v4308, %v4335
  %v4337 = vcombine.high %v4315, %v4315
  %v4338 = vcombine.high %v4322, %v4322
  %v4339 = vcombine.high %v4329, %v4329
  %v4340 = vcombine.high %v4185, %v4185
  %v4342 = vunpack.c.l.s4 1966171168
  %v4343 = vunpack.c.0.s8 %v4342
  %v4344 = vlaneseq
  %v4345 = vshrl.u32 %v4344, 7
  %v4346 = vsub.s32 %v4343, %v4345
  %v4347 = vrot.slane %v4185, %v4346
  %v4349 = vunpack.c.l.s4 1966171168
  %v4350 = vunpack.c.0.s8 %v4349
  %v4351 = vlaneseq
  %v4352 = vshrl.u32 %v4351, 7
  %v4353 = vsub.s32 %v4350, %v4352
  %v4354 = vrot.slane %v4340, %v4353
  %v4355 = vcombine.high %v4347, %v4347
  %v4356 = vcombine.high %v4354, %v4354
  %v4358 = vunpack.c.l.s4 1966171168
  %v4359 = vunpack.c.0.s8 %v4358
  %v4360 = vlaneseq
  %v4361 = vshrl.u32 %v4360, 7
  %v4362 = vsub.s32 %v4359, %v4361
  %v4363 = vrot.slane %v4347, %v4362
  %v4365 = vunpack.c.l.s4 1966171168
  %v4366 = vunpack.c.0.s8 %v4365
  %v4367 = vlaneseq
  %v4368 = vshrl.u32 %v4367, 7
  %v4369 = vsub.s32 %v4366, %v4368
  %v4370 = vrot.slane %v4354, %v4369
  %v4372 = vunpack.c.l.s4 1966171168
  %v4373 = vunpack.c.0.s8 %v4372
  %v4374 = vlaneseq
  %v4375 = vshrl.u32 %v4374, 7
  %v4376 = vsub.s32 %v4373, %v4375
  %v4377 = vrot.slane %v4355, %v4376
  %v4379 = vunpack.c.l.s4 1966171168
  %v4380 = vunpack.c.0.s8 %v4379
  %v4381 = vlaneseq
  %v4382 = vshrl.u32 %v4381, 7
  %v4383 = vsub.s32 %v4380, %v4382
  %v4384 = vrot.slane %v4356, %v4383
  %v4385 = vcombine.high %v4363, %v4363
  %v4386 = vcombine.high %v4370, %v4370
  %v4387 = vcombine.high %v4377, %v4377
  %v4388 = vcombine.high %v4186, %v4186
  %v4390 = vunpack.c.l.s4 1966171168
  %v4391 = vunpack.c.0.s8 %v4390
  %v4392 = vlaneseq
  %v4393 = vshrl.u32 %v4392, 7
  %v4394 = vsub.s32 %v4391, %v4393
  %v4395 = vrot.slane %v4186, %v4394
  %v4397 = vunpack.c.l.s4 1966171168
  %v4398 = vunpack.c.0.s8 %v4397
  %v4399 = vlaneseq
  %v4400 = vshrl.u32 %v4399, 7
  %v4401 = vsub.s32 %v4398, %v4400
  %v4402 = vrot.slane %v4388, %v4401
  %v4403 = vcombine.high %v4395, %v4395
  %v4404 = vcombine.high %v4402, %v4402
  %v4406 = vunpack.c.l.s4 1966171168
  %v4407 = vunpack.c.0.s8 %v4406
  %v4408 = vlaneseq
  %v4409 = vshrl.u32 %v4408, 7
  %v4410 = vsub.s32 %v4407, %v4409
  %v4411 = vrot.slane %v4395, %v4410
  %v4413 = vunpack.c.l.s4 1966171168
  %v4414 = vunpack.c.0.s8 %v4413
  %v4415 = vlaneseq
  %v4416 = vshrl.u32 %v4415, 7
  %v4417 = vsub.s32 %v4414, %v4416
  %v4418 = vrot.slane %v4402, %v4417
  %v4420 = vunpack.c.l.s4 1966171168
  %v4421 = vunpack.c.0.s8 %v4420
  %v4422 = vlaneseq
  %v4423 = vshrl.u32 %v4422, 7
  %v4424 = vsub.s32 %v4421, %v4423
  %v4425 = vrot.slane %v4403, %v4424
  %v4427 = vunpack.c.l.s4 1966171168
  %v4428 = vunpack.c.0.s8 %v4427
  %v4429 = vlaneseq
  %v4430 = vshrl.u32 %v4429, 7
  %v4431 = vsub.s32 %v4428, %v4430
  %v4432 = vrot.slane %v4404, %v4431
  %v4433 = vcombine.high %v4411, %v4411
  %v4434 = vcombine.high %v4418, %v4418
  %v4435 = vcombine.high %v4425, %v4425
  %v4436 = vcombine.high %v4187, %v4187
  %v4438 = vunpack.c.l.s4 1966171168
  %v4439 = vunpack.c.0.s8 %v4438
  %v4440 = vlaneseq
  %v4441 = vshrl.u32 %v4440, 7
  %v4442 = vsub.s32 %v4439, %v4441
  %v4443 = vrot.slane %v4187, %v4442
  %v4445 = vunpack.c.l.s4 1966171168
  %v4446 = vunpack.c.0.s8 %v4445
  %v4447 = vlaneseq
  %v4448 = vshrl.u32 %v4447, 7
  %v4449 = vsub.s32 %v4446, %v4448
  %v4450 = vrot.slane %v4436, %v4449
  %v4451 = vcombine.high %v4443, %v4443
  %v4452 = vcombine.high %v4450, %v4450
  %v4454 = vunpack.c.l.s4 1966171168
  %v4455 = vunpack.c.0.s8 %v4454
  %v4456 = vlaneseq
  %v4457 = vshrl.u32 %v4456, 7
  %v4458 = vsub.s32 %v4455, %v4457
  %v4459 = vrot.slane %v4443, %v4458
  %v4461 = vunpack.c.l.s4 1966171168
  %v4462 = vunpack.c.0.s8 %v4461
  %v4463 = vlaneseq
  %v4464 = vshrl.u32 %v4463, 7
  %v4465 = vsub.s32 %v4462, %v4464
  %v4466 = vrot.slane %v4450, %v4465
  %v4468 = vunpack.c.l.s4 1966171168
  %v4469 = vunpack.c.0.s8 %v4468
  %v4470 = vlaneseq
  %v4471 = vshrl.u32 %v4470, 7
  %v4472 = vsub.s32 %v4469, %v4471
  %v4473 = vrot.slane %v4451, %v4472
  %v4475 = vunpack.c.l.s4 1966171168
  %v4476 = vunpack.c.0.s8 %v4475
  %v4477 = vlaneseq
  %v4478 = vshrl.u32 %v4477, 7
  %v4479 = vsub.s32 %v4476, %v4478
  %v4480 = vrot.slane %v4452, %v4479
  %v4481 = vcombine.high %v4459, %v4459
  %v4482 = vcombine.high %v4466, %v4466
  %v4483 = vcombine.high %v4473, %v4473
  %v4484 = vcombine.high %v4188, %v4188
  %v4486 = vunpack.c.l.s4 1966171168
  %v4487 = vunpack.c.0.s8 %v4486
  %v4488 = vlaneseq
  %v4489 = vshrl.u32 %v4488, 7
  %v4490 = vsub.s32 %v4487, %v4489
  %v4491 = vrot.slane %v4188, %v4490
  %v4493 = vunpack.c.l.s4 1966171168
  %v4494 = vunpack.c.0.s8 %v4493
  %v4495 = vlaneseq
  %v4496 = vshrl.u32 %v4495, 7
  %v4497 = vsub.s32 %v4494, %v4496
  %v4498 = vrot.slane %v4484, %v4497
  %v4499 = vcombine.high %v4491, %v4491
  %v4500 = vcombine.high %v4498, %v4498
  %v4502 = vunpack.c.l.s4 1966171168
  %v4503 = vunpack.c.0.s8 %v4502
  %v4504 = vlaneseq
  %v4505 = vshrl.u32 %v4504, 7
  %v4506 = vsub.s32 %v4503, %v4505
  %v4507 = vrot.slane %v4491, %v4506
  %v4509 = vunpack.c.l.s4 1966171168
  %v4510 = vunpack.c.0.s8 %v4509
  %v4511 = vlaneseq
  %v4512 = vshrl.u32 %v4511, 7
  %v4513 = vsub.s32 %v4510, %v4512
  %v4514 = vrot.slane %v4498, %v4513
  %v4516 = vunpack.c.l.s4 1966171168
  %v4517 = vunpack.c.0.s8 %v4516
  %v4518 = vlaneseq
  %v4519 = vshrl.u32 %v4518, 7
  %v4520 = vsub.s32 %v4517, %v4519
  %v4521 = vrot.slane %v4499, %v4520
  %v4523 = vunpack.c.l.s4 1966171168
  %v4524 = vunpack.c.0.s8 %v4523
  %v4525 = vlaneseq
  %v4526 = vshrl.u32 %v4525, 7
  %v4527 = vsub.s32 %v4524, %v4526
  %v4528 = vrot.slane %v4500, %v4527
  %v4529 = vcombine.high %v4507, %v4507
  %v4530 = vcombine.high %v4514, %v4514
  %v4531 = vcombine.high %v4521, %v4521
  %v4532 = vcombine.low %v1418, %v1432
  %v4533 = vcombine.low %v1440, %v1442
  %v4534 = vcombine.low %v1425, %v1439
  %v4535 = vcombine.low %v1441, %v1466
  %v4537 = vunpack.c.l.s4 1966171168
  %v4538 = vunpack.c.0.s8 %v4537
  %v4539 = vlaneseq
  %v4540 = vshrl.u32 %v4539, 7
  %v4541 = vsub.s32 %v4538, %v4540
  %v4542 = vrot.slane %v4532, %v4541
  %v4544 = vunpack.c.l.s4 1966171168
  %v4545 = vunpack.c.0.s8 %v4544
  %v4546 = vlaneseq
  %v4547 = vshrl.u32 %v4546, 7
  %v4548 = vsub.s32 %v4545, %v4547
  %v4549 = vrot.slane %v4533, %v4548
  %v4551 = vunpack.c.l.s4 1966171168
  %v4552 = vunpack.c.0.s8 %v4551
  %v4553 = vlaneseq
  %v4554 = vshrl.u32 %v4553, 7
  %v4555 = vsub.s32 %v4552, %v4554
  %v4556 = vrot.slane %v4534, %v4555
  %v4558 = vunpack.c.l.s4 1966171168
  %v4559 = vunpack.c.0.s8 %v4558
  %v4560 = vlaneseq
  %v4561 = vshrl.u32 %v4560, 7
  %v4562 = vsub.s32 %v4559, %v4561
  %v4563 = vrot.slane %v4535, %v4562
  %v4564 = vcombine.low %v4542, %v4549
  %v4565 = vcombine.low %v4556, %v4563
  %v4567 = vunpack.c.l.s4 1966171168
  %v4568 = vunpack.c.0.s8 %v4567
  %v4569 = vlaneseq
  %v4570 = vshrl.u32 %v4569, 7
  %v4571 = vsub.s32 %v4568, %v4570
  %v4572 = vrot.slane %v4564, %v4571
  %v4574 = vunpack.c.l.s4 1966171168
  %v4575 = vunpack.c.0.s8 %v4574
  %v4576 = vlaneseq
  %v4577 = vshrl.u32 %v4576, 7
  %v4578 = vsub.s32 %v4575, %v4577
  %v4579 = vrot.slane %v4565, %v4578
  %v4580 = vcombine.low %v4572, %v4579
  %v4581 = vcombine.low %v1480, %v1488
  %v4582 = vcombine.low %v1490, %v1473
  %v4583 = vcombine.low %v1487, %v1489
  %v4584 = vcombine.low %v1514, %v1528
  %v4586 = vunpack.c.l.s4 1966171168
  %v4587 = vunpack.c.0.s8 %v4586
  %v4588 = vlaneseq
  %v4589 = vshrl.u32 %v4588, 7
  %v4590 = vsub.s32 %v4587, %v4589
  %v4591 = vrot.slane %v4581, %v4590
  %v4593 = vunpack.c.l.s4 1966171168
  %v4594 = vunpack.c.0.s8 %v4593
  %v4595 = vlaneseq
  %v4596 = vshrl.u32 %v4595, 7
  %v4597 = vsub.s32 %v4594, %v4596
  %v4598 = vrot.slane %v4582, %v4597
  %v4600 = vunpack.c.l.s4 1966171168
  %v4601 = vunpack.c.0.s8 %v4600
  %v4602 = vlaneseq
  %v4603 = vshrl.u32 %v4602, 7
  %v4604 = vsub.s32 %v4601, %v4603
  %v4605 = vrot.slane %v4583, %v4604
  %v4607 = vunpack.c.l.s4 1966171168
  %v4608 = vunpack.c.0.s8 %v4607
  %v4609 = vlaneseq
  %v4610 = vshrl.u32 %v4609, 7
  %v4611 = vsub.s32 %v4608, %v4610
  %v4612 = vrot.slane %v4584, %v4611
  %v4613 = vcombine.low %v4591, %v4598
  %v4614 = vcombine.low %v4605, %v4612
  %v4616 = vunpack.c.l.s4 1966171168
  %v4617 = vunpack.c.0.s8 %v4616
  %v4618 = vlaneseq
  %v4619 = vshrl.u32 %v4618, 7
  %v4620 = vsub.s32 %v4617, %v4619
  %v4621 = vrot.slane %v4613, %v4620
  %v4623 = vunpack.c.l.s4 1966171168
  %v4624 = vunpack.c.0.s8 %v4623
  %v4625 = vlaneseq
  %v4626 = vshrl.u32 %v4625, 7
  %v4627 = vsub.s32 %v4624, %v4626
  %v4628 = vrot.slane %v4614, %v4627
  %v4629 = vcombine.low %v4621, %v4628
  %v4630 = vcombine.low %v1536, %v1538
  %v4631 = vcombine.low %v1521, %v1535
  %v4632 = vcombine.low %v1537, %v1562
  %v4633 = vcombine.low %v1576, %v1584
  %v4635 = vunpack.c.l.s4 1966171168
  %v4636 = vunpack.c.0.s8 %v4635
  %v4637 = vlaneseq
  %v4638 = vshrl.u32 %v4637, 7
  %v4639 = vsub.s32 %v4636, %v4638
  %v4640 = vrot.slane %v4630, %v4639
  %v4642 = vunpack.c.l.s4 1966171168
  %v4643 = vunpack.c.0.s8 %v4642
  %v4644 = vlaneseq
  %v4645 = vshrl.u32 %v4644, 7
  %v4646 = vsub.s32 %v4643, %v4645
  %v4647 = vrot.slane %v4631, %v4646
  %v4649 = vunpack.c.l.s4 1966171168
  %v4650 = vunpack.c.0.s8 %v4649
  %v4651 = vlaneseq
  %v4652 = vshrl.u32 %v4651, 7
  %v4653 = vsub.s32 %v4650, %v4652
  %v4654 = vrot.slane %v4632, %v4653
  %v4656 = vunpack.c.l.s4 1966171168
  %v4657 = vunpack.c.0.s8 %v4656
  %v4658 = vlaneseq
  %v4659 = vshrl.u32 %v4658, 7
  %v4660 = vsub.s32 %v4657, %v4659
  %v4661 = vrot.slane %v4633, %v4660
  %v4662 = vcombine.low %v4640, %v4647
  %v4663 = vcombine.low %v4654, %v4661
  %v4665 = vunpack.c.l.s4 1966171168
  %v4666 = vunpack.c.0.s8 %v4665
  %v4667 = vlaneseq
  %v4668 = vshrl.u32 %v4667, 7
  %v4669 = vsub.s32 %v4666, %v4668
  %v4670 = vrot.slane %v4662, %v4669
  %v4672 = vunpack.c.l.s4 1966171168
  %v4673 = vunpack.c.0.s8 %v4672
  %v4674 = vlaneseq
  %v4675 = vshrl.u32 %v4674, 7
  %v4676 = vsub.s32 %v4673, %v4675
  %v4677 = vrot.slane %v4663, %v4676
  %v4678 = vcombine.low %v4670, %v4677
  %v4679 = vcombine.low %v1586, %v1569
  %v4680 = vcombine.low %v1583, %v1585
  %v4681 = vcombine.low %v1610, %v1624
  %v4682 = vcombine.low %v1632, %v1634
  %v4684 = vunpack.c.l.s4 1966171168
  %v4685 = vunpack.c.0.s8 %v4684
  %v4686 = vlaneseq
  %v4687 = vshrl.u32 %v4686, 7
  %v4688 = vsub.s32 %v4685, %v4687
  %v4689 = vrot.slane %v4679, %v4688
  %v4691 = vunpack.c.l.s4 1966171168
  %v4692 = vunpack.c.0.s8 %v4691
  %v4693 = vlaneseq
  %v4694 = vshrl.u32 %v4693, 7
  %v4695 = vsub.s32 %v4692, %v4694
  %v4696 = vrot.slane %v4680, %v4695
  %v4698 = vunpack.c.l.s4 1966171168
  %v4699 = vunpack.c.0.s8 %v4698
  %v4700 = vlaneseq
  %v4701 = vshrl.u32 %v4700, 7
  %v4702 = vsub.s32 %v4699, %v4701
  %v4703 = vrot.slane %v4681, %v4702
  %v4705 = vunpack.c.l.s4 1966171168
  %v4706 = vunpack.c.0.s8 %v4705
  %v4707 = vlaneseq
  %v4708 = vshrl.u32 %v4707, 7
  %v4709 = vsub.s32 %v4706, %v4708
  %v4710 = vrot.slane %v4682, %v4709
  %v4711 = vcombine.low %v4689, %v4696
  %v4712 = vcombine.low %v4703, %v4710
  %v4714 = vunpack.c.l.s4 1966171168
  %v4715 = vunpack.c.0.s8 %v4714
  %v4716 = vlaneseq
  %v4717 = vshrl.u32 %v4716, 7
  %v4718 = vsub.s32 %v4715, %v4717
  %v4719 = vrot.slane %v4711, %v4718
  %v4721 = vunpack.c.l.s4 1966171168
  %v4722 = vunpack.c.0.s8 %v4721
  %v4723 = vlaneseq
  %v4724 = vshrl.u32 %v4723, 7
  %v4725 = vsub.s32 %v4722, %v4724
  %v4726 = vrot.slane %v4712, %v4725
  %v4727 = vcombine.low %v4719, %v4726
  %v4728 = vcombine.low %v1617, %v1631
  %v4729 = vcombine.low %v1633, %v1658
  %v4730 = vcombine.low %v1672, %v1680
  %v4731 = vcombine.low %v1682, %v1665
  %v4733 = vunpack.c.l.s4 1966171168
  %v4734 = vunpack.c.0.s8 %v4733
  %v4735 = vlaneseq
  %v4736 = vshrl.u32 %v4735, 7
  %v4737 = vsub.s32 %v4734, %v4736
  %v4738 = vrot.slane %v4728, %v4737
  %v4740 = vunpack.c.l.s4 1966171168
  %v4741 = vunpack.c.0.s8 %v4740
  %v4742 = vlaneseq
  %v4743 = vshrl.u32 %v4742, 7
  %v4744 = vsub.s32 %v4741, %v4743
  %v4745 = vrot.slane %v4729, %v4744
  %v4747 = vunpack.c.l.s4 1966171168
  %v4748 = vunpack.c.0.s8 %v4747
  %v4749 = vlaneseq
  %v4750 = vshrl.u32 %v4749, 7
  %v4751 = vsub.s32 %v4748, %v4750
  %v4752 = vrot.slane %v4730, %v4751
  %v4754 = vunpack.c.l.s4 1966171168
  %v4755 = vunpack.c.0.s8 %v4754
  %v4756 = vlaneseq
  %v4757 = vshrl.u32 %v4756, 7
  %v4758 = vsub.s32 %v4755, %v4757
  %v4759 = vrot.slane %v4731, %v4758
  %v4760 = vcombine.low %v4738, %v4745
  %v4761 = vcombine.low %v4752, %v4759
  %v4763 = vunpack.c.l.s4 1966171168
  %v4764 = vunpack.c.0.s8 %v4763
  %v4765 = vlaneseq
  %v4766 = vshrl.u32 %v4765, 7
  %v4767 = vsub.s32 %v4764, %v4766
  %v4768 = vrot.slane %v4760, %v4767
  %v4770 = vunpack.c.l.s4 1966171168
  %v4771 = vunpack.c.0.s8 %v4770
  %v4772 = vlaneseq
  %v4773 = vshrl.u32 %v4772, 7
  %v4774 = vsub.s32 %v4771, %v4773
  %v4775 = vrot.slane %v4761, %v4774
  %v4776 = vcombine.low %v4768, %v4775
  %v4777 = vcombine.low %v1679, %v1681
  %v4778 = vcombine.low %v1706, %v1720
  %v4779 = vcombine.low %v1728, %v1730
  %v4780 = vcombine.low %v1713, %v1727
  %v4782 = vunpack.c.l.s4 1966171168
  %v4783 = vunpack.c.0.s8 %v4782
  %v4784 = vlaneseq
  %v4785 = vshrl.u32 %v4784, 7
  %v4786 = vsub.s32 %v4783, %v4785
  %v4787 = vrot.slane %v4777, %v4786
  %v4789 = vunpack.c.l.s4 1966171168
  %v4790 = vunpack.c.0.s8 %v4789
  %v4791 = vlaneseq
  %v4792 = vshrl.u32 %v4791, 7
  %v4793 = vsub.s32 %v4790, %v4792
  %v4794 = vrot.slane %v4778, %v4793
  %v4796 = vunpack.c.l.s4 1966171168
  %v4797 = vunpack.c.0.s8 %v4796
  %v4798 = vlaneseq
  %v4799 = vshrl.u32 %v4798, 7
  %v4800 = vsub.s32 %v4797, %v4799
  %v4801 = vrot.slane %v4779, %v4800
  %v4803 = vunpack.c.l.s4 1966171168
  %v4804 = vunpack.c.0.s8 %v4803
  %v4805 = vlaneseq
  %v4806 = vshrl.u32 %v4805, 7
  %v4807 = vsub.s32 %v4804, %v4806
  %v4808 = vrot.slane %v4780, %v4807
  %v4809 = vcombine.low %v4787, %v4794
  %v4810 = vcombine.low %v4801, %v4808
  %v4812 = vunpack.c.l.s4 1966171168
  %v4813 = vunpack.c.0.s8 %v4812
  %v4814 = vlaneseq
  %v4815 = vshrl.u32 %v4814, 7
  %v4816 = vsub.s32 %v4813, %v4815
  %v4817 = vrot.slane %v4809, %v4816
  %v4819 = vunpack.c.l.s4 1966171168
  %v4820 = vunpack.c.0.s8 %v4819
  %v4821 = vlaneseq
  %v4822 = vshrl.u32 %v4821, 7
  %v4823 = vsub.s32 %v4820, %v4822
  %v4824 = vrot.slane %v4810, %v4823
  %v4825 = vcombine.low %v4817, %v4824
  %v4827 = vunpack.c.l.s4 1966171168
  %v4828 = vunpack.c.0.s8 %v4827
  %v4829 = vlaneseq
  %v4830 = vshrl.u32 %v4829, 7
  %v4831 = vsub.s32 %v4828, %v4830
  %v4832 = vrot.slane %v1729, %v4831
  %v4834 = vunpack.c.l.s4 1966171168
  %v4835 = vunpack.c.0.s8 %v4834
  %v4836 = vlaneseq
  %v4837 = vshrl.u32 %v4836, 7
  %v4838 = vsub.s32 %v4835, %v4837
  %v4839 = vrot.slane %v4832, %v4838
  %v4847 = vcombine.low %v1768, %v1782
  %v4848 = vcombine.low %v1790, %v1792
  %v4849 = vcombine.low %v1775, %v1789
  %v4850 = vcombine.low %v1791, %v1816
  %v4852 = vunpack.c.l.s4 1966171168
  %v4853 = vunpack.c.0.s8 %v4852
  %v4854 = vlaneseq
  %v4855 = vshrl.u32 %v4854, 7
  %v4856 = vsub.s32 %v4853, %v4855
  %v4857 = vrot.slane %v4847, %v4856
  %v4859 = vunpack.c.l.s4 1966171168
  %v4860 = vunpack.c.0.s8 %v4859
  %v4861 = vlaneseq
  %v4862 = vshrl.u32 %v4861, 7
  %v4863 = vsub.s32 %v4860, %v4862
  %v4864 = vrot.slane %v4848, %v4863
  %v4866 = vunpack.c.l.s4 1966171168
  %v4867 = vunpack.c.0.s8 %v4866
  %v4868 = vlaneseq
  %v4869 = vshrl.u32 %v4868, 7
  %v4870 = vsub.s32 %v4867, %v4869
  %v4871 = vrot.slane %v4849, %v4870
  %v4873 = vunpack.c.l.s4 1966171168
  %v4874 = vunpack.c.0.s8 %v4873
  %v4875 = vlaneseq
  %v4876 = vshrl.u32 %v4875, 7
  %v4877 = vsub.s32 %v4874, %v4876
  %v4878 = vrot.slane %v4850, %v4877
  %v4879 = vcombine.low %v4857, %v4864
  %v4880 = vcombine.low %v4871, %v4878
  %v4882 = vunpack.c.l.s4 1966171168
  %v4883 = vunpack.c.0.s8 %v4882
  %v4884 = vlaneseq
  %v4885 = vshrl.u32 %v4884, 7
  %v4886 = vsub.s32 %v4883, %v4885
  %v4887 = vrot.slane %v4879, %v4886
  %v4889 = vunpack.c.l.s4 1966171168
  %v4890 = vunpack.c.0.s8 %v4889
  %v4891 = vlaneseq
  %v4892 = vshrl.u32 %v4891, 7
  %v4893 = vsub.s32 %v4890, %v4892
  %v4894 = vrot.slane %v4880, %v4893
  %v4895 = vcombine.low %v4887, %v4894
  %v4896 = vcombine.low %v1830, %v1838
  %v4897 = vcombine.low %v1840, %v1823
  %v4898 = vcombine.low %v1837, %v1839
  %v4899 = vcombine.low %v1864, %v1878
  %v4901 = vunpack.c.l.s4 1966171168
  %v4902 = vunpack.c.0.s8 %v4901
  %v4903 = vlaneseq
  %v4904 = vshrl.u32 %v4903, 7
  %v4905 = vsub.s32 %v4902, %v4904
  %v4906 = vrot.slane %v4896, %v4905
  %v4908 = vunpack.c.l.s4 1966171168
  %v4909 = vunpack.c.0.s8 %v4908
  %v4910 = vlaneseq
  %v4911 = vshrl.u32 %v4910, 7
  %v4912 = vsub.s32 %v4909, %v4911
  %v4913 = vrot.slane %v4897, %v4912
  %v4915 = vunpack.c.l.s4 1966171168
  %v4916 = vunpack.c.0.s8 %v4915
  %v4917 = vlaneseq
  %v4918 = vshrl.u32 %v4917, 7
  %v4919 = vsub.s32 %v4916, %v4918
  %v4920 = vrot.slane %v4898, %v4919
  %v4922 = vunpack.c.l.s4 1966171168
  %v4923 = vunpack.c.0.s8 %v4922
  %v4924 = vlaneseq
  %v4925 = vshrl.u32 %v4924, 7
  %v4926 = vsub.s32 %v4923, %v4925
  %v4927 = vrot.slane %v4899, %v4926
  %v4928 = vcombine.low %v4906, %v4913
  %v4929 = vcombine.low %v4920, %v4927
  %v4931 = vunpack.c.l.s4 1966171168
  %v4932 = vunpack.c.0.s8 %v4931
  %v4933 = vlaneseq
  %v4934 = vshrl.u32 %v4933, 7
  %v4935 = vsub.s32 %v4932, %v4934
  %v4936 = vrot.slane %v4928, %v4935
  %v4938 = vunpack.c.l.s4 1966171168
  %v4939 = vunpack.c.0.s8 %v4938
  %v4940 = vlaneseq
  %v4941 = vshrl.u32 %v4940, 7
  %v4942 = vsub.s32 %v4939, %v4941
  %v4943 = vrot.slane %v4929, %v4942
  %v4944 = vcombine.low %v4936, %v4943
  %v4945 = vcombine.low %v1886, %v1888
  %v4946 = vcombine.low %v1871, %v1885
  %v4947 = vcombine.low %v1887, %v1912
  %v4948 = vcombine.low %v1926, %v1934
  %v4950 = vunpack.c.l.s4 1966171168
  %v4951 = vunpack.c.0.s8 %v4950
  %v4952 = vlaneseq
  %v4953 = vshrl.u32 %v4952, 7
  %v4954 = vsub.s32 %v4951, %v4953
  %v4955 = vrot.slane %v4945, %v4954
  %v4957 = vunpack.c.l.s4 1966171168
  %v4958 = vunpack.c.0.s8 %v4957
  %v4959 = vlaneseq
  %v4960 = vshrl.u32 %v4959, 7
  %v4961 = vsub.s32 %v4958, %v4960
  %v4962 = vrot.slane %v4946, %v4961
  %v4964 = vunpack.c.l.s4 1966171168
  %v4965 = vunpack.c.0.s8 %v4964
  %v4966 = vlaneseq
  %v4967 = vshrl.u32 %v4966, 7
  %v4968 = vsub.s32 %v4965, %v4967
  %v4969 = vrot.slane %v4947, %v4968
  %v4971 = vunpack.c.l.s4 1966171168
  %v4972 = vunpack.c.0.s8 %v4971
  %v4973 = vlaneseq
  %v4974 = vshrl.u32 %v4973, 7
  %v4975 = vsub.s32 %v4972, %v4974
  %v4976 = vrot.slane %v4948, %v4975
  %v4977 = vcombine.low %v4955, %v4962
  %v4978 = vcombine.low %v4969, %v4976
  %v4980 = vunpack.c.l.s4 1966171168
  %v4981 = vunpack.c.0.s8 %v4980
  %v4982 = vlaneseq
  %v4983 = vshrl.u32 %v4982, 7
  %v4984 = vsub.s32 %v4981, %v4983
  %v4985 = vrot.slane %v4977, %v4984
  %v4987 = vunpack.c.l.s4 1966171168
  %v4988 = vunpack.c.0.s8 %v4987
  %v4989 = vlaneseq
  %v4990 = vshrl.u32 %v4989, 7
  %v4991 = vsub.s32 %v4988, %v4990
  %v4992 = vrot.slane %v4978, %v4991
  %v4993 = vcombine.low %v4985, %v4992
  %v4994 = vcombine.low %v1936, %v1919
  %v4995 = vcombine.low %v1933, %v1935
  %v4996 = vcombine.low %v1960, %v1974
  %v4997 = vcombine.low %v1982, %v1984
  %v4999 = vunpack.c.l.s4 1966171168
  %v5000 = vunpack.c.0.s8 %v4999
  %v5001 = vlaneseq
  %v5002 = vshrl.u32 %v5001, 7
  %v5003 = vsub.s32 %v5000, %v5002
  %v5004 = vrot.slane %v4994, %v5003
  %v5006 = vunpack.c.l.s4 1966171168
  %v5007 = vunpack.c.0.s8 %v5006
  %v5008 = vlaneseq
  %v5009 = vshrl.u32 %v5008, 7
  %v5010 = vsub.s32 %v5007, %v5009
  %v5011 = vrot.slane %v4995, %v5010
  %v5013 = vunpack.c.l.s4 1966171168
  %v5014 = vunpack.c.0.s8 %v5013
  %v5015 = vlaneseq
  %v5016 = vshrl.u32 %v5015, 7
  %v5017 = vsub.s32 %v5014, %v5016
  %v5018 = vrot.slane %v4996, %v5017
  %v5020 = vunpack.c.l.s4 1966171168
  %v5021 = vunpack.c.0.s8 %v5020
  %v5022 = vlaneseq
  %v5023 = vshrl.u32 %v5022, 7
  %v5024 = vsub.s32 %v5021, %v5023
  %v5025 = vrot.slane %v4997, %v5024
  %v5026 = vcombine.low %v5004, %v5011
  %v5027 = vcombine.low %v5018, %v5025
  %v5029 = vunpack.c.l.s4 1966171168
  %v5030 = vunpack.c.0.s8 %v5029
  %v5031 = vlaneseq
  %v5032 = vshrl.u32 %v5031, 7
  %v5033 = vsub.s32 %v5030, %v5032
  %v5034 = vrot.slane %v5026, %v5033
  %v5036 = vunpack.c.l.s4 1966171168
  %v5037 = vunpack.c.0.s8 %v5036
  %v5038 = vlaneseq
  %v5039 = vshrl.u32 %v5038, 7
  %v5040 = vsub.s32 %v5037, %v5039
  %v5041 = vrot.slane %v5027, %v5040
  %v5042 = vcombine.low %v5034, %v5041
  %v5043 = vcombine.low %v1967, %v1981
  %v5044 = vcombine.low %v1983, %v2008
  %v5045 = vcombine.low %v2022, %v2030
  %v5046 = vcombine.low %v2032, %v2015
  %v5048 = vunpack.c.l.s4 1966171168
  %v5049 = vunpack.c.0.s8 %v5048
  %v5050 = vlaneseq
  %v5051 = vshrl.u32 %v5050, 7
  %v5052 = vsub.s32 %v5049, %v5051
  %v5053 = vrot.slane %v5043, %v5052
  %v5055 = vunpack.c.l.s4 1966171168
  %v5056 = vunpack.c.0.s8 %v5055
  %v5057 = vlaneseq
  %v5058 = vshrl.u32 %v5057, 7
  %v5059 = vsub.s32 %v5056, %v5058
  %v5060 = vrot.slane %v5044, %v5059
  %v5062 = vunpack.c.l.s4 1966171168
  %v5063 = vunpack.c.0.s8 %v5062
  %v5064 = vlaneseq
  %v5065 = vshrl.u32 %v5064, 7
  %v5066 = vsub.s32 %v5063, %v5065
  %v5067 = vrot.slane %v5045, %v5066
  %v5069 = vunpack.c.l.s4 1966171168
  %v5070 = vunpack.c.0.s8 %v5069
  %v5071 = vlaneseq
  %v5072 = vshrl.u32 %v5071, 7
  %v5073 = vsub.s32 %v5070, %v5072
  %v5074 = vrot.slane %v5046, %v5073
  %v5075 = vcombine.low %v5053, %v5060
  %v5076 = vcombine.low %v5067, %v5074
  %v5078 = vunpack.c.l.s4 1966171168
  %v5079 = vunpack.c.0.s8 %v5078
  %v5080 = vlaneseq
  %v5081 = vshrl.u32 %v5080, 7
  %v5082 = vsub.s32 %v5079, %v5081
  %v5083 = vrot.slane %v5075, %v5082
  %v5085 = vunpack.c.l.s4 1966171168
  %v5086 = vunpack.c.0.s8 %v5085
  %v5087 = vlaneseq
  %v5088 = vshrl.u32 %v5087, 7
  %v5089 = vsub.s32 %v5086, %v5088
  %v5090 = vrot.slane %v5076, %v5089
  %v5091 = vcombine.low %v5083, %v5090
  %v5092 = vcombine.low %v2029, %v2031
  %v5093 = vcombine.low %v2056, %v2070
  %v5094 = vcombine.low %v2078, %v2080
  %v5095 = vcombine.low %v2063, %v2077
  %v5097 = vunpack.c.l.s4 1966171168
  %v5098 = vunpack.c.0.s8 %v5097
  %v5099 = vlaneseq
  %v5100 = vshrl.u32 %v5099, 7
  %v5101 = vsub.s32 %v5098, %v5100
  %v5102 = vrot.slane %v5092, %v5101
  %v5104 = vunpack.c.l.s4 1966171168
  %v5105 = vunpack.c.0.s8 %v5104
  %v5106 = vlaneseq
  %v5107 = vshrl.u32 %v5106, 7
  %v5108 = vsub.s32 %v5105, %v5107
  %v5109 = vrot.slane %v5093, %v5108
  %v5111 = vunpack.c.l.s4 1966171168
  %v5112 = vunpack.c.0.s8 %v5111
  %v5113 = vlaneseq
  %v5114 = vshrl.u32 %v5113, 7
  %v5115 = vsub.s32 %v5112, %v5114
  %v5116 = vrot.slane %v5094, %v5115
  %v5118 = vunpack.c.l.s4 1966171168
  %v5119 = vunpack.c.0.s8 %v5118
  %v5120 = vlaneseq
  %v5121 = vshrl.u32 %v5120, 7
  %v5122 = vsub.s32 %v5119, %v5121
  %v5123 = vrot.slane %v5095, %v5122
  %v5124 = vcombine.low %v5102, %v5109
  %v5125 = vcombine.low %v5116, %v5123
  %v5127 = vunpack.c.l.s4 1966171168
  %v5128 = vunpack.c.0.s8 %v5127
  %v5129 = vlaneseq
  %v5130 = vshrl.u32 %v5129, 7
  %v5131 = vsub.s32 %v5128, %v5130
  %v5132 = vrot.slane %v5124, %v5131
  %v5134 = vunpack.c.l.s4 1966171168
  %v5135 = vunpack.c.0.s8 %v5134
  %v5136 = vlaneseq
  %v5137 = vshrl.u32 %v5136, 7
  %v5138 = vsub.s32 %v5135, %v5137
  %v5139 = vrot.slane %v5125, %v5138
  %v5140 = vcombine.low %v5132, %v5139
  %v5142 = vunpack.c.l.s4 1966171168
  %v5143 = vunpack.c.0.s8 %v5142
  %v5144 = vlaneseq
  %v5145 = vshrl.u32 %v5144, 7
  %v5146 = vsub.s32 %v5143, %v5145
  %v5147 = vrot.slane %v2079, %v5146
  %v5149 = vunpack.c.l.s4 1966171168
  %v5150 = vunpack.c.0.s8 %v5149
  %v5151 = vlaneseq
  %v5152 = vshrl.u32 %v5151, 7
  %v5153 = vsub.s32 %v5150, %v5152
  %v5154 = vrot.slane %v5147, %v5153
  %v5162 = vcombine.low %v2118, %v2132
  %v5163 = vcombine.low %v2140, %v2142
  %v5164 = vcombine.low %v2125, %v2139
  %v5165 = vcombine.low %v2141, %v2166
  %v5167 = vunpack.c.l.s4 1966171168
  %v5168 = vunpack.c.0.s8 %v5167
  %v5169 = vlaneseq
  %v5170 = vshrl.u32 %v5169, 7
  %v5171 = vsub.s32 %v5168, %v5170
  %v5172 = vrot.slane %v5162, %v5171
  %v5174 = vunpack.c.l.s4 1966171168
  %v5175 = vunpack.c.0.s8 %v5174
  %v5176 = vlaneseq
  %v5177 = vshrl.u32 %v5176, 7
  %v5178 = vsub.s32 %v5175, %v5177
  %v5179 = vrot.slane %v5163, %v5178
  %v5181 = vunpack.c.l.s4 1966171168
  %v5182 = vunpack.c.0.s8 %v5181
  %v5183 = vlaneseq
  %v5184 = vshrl.u32 %v5183, 7
  %v5185 = vsub.s32 %v5182, %v5184
  %v5186 = vrot.slane %v5164, %v5185
  %v5188 = vunpack.c.l.s4 1966171168
  %v5189 = vunpack.c.0.s8 %v5188
  %v5190 = vlaneseq
  %v5191 = vshrl.u32 %v5190, 7
  %v5192 = vsub.s32 %v5189, %v5191
  %v5193 = vrot.slane %v5165, %v5192
  %v5194 = vcombine.low %v5172, %v5179
  %v5195 = vcombine.low %v5186, %v5193
  %v5197 = vunpack.c.l.s4 1966171168
  %v5198 = vunpack.c.0.s8 %v5197
  %v5199 = vlaneseq
  %v5200 = vshrl.u32 %v5199, 7
  %v5201 = vsub.s32 %v5198, %v5200
  %v5202 = vrot.slane %v5194, %v5201
  %v5204 = vunpack.c.l.s4 1966171168
  %v5205 = vunpack.c.0.s8 %v5204
  %v5206 = vlaneseq
  %v5207 = vshrl.u32 %v5206, 7
  %v5208 = vsub.s32 %v5205, %v5207
  %v5209 = vrot.slane %v5195, %v5208
  %v5210 = vcombine.low %v5202, %v5209
  %v5211 = vcombine.low %v2180, %v2188
  %v5212 = vcombine.low %v2190, %v2173
  %v5213 = vcombine.low %v2187, %v2189
  %v5214 = vcombine.low %v2214, %v2228
  %v5216 = vunpack.c.l.s4 1966171168
  %v5217 = vunpack.c.0.s8 %v5216
  %v5218 = vlaneseq
  %v5219 = vshrl.u32 %v5218, 7
  %v5220 = vsub.s32 %v5217, %v5219
  %v5221 = vrot.slane %v5211, %v5220
  %v5223 = vunpack.c.l.s4 1966171168
  %v5224 = vunpack.c.0.s8 %v5223
  %v5225 = vlaneseq
  %v5226 = vshrl.u32 %v5225, 7
  %v5227 = vsub.s32 %v5224, %v5226
  %v5228 = vrot.slane %v5212, %v5227
  %v5230 = vunpack.c.l.s4 1966171168
  %v5231 = vunpack.c.0.s8 %v5230
  %v5232 = vlaneseq
  %v5233 = vshrl.u32 %v5232, 7
  %v5234 = vsub.s32 %v5231, %v5233
  %v5235 = vrot.slane %v5213, %v5234
  %v5237 = vunpack.c.l.s4 1966171168
  %v5238 = vunpack.c.0.s8 %v5237
  %v5239 = vlaneseq
  %v5240 = vshrl.u32 %v5239, 7
  %v5241 = vsub.s32 %v5238, %v5240
  %v5242 = vrot.slane %v5214, %v5241
  %v5243 = vcombine.low %v5221, %v5228
  %v5244 = vcombine.low %v5235, %v5242
  %v5246 = vunpack.c.l.s4 1966171168
  %v5247 = vunpack.c.0.s8 %v5246
  %v5248 = vlaneseq
  %v5249 = vshrl.u32 %v5248, 7
  %v5250 = vsub.s32 %v5247, %v5249
  %v5251 = vrot.slane %v5243, %v5250
  %v5253 = vunpack.c.l.s4 1966171168
  %v5254 = vunpack.c.0.s8 %v5253
  %v5255 = vlaneseq
  %v5256 = vshrl.u32 %v5255, 7
  %v5257 = vsub.s32 %v5254, %v5256
  %v5258 = vrot.slane %v5244, %v5257
  %v5259 = vcombine.low %v5251, %v5258
  %v5260 = vcombine.low %v2236, %v2238
  %v5261 = vcombine.low %v2221, %v2235
  %v5262 = vcombine.low %v2237, %v2262
  %v5263 = vcombine.low %v2276, %v2284
  %v5265 = vunpack.c.l.s4 1966171168
  %v5266 = vunpack.c.0.s8 %v5265
  %v5267 = vlaneseq
  %v5268 = vshrl.u32 %v5267, 7
  %v5269 = vsub.s32 %v5266, %v5268
  %v5270 = vrot.slane %v5260, %v5269
  %v5272 = vunpack.c.l.s4 1966171168
  %v5273 = vunpack.c.0.s8 %v5272
  %v5274 = vlaneseq
  %v5275 = vshrl.u32 %v5274, 7
  %v5276 = vsub.s32 %v5273, %v5275
  %v5277 = vrot.slane %v5261, %v5276
  %v5279 = vunpack.c.l.s4 1966171168
  %v5280 = vunpack.c.0.s8 %v5279
  %v5281 = vlaneseq
  %v5282 = vshrl.u32 %v5281, 7
  %v5283 = vsub.s32 %v5280, %v5282
  %v5284 = vrot.slane %v5262, %v5283
  %v5286 = vunpack.c.l.s4 1966171168
  %v5287 = vunpack.c.0.s8 %v5286
  %v5288 = vlaneseq
  %v5289 = vshrl.u32 %v5288, 7
  %v5290 = vsub.s32 %v5287, %v5289
  %v5291 = vrot.slane %v5263, %v5290
  %v5292 = vcombine.low %v5270, %v5277
  %v5293 = vcombine.low %v5284, %v5291
  %v5295 = vunpack.c.l.s4 1966171168
  %v5296 = vunpack.c.0.s8 %v5295
  %v5297 = vlaneseq
  %v5298 = vshrl.u32 %v5297, 7
  %v5299 = vsub.s32 %v5296, %v5298
  %v5300 = vrot.slane %v5292, %v5299
  %v5302 = vunpack.c.l.s4 1966171168
  %v5303 = vunpack.c.0.s8 %v5302
  %v5304 = vlaneseq
  %v5305 = vshrl.u32 %v5304, 7
  %v5306 = vsub.s32 %v5303, %v5305
  %v5307 = vrot.slane %v5293, %v5306
  %v5308 = vcombine.low %v5300, %v5307
  %v5309 = vcombine.low %v2286, %v2269
  %v5310 = vcombine.low %v2283, %v2285
  %v5311 = vcombine.low %v2310, %v2324
  %v5312 = vcombine.low %v2332, %v2334
  %v5314 = vunpack.c.l.s4 1966171168
  %v5315 = vunpack.c.0.s8 %v5314
  %v5316 = vlaneseq
  %v5317 = vshrl.u32 %v5316, 7
  %v5318 = vsub.s32 %v5315, %v5317
  %v5319 = vrot.slane %v5309, %v5318
  %v5321 = vunpack.c.l.s4 1966171168
  %v5322 = vunpack.c.0.s8 %v5321
  %v5323 = vlaneseq
  %v5324 = vshrl.u32 %v5323, 7
  %v5325 = vsub.s32 %v5322, %v5324
  %v5326 = vrot.slane %v5310, %v5325
  %v5328 = vunpack.c.l.s4 1966171168
  %v5329 = vunpack.c.0.s8 %v5328
  %v5330 = vlaneseq
  %v5331 = vshrl.u32 %v5330, 7
  %v5332 = vsub.s32 %v5329, %v5331
  %v5333 = vrot.slane %v5311, %v5332
  %v5335 = vunpack.c.l.s4 1966171168
  %v5336 = vunpack.c.0.s8 %v5335
  %v5337 = vlaneseq
  %v5338 = vshrl.u32 %v5337, 7
  %v5339 = vsub.s32 %v5336, %v5338
  %v5340 = vrot.slane %v5312, %v5339
  %v5341 = vcombine.low %v5319, %v5326
  %v5342 = vcombine.low %v5333, %v5340
  %v5344 = vunpack.c.l.s4 1966171168
  %v5345 = vunpack.c.0.s8 %v5344
  %v5346 = vlaneseq
  %v5347 = vshrl.u32 %v5346, 7
  %v5348 = vsub.s32 %v5345, %v5347
  %v5349 = vrot.slane %v5341, %v5348
  %v5351 = vunpack.c.l.s4 1966171168
  %v5352 = vunpack.c.0.s8 %v5351
  %v5353 = vlaneseq
  %v5354 = vshrl.u32 %v5353, 7
  %v5355 = vsub.s32 %v5352, %v5354
  %v5356 = vrot.slane %v5342, %v5355
  %v5357 = vcombine.low %v5349, %v5356
  %v5358 = vcombine.low %v2317, %v2331
  %v5359 = vcombine.low %v2333, %v2358
  %v5360 = vcombine.low %v2372, %v2380
  %v5361 = vcombine.low %v2382, %v2365
  %v5363 = vunpack.c.l.s4 1966171168
  %v5364 = vunpack.c.0.s8 %v5363
  %v5365 = vlaneseq
  %v5366 = vshrl.u32 %v5365, 7
  %v5367 = vsub.s32 %v5364, %v5366
  %v5368 = vrot.slane %v5358, %v5367
  %v5370 = vunpack.c.l.s4 1966171168
  %v5371 = vunpack.c.0.s8 %v5370
  %v5372 = vlaneseq
  %v5373 = vshrl.u32 %v5372, 7
  %v5374 = vsub.s32 %v5371, %v5373
  %v5375 = vrot.slane %v5359, %v5374
  %v5377 = vunpack.c.l.s4 1966171168
  %v5378 = vunpack.c.0.s8 %v5377
  %v5379 = vlaneseq
  %v5380 = vshrl.u32 %v5379, 7
  %v5381 = vsub.s32 %v5378, %v5380
  %v5382 = vrot.slane %v5360, %v5381
  %v5384 = vunpack.c.l.s4 1966171168
  %v5385 = vunpack.c.0.s8 %v5384
  %v5386 = vlaneseq
  %v5387 = vshrl.u32 %v5386, 7
  %v5388 = vsub.s32 %v5385, %v5387
  %v5389 = vrot.slane %v5361, %v5388
  %v5390 = vcombine.low %v5368, %v5375
  %v5391 = vcombine.low %v5382, %v5389
  %v5393 = vunpack.c.l.s4 1966171168
  %v5394 = vunpack.c.0.s8 %v5393
  %v5395 = vlaneseq
  %v5396 = vshrl.u32 %v5395, 7
  %v5397 = vsub.s32 %v5394, %v5396
  %v5398 = vrot.slane %v5390, %v5397
  %v5400 = vunpack.c.l.s4 1966171168
  %v5401 = vunpack.c.0.s8 %v5400
  %v5402 = vlaneseq
  %v5403 = vshrl.u32 %v5402, 7
  %v5404 = vsub.s32 %v5401, %v5403
  %v5405 = vrot.slane %v5391, %v5404
  %v5406 = vcombine.low %v5398, %v5405
  %v5407 = vcombine.low %v2379, %v2381
  %v5408 = vcombine.low %v2406, %v2420
  %v5409 = vcombine.low %v2428, %v2430
  %v5410 = vcombine.low %v2413, %v2427
  %v5412 = vunpack.c.l.s4 1966171168
  %v5413 = vunpack.c.0.s8 %v5412
  %v5414 = vlaneseq
  %v5415 = vshrl.u32 %v5414, 7
  %v5416 = vsub.s32 %v5413, %v5415
  %v5417 = vrot.slane %v5407, %v5416
  %v5419 = vunpack.c.l.s4 1966171168
  %v5420 = vunpack.c.0.s8 %v5419
  %v5421 = vlaneseq
  %v5422 = vshrl.u32 %v5421, 7
  %v5423 = vsub.s32 %v5420, %v5422
  %v5424 = vrot.slane %v5408, %v5423
  %v5426 = vunpack.c.l.s4 1966171168
  %v5427 = vunpack.c.0.s8 %v5426
  %v5428 = vlaneseq
  %v5429 = vshrl.u32 %v5428, 7
  %v5430 = vsub.s32 %v5427, %v5429
  %v5431 = vrot.slane %v5409, %v5430
  %v5433 = vunpack.c.l.s4 1966171168
  %v5434 = vunpack.c.0.s8 %v5433
  %v5435 = vlaneseq
  %v5436 = vshrl.u32 %v5435, 7
  %v5437 = vsub.s32 %v5434, %v5436
  %v5438 = vrot.slane %v5410, %v5437
  %v5439 = vcombine.low %v5417, %v5424
  %v5440 = vcombine.low %v5431, %v5438
  %v5442 = vunpack.c.l.s4 1966171168
  %v5443 = vunpack.c.0.s8 %v5442
  %v5444 = vlaneseq
  %v5445 = vshrl.u32 %v5444, 7
  %v5446 = vsub.s32 %v5443, %v5445
  %v5447 = vrot.slane %v5439, %v5446
  %v5449 = vunpack.c.l.s4 1966171168
  %v5450 = vunpack.c.0.s8 %v5449
  %v5451 = vlaneseq
  %v5452 = vshrl.u32 %v5451, 7
  %v5453 = vsub.s32 %v5450, %v5452
  %v5454 = vrot.slane %v5440, %v5453
  %v5455 = vcombine.low %v5447, %v5454
  %v5457 = vunpack.c.l.s4 1966171168
  %v5458 = vunpack.c.0.s8 %v5457
  %v5459 = vlaneseq
  %v5460 = vshrl.u32 %v5459, 7
  %v5461 = vsub.s32 %v5458, %v5460
  %v5462 = vrot.slane %v2429, %v5461
  %v5464 = vunpack.c.l.s4 1966171168
  %v5465 = vunpack.c.0.s8 %v5464
  %v5466 = vlaneseq
  %v5467 = vshrl.u32 %v5466, 7
  %v5468 = vsub.s32 %v5465, %v5467
  %v5469 = vrot.slane %v5462, %v5468
  %v5477 = vcombine.low %v2468, %v2482
  %v5478 = vcombine.low %v2490, %v2492
  %v5479 = vcombine.low %v2475, %v2489
  %v5480 = vcombine.low %v2491, %v2516
  %v5482 = vunpack.c.l.s4 1966171168
  %v5483 = vunpack.c.0.s8 %v5482
  %v5484 = vlaneseq
  %v5485 = vshrl.u32 %v5484, 7
  %v5486 = vsub.s32 %v5483, %v5485
  %v5487 = vrot.slane %v5477, %v5486
  %v5489 = vunpack.c.l.s4 1966171168
  %v5490 = vunpack.c.0.s8 %v5489
  %v5491 = vlaneseq
  %v5492 = vshrl.u32 %v5491, 7
  %v5493 = vsub.s32 %v5490, %v5492
  %v5494 = vrot.slane %v5478, %v5493
  %v5496 = vunpack.c.l.s4 1966171168
  %v5497 = vunpack.c.0.s8 %v5496
  %v5498 = vlaneseq
  %v5499 = vshrl.u32 %v5498, 7
  %v5500 = vsub.s32 %v5497, %v5499
  %v5501 = vrot.slane %v5479, %v5500
  %v5503 = vunpack.c.l.s4 1966171168
  %v5504 = vunpack.c.0.s8 %v5503
  %v5505 = vlaneseq
  %v5506 = vshrl.u32 %v5505, 7
  %v5507 = vsub.s32 %v5504, %v5506
  %v5508 = vrot.slane %v5480, %v5507
  %v5509 = vcombine.low %v5487, %v5494
  %v5510 = vcombine.low %v5501, %v5508
  %v5512 = vunpack.c.l.s4 1966171168
  %v5513 = vunpack.c.0.s8 %v5512
  %v5514 = vlaneseq
  %v5515 = vshrl.u32 %v5514, 7
  %v5516 = vsub.s32 %v5513, %v5515
  %v5517 = vrot.slane %v5509, %v5516
  %v5519 = vunpack.c.l.s4 1966171168
  %v5520 = vunpack.c.0.s8 %v5519
  %v5521 = vlaneseq
  %v5522 = vshrl.u32 %v5521, 7
  %v5523 = vsub.s32 %v5520, %v5522
  %v5524 = vrot.slane %v5510, %v5523
  %v5525 = vcombine.low %v5517, %v5524
  %v5526 = vcombine.low %v2530, %v2538
  %v5527 = vcombine.low %v2540, %v2523
  %v5528 = vcombine.low %v2537, %v2539
  %v5529 = vcombine.low %v2564, %v2578
  %v5531 = vunpack.c.l.s4 1966171168
  %v5532 = vunpack.c.0.s8 %v5531
  %v5533 = vlaneseq
  %v5534 = vshrl.u32 %v5533, 7
  %v5535 = vsub.s32 %v5532, %v5534
  %v5536 = vrot.slane %v5526, %v5535
  %v5538 = vunpack.c.l.s4 1966171168
  %v5539 = vunpack.c.0.s8 %v5538
  %v5540 = vlaneseq
  %v5541 = vshrl.u32 %v5540, 7
  %v5542 = vsub.s32 %v5539, %v5541
  %v5543 = vrot.slane %v5527, %v5542
  %v5545 = vunpack.c.l.s4 1966171168
  %v5546 = vunpack.c.0.s8 %v5545
  %v5547 = vlaneseq
  %v5548 = vshrl.u32 %v5547, 7
  %v5549 = vsub.s32 %v5546, %v5548
  %v5550 = vrot.slane %v5528, %v5549
  %v5552 = vunpack.c.l.s4 1966171168
  %v5553 = vunpack.c.0.s8 %v5552
  %v5554 = vlaneseq
  %v5555 = vshrl.u32 %v5554, 7
  %v5556 = vsub.s32 %v5553, %v5555
  %v5557 = vrot.slane %v5529, %v5556
  %v5558 = vcombine.low %v5536, %v5543
  %v5559 = vcombine.low %v5550, %v5557
  %v5561 = vunpack.c.l.s4 1966171168
  %v5562 = vunpack.c.0.s8 %v5561
  %v5563 = vlaneseq
  %v5564 = vshrl.u32 %v5563, 7
  %v5565 = vsub.s32 %v5562, %v5564
  %v5566 = vrot.slane %v5558, %v5565
  %v5568 = vunpack.c.l.s4 1966171168
  %v5569 = vunpack.c.0.s8 %v5568
  %v5570 = vlaneseq
  %v5571 = vshrl.u32 %v5570, 7
  %v5572 = vsub.s32 %v5569, %v5571
  %v5573 = vrot.slane %v5559, %v5572
  %v5574 = vcombine.low %v5566, %v5573
  %v5575 = vcombine.low %v2586, %v2588
  %v5576 = vcombine.low %v2571, %v2585
  %v5577 = vcombine.low %v2587, %v2612
  %v5578 = vcombine.low %v2626, %v2634
  %v5580 = vunpack.c.l.s4 1966171168
  %v5581 = vunpack.c.0.s8 %v5580
  %v5582 = vlaneseq
  %v5583 = vshrl.u32 %v5582, 7
  %v5584 = vsub.s32 %v5581, %v5583
  %v5585 = vrot.slane %v5575, %v5584
  %v5587 = vunpack.c.l.s4 1966171168
  %v5588 = vunpack.c.0.s8 %v5587
  %v5589 = vlaneseq
  %v5590 = vshrl.u32 %v5589, 7
  %v5591 = vsub.s32 %v5588, %v5590
  %v5592 = vrot.slane %v5576, %v5591
  %v5594 = vunpack.c.l.s4 1966171168
  %v5595 = vunpack.c.0.s8 %v5594
  %v5596 = vlaneseq
  %v5597 = vshrl.u32 %v5596, 7
  %v5598 = vsub.s32 %v5595, %v5597
  %v5599 = vrot.slane %v5577, %v5598
  %v5601 = vunpack.c.l.s4 1966171168
  %v5602 = vunpack.c.0.s8 %v5601
  %v5603 = vlaneseq
  %v5604 = vshrl.u32 %v5603, 7
  %v5605 = vsub.s32 %v5602, %v5604
  %v5606 = vrot.slane %v5578, %v5605
  %v5607 = vcombine.low %v5585, %v5592
  %v5608 = vcombine.low %v5599, %v5606
  %v5610 = vunpack.c.l.s4 1966171168
  %v5611 = vunpack.c.0.s8 %v5610
  %v5612 = vlaneseq
  %v5613 = vshrl.u32 %v5612, 7
  %v5614 = vsub.s32 %v5611, %v5613
  %v5615 = vrot.slane %v5607, %v5614
  %v5617 = vunpack.c.l.s4 1966171168
  %v5618 = vunpack.c.0.s8 %v5617
  %v5619 = vlaneseq
  %v5620 = vshrl.u32 %v5619, 7
  %v5621 = vsub.s32 %v5618, %v5620
  %v5622 = vrot.slane %v5608, %v5621
  %v5623 = vcombine.low %v5615, %v5622
  %v5624 = vcombine.low %v2636, %v2619
  %v5625 = vcombine.low %v2633, %v2635
  %v5626 = vcombine.low %v2660, %v2674
  %v5627 = vcombine.low %v2682, %v2684
  %v5629 = vunpack.c.l.s4 1966171168
  %v5630 = vunpack.c.0.s8 %v5629
  %v5631 = vlaneseq
  %v5632 = vshrl.u32 %v5631, 7
  %v5633 = vsub.s32 %v5630, %v5632
  %v5634 = vrot.slane %v5624, %v5633
  %v5636 = vunpack.c.l.s4 1966171168
  %v5637 = vunpack.c.0.s8 %v5636
  %v5638 = vlaneseq
  %v5639 = vshrl.u32 %v5638, 7
  %v5640 = vsub.s32 %v5637, %v5639
  %v5641 = vrot.slane %v5625, %v5640
  %v5643 = vunpack.c.l.s4 1966171168
  %v5644 = vunpack.c.0.s8 %v5643
  %v5645 = vlaneseq
  %v5646 = vshrl.u32 %v5645, 7
  %v5647 = vsub.s32 %v5644, %v5646
  %v5648 = vrot.slane %v5626, %v5647
  %v5650 = vunpack.c.l.s4 1966171168
  %v5651 = vunpack.c.0.s8 %v5650
  %v5652 = vlaneseq
  %v5653 = vshrl.u32 %v5652, 7
  %v5654 = vsub.s32 %v5651, %v5653
  %v5655 = vrot.slane %v5627, %v5654
  %v5656 = vcombine.low %v5634, %v5641
  %v5657 = vcombine.low %v5648, %v5655
  %v5659 = vunpack.c.l.s4 1966171168
  %v5660 = vunpack.c.0.s8 %v5659
  %v5661 = vlaneseq
  %v5662 = vshrl.u32 %v5661, 7
  %v5663 = vsub.s32 %v5660, %v5662
  %v5664 = vrot.slane %v5656, %v5663
  %v5666 = vunpack.c.l.s4 1966171168
  %v5667 = vunpack.c.0.s8 %v5666
  %v5668 = vlaneseq
  %v5669 = vshrl.u32 %v5668, 7
  %v5670 = vsub.s32 %v5667, %v5669
  %v5671 = vrot.slane %v5657, %v5670
  %v5672 = vcombine.low %v5664, %v5671
  %v5673 = vcombine.low %v2667, %v2681
  %v5674 = vcombine.low %v2683, %v2708
  %v5675 = vcombine.low %v2722, %v2730
  %v5676 = vcombine.low %v2732, %v2715
  %v5678 = vunpack.c.l.s4 1966171168
  %v5679 = vunpack.c.0.s8 %v5678
  %v5680 = vlaneseq
  %v5681 = vshrl.u32 %v5680, 7
  %v5682 = vsub.s32 %v5679, %v5681
  %v5683 = vrot.slane %v5673, %v5682
  %v5685 = vunpack.c.l.s4 1966171168
  %v5686 = vunpack.c.0.s8 %v5685
  %v5687 = vlaneseq
  %v5688 = vshrl.u32 %v5687, 7
  %v5689 = vsub.s32 %v5686, %v5688
  %v5690 = vrot.slane %v5674, %v5689
  %v5692 = vunpack.c.l.s4 1966171168
  %v5693 = vunpack.c.0.s8 %v5692
  %v5694 = vlaneseq
  %v5695 = vshrl.u32 %v5694, 7
  %v5696 = vsub.s32 %v5693, %v5695
  %v5697 = vrot.slane %v5675, %v5696
  %v5699 = vunpack.c.l.s4 1966171168
  %v5700 = vunpack.c.0.s8 %v5699
  %v5701 = vlaneseq
  %v5702 = vshrl.u32 %v5701, 7
  %v5703 = vsub.s32 %v5700, %v5702
  %v5704 = vrot.slane %v5676, %v5703
  %v5705 = vcombine.low %v5683, %v5690
  %v5706 = vcombine.low %v5697, %v5704
  %v5708 = vunpack.c.l.s4 1966171168
  %v5709 = vunpack.c.0.s8 %v5708
  %v5710 = vlaneseq
  %v5711 = vshrl.u32 %v5710, 7
  %v5712 = vsub.s32 %v5709, %v5711
  %v5713 = vrot.slane %v5705, %v5712
  %v5715 = vunpack.c.l.s4 1966171168
  %v5716 = vunpack.c.0.s8 %v5715
  %v5717 = vlaneseq
  %v5718 = vshrl.u32 %v5717, 7
  %v5719 = vsub.s32 %v5716, %v5718
  %v5720 = vrot.slane %v5706, %v5719
  %v5721 = vcombine.low %v5713, %v5720
  %v5722 = vcombine.low %v2729, %v2731
  %v5723 = vcombine.low %v2756, %v2770
  %v5724 = vcombine.low %v2778, %v2780
  %v5725 = vcombine.low %v2763, %v2777
  %v5727 = vunpack.c.l.s4 1966171168
  %v5728 = vunpack.c.0.s8 %v5727
  %v5729 = vlaneseq
  %v5730 = vshrl.u32 %v5729, 7
  %v5731 = vsub.s32 %v5728, %v5730
  %v5732 = vrot.slane %v5722, %v5731
  %v5734 = vunpack.c.l.s4 1966171168
  %v5735 = vunpack.c.0.s8 %v5734
  %v5736 = vlaneseq
  %v5737 = vshrl.u32 %v5736, 7
  %v5738 = vsub.s32 %v5735, %v5737
  %v5739 = vrot.slane %v5723, %v5738
  %v5741 = vunpack.c.l.s4 1966171168
  %v5742 = vunpack.c.0.s8 %v5741
  %v5743 = vlaneseq
  %v5744 = vshrl.u32 %v5743, 7
  %v5745 = vsub.s32 %v5742, %v5744
  %v5746 = vrot.slane %v5724, %v5745
  %v5748 = vunpack.c.l.s4 1966171168
  %v5749 = vunpack.c.0.s8 %v5748
  %v5750 = vlaneseq
  %v5751 = vshrl.u32 %v5750, 7
  %v5752 = vsub.s32 %v5749, %v5751
  %v5753 = vrot.slane %v5725, %v5752
  %v5754 = vcombine.low %v5732, %v5739
  %v5755 = vcombine.low %v5746, %v5753
  %v5757 = vunpack.c.l.s4 1966171168
  %v5758 = vunpack.c.0.s8 %v5757
  %v5759 = vlaneseq
  %v5760 = vshrl.u32 %v5759, 7
  %v5761 = vsub.s32 %v5758, %v5760
  %v5762 = vrot.slane %v5754, %v5761
  %v5764 = vunpack.c.l.s4 1966171168
  %v5765 = vunpack.c.0.s8 %v5764
  %v5766 = vlaneseq
  %v5767 = vshrl.u32 %v5766, 7
  %v5768 = vsub.s32 %v5765, %v5767
  %v5769 = vrot.slane %v5755, %v5768
  %v5770 = vcombine.low %v5762, %v5769
  %v5772 = vunpack.c.l.s4 1966171168
  %v5773 = vunpack.c.0.s8 %v5772
  %v5774 = vlaneseq
  %v5775 = vshrl.u32 %v5774, 7
  %v5776 = vsub.s32 %v5773, %v5775
  %v5777 = vrot.slane %v2779, %v5776
  %v5779 = vunpack.c.l.s4 1966171168
  %v5780 = vunpack.c.0.s8 %v5779
  %v5781 = vlaneseq
  %v5782 = vshrl.u32 %v5781, 7
  %v5783 = vsub.s32 %v5780, %v5782
  %v5784 = vrot.slane %v5777, %v5783
  %v5792 = vcombine.low %v2818, %v2832
  %v5793 = vcombine.low %v2840, %v2842
  %v5794 = vcombine.low %v2825, %v2839
  %v5795 = vcombine.low %v2841, %v2866
  %v5797 = vunpack.c.l.s4 1966171168
  %v5798 = vunpack.c.0.s8 %v5797
  %v5799 = vlaneseq
  %v5800 = vshrl.u32 %v5799, 7
  %v5801 = vsub.s32 %v5798, %v5800
  %v5802 = vrot.slane %v5792, %v5801
  %v5804 = vunpack.c.l.s4 1966171168
  %v5805 = vunpack.c.0.s8 %v5804
  %v5806 = vlaneseq
  %v5807 = vshrl.u32 %v5806, 7
  %v5808 = vsub.s32 %v5805, %v5807
  %v5809 = vrot.slane %v5793, %v5808
  %v5811 = vunpack.c.l.s4 1966171168
  %v5812 = vunpack.c.0.s8 %v5811
  %v5813 = vlaneseq
  %v5814 = vshrl.u32 %v5813, 7
  %v5815 = vsub.s32 %v5812, %v5814
  %v5816 = vrot.slane %v5794, %v5815
  %v5818 = vunpack.c.l.s4 1966171168
  %v5819 = vunpack.c.0.s8 %v5818
  %v5820 = vlaneseq
  %v5821 = vshrl.u32 %v5820, 7
  %v5822 = vsub.s32 %v5819, %v5821
  %v5823 = vrot.slane %v5795, %v5822
  %v5824 = vcombine.low %v5802, %v5809
  %v5825 = vcombine.low %v5816, %v5823
  %v5827 = vunpack.c.l.s4 1966171168
  %v5828 = vunpack.c.0.s8 %v5827
  %v5829 = vlaneseq
  %v5830 = vshrl.u32 %v5829, 7
  %v5831 = vsub.s32 %v5828, %v5830
  %v5832 = vrot.slane %v5824, %v5831
  %v5834 = vunpack.c.l.s4 1966171168
  %v5835 = vunpack.c.0.s8 %v5834
  %v5836 = vlaneseq
  %v5837 = vshrl.u32 %v5836, 7
  %v5838 = vsub.s32 %v5835, %v5837
  %v5839 = vrot.slane %v5825, %v5838
  %v5840 = vcombine.low %v5832, %v5839
  %v5841 = vcombine.low %v2880, %v2888
  %v5842 = vcombine.low %v2890, %v2873
  %v5843 = vcombine.low %v2887, %v2889
  %v5844 = vcombine.low %v2914, %v2928
  %v5846 = vunpack.c.l.s4 1966171168
  %v5847 = vunpack.c.0.s8 %v5846
  %v5848 = vlaneseq
  %v5849 = vshrl.u32 %v5848, 7
  %v5850 = vsub.s32 %v5847, %v5849
  %v5851 = vrot.slane %v5841, %v5850
  %v5853 = vunpack.c.l.s4 1966171168
  %v5854 = vunpack.c.0.s8 %v5853
  %v5855 = vlaneseq
  %v5856 = vshrl.u32 %v5855, 7
  %v5857 = vsub.s32 %v5854, %v5856
  %v5858 = vrot.slane %v5842, %v5857
  %v5860 = vunpack.c.l.s4 1966171168
  %v5861 = vunpack.c.0.s8 %v5860
  %v5862 = vlaneseq
  %v5863 = vshrl.u32 %v5862, 7
  %v5864 = vsub.s32 %v5861, %v5863
  %v5865 = vrot.slane %v5843, %v5864
  %v5867 = vunpack.c.l.s4 1966171168
  %v5868 = vunpack.c.0.s8 %v5867
  %v5869 = vlaneseq
  %v5870 = vshrl.u32 %v5869, 7
  %v5871 = vsub.s32 %v5868, %v5870
  %v5872 = vrot.slane %v5844, %v5871
  %v5873 = vcombine.low %v5851, %v5858
  %v5874 = vcombine.low %v5865, %v5872
  %v5876 = vunpack.c.l.s4 1966171168
  %v5877 = vunpack.c.0.s8 %v5876
  %v5878 = vlaneseq
  %v5879 = vshrl.u32 %v5878, 7
  %v5880 = vsub.s32 %v5877, %v5879
  %v5881 = vrot.slane %v5873, %v5880
  %v5883 = vunpack.c.l.s4 1966171168
  %v5884 = vunpack.c.0.s8 %v5883
  %v5885 = vlaneseq
  %v5886 = vshrl.u32 %v5885, 7
  %v5887 = vsub.s32 %v5884, %v5886
  %v5888 = vrot.slane %v5874, %v5887
  %v5889 = vcombine.low %v5881, %v5888
  %v5890 = vcombine.low %v2936, %v2938
  %v5891 = vcombine.low %v2921, %v2935
  %v5892 = vcombine.low %v2937, %v2962
  %v5893 = vcombine.low %v2976, %v2984
  %v5895 = vunpack.c.l.s4 1966171168
  %v5896 = vunpack.c.0.s8 %v5895
  %v5897 = vlaneseq
  %v5898 = vshrl.u32 %v5897, 7
  %v5899 = vsub.s32 %v5896, %v5898
  %v5900 = vrot.slane %v5890, %v5899
  %v5902 = vunpack.c.l.s4 1966171168
  %v5903 = vunpack.c.0.s8 %v5902
  %v5904 = vlaneseq
  %v5905 = vshrl.u32 %v5904, 7
  %v5906 = vsub.s32 %v5903, %v5905
  %v5907 = vrot.slane %v5891, %v5906
  %v5909 = vunpack.c.l.s4 1966171168
  %v5910 = vunpack.c.0.s8 %v5909
  %v5911 = vlaneseq
  %v5912 = vshrl.u32 %v5911, 7
  %v5913 = vsub.s32 %v5910, %v5912
  %v5914 = vrot.slane %v5892, %v5913
  %v5916 = vunpack.c.l.s4 1966171168
  %v5917 = vunpack.c.0.s8 %v5916
  %v5918 = vlaneseq
  %v5919 = vshrl.u32 %v5918, 7
  %v5920 = vsub.s32 %v5917, %v5919
  %v5921 = vrot.slane %v5893, %v5920
  %v5922 = vcombine.low %v5900, %v5907
  %v5923 = vcombine.low %v5914, %v5921
  %v5925 = vunpack.c.l.s4 1966171168
  %v5926 = vunpack.c.0.s8 %v5925
  %v5927 = vlaneseq
  %v5928 = vshrl.u32 %v5927, 7
  %v5929 = vsub.s32 %v5926, %v5928
  %v5930 = vrot.slane %v5922, %v5929
  %v5932 = vunpack.c.l.s4 1966171168
  %v5933 = vunpack.c.0.s8 %v5932
  %v5934 = vlaneseq
  %v5935 = vshrl.u32 %v5934, 7
  %v5936 = vsub.s32 %v5933, %v5935
  %v5937 = vrot.slane %v5923, %v5936
  %v5938 = vcombine.low %v5930, %v5937
  %v5939 = vcombine.low %v2986, %v2969
  %v5940 = vcombine.low %v2983, %v2985
  %v5941 = vcombine.low %v3010, %v3024
  %v5942 = vcombine.low %v3032, %v3034
  %v5944 = vunpack.c.l.s4 1966171168
  %v5945 = vunpack.c.0.s8 %v5944
  %v5946 = vlaneseq
  %v5947 = vshrl.u32 %v5946, 7
  %v5948 = vsub.s32 %v5945, %v5947
  %v5949 = vrot.slane %v5939, %v5948
  %v5951 = vunpack.c.l.s4 1966171168
  %v5952 = vunpack.c.0.s8 %v5951
  %v5953 = vlaneseq
  %v5954 = vshrl.u32 %v5953, 7
  %v5955 = vsub.s32 %v5952, %v5954
  %v5956 = vrot.slane %v5940, %v5955
  %v5958 = vunpack.c.l.s4 1966171168
  %v5959 = vunpack.c.0.s8 %v5958
  %v5960 = vlaneseq
  %v5961 = vshrl.u32 %v5960, 7
  %v5962 = vsub.s32 %v5959, %v5961
  %v5963 = vrot.slane %v5941, %v5962
  %v5965 = vunpack.c.l.s4 1966171168
  %v5966 = vunpack.c.0.s8 %v5965
  %v5967 = vlaneseq
  %v5968 = vshrl.u32 %v5967, 7
  %v5969 = vsub.s32 %v5966, %v5968
  %v5970 = vrot.slane %v5942, %v5969
  %v5971 = vcombine.low %v5949, %v5956
  %v5972 = vcombine.low %v5963, %v5970
  %v5974 = vunpack.c.l.s4 1966171168
  %v5975 = vunpack.c.0.s8 %v5974
  %v5976 = vlaneseq
  %v5977 = vshrl.u32 %v5976, 7
  %v5978 = vsub.s32 %v5975, %v5977
  %v5979 = vrot.slane %v5971, %v5978
  %v5981 = vunpack.c.l.s4 1966171168
  %v5982 = vunpack.c.0.s8 %v5981
  %v5983 = vlaneseq
  %v5984 = vshrl.u32 %v5983, 7
  %v5985 = vsub.s32 %v5982, %v5984
  %v5986 = vrot.slane %v5972, %v5985
  %v5987 = vcombine.low %v5979, %v5986
  %v5988 = vcombine.low %v3017, %v3031
  %v5989 = vcombine.low %v3033, %v3058
  %v5990 = vcombine.low %v3072, %v3080
  %v5991 = vcombine.low %v3082, %v3065
  %v5993 = vunpack.c.l.s4 1966171168
  %v5994 = vunpack.c.0.s8 %v5993
  %v5995 = vlaneseq
  %v5996 = vshrl.u32 %v5995, 7
  %v5997 = vsub.s32 %v5994, %v5996
  %v5998 = vrot.slane %v5988, %v5997
  %v6000 = vunpack.c.l.s4 1966171168
  %v6001 = vunpack.c.0.s8 %v6000
  %v6002 = vlaneseq
  %v6003 = vshrl.u32 %v6002, 7
  %v6004 = vsub.s32 %v6001, %v6003
  %v6005 = vrot.slane %v5989, %v6004
  %v6007 = vunpack.c.l.s4 1966171168
  %v6008 = vunpack.c.0.s8 %v6007
  %v6009 = vlaneseq
  %v6010 = vshrl.u32 %v6009, 7
  %v6011 = vsub.s32 %v6008, %v6010
  %v6012 = vrot.slane %v5990, %v6011
  %v6014 = vunpack.c.l.s4 1966171168
  %v6015 = vunpack.c.0.s8 %v6014
  %v6016 = vlaneseq
  %v6017 = vshrl.u32 %v6016, 7
  %v6018 = vsub.s32 %v6015, %v6017
  %v6019 = vrot.slane %v5991, %v6018
  %v6020 = vcombine.low %v5998, %v6005
  %v6021 = vcombine.low %v6012, %v6019
  %v6023 = vunpack.c.l.s4 1966171168
  %v6024 = vunpack.c.0.s8 %v6023
  %v6025 = vlaneseq
  %v6026 = vshrl.u32 %v6025, 7
  %v6027 = vsub.s32 %v6024, %v6026
  %v6028 = vrot.slane %v6020, %v6027
  %v6030 = vunpack.c.l.s4 1966171168
  %v6031 = vunpack.c.0.s8 %v6030
  %v6032 = vlaneseq
  %v6033 = vshrl.u32 %v6032, 7
  %v6034 = vsub.s32 %v6031, %v6033
  %v6035 = vrot.slane %v6021, %v6034
  %v6036 = vcombine.low %v6028, %v6035
  %v6037 = vcombine.low %v3079, %v3081
  %v6038 = vcombine.low %v3106, %v3120
  %v6039 = vcombine.low %v3128, %v3130
  %v6040 = vcombine.low %v3113, %v3127
  %v6042 = vunpack.c.l.s4 1966171168
  %v6043 = vunpack.c.0.s8 %v6042
  %v6044 = vlaneseq
  %v6045 = vshrl.u32 %v6044, 7
  %v6046 = vsub.s32 %v6043, %v6045
  %v6047 = vrot.slane %v6037, %v6046
  %v6049 = vunpack.c.l.s4 1966171168
  %v6050 = vunpack.c.0.s8 %v6049
  %v6051 = vlaneseq
  %v6052 = vshrl.u32 %v6051, 7
  %v6053 = vsub.s32 %v6050, %v6052
  %v6054 = vrot.slane %v6038, %v6053
  %v6056 = vunpack.c.l.s4 1966171168
  %v6057 = vunpack.c.0.s8 %v6056
  %v6058 = vlaneseq
  %v6059 = vshrl.u32 %v6058, 7
  %v6060 = vsub.s32 %v6057, %v6059
  %v6061 = vrot.slane %v6039, %v6060
  %v6063 = vunpack.c.l.s4 1966171168
  %v6064 = vunpack.c.0.s8 %v6063
  %v6065 = vlaneseq
  %v6066 = vshrl.u32 %v6065, 7
  %v6067 = vsub.s32 %v6064, %v6066
  %v6068 = vrot.slane %v6040, %v6067
  %v6069 = vcombine.low %v6047, %v6054
  %v6070 = vcombine.low %v6061, %v6068
  %v6072 = vunpack.c.l.s4 1966171168
  %v6073 = vunpack.c.0.s8 %v6072
  %v6074 = vlaneseq
  %v6075 = vshrl.u32 %v6074, 7
  %v6076 = vsub.s32 %v6073, %v6075
  %v6077 = vrot.slane %v6069, %v6076
  %v6079 = vunpack.c.l.s4 1966171168
  %v6080 = vunpack.c.0.s8 %v6079
  %v6081 = vlaneseq
  %v6082 = vshrl.u32 %v6081, 7
  %v6083 = vsub.s32 %v6080, %v6082
  %v6084 = vrot.slane %v6070, %v6083
  %v6085 = vcombine.low %v6077, %v6084
  %v6087 = vunpack.c.l.s4 1966171168
  %v6088 = vunpack.c.0.s8 %v6087
  %v6089 = vlaneseq
  %v6090 = vshrl.u32 %v6089, 7
  %v6091 = vsub.s32 %v6088, %v6090
  %v6092 = vrot.slane %v3129, %v6091
  %v6094 = vunpack.c.l.s4 1966171168
  %v6095 = vunpack.c.0.s8 %v6094
  %v6096 = vlaneseq
  %v6097 = vshrl.u32 %v6096, 7
  %v6098 = vsub.s32 %v6095, %v6097
  %v6099 = vrot.slane %v6092, %v6098
  %v6107 = vcombine.low %v3168, %v3182
  %v6108 = vcombine.low %v3190, %v3192
  %v6109 = vcombine.low %v3175, %v3189
  %v6110 = vcombine.low %v3191, %v3216
  %v6112 = vunpack.c.l.s4 1966171168
  %v6113 = vunpack.c.0.s8 %v6112
  %v6114 = vlaneseq
  %v6115 = vshrl.u32 %v6114, 7
  %v6116 = vsub.s32 %v6113, %v6115
  %v6117 = vrot.slane %v6107, %v6116
  %v6119 = vunpack.c.l.s4 1966171168
  %v6120 = vunpack.c.0.s8 %v6119
  %v6121 = vlaneseq
  %v6122 = vshrl.u32 %v6121, 7
  %v6123 = vsub.s32 %v6120, %v6122
  %v6124 = vrot.slane %v6108, %v6123
  %v6126 = vunpack.c.l.s4 1966171168
  %v6127 = vunpack.c.0.s8 %v6126
  %v6128 = vlaneseq
  %v6129 = vshrl.u32 %v6128, 7
  %v6130 = vsub.s32 %v6127, %v6129
  %v6131 = vrot.slane %v6109, %v6130
  %v6133 = vunpack.c.l.s4 1966171168
  %v6134 = vunpack.c.0.s8 %v6133
  %v6135 = vlaneseq
  %v6136 = vshrl.u32 %v6135, 7
  %v6137 = vsub.s32 %v6134, %v6136
  %v6138 = vrot.slane %v6110, %v6137
  %v6139 = vcombine.low %v6117, %v6124
  %v6140 = vcombine.low %v6131, %v6138
  %v6142 = vunpack.c.l.s4 1966171168
  %v6143 = vunpack.c.0.s8 %v6142
  %v6144 = vlaneseq
  %v6145 = vshrl.u32 %v6144, 7
  %v6146 = vsub.s32 %v6143, %v6145
  %v6147 = vrot.slane %v6139, %v6146
  %v6149 = vunpack.c.l.s4 1966171168
  %v6150 = vunpack.c.0.s8 %v6149
  %v6151 = vlaneseq
  %v6152 = vshrl.u32 %v6151, 7
  %v6153 = vsub.s32 %v6150, %v6152
  %v6154 = vrot.slane %v6140, %v6153
  %v6155 = vcombine.low %v6147, %v6154
  %v6156 = vcombine.low %v3230, %v3238
  %v6157 = vcombine.low %v3240, %v3223
  %v6158 = vcombine.low %v3237, %v3239
  %v6159 = vcombine.low %v3264, %v3278
  %v6161 = vunpack.c.l.s4 1966171168
  %v6162 = vunpack.c.0.s8 %v6161
  %v6163 = vlaneseq
  %v6164 = vshrl.u32 %v6163, 7
  %v6165 = vsub.s32 %v6162, %v6164
  %v6166 = vrot.slane %v6156, %v6165
  %v6168 = vunpack.c.l.s4 1966171168
  %v6169 = vunpack.c.0.s8 %v6168
  %v6170 = vlaneseq
  %v6171 = vshrl.u32 %v6170, 7
  %v6172 = vsub.s32 %v6169, %v6171
  %v6173 = vrot.slane %v6157, %v6172
  %v6175 = vunpack.c.l.s4 1966171168
  %v6176 = vunpack.c.0.s8 %v6175
  %v6177 = vlaneseq
  %v6178 = vshrl.u32 %v6177, 7
  %v6179 = vsub.s32 %v6176, %v6178
  %v6180 = vrot.slane %v6158, %v6179
  %v6182 = vunpack.c.l.s4 1966171168
  %v6183 = vunpack.c.0.s8 %v6182
  %v6184 = vlaneseq
  %v6185 = vshrl.u32 %v6184, 7
  %v6186 = vsub.s32 %v6183, %v6185
  %v6187 = vrot.slane %v6159, %v6186
  %v6188 = vcombine.low %v6166, %v6173
  %v6189 = vcombine.low %v6180, %v6187
  %v6191 = vunpack.c.l.s4 1966171168
  %v6192 = vunpack.c.0.s8 %v6191
  %v6193 = vlaneseq
  %v6194 = vshrl.u32 %v6193, 7
  %v6195 = vsub.s32 %v6192, %v6194
  %v6196 = vrot.slane %v6188, %v6195
  %v6198 = vunpack.c.l.s4 1966171168
  %v6199 = vunpack.c.0.s8 %v6198
  %v6200 = vlaneseq
  %v6201 = vshrl.u32 %v6200, 7
  %v6202 = vsub.s32 %v6199, %v6201
  %v6203 = vrot.slane %v6189, %v6202
  %v6204 = vcombine.low %v6196, %v6203
  %v6205 = vcombine.low %v3286, %v3288
  %v6206 = vcombine.low %v3271, %v3285
  %v6207 = vcombine.low %v3287, %v3312
  %v6208 = vcombine.low %v3326, %v3334
  %v6210 = vunpack.c.l.s4 1966171168
  %v6211 = vunpack.c.0.s8 %v6210
  %v6212 = vlaneseq
  %v6213 = vshrl.u32 %v6212, 7
  %v6214 = vsub.s32 %v6211, %v6213
  %v6215 = vrot.slane %v6205, %v6214
  %v6217 = vunpack.c.l.s4 1966171168
  %v6218 = vunpack.c.0.s8 %v6217
  %v6219 = vlaneseq
  %v6220 = vshrl.u32 %v6219, 7
  %v6221 = vsub.s32 %v6218, %v6220
  %v6222 = vrot.slane %v6206, %v6221
  %v6224 = vunpack.c.l.s4 1966171168
  %v6225 = vunpack.c.0.s8 %v6224
  %v6226 = vlaneseq
  %v6227 = vshrl.u32 %v6226, 7
  %v6228 = vsub.s32 %v6225, %v6227
  %v6229 = vrot.slane %v6207, %v6228
  %v6231 = vunpack.c.l.s4 1966171168
  %v6232 = vunpack.c.0.s8 %v6231
  %v6233 = vlaneseq
  %v6234 = vshrl.u32 %v6233, 7
  %v6235 = vsub.s32 %v6232, %v6234
  %v6236 = vrot.slane %v6208, %v6235
  %v6237 = vcombine.low %v6215, %v6222
  %v6238 = vcombine.low %v6229, %v6236
  %v6240 = vunpack.c.l.s4 1966171168
  %v6241 = vunpack.c.0.s8 %v6240
  %v6242 = vlaneseq
  %v6243 = vshrl.u32 %v6242, 7
  %v6244 = vsub.s32 %v6241, %v6243
  %v6245 = vrot.slane %v6237, %v6244
  %v6247 = vunpack.c.l.s4 1966171168
  %v6248 = vunpack.c.0.s8 %v6247
  %v6249 = vlaneseq
  %v6250 = vshrl.u32 %v6249, 7
  %v6251 = vsub.s32 %v6248, %v6250
  %v6252 = vrot.slane %v6238, %v6251
  %v6253 = vcombine.low %v6245, %v6252
  %v6254 = vcombine.low %v3336, %v3319
  %v6255 = vcombine.low %v3333, %v3335
  %v6256 = vcombine.low %v3360, %v3374
  %v6257 = vcombine.low %v3382, %v3384
  %v6259 = vunpack.c.l.s4 1966171168
  %v6260 = vunpack.c.0.s8 %v6259
  %v6261 = vlaneseq
  %v6262 = vshrl.u32 %v6261, 7
  %v6263 = vsub.s32 %v6260, %v6262
  %v6264 = vrot.slane %v6254, %v6263
  %v6266 = vunpack.c.l.s4 1966171168
  %v6267 = vunpack.c.0.s8 %v6266
  %v6268 = vlaneseq
  %v6269 = vshrl.u32 %v6268, 7
  %v6270 = vsub.s32 %v6267, %v6269
  %v6271 = vrot.slane %v6255, %v6270
  %v6273 = vunpack.c.l.s4 1966171168
  %v6274 = vunpack.c.0.s8 %v6273
  %v6275 = vlaneseq
  %v6276 = vshrl.u32 %v6275, 7
  %v6277 = vsub.s32 %v6274, %v6276
  %v6278 = vrot.slane %v6256, %v6277
  %v6280 = vunpack.c.l.s4 1966171168
  %v6281 = vunpack.c.0.s8 %v6280
  %v6282 = vlaneseq
  %v6283 = vshrl.u32 %v6282, 7
  %v6284 = vsub.s32 %v6281, %v6283
  %v6285 = vrot.slane %v6257, %v6284
  %v6286 = vcombine.low %v6264, %v6271
  %v6287 = vcombine.low %v6278, %v6285
  %v6289 = vunpack.c.l.s4 1966171168
  %v6290 = vunpack.c.0.s8 %v6289
  %v6291 = vlaneseq
  %v6292 = vshrl.u32 %v6291, 7
  %v6293 = vsub.s32 %v6290, %v6292
  %v6294 = vrot.slane %v6286, %v6293
  %v6296 = vunpack.c.l.s4 1966171168
  %v6297 = vunpack.c.0.s8 %v6296
  %v6298 = vlaneseq
  %v6299 = vshrl.u32 %v6298, 7
  %v6300 = vsub.s32 %v6297, %v6299
  %v6301 = vrot.slane %v6287, %v6300
  %v6302 = vcombine.low %v6294, %v6301
  %v6303 = vcombine.low %v3367, %v3381
  %v6304 = vcombine.low %v3383, %v3408
  %v6305 = vcombine.low %v3422, %v3430
  %v6306 = vcombine.low %v3432, %v3415
  %v6308 = vunpack.c.l.s4 1966171168
  %v6309 = vunpack.c.0.s8 %v6308
  %v6310 = vlaneseq
  %v6311 = vshrl.u32 %v6310, 7
  %v6312 = vsub.s32 %v6309, %v6311
  %v6313 = vrot.slane %v6303, %v6312
  %v6315 = vunpack.c.l.s4 1966171168
  %v6316 = vunpack.c.0.s8 %v6315
  %v6317 = vlaneseq
  %v6318 = vshrl.u32 %v6317, 7
  %v6319 = vsub.s32 %v6316, %v6318
  %v6320 = vrot.slane %v6304, %v6319
  %v6322 = vunpack.c.l.s4 1966171168
  %v6323 = vunpack.c.0.s8 %v6322
  %v6324 = vlaneseq
  %v6325 = vshrl.u32 %v6324, 7
  %v6326 = vsub.s32 %v6323, %v6325
  %v6327 = vrot.slane %v6305, %v6326
  %v6329 = vunpack.c.l.s4 1966171168
  %v6330 = vunpack.c.0.s8 %v6329
  %v6331 = vlaneseq
  %v6332 = vshrl.u32 %v6331, 7
  %v6333 = vsub.s32 %v6330, %v6332
  %v6334 = vrot.slane %v6306, %v6333
  %v6335 = vcombine.low %v6313, %v6320
  %v6336 = vcombine.low %v6327, %v6334
  %v6338 = vunpack.c.l.s4 1966171168
  %v6339 = vunpack.c.0.s8 %v6338
  %v6340 = vlaneseq
  %v6341 = vshrl.u32 %v6340, 7
  %v6342 = vsub.s32 %v6339, %v6341
  %v6343 = vrot.slane %v6335, %v6342
  %v6345 = vunpack.c.l.s4 1966171168
  %v6346 = vunpack.c.0.s8 %v6345
  %v6347 = vlaneseq
  %v6348 = vshrl.u32 %v6347, 7
  %v6349 = vsub.s32 %v6346, %v6348
  %v6350 = vrot.slane %v6336, %v6349
  %v6351 = vcombine.low %v6343, %v6350
  %v6352 = vcombine.low %v3429, %v3431
  %v6353 = vcombine.low %v3456, %v3470
  %v6354 = vcombine.low %v3478, %v3480
  %v6355 = vcombine.low %v3463, %v3477
  %v6357 = vunpack.c.l.s4 1966171168
  %v6358 = vunpack.c.0.s8 %v6357
  %v6359 = vlaneseq
  %v6360 = vshrl.u32 %v6359, 7
  %v6361 = vsub.s32 %v6358, %v6360
  %v6362 = vrot.slane %v6352, %v6361
  %v6364 = vunpack.c.l.s4 1966171168
  %v6365 = vunpack.c.0.s8 %v6364
  %v6366 = vlaneseq
  %v6367 = vshrl.u32 %v6366, 7
  %v6368 = vsub.s32 %v6365, %v6367
  %v6369 = vrot.slane %v6353, %v6368
  %v6371 = vunpack.c.l.s4 1966171168
  %v6372 = vunpack.c.0.s8 %v6371
  %v6373 = vlaneseq
  %v6374 = vshrl.u32 %v6373, 7
  %v6375 = vsub.s32 %v6372, %v6374
  %v6376 = vrot.slane %v6354, %v6375
  %v6378 = vunpack.c.l.s4 1966171168
  %v6379 = vunpack.c.0.s8 %v6378
  %v6380 = vlaneseq
  %v6381 = vshrl.u32 %v6380, 7
  %v6382 = vsub.s32 %v6379, %v6381
  %v6383 = vrot.slane %v6355, %v6382
  %v6384 = vcombine.low %v6362, %v6369
  %v6385 = vcombine.low %v6376, %v6383
  %v6387 = vunpack.c.l.s4 1966171168
  %v6388 = vunpack.c.0.s8 %v6387
  %v6389 = vlaneseq
  %v6390 = vshrl.u32 %v6389, 7
  %v6391 = vsub.s32 %v6388, %v6390
  %v6392 = vrot.slane %v6384, %v6391
  %v6394 = vunpack.c.l.s4 1966171168
  %v6395 = vunpack.c.0.s8 %v6394
  %v6396 = vlaneseq
  %v6397 = vshrl.u32 %v6396, 7
  %v6398 = vsub.s32 %v6395, %v6397
  %v6399 = vrot.slane %v6385, %v6398
  %v6400 = vcombine.low %v6392, %v6399
  %v6402 = vunpack.c.l.s4 1966171168
  %v6403 = vunpack.c.0.s8 %v6402
  %v6404 = vlaneseq
  %v6405 = vshrl.u32 %v6404, 7
  %v6406 = vsub.s32 %v6403, %v6405
  %v6407 = vrot.slane %v3479, %v6406
  %v6409 = vunpack.c.l.s4 1966171168
  %v6410 = vunpack.c.0.s8 %v6409
  %v6411 = vlaneseq
  %v6412 = vshrl.u32 %v6411, 7
  %v6413 = vsub.s32 %v6410, %v6412
  %v6414 = vrot.slane %v6407, %v6413
  %v6422 = vcombine.low %v3519, %v3533
  %v6423 = vcombine.low %v3541, %v3543
  %v6424 = vcombine.low %v3526, %v3540
  %v6425 = vcombine.low %v3542, %v3567
  %v6427 = vunpack.c.l.s4 1966171168
  %v6428 = vunpack.c.0.s8 %v6427
  %v6429 = vlaneseq
  %v6430 = vshrl.u32 %v6429, 7
  %v6431 = vsub.s32 %v6428, %v6430
  %v6432 = vrot.slane %v6422, %v6431
  %v6434 = vunpack.c.l.s4 1966171168
  %v6435 = vunpack.c.0.s8 %v6434
  %v6436 = vlaneseq
  %v6437 = vshrl.u32 %v6436, 7
  %v6438 = vsub.s32 %v6435, %v6437
  %v6439 = vrot.slane %v6423, %v6438
  %v6441 = vunpack.c.l.s4 1966171168
  %v6442 = vunpack.c.0.s8 %v6441
  %v6443 = vlaneseq
  %v6444 = vshrl.u32 %v6443, 7
  %v6445 = vsub.s32 %v6442, %v6444
  %v6446 = vrot.slane %v6424, %v6445
  %v6448 = vunpack.c.l.s4 1966171168
  %v6449 = vunpack.c.0.s8 %v6448
  %v6450 = vlaneseq
  %v6451 = vshrl.u32 %v6450, 7
  %v6452 = vsub.s32 %v6449, %v6451
  %v6453 = vrot.slane %v6425, %v6452
  %v6454 = vcombine.low %v6432, %v6439
  %v6455 = vcombine.low %v6446, %v6453
  %v6457 = vunpack.c.l.s4 1966171168
  %v6458 = vunpack.c.0.s8 %v6457
  %v6459 = vlaneseq
  %v6460 = vshrl.u32 %v6459, 7
  %v6461 = vsub.s32 %v6458, %v6460
  %v6462 = vrot.slane %v6454, %v6461
  %v6464 = vunpack.c.l.s4 1966171168
  %v6465 = vunpack.c.0.s8 %v6464
  %v6466 = vlaneseq
  %v6467 = vshrl.u32 %v6466, 7
  %v6468 = vsub.s32 %v6465, %v6467
  %v6469 = vrot.slane %v6455, %v6468
  %v6470 = vcombine.low %v6462, %v6469
  %v6471 = vcombine.low %v3581, %v3589
  %v6472 = vcombine.low %v3591, %v3574
  %v6473 = vcombine.low %v3588, %v3590
  %v6474 = vcombine.low %v3615, %v3629
  %v6476 = vunpack.c.l.s4 1966171168
  %v6477 = vunpack.c.0.s8 %v6476
  %v6478 = vlaneseq
  %v6479 = vshrl.u32 %v6478, 7
  %v6480 = vsub.s32 %v6477, %v6479
  %v6481 = vrot.slane %v6471, %v6480
  %v6483 = vunpack.c.l.s4 1966171168
  %v6484 = vunpack.c.0.s8 %v6483
  %v6485 = vlaneseq
  %v6486 = vshrl.u32 %v6485, 7
  %v6487 = vsub.s32 %v6484, %v6486
  %v6488 = vrot.slane %v6472, %v6487
  %v6490 = vunpack.c.l.s4 1966171168
  %v6491 = vunpack.c.0.s8 %v6490
  %v6492 = vlaneseq
  %v6493 = vshrl.u32 %v6492, 7
  %v6494 = vsub.s32 %v6491, %v6493
  %v6495 = vrot.slane %v6473, %v6494
  %v6497 = vunpack.c.l.s4 1966171168
  %v6498 = vunpack.c.0.s8 %v6497
  %v6499 = vlaneseq
  %v6500 = vshrl.u32 %v6499, 7
  %v6501 = vsub.s32 %v6498, %v6500
  %v6502 = vrot.slane %v6474, %v6501
  %v6503 = vcombine.low %v6481, %v6488
  %v6504 = vcombine.low %v6495, %v6502
  %v6506 = vunpack.c.l.s4 1966171168
  %v6507 = vunpack.c.0.s8 %v6506
  %v6508 = vlaneseq
  %v6509 = vshrl.u32 %v6508, 7
  %v6510 = vsub.s32 %v6507, %v6509
  %v6511 = vrot.slane %v6503, %v6510
  %v6513 = vunpack.c.l.s4 1966171168
  %v6514 = vunpack.c.0.s8 %v6513
  %v6515 = vlaneseq
  %v6516 = vshrl.u32 %v6515, 7
  %v6517 = vsub.s32 %v6514, %v6516
  %v6518 = vrot.slane %v6504, %v6517
  %v6519 = vcombine.low %v6511, %v6518
  %v6520 = vcombine.low %v3637, %v3639
  %v6521 = vcombine.low %v3622, %v3636
  %v6522 = vcombine.low %v3638, %v3663
  %v6523 = vcombine.low %v3677, %v3685
  %v6525 = vunpack.c.l.s4 1966171168
  %v6526 = vunpack.c.0.s8 %v6525
  %v6527 = vlaneseq
  %v6528 = vshrl.u32 %v6527, 7
  %v6529 = vsub.s32 %v6526, %v6528
  %v6530 = vrot.slane %v6520, %v6529
  %v6532 = vunpack.c.l.s4 1966171168
  %v6533 = vunpack.c.0.s8 %v6532
  %v6534 = vlaneseq
  %v6535 = vshrl.u32 %v6534, 7
  %v6536 = vsub.s32 %v6533, %v6535
  %v6537 = vrot.slane %v6521, %v6536
  %v6539 = vunpack.c.l.s4 1966171168
  %v6540 = vunpack.c.0.s8 %v6539
  %v6541 = vlaneseq
  %v6542 = vshrl.u32 %v6541, 7
  %v6543 = vsub.s32 %v6540, %v6542
  %v6544 = vrot.slane %v6522, %v6543
  %v6546 = vunpack.c.l.s4 1966171168
  %v6547 = vunpack.c.0.s8 %v6546
  %v6548 = vlaneseq
  %v6549 = vshrl.u32 %v6548, 7
  %v6550 = vsub.s32 %v6547, %v6549
  %v6551 = vrot.slane %v6523, %v6550
  %v6552 = vcombine.low %v6530, %v6537
  %v6553 = vcombine.low %v6544, %v6551
  %v6555 = vunpack.c.l.s4 1966171168
  %v6556 = vunpack.c.0.s8 %v6555
  %v6557 = vlaneseq
  %v6558 = vshrl.u32 %v6557, 7
  %v6559 = vsub.s32 %v6556, %v6558
  %v6560 = vrot.slane %v6552, %v6559
  %v6562 = vunpack.c.l.s4 1966171168
  %v6563 = vunpack.c.0.s8 %v6562
  %v6564 = vlaneseq
  %v6565 = vshrl.u32 %v6564, 7
  %v6566 = vsub.s32 %v6563, %v6565
  %v6567 = vrot.slane %v6553, %v6566
  %v6568 = vcombine.low %v6560, %v6567
  %v6569 = vcombine.low %v3687, %v3670
  %v6570 = vcombine.low %v3684, %v3686
  %v6571 = vcombine.low %v3711, %v3725
  %v6572 = vcombine.low %v3733, %v3735
  %v6574 = vunpack.c.l.s4 1966171168
  %v6575 = vunpack.c.0.s8 %v6574
  %v6576 = vlaneseq
  %v6577 = vshrl.u32 %v6576, 7
  %v6578 = vsub.s32 %v6575, %v6577
  %v6579 = vrot.slane %v6569, %v6578
  %v6581 = vunpack.c.l.s4 1966171168
  %v6582 = vunpack.c.0.s8 %v6581
  %v6583 = vlaneseq
  %v6584 = vshrl.u32 %v6583, 7
  %v6585 = vsub.s32 %v6582, %v6584
  %v6586 = vrot.slane %v6570, %v6585
  %v6588 = vunpack.c.l.s4 1966171168
  %v6589 = vunpack.c.0.s8 %v6588
  %v6590 = vlaneseq
  %v6591 = vshrl.u32 %v6590, 7
  %v6592 = vsub.s32 %v6589, %v6591
  %v6593 = vrot.slane %v6571, %v6592
  %v6595 = vunpack.c.l.s4 1966171168
  %v6596 = vunpack.c.0.s8 %v6595
  %v6597 = vlaneseq
  %v6598 = vshrl.u32 %v6597, 7
  %v6599 = vsub.s32 %v6596, %v6598
  %v6600 = vrot.slane %v6572, %v6599
  %v6601 = vcombine.low %v6579, %v6586
  %v6602 = vcombine.low %v6593, %v6600
  %v6604 = vunpack.c.l.s4 1966171168
  %v6605 = vunpack.c.0.s8 %v6604
  %v6606 = vlaneseq
  %v6607 = vshrl.u32 %v6606, 7
  %v6608 = vsub.s32 %v6605, %v6607
  %v6609 = vrot.slane %v6601, %v6608
  %v6611 = vunpack.c.l.s4 1966171168
  %v6612 = vunpack.c.0.s8 %v6611
  %v6613 = vlaneseq
  %v6614 = vshrl.u32 %v6613, 7
  %v6615 = vsub.s32 %v6612, %v6614
  %v6616 = vrot.slane %v6602, %v6615
  %v6617 = vcombine.low %v6609, %v6616
  %v6618 = vcombine.low %v3718, %v3732
  %v6619 = vcombine.low %v3734, %v3759
  %v6620 = vcombine.low %v3773, %v3781
  %v6621 = vcombine.low %v3783, %v3766
  %v6623 = vunpack.c.l.s4 1966171168
  %v6624 = vunpack.c.0.s8 %v6623
  %v6625 = vlaneseq
  %v6626 = vshrl.u32 %v6625, 7
  %v6627 = vsub.s32 %v6624, %v6626
  %v6628 = vrot.slane %v6618, %v6627
  %v6630 = vunpack.c.l.s4 1966171168
  %v6631 = vunpack.c.0.s8 %v6630
  %v6632 = vlaneseq
  %v6633 = vshrl.u32 %v6632, 7
  %v6634 = vsub.s32 %v6631, %v6633
  %v6635 = vrot.slane %v6619, %v6634
  %v6637 = vunpack.c.l.s4 1966171168
  %v6638 = vunpack.c.0.s8 %v6637
  %v6639 = vlaneseq
  %v6640 = vshrl.u32 %v6639, 7
  %v6641 = vsub.s32 %v6638, %v6640
  %v6642 = vrot.slane %v6620, %v6641
  %v6644 = vunpack.c.l.s4 1966171168
  %v6645 = vunpack.c.0.s8 %v6644
  %v6646 = vlaneseq
  %v6647 = vshrl.u32 %v6646, 7
  %v6648 = vsub.s32 %v6645, %v6647
  %v6649 = vrot.slane %v6621, %v6648
  %v6650 = vcombine.low %v6628, %v6635
  %v6651 = vcombine.low %v6642, %v6649
  %v6653 = vunpack.c.l.s4 1966171168
  %v6654 = vunpack.c.0.s8 %v6653
  %v6655 = vlaneseq
  %v6656 = vshrl.u32 %v6655, 7
  %v6657 = vsub.s32 %v6654, %v6656
  %v6658 = vrot.slane %v6650, %v6657
  %v6660 = vunpack.c.l.s4 1966171168
  %v6661 = vunpack.c.0.s8 %v6660
  %v6662 = vlaneseq
  %v6663 = vshrl.u32 %v6662, 7
  %v6664 = vsub.s32 %v6661, %v6663
  %v6665 = vrot.slane %v6651, %v6664
  %v6666 = vcombine.low %v6658, %v6665
  %v6667 = vcombine.low %v3780, %v3782
  %v6668 = vcombine.low %v3807, %v3821
  %v6669 = vcombine.low %v3829, %v3831
  %v6670 = vcombine.low %v3814, %v3828
  %v6672 = vunpack.c.l.s4 1966171168
  %v6673 = vunpack.c.0.s8 %v6672
  %v6674 = vlaneseq
  %v6675 = vshrl.u32 %v6674, 7
  %v6676 = vsub.s32 %v6673, %v6675
  %v6677 = vrot.slane %v6667, %v6676
  %v6679 = vunpack.c.l.s4 1966171168
  %v6680 = vunpack.c.0.s8 %v6679
  %v6681 = vlaneseq
  %v6682 = vshrl.u32 %v6681, 7
  %v6683 = vsub.s32 %v6680, %v6682
  %v6684 = vrot.slane %v6668, %v6683
  %v6686 = vunpack.c.l.s4 1966171168
  %v6687 = vunpack.c.0.s8 %v6686
  %v6688 = vlaneseq
  %v6689 = vshrl.u32 %v6688, 7
  %v6690 = vsub.s32 %v6687, %v6689
  %v6691 = vrot.slane %v6669, %v6690
  %v6693 = vunpack.c.l.s4 1966171168
  %v6694 = vunpack.c.0.s8 %v6693
  %v6695 = vlaneseq
  %v6696 = vshrl.u32 %v6695, 7
  %v6697 = vsub.s32 %v6694, %v6696
  %v6698 = vrot.slane %v6670, %v6697
  %v6699 = vcombine.low %v6677, %v6684
  %v6700 = vcombine.low %v6691, %v6698
  %v6702 = vunpack.c.l.s4 1966171168
  %v6703 = vunpack.c.0.s8 %v6702
  %v6704 = vlaneseq
  %v6705 = vshrl.u32 %v6704, 7
  %v6706 = vsub.s32 %v6703, %v6705
  %v6707 = vrot.slane %v6699, %v6706
  %v6709 = vunpack.c.l.s4 1966171168
  %v6710 = vunpack.c.0.s8 %v6709
  %v6711 = vlaneseq
  %v6712 = vshrl.u32 %v6711, 7
  %v6713 = vsub.s32 %v6710, %v6712
  %v6714 = vrot.slane %v6700, %v6713
  %v6715 = vcombine.low %v6707, %v6714
  %v6717 = vunpack.c.l.s4 1966171168
  %v6718 = vunpack.c.0.s8 %v6717
  %v6719 = vlaneseq
  %v6720 = vshrl.u32 %v6719, 7
  %v6721 = vsub.s32 %v6718, %v6720
  %v6722 = vrot.slane %v3830, %v6721
  %v6724 = vunpack.c.l.s4 1966171168
  %v6725 = vunpack.c.0.s8 %v6724
  %v6726 = vlaneseq
  %v6727 = vshrl.u32 %v6726, 7
  %v6728 = vsub.s32 %v6725, %v6727
  %v6729 = vrot.slane %v6722, %v6728
  %v6737 = vcombine.low %v3869, %v3883
  %v6738 = vcombine.low %v3891, %v3893
  %v6739 = vcombine.low %v3876, %v3890
  %v6740 = vcombine.low %v3892, %v3917
  %v6742 = vunpack.c.l.s4 1966171168
  %v6743 = vunpack.c.0.s8 %v6742
  %v6744 = vlaneseq
  %v6745 = vshrl.u32 %v6744, 7
  %v6746 = vsub.s32 %v6743, %v6745
  %v6747 = vrot.slane %v6737, %v6746
  %v6749 = vunpack.c.l.s4 1966171168
  %v6750 = vunpack.c.0.s8 %v6749
  %v6751 = vlaneseq
  %v6752 = vshrl.u32 %v6751, 7
  %v6753 = vsub.s32 %v6750, %v6752
  %v6754 = vrot.slane %v6738, %v6753
  %v6756 = vunpack.c.l.s4 1966171168
  %v6757 = vunpack.c.0.s8 %v6756
  %v6758 = vlaneseq
  %v6759 = vshrl.u32 %v6758, 7
  %v6760 = vsub.s32 %v6757, %v6759
  %v6761 = vrot.slane %v6739, %v6760
  %v6763 = vunpack.c.l.s4 1966171168
  %v6764 = vunpack.c.0.s8 %v6763
  %v6765 = vlaneseq
  %v6766 = vshrl.u32 %v6765, 7
  %v6767 = vsub.s32 %v6764, %v6766
  %v6768 = vrot.slane %v6740, %v6767
  %v6769 = vcombine.low %v6747, %v6754
  %v6770 = vcombine.low %v6761, %v6768
  %v6772 = vunpack.c.l.s4 1966171168
  %v6773 = vunpack.c.0.s8 %v6772
  %v6774 = vlaneseq
  %v6775 = vshrl.u32 %v6774, 7
  %v6776 = vsub.s32 %v6773, %v6775
  %v6777 = vrot.slane %v6769, %v6776
  %v6779 = vunpack.c.l.s4 1966171168
  %v6780 = vunpack.c.0.s8 %v6779
  %v6781 = vlaneseq
  %v6782 = vshrl.u32 %v6781, 7
  %v6783 = vsub.s32 %v6780, %v6782
  %v6784 = vrot.slane %v6770, %v6783
  %v6785 = vcombine.low %v6777, %v6784
  %v6786 = vcombine.low %v3931, %v3939
  %v6787 = vcombine.low %v3941, %v3924
  %v6788 = vcombine.low %v3938, %v3940
  %v6789 = vcombine.low %v3965, %v3979
  %v6791 = vunpack.c.l.s4 1966171168
  %v6792 = vunpack.c.0.s8 %v6791
  %v6793 = vlaneseq
  %v6794 = vshrl.u32 %v6793, 7
  %v6795 = vsub.s32 %v6792, %v6794
  %v6796 = vrot.slane %v6786, %v6795
  %v6798 = vunpack.c.l.s4 1966171168
  %v6799 = vunpack.c.0.s8 %v6798
  %v6800 = vlaneseq
  %v6801 = vshrl.u32 %v6800, 7
  %v6802 = vsub.s32 %v6799, %v6801
  %v6803 = vrot.slane %v6787, %v6802
  %v6805 = vunpack.c.l.s4 1966171168
  %v6806 = vunpack.c.0.s8 %v6805
  %v6807 = vlaneseq
  %v6808 = vshrl.u32 %v6807, 7
  %v6809 = vsub.s32 %v6806, %v6808
  %v6810 = vrot.slane %v6788, %v6809
  %v6812 = vunpack.c.l.s4 1966171168
  %v6813 = vunpack.c.0.s8 %v6812
  %v6814 = vlaneseq
  %v6815 = vshrl.u32 %v6814, 7
  %v6816 = vsub.s32 %v6813, %v6815
  %v6817 = vrot.slane %v6789, %v6816
  %v6818 = vcombine.low %v6796, %v6803
  %v6819 = vcombine.low %v6810, %v6817
  %v6821 = vunpack.c.l.s4 1966171168
  %v6822 = vunpack.c.0.s8 %v6821
  %v6823 = vlaneseq
  %v6824 = vshrl.u32 %v6823, 7
  %v6825 = vsub.s32 %v6822, %v6824
  %v6826 = vrot.slane %v6818, %v6825
  %v6828 = vunpack.c.l.s4 1966171168
  %v6829 = vunpack.c.0.s8 %v6828
  %v6830 = vlaneseq
  %v6831 = vshrl.u32 %v6830, 7
  %v6832 = vsub.s32 %v6829, %v6831
  %v6833 = vrot.slane %v6819, %v6832
  %v6834 = vcombine.low %v6826, %v6833
  %v6835 = vcombine.low %v3987, %v3989
  %v6836 = vcombine.low %v3972, %v3986
  %v6837 = vcombine.low %v3988, %v4013
  %v6838 = vcombine.low %v4027, %v4035
  %v6840 = vunpack.c.l.s4 1966171168
  %v6841 = vunpack.c.0.s8 %v6840
  %v6842 = vlaneseq
  %v6843 = vshrl.u32 %v6842, 7
  %v6844 = vsub.s32 %v6841, %v6843
  %v6845 = vrot.slane %v6835, %v6844
  %v6847 = vunpack.c.l.s4 1966171168
  %v6848 = vunpack.c.0.s8 %v6847
  %v6849 = vlaneseq
  %v6850 = vshrl.u32 %v6849, 7
  %v6851 = vsub.s32 %v6848, %v6850
  %v6852 = vrot.slane %v6836, %v6851
  %v6854 = vunpack.c.l.s4 1966171168
  %v6855 = vunpack.c.0.s8 %v6854
  %v6856 = vlaneseq
  %v6857 = vshrl.u32 %v6856, 7
  %v6858 = vsub.s32 %v6855, %v6857
  %v6859 = vrot.slane %v6837, %v6858
  %v6861 = vunpack.c.l.s4 1966171168
  %v6862 = vunpack.c.0.s8 %v6861
  %v6863 = vlaneseq
  %v6864 = vshrl.u32 %v6863, 7
  %v6865 = vsub.s32 %v6862, %v6864
  %v6866 = vrot.slane %v6838, %v6865
  %v6867 = vcombine.low %v6845, %v6852
  %v6868 = vcombine.low %v6859, %v6866
  %v6870 = vunpack.c.l.s4 1966171168
  %v6871 = vunpack.c.0.s8 %v6870
  %v6872 = vlaneseq
  %v6873 = vshrl.u32 %v6872, 7
  %v6874 = vsub.s32 %v6871, %v6873
  %v6875 = vrot.slane %v6867, %v6874
  %v6877 = vunpack.c.l.s4 1966171168
  %v6878 = vunpack.c.0.s8 %v6877
  %v6879 = vlaneseq
  %v6880 = vshrl.u32 %v6879, 7
  %v6881 = vsub.s32 %v6878, %v6880
  %v6882 = vrot.slane %v6868, %v6881
  %v6883 = vcombine.low %v6875, %v6882
  %v6884 = vcombine.low %v4037, %v4020
  %v6885 = vcombine.low %v4034, %v4036
  %v6886 = vcombine.low %v4061, %v4075
  %v6887 = vcombine.low %v4083, %v4085
  %v6889 = vunpack.c.l.s4 1966171168
  %v6890 = vunpack.c.0.s8 %v6889
  %v6891 = vlaneseq
  %v6892 = vshrl.u32 %v6891, 7
  %v6893 = vsub.s32 %v6890, %v6892
  %v6894 = vrot.slane %v6884, %v6893
  %v6896 = vunpack.c.l.s4 1966171168
  %v6897 = vunpack.c.0.s8 %v6896
  %v6898 = vlaneseq
  %v6899 = vshrl.u32 %v6898, 7
  %v6900 = vsub.s32 %v6897, %v6899
  %v6901 = vrot.slane %v6885, %v6900
  %v6903 = vunpack.c.l.s4 1966171168
  %v6904 = vunpack.c.0.s8 %v6903
  %v6905 = vlaneseq
  %v6906 = vshrl.u32 %v6905, 7
  %v6907 = vsub.s32 %v6904, %v6906
  %v6908 = vrot.slane %v6886, %v6907
  %v6910 = vunpack.c.l.s4 1966171168
  %v6911 = vunpack.c.0.s8 %v6910
  %v6912 = vlaneseq
  %v6913 = vshrl.u32 %v6912, 7
  %v6914 = vsub.s32 %v6911, %v6913
  %v6915 = vrot.slane %v6887, %v6914
  %v6916 = vcombine.low %v6894, %v6901
  %v6917 = vcombine.low %v6908, %v6915
  %v6919 = vunpack.c.l.s4 1966171168
  %v6920 = vunpack.c.0.s8 %v6919
  %v6921 = vlaneseq
  %v6922 = vshrl.u32 %v6921, 7
  %v6923 = vsub.s32 %v6920, %v6922
  %v6924 = vrot.slane %v6916, %v6923
  %v6926 = vunpack.c.l.s4 1966171168
  %v6927 = vunpack.c.0.s8 %v6926
  %v6928 = vlaneseq
  %v6929 = vshrl.u32 %v6928, 7
  %v6930 = vsub.s32 %v6927, %v6929
  %v6931 = vrot.slane %v6917, %v6930
  %v6932 = vcombine.low %v6924, %v6931
  %v6933 = vcombine.low %v4068, %v4082
  %v6934 = vcombine.low %v4084, %v4109
  %v6935 = vcombine.low %v4123, %v4131
  %v6936 = vcombine.low %v4133, %v4116
  %v6938 = vunpack.c.l.s4 1966171168
  %v6939 = vunpack.c.0.s8 %v6938
  %v6940 = vlaneseq
  %v6941 = vshrl.u32 %v6940, 7
  %v6942 = vsub.s32 %v6939, %v6941
  %v6943 = vrot.slane %v6933, %v6942
  %v6945 = vunpack.c.l.s4 1966171168
  %v6946 = vunpack.c.0.s8 %v6945
  %v6947 = vlaneseq
  %v6948 = vshrl.u32 %v6947, 7
  %v6949 = vsub.s32 %v6946, %v6948
  %v6950 = vrot.slane %v6934, %v6949
  %v6952 = vunpack.c.l.s4 1966171168
  %v6953 = vunpack.c.0.s8 %v6952
  %v6954 = vlaneseq
  %v6955 = vshrl.u32 %v6954, 7
  %v6956 = vsub.s32 %v6953, %v6955
  %v6957 = vrot.slane %v6935, %v6956
  %v6959 = vunpack.c.l.s4 1966171168
  %v6960 = vunpack.c.0.s8 %v6959
  %v6961 = vlaneseq
  %v6962 = vshrl.u32 %v6961, 7
  %v6963 = vsub.s32 %v6960, %v6962
  %v6964 = vrot.slane %v6936, %v6963
  %v6965 = vcombine.low %v6943, %v6950
  %v6966 = vcombine.low %v6957, %v6964
  %v6968 = vunpack.c.l.s4 1966171168
  %v6969 = vunpack.c.0.s8 %v6968
  %v6970 = vlaneseq
  %v6971 = vshrl.u32 %v6970, 7
  %v6972 = vsub.s32 %v6969, %v6971
  %v6973 = vrot.slane %v6965, %v6972
  %v6975 = vunpack.c.l.s4 1966171168
  %v6976 = vunpack.c.0.s8 %v6975
  %v6977 = vlaneseq
  %v6978 = vshrl.u32 %v6977, 7
  %v6979 = vsub.s32 %v6976, %v6978
  %v6980 = vrot.slane %v6966, %v6979
  %v6981 = vcombine.low %v6973, %v6980
  %v6982 = vcombine.low %v4130, %v4132
  %v6983 = vcombine.low %v4157, %v4171
  %v6984 = vcombine.low %v4179, %v4181
  %v6985 = vcombine.low %v4164, %v4178
  %v6987 = vunpack.c.l.s4 1966171168
  %v6988 = vunpack.c.0.s8 %v6987
  %v6989 = vlaneseq
  %v6990 = vshrl.u32 %v6989, 7
  %v6991 = vsub.s32 %v6988, %v6990
  %v6992 = vrot.slane %v6982, %v6991
  %v6994 = vunpack.c.l.s4 1966171168
  %v6995 = vunpack.c.0.s8 %v6994
  %v6996 = vlaneseq
  %v6997 = vshrl.u32 %v6996, 7
  %v6998 = vsub.s32 %v6995, %v6997
  %v6999 = vrot.slane %v6983, %v6998
  %v7001 = vunpack.c.l.s4 1966171168
  %v7002 = vunpack.c.0.s8 %v7001
  %v7003 = vlaneseq
  %v7004 = vshrl.u32 %v7003, 7
  %v7005 = vsub.s32 %v7002, %v7004
  %v7006 = vrot.slane %v6984, %v7005
  %v7008 = vunpack.c.l.s4 1966171168
  %v7009 = vunpack.c.0.s8 %v7008
  %v7010 = vlaneseq
  %v7011 = vshrl.u32 %v7010, 7
  %v7012 = vsub.s32 %v7009, %v7011
  %v7013 = vrot.slane %v6985, %v7012
  %v7014 = vcombine.low %v6992, %v6999
  %v7015 = vcombine.low %v7006, %v7013
  %v7017 = vunpack.c.l.s4 1966171168
  %v7018 = vunpack.c.0.s8 %v7017
  %v7019 = vlaneseq
  %v7020 = vshrl.u32 %v7019, 7
  %v7021 = vsub.s32 %v7018, %v7020
  %v7022 = vrot.slane %v7014, %v7021
  %v7024 = vunpack.c.l.s4 1966171168
  %v7025 = vunpack.c.0.s8 %v7024
  %v7026 = vlaneseq
  %v7027 = vshrl.u32 %v7026, 7
  %v7028 = vsub.s32 %v7025, %v7027
  %v7029 = vrot.slane %v7015, %v7028
  %v7030 = vcombine.low %v7022, %v7029
  %v7032 = vunpack.c.l.s4 1966171168
  %v7033 = vunpack.c.0.s8 %v7032
  %v7034 = vlaneseq
  %v7035 = vshrl.u32 %v7034, 7
  %v7036 = vsub.s32 %v7033, %v7035
  %v7037 = vrot.slane %v4180, %v7036
  %v7039 = vunpack.c.l.s4 1966171168
  %v7040 = vunpack.c.0.s8 %v7039
  %v7041 = vlaneseq
  %v7042 = vshrl.u32 %v7041, 7
  %v7043 = vsub.s32 %v7040, %v7042
  %v7044 = vrot.slane %v7037, %v7043
  %v7052 = vcombine.low %v4219, %v4233
  %v7053 = vcombine.low %v4241, %v4243
  %v7054 = vcombine.low %v4226, %v4240
  %v7055 = vcombine.low %v4242, %v4267
  %v7057 = vunpack.c.l.s4 1966171168
  %v7058 = vunpack.c.0.s8 %v7057
  %v7059 = vlaneseq
  %v7060 = vshrl.u32 %v7059, 7
  %v7061 = vsub.s32 %v7058, %v7060
  %v7062 = vrot.slane %v7052, %v7061
  %v7064 = vunpack.c.l.s4 1966171168
  %v7065 = vunpack.c.0.s8 %v7064
  %v7066 = vlaneseq
  %v7067 = vshrl.u32 %v7066, 7
  %v7068 = vsub.s32 %v7065, %v7067
  %v7069 = vrot.slane %v7053, %v7068
  %v7071 = vunpack.c.l.s4 1966171168
  %v7072 = vunpack.c.0.s8 %v7071
  %v7073 = vlaneseq
  %v7074 = vshrl.u32 %v7073, 7
  %v7075 = vsub.s32 %v7072, %v7074
  %v7076 = vrot.slane %v7054, %v7075
  %v7078 = vunpack.c.l.s4 1966171168
  %v7079 = vunpack.c.0.s8 %v7078
  %v7080 = vlaneseq
  %v7081 = vshrl.u32 %v7080, 7
  %v7082 = vsub.s32 %v7079, %v7081
  %v7083 = vrot.slane %v7055, %v7082
  %v7084 = vcombine.low %v7062, %v7069
  %v7085 = vcombine.low %v7076, %v7083
  %v7087 = vunpack.c.l.s4 1966171168
  %v7088 = vunpack.c.0.s8 %v7087
  %v7089 = vlaneseq
  %v7090 = vshrl.u32 %v7089, 7
  %v7091 = vsub.s32 %v7088, %v7090
  %v7092 = vrot.slane %v7084, %v7091
  %v7094 = vunpack.c.l.s4 1966171168
  %v7095 = vunpack.c.0.s8 %v7094
  %v7096 = vlaneseq
  %v7097 = vshrl.u32 %v7096, 7
  %v7098 = vsub.s32 %v7095, %v7097
  %v7099 = vrot.slane %v7085, %v7098
  %v7100 = vcombine.low %v7092, %v7099
  %v7101 = vcombine.low %v4281, %v4289
  %v7102 = vcombine.low %v4291, %v4274
  %v7103 = vcombine.low %v4288, %v4290
  %v7104 = vcombine.low %v4315, %v4329
  %v7106 = vunpack.c.l.s4 1966171168
  %v7107 = vunpack.c.0.s8 %v7106
  %v7108 = vlaneseq
  %v7109 = vshrl.u32 %v7108, 7
  %v7110 = vsub.s32 %v7107, %v7109
  %v7111 = vrot.slane %v7101, %v7110
  %v7113 = vunpack.c.l.s4 1966171168
  %v7114 = vunpack.c.0.s8 %v7113
  %v7115 = vlaneseq
  %v7116 = vshrl.u32 %v7115, 7
  %v7117 = vsub.s32 %v7114, %v7116
  %v7118 = vrot.slane %v7102, %v7117
  %v7120 = vunpack.c.l.s4 1966171168
  %v7121 = vunpack.c.0.s8 %v7120
  %v7122 = vlaneseq
  %v7123 = vshrl.u32 %v7122, 7
  %v7124 = vsub.s32 %v7121, %v7123
  %v7125 = vrot.slane %v7103, %v7124
  %v7127 = vunpack.c.l.s4 1966171168
  %v7128 = vunpack.c.0.s8 %v7127
  %v7129 = vlaneseq
  %v7130 = vshrl.u32 %v7129, 7
  %v7131 = vsub.s32 %v7128, %v7130
  %v7132 = vrot.slane %v7104, %v7131
  %v7133 = vcombine.low %v7111, %v7118
  %v7134 = vcombine.low %v7125, %v7132
  %v7136 = vunpack.c.l.s4 1966171168
  %v7137 = vunpack.c.0.s8 %v7136
  %v7138 = vlaneseq
  %v7139 = vshrl.u32 %v7138, 7
  %v7140 = vsub.s32 %v7137, %v7139
  %v7141 = vrot.slane %v7133, %v7140
  %v7143 = vunpack.c.l.s4 1966171168
  %v7144 = vunpack.c.0.s8 %v7143
  %v7145 = vlaneseq
  %v7146 = vshrl.u32 %v7145, 7
  %v7147 = vsub.s32 %v7144, %v7146
  %v7148 = vrot.slane %v7134, %v7147
  %v7149 = vcombine.low %v7141, %v7148
  %v7150 = vcombine.low %v4337, %v4339
  %v7151 = vcombine.low %v4322, %v4336
  %v7152 = vcombine.low %v4338, %v4363
  %v7153 = vcombine.low %v4377, %v4385
  %v7155 = vunpack.c.l.s4 1966171168
  %v7156 = vunpack.c.0.s8 %v7155
  %v7157 = vlaneseq
  %v7158 = vshrl.u32 %v7157, 7
  %v7159 = vsub.s32 %v7156, %v7158
  %v7160 = vrot.slane %v7150, %v7159
  %v7162 = vunpack.c.l.s4 1966171168
  %v7163 = vunpack.c.0.s8 %v7162
  %v7164 = vlaneseq
  %v7165 = vshrl.u32 %v7164, 7
  %v7166 = vsub.s32 %v7163, %v7165
  %v7167 = vrot.slane %v7151, %v7166
  %v7169 = vunpack.c.l.s4 1966171168
  %v7170 = vunpack.c.0.s8 %v7169
  %v7171 = vlaneseq
  %v7172 = vshrl.u32 %v7171, 7
  %v7173 = vsub.s32 %v7170, %v7172
  %v7174 = vrot.slane %v7152, %v7173
  %v7176 = vunpack.c.l.s4 1966171168
  %v7177 = vunpack.c.0.s8 %v7176
  %v7178 = vlaneseq
  %v7179 = vshrl.u32 %v7178, 7
  %v7180 = vsub.s32 %v7177, %v7179
  %v7181 = vrot.slane %v7153, %v7180
  %v7182 = vcombine.low %v7160, %v7167
  %v7183 = vcombine.low %v7174, %v7181
  %v7185 = vunpack.c.l.s4 1966171168
  %v7186 = vunpack.c.0.s8 %v7185
  %v7187 = vlaneseq
  %v7188 = vshrl.u32 %v7187, 7
  %v7189 = vsub.s32 %v7186, %v7188
  %v7190 = vrot.slane %v7182, %v7189
  %v7192 = vunpack.c.l.s4 1966171168
  %v7193 = vunpack.c.0.s8 %v7192
  %v7194 = vlaneseq
  %v7195 = vshrl.u32 %v7194, 7
  %v7196 = vsub.s32 %v7193, %v7195
  %v7197 = vrot.slane %v7183, %v7196
  %v7198 = vcombine.low %v7190, %v7197
  %v7199 = vcombine.low %v4387, %v4370
  %v7200 = vcombine.low %v4384, %v4386
  %v7201 = vcombine.low %v4411, %v4425
  %v7202 = vcombine.low %v4433, %v4435
  %v7204 = vunpack.c.l.s4 1966171168
  %v7205 = vunpack.c.0.s8 %v7204
  %v7206 = vlaneseq
  %v7207 = vshrl.u32 %v7206, 7
  %v7208 = vsub.s32 %v7205, %v7207
  %v7209 = vrot.slane %v7199, %v7208
  %v7211 = vunpack.c.l.s4 1966171168
  %v7212 = vunpack.c.0.s8 %v7211
  %v7213 = vlaneseq
  %v7214 = vshrl.u32 %v7213, 7
  %v7215 = vsub.s32 %v7212, %v7214
  %v7216 = vrot.slane %v7200, %v7215
  %v7218 = vunpack.c.l.s4 1966171168
  %v7219 = vunpack.c.0.s8 %v7218
  %v7220 = vlaneseq
  %v7221 = vshrl.u32 %v7220, 7
  %v7222 = vsub.s32 %v7219, %v7221
  %v7223 = vrot.slane %v7201, %v7222
  %v7225 = vunpack.c.l.s4 1966171168
  %v7226 = vunpack.c.0.s8 %v7225
  %v7227 = vlaneseq
  %v7228 = vshrl.u32 %v7227, 7
  %v7229 = vsub.s32 %v7226, %v7228
  %v7230 = vrot.slane %v7202, %v7229
  %v7231 = vcombine.low %v7209, %v7216
  %v7232 = vcombine.low %v7223, %v7230
  %v7234 = vunpack.c.l.s4 1966171168
  %v7235 = vunpack.c.0.s8 %v7234
  %v7236 = vlaneseq
  %v7237 = vshrl.u32 %v7236, 7
  %v7238 = vsub.s32 %v7235, %v7237
  %v7239 = vrot.slane %v7231, %v7238
  %v7241 = vunpack.c.l.s4 1966171168
  %v7242 = vunpack.c.0.s8 %v7241
  %v7243 = vlaneseq
  %v7244 = vshrl.u32 %v7243, 7
  %v7245 = vsub.s32 %v7242, %v7244
  %v7246 = vrot.slane %v7232, %v7245
  %v7247 = vcombine.low %v7239, %v7246
  %v7248 = vcombine.low %v4418, %v4432
  %v7249 = vcombine.low %v4434, %v4459
  %v7250 = vcombine.low %v4473, %v4481
  %v7251 = vcombine.low %v4483, %v4466
  %v7253 = vunpack.c.l.s4 1966171168
  %v7254 = vunpack.c.0.s8 %v7253
  %v7255 = vlaneseq
  %v7256 = vshrl.u32 %v7255, 7
  %v7257 = vsub.s32 %v7254, %v7256
  %v7258 = vrot.slane %v7248, %v7257
  %v7260 = vunpack.c.l.s4 1966171168
  %v7261 = vunpack.c.0.s8 %v7260
  %v7262 = vlaneseq
  %v7263 = vshrl.u32 %v7262, 7
  %v7264 = vsub.s32 %v7261, %v7263
  %v7265 = vrot.slane %v7249, %v7264
  %v7267 = vunpack.c.l.s4 1966171168
  %v7268 = vunpack.c.0.s8 %v7267
  %v7269 = vlaneseq
  %v7270 = vshrl.u32 %v7269, 7
  %v7271 = vsub.s32 %v7268, %v7270
  %v7272 = vrot.slane %v7250, %v7271
  %v7274 = vunpack.c.l.s4 1966171168
  %v7275 = vunpack.c.0.s8 %v7274
  %v7276 = vlaneseq
  %v7277 = vshrl.u32 %v7276, 7
  %v7278 = vsub.s32 %v7275, %v7277
  %v7279 = vrot.slane %v7251, %v7278
  %v7280 = vcombine.low %v7258, %v7265
  %v7281 = vcombine.low %v7272, %v7279
  %v7283 = vunpack.c.l.s4 1966171168
  %v7284 = vunpack.c.0.s8 %v7283
  %v7285 = vlaneseq
  %v7286 = vshrl.u32 %v7285, 7
  %v7287 = vsub.s32 %v7284, %v7286
  %v7288 = vrot.slane %v7280, %v7287
  %v7290 = vunpack.c.l.s4 1966171168
  %v7291 = vunpack.c.0.s8 %v7290
  %v7292 = vlaneseq
  %v7293 = vshrl.u32 %v7292, 7
  %v7294 = vsub.s32 %v7291, %v7293
  %v7295 = vrot.slane %v7281, %v7294
  %v7296 = vcombine.low %v7288, %v7295
  %v7297 = vcombine.low %v4480, %v4482
  %v7298 = vcombine.low %v4507, %v4521
  %v7299 = vcombine.low %v4529, %v4531
  %v7300 = vcombine.low %v4514, %v4528
  %v7302 = vunpack.c.l.s4 1966171168
  %v7303 = vunpack.c.0.s8 %v7302
  %v7304 = vlaneseq
  %v7305 = vshrl.u32 %v7304, 7
  %v7306 = vsub.s32 %v7303, %v7305
  %v7307 = vrot.slane %v7297, %v7306
  %v7309 = vunpack.c.l.s4 1966171168
  %v7310 = vunpack.c.0.s8 %v7309
  %v7311 = vlaneseq
  %v7312 = vshrl.u32 %v7311, 7
  %v7313 = vsub.s32 %v7310, %v7312
  %v7314 = vrot.slane %v7298, %v7313
  %v7316 = vunpack.c.l.s4 1966171168
  %v7317 = vunpack.c.0.s8 %v7316
  %v7318 = vlaneseq
  %v7319 = vshrl.u32 %v7318, 7
  %v7320 = vsub.s32 %v7317, %v7319
  %v7321 = vrot.slane %v7299, %v7320
  %v7323 = vunpack.c.l.s4 1966171168
  %v7324 = vunpack.c.0.s8 %v7323
  %v7325 = vlaneseq
  %v7326 = vshrl.u32 %v7325, 7
  %v7327 = vsub.s32 %v7324, %v7326
  %v7328 = vrot.slane %v7300, %v7327
  %v7329 = vcombine.low %v7307, %v7314
  %v7330 = vcombine.low %v7321, %v7328
  %v7332 = vunpack.c.l.s4 1966171168
  %v7333 = vunpack.c.0.s8 %v7332
  %v7334 = vlaneseq
  %v7335 = vshrl.u32 %v7334, 7
  %v7336 = vsub.s32 %v7333, %v7335
  %v7337 = vrot.slane %v7329, %v7336
  %v7339 = vunpack.c.l.s4 1966171168
  %v7340 = vunpack.c.0.s8 %v7339
  %v7341 = vlaneseq
  %v7342 = vshrl.u32 %v7341, 7
  %v7343 = vsub.s32 %v7340, %v7342
  %v7344 = vrot.slane %v7330, %v7343
  %v7345 = vcombine.low %v7337, %v7344
  %v7347 = vunpack.c.l.s4 1966171168
  %v7348 = vunpack.c.0.s8 %v7347
  %v7349 = vlaneseq
  %v7350 = vshrl.u32 %v7349, 7
  %v7351 = vsub.s32 %v7348, %v7350
  %v7352 = vrot.slane %v4530, %v7351
  %v7354 = vunpack.c.l.s4 1966171168
  %v7355 = vunpack.c.0.s8 %v7354
  %v7356 = vlaneseq
  %v7357 = vshrl.u32 %v7356, 7
  %v7358 = vsub.s32 %v7355, %v7357
  %v7359 = vrot.slane %v7352, %v7358
  %v7367 = vld [vmem:[%s4] sm:$0xff]
  %v7368 = vld [vmem:[%s4 + $0x8] sm:$0xff]
  %v7369 = vld [vmem:[%s4 + $0x10] sm:$0xff]
  %v7370 = vld [vmem:[%s4 + $0x18] sm:$0xff]
  %v7371 = vld [vmem:[%s4 + $0x20] sm:$0xff]
  %v7372 = vld [vmem:[%s4 + $0x28] sm:$0xff]
  %v7373 = vld [vmem:[%s4 + $0x30] sm:$0xff]
  %v7374 = vld [vmem:[%s4 + $0x38] sm:$0xff]
  %v7375 = vld [vmem:[%s4 + $0x40] sm:$0xff]
  %v7376 = vld [vmem:[%s4 + $0x48] sm:$0xff]
  %v7377 = vld [vmem:[%s4 + $0x50] sm:$0xff]
  %v7378 = vld [vmem:[%s4 + $0x58] sm:$0xff]
  %v7379 = vld [vmem:[%s4 + $0x60] sm:$0xff]
  %v7380 = vld [vmem:[%s4 + $0x68] sm:$0xff]
  %v7381 = vld [vmem:[%s4 + $0x70] sm:$0xff]
  %v7382 = vld [vmem:[%s4 + $0x78] sm:$0xff]
  %v7383 = vld [vmem:[%s4 + $0x80] sm:$0xff]
  %v7384 = vld [vmem:[%s4 + $0x88] sm:$0xff]
  %v7385 = vld [vmem:[%s4 + $0x90] sm:$0xff]
  %v7386 = vld [vmem:[%s4 + $0x98] sm:$0xff]
  %v7387 = vld [vmem:[%s4 + $0xa0] sm:$0xff]
  %v7388 = vld [vmem:[%s4 + $0xa8] sm:$0xff]
  %v7389 = vld [vmem:[%s4 + $0xb0] sm:$0xff]
  %v7390 = vld [vmem:[%s4 + $0xb8] sm:$0xff]
  %v7391 = vld [vmem:[%s4 + $0xc0] sm:$0xff]
  %v7392 = vld [vmem:[%s4 + $0xc8] sm:$0xff]
  %v7393 = vld [vmem:[%s4 + $0xd0] sm:$0xff]
  %v7394 = vld [vmem:[%s4 + $0xd8] sm:$0xff]
  %v7395 = vld [vmem:[%s4 + $0xe0] sm:$0xff]
  %v7396 = vld [vmem:[%s4 + $0xe8] sm:$0xff]
  %v7397 = vld [vmem:[%s4 + $0xf0] sm:$0xff]
  %v7398 = vld [vmem:[%s4 + $0xf8] sm:$0xff]
  %v7399 = vld [vmem:[%s4 + $0x100] sm:$0xff]
  %v7400 = vld [vmem:[%s4 + $0x108] sm:$0xff]
  %v7401 = vld [vmem:[%s4 + $0x110] sm:$0xff]
  %v7402 = vld [vmem:[%s4 + $0x118] sm:$0xff]
  %v7403 = vld [vmem:[%s4 + $0x120] sm:$0xff]
  %v7404 = vld [vmem:[%s4 + $0x128] sm:$0xff]
  %v7405 = vld [vmem:[%s4 + $0x130] sm:$0xff]
  %v7406 = vld [vmem:[%s4 + $0x138] sm:$0xff]
  %v7407 = vld [vmem:[%s4 + $0x140] sm:$0xff]
  %v7408 = vld [vmem:[%s4 + $0x148] sm:$0xff]
  %v7409 = vld [vmem:[%s4 + $0x150] sm:$0xff]
  %v7410 = vld [vmem:[%s4 + $0x158] sm:$0xff]
  %v7411 = vld [vmem:[%s4 + $0x160] sm:$0xff]
  %v7412 = vld [vmem:[%s4 + $0x168] sm:$0xff]
  %v7413 = vld [vmem:[%s4 + $0x170] sm:$0xff]
  %v7414 = vld [vmem:[%s4 + $0x178] sm:$0xff]
  %v7415 = vld [vmem:[%s4 + $0x180] sm:$0xff]
  %v7416 = vld [vmem:[%s4 + $0x188] sm:$0xff]
  %v7417 = vld [vmem:[%s4 + $0x190] sm:$0xff]
  %v7418 = vld [vmem:[%s4 + $0x198] sm:$0xff]
  %v7419 = vld [vmem:[%s4 + $0x1a0] sm:$0xff]
  %v7420 = vld [vmem:[%s4 + $0x1a8] sm:$0xff]
  %v7421 = vld [vmem:[%s4 + $0x1b0] sm:$0xff]
  %v7422 = vld [vmem:[%s4 + $0x1b8] sm:$0xff]
  %v7423 = vld [vmem:[%s4 + $0x1c0] sm:$0xff]
  %v7424 = vld [vmem:[%s4 + $0x1c8] sm:$0xff]
  %v7425 = vld [vmem:[%s4 + $0x1d0] sm:$0xff]
  %v7426 = vld [vmem:[%s4 + $0x1d8] sm:$0xff]
  %v7427 = vld [vmem:[%s4 + $0x1e0] sm:$0xff]
  %v7428 = vld [vmem:[%s4 + $0x1e8] sm:$0xff]
  %v7429 = vld [vmem:[%s4 + $0x1f0] sm:$0xff]
  %v7430 = vld [vmem:[%s4 + $0x1f8] sm:$0xff]
  %v7431 = vld [vmem:[%s4 + $0x200] sm:$0xff]
  %v7432 = vld [vmem:[%s4 + $0x208] sm:$0xff]
  %v7433 = vld [vmem:[%s4 + $0x210] sm:$0xff]
  %v7434 = vld [vmem:[%s4 + $0x218] sm:$0xff]
  %v7435 = vld [vmem:[%s4 + $0x220] sm:$0xff]
  %v7436 = vld [vmem:[%s4 + $0x228] sm:$0xff]
  %v7437 = vld [vmem:[%s4 + $0x230] sm:$0xff]
  %v7438 = vld [vmem:[%s4 + $0x238] sm:$0xff]
  %v7439 = vld [vmem:[%s4 + $0x240] sm:$0xff]
  %v7440 = vld [vmem:[%s4 + $0x248] sm:$0xff]
  %v7441 = vld [vmem:[%s4 + $0x250] sm:$0xff]
  %v7442 = vld [vmem:[%s4 + $0x258] sm:$0xff]
  %v7443 = vld [vmem:[%s4 + $0x260] sm:$0xff]
  %v7444 = vld [vmem:[%s4 + $0x268] sm:$0xff]
  %v7445 = vld [vmem:[%s4 + $0x270] sm:$0xff]
  %v7446 = vld [vmem:[%s4 + $0x278] sm:$0xff]
  %v7447 = vld [vmem:[%s4 + $0x280] sm:$0xff]
  %v7448 = vld [vmem:[%s4 + $0x288] sm:$0xff]
  %v7449 = vld [vmem:[%s4 + $0x290] sm:$0xff]
  %v7450 = vld [vmem:[%s4 + $0x298] sm:$0xff]
  %v7451 = vld [vmem:[%s4 + $0x2a0] sm:$0xff]
  %v7452 = vld [vmem:[%s4 + $0x2a8] sm:$0xff]
  %v7453 = vld [vmem:[%s4 + $0x2b0] sm:$0xff]
  %v7454 = vld [vmem:[%s4 + $0x2b8] sm:$0xff]
  %v7455 = vld [vmem:[%s4 + $0x2c0] sm:$0xff]
  %v7456 = vld [vmem:[%s4 + $0x2c8] sm:$0xff]
  %v7457 = vld [vmem:[%s4 + $0x2d0] sm:$0xff]
  %v7458 = vld [vmem:[%s4 + $0x2d8] sm:$0xff]
  %v7459 = vld [vmem:[%s4 + $0x2e0] sm:$0xff]
  %v7460 = vld [vmem:[%s4 + $0x2e8] sm:$0xff]
  %v7461 = vld [vmem:[%s4 + $0x2f0] sm:$0xff]
  %v7462 = vld [vmem:[%s4 + $0x2f8] sm:$0xff]
  %v7463 = vld [vmem:[%s4 + $0x300] sm:$0xff]
  %v7464 = vld [vmem:[%s4 + $0x308] sm:$0xff]
  %v7465 = vld [vmem:[%s4 + $0x310] sm:$0xff]
  %v7466 = vld [vmem:[%s4 + $0x318] sm:$0xff]
  %v7467 = vld [vmem:[%s4 + $0x320] sm:$0xff]
  %v7468 = vld [vmem:[%s4 + $0x328] sm:$0xff]
  %v7469 = vld [vmem:[%s4 + $0x330] sm:$0xff]
  %v7470 = vld [vmem:[%s4 + $0x338] sm:$0xff]
  %v7471 = vld [vmem:[%s4 + $0x340] sm:$0xff]
  %v7472 = vld [vmem:[%s4 + $0x348] sm:$0xff]
  %v7473 = vld [vmem:[%s4 + $0x350] sm:$0xff]
  %v7474 = vld [vmem:[%s4 + $0x358] sm:$0xff]
  %v7475 = vld [vmem:[%s4 + $0x360] sm:$0xff]
  %v7476 = vld [vmem:[%s4 + $0x368] sm:$0xff]
  %v7477 = vld [vmem:[%s4 + $0x370] sm:$0xff]
  %v7478 = vld [vmem:[%s4 + $0x378] sm:$0xff]
  %v7479 = vld [vmem:[%s4 + $0x380] sm:$0xff]
  %v7480 = vld [vmem:[%s4 + $0x388] sm:$0xff]
  %v7481 = vld [vmem:[%s4 + $0x390] sm:$0xff]
  %v7482 = vld [vmem:[%s4 + $0x398] sm:$0xff]
  %v7483 = vld [vmem:[%s4 + $0x3a0] sm:$0xff]
  %v7484 = vld [vmem:[%s4 + $0x3a8] sm:$0xff]
  %v7485 = vld [vmem:[%s4 + $0x3b0] sm:$0xff]
  %v7486 = vld [vmem:[%s4 + $0x3b8] sm:$0xff]
  %v7487 = vld [vmem:[%s4 + $0x3c0] sm:$0xff]
  %v7488 = vld [vmem:[%s4 + $0x3c8] sm:$0xff]
  %v7489 = vld [vmem:[%s4 + $0x3d0] sm:$0xff]
  %v7490 = vld [vmem:[%s4 + $0x3d8] sm:$0xff]
  %v7491 = vld [vmem:[%s4 + $0x3e0] sm:$0xff]
  %v7492 = vld [vmem:[%s4 + $0x3e8] sm:$0xff]
  %v7493 = vld [vmem:[%s4 + $0x3f0] sm:$0xff]
  %v7494 = vld [vmem:[%s4 + $0x3f8] sm:$0xff]
  %v7495 = vld [vmem:[%s4 + $0x400] sm:$0xff]
  %v7496 = vld [vmem:[%s4 + $0x408] sm:$0xff]
  %v7497 = vld [vmem:[%s4 + $0x410] sm:$0xff]
  %v7498 = vld [vmem:[%s4 + $0x418] sm:$0xff]
  %v7499 = vld [vmem:[%s4 + $0x420] sm:$0xff]
  %v7500 = vld [vmem:[%s4 + $0x428] sm:$0xff]
  %v7501 = vld [vmem:[%s4 + $0x430] sm:$0xff]
  %v7502 = vld [vmem:[%s4 + $0x438] sm:$0xff]
  %v7503 = vld [vmem:[%s4 + $0x440] sm:$0xff]
  %v7504 = vld [vmem:[%s4 + $0x448] sm:$0xff]
  %v7505 = vld [vmem:[%s4 + $0x450] sm:$0xff]
  %v7506 = vld [vmem:[%s4 + $0x458] sm:$0xff]
  %v7507 = vld [vmem:[%s4 + $0x460] sm:$0xff]
  %v7508 = vld [vmem:[%s4 + $0x468] sm:$0xff]
  %v7509 = vld [vmem:[%s4 + $0x470] sm:$0xff]
  %v7510 = vld [vmem:[%s4 + $0x478] sm:$0xff]
  %7511 = vmatprep.subr.mxu0 0.0
  %7512 = vmatpush1.msra.mxu0 %v7367
  %7513 = vmatprep.subr.mxu0 0.0
  %7514 = vmatpush1.msra.mxu0 %v7368
  %7515 = vmatprep.subr.mxu0 0.0
  %7516 = vmatpush1.msra.mxu0 %v7369
  %7517 = vmatprep.subr.mxu0 0.0
  %7518 = vmatpush1.msra.mxu0 %v7370
  %7519 = vmatprep.subr.mxu0 0.0
  %7520 = vmatpush1.msra.mxu0 %v7371
  %7521 = vmatprep.subr.mxu0 0.0
  %7522 = vmatpush1.msra.mxu0 %v7372
  %7523 = vmatprep.subr.mxu0 0.0
  %7524 = vmatpush1.msra.mxu0 %v7373
  %7525 = vmatprep.subr.mxu0 0.0
  %7526 = vmatpush1.msra.mxu0 %v7374
  %7527 = vmatprep.subr.mxu0 0.0
  %7528 = vmatpush1.msra.mxu0 %v7375
  %7529 = vmatprep.subr.mxu0 0.0
  %7530 = vmatpush1.msra.mxu0 %v7376
  %7531 = vmatprep.subr.mxu0 0.0
  %7532 = vmatpush1.msra.mxu0 %v7377
  %7533 = vmatprep.subr.mxu0 0.0
  %7534 = vmatpush1.msra.mxu0 %v7378
  %7535 = vmatprep.subr.mxu0 0.0
  %7536 = vmatpush1.msra.mxu0 %v7379
  %7537 = vmatprep.subr.mxu0 0.0
  %7538 = vmatpush1.msra.mxu0 %v7380
  %7539 = vmatprep.subr.mxu0 0.0
  %7540 = vmatpush1.msra.mxu0 %v7381
  %7541 = vmatprep.subr.mxu0 0.0
  %7542 = vmatpush1.msra.mxu0 %v7382
  %7543 = vmatprep.subr.mxu0 0.0
  %7544 = vmatpush1.msra.mxu0 %v7383
  %7545 = vmatprep.subr.mxu0 0.0
  %7546 = vmatpush1.msra.mxu0 %v7384
  %7547 = vmatprep.subr.mxu0 0.0
  %7548 = vmatpush1.msra.mxu0 %v7385
  %7549 = vmatprep.subr.mxu0 0.0
  %7550 = vmatpush1.msra.mxu0 %v7386
  %7551 = vmatprep.subr.mxu0 0.0
  %7552 = vmatpush1.msra.mxu0 %v7387
  %7553 = vmatprep.subr.mxu0 0.0
  %7554 = vmatpush1.msra.mxu0 %v7388
  %7555 = vmatprep.subr.mxu0 0.0
  %7556 = vmatpush1.msra.mxu0 %v7389
  %7557 = vmatprep.subr.mxu0 0.0
  %7558 = vmatpush1.msra.mxu0 %v7390
  %7559 = vmatprep.subr.mxu0 0.0
  %7560 = vmatpush1.msra.mxu0 %v7391
  %7561 = vmatprep.subr.mxu0 0.0
  %7562 = vmatpush1.msra.mxu0 %v7392
  %7563 = vmatprep.subr.mxu0 0.0
  %7564 = vmatpush1.msra.mxu0 %v7393
  %7565 = vmatprep.subr.mxu0 0.0
  %7566 = vmatpush1.msra.mxu0 %v7394
  %7567 = vmatprep.subr.mxu0 0.0
  %7568 = vmatpush1.msra.mxu0 %v7395
  %7569 = vmatprep.subr.mxu0 0.0
  %7570 = vmatpush1.msra.mxu0 %v7396
  %7571 = vmatprep.subr.mxu0 0.0
  %7572 = vmatpush1.msra.mxu0 %v7397
  %7573 = vmatprep.subr.mxu0 0.0
  %7574 = vmatpush1.msra.mxu0 %v7398
  %7575 = vmatprep.mubr.f32.mxu0 %v4895
  %7576 = vmatmul.mubr.f32.gmra.mrb[0].mxu0 %v4580
  %v7577 = vpop.f32.mrb[0].mxu0
  %v7578 = vadd.f32 0.0, %v7577
  %v7579 = vpop.f32.mrb[0].mxu0
  %7580 = vmatprep.mubr.f32.mxu0 %v4944
  %7581 = vmatmul.mubr.f32.gmra.mrb[0].mxu0 %v4629
  %v7582 = vpop.f32.mrb[0].mxu0
  %v7583 = vadd.f32 0.0, %v7582
  %v7584 = vpop.f32.mrb[0].mxu0
  %7585 = vmatprep.mubr.f32.mxu0 %v4993
  %7586 = vmatmul.mubr.f32.gmra.mrb[0].mxu0 %v4678
  %v7587 = vpop.f32.mrb[0].mxu0
  %v7588 = vadd.f32 0.0, %v7587
  %v7589 = vpop.f32.mrb[0].mxu0
  %7590 = vmatprep.mubr.f32.mxu0 %v5042
  %7591 = vmatmul.mubr.f32.gmra.mrb[0].mxu0 %v4727
  %v7592 = vpop.f32.mrb[0].mxu0
  %v7593 = vadd.f32 0.0, %v7592
  %v7594 = vpop.f32.mrb[0].mxu0
  %7595 = vmatprep.mubr.f32.mxu0 %v5091
  %7596 = vmatmul.mubr.f32.gmra.mrb[0].mxu0 %v4776
  %v7597 = vpop.f32.mrb[0].mxu0
  %v7598 = vadd.f32 0.0, %v7597
  %v7599 = vpop.f32.mrb[0].mxu0
  %7600 = vmatprep.mubr.f32.mxu0 %v5140
  %7601 = vmatmul.mubr.f32.gmra.mrb[0].mxu0 %v4825
  %v7602 = vpop.f32.mrb[0].mxu0
  %v7603 = vadd.f32 0.0, %v7602
  %v7604 = vpop.f32.mrb[0].mxu0
  %7605 = vmatprep.mubr.f32.mxu0 %v5154
  %7606 = vmatmul.mubr.f32.gmra.mrb[0].mxu0 %v4839
  %v7607 = vpop.f32.mrb[0].mxu0
  %v7608 = vadd.f32 0.0, %v7607
  %v7609 = vpop.f32.mrb[0].mxu0
  %7610 = vdwg.mxu0
  %7611 = vmatprep.subr.mxu0 0.0
  %7612 = vmatpush1.msra.mxu0 %v7399
  %7613 = vmatprep.subr.mxu0 0.0
  %7614 = vmatpush1.msra.mxu0 %v7400
  %7615 = vmatprep.subr.mxu0 0.0
  %7616 = vmatpush1.msra.mxu0 %v7401
  %7617 = vmatprep.subr.mxu0 0.0
  %7618 = vmatpush1.msra.mxu0 %v7402
  %7619 = vmatprep.subr.mxu0 0.0
  %7620 = vmatpush1.msra.mxu0 %v7403
  %7621 = vmatprep.subr.mxu0 0.0
  %7622 = vmatpush1.msra.mxu0 %v7404
  %7623 = vmatprep.subr.mxu0 0.0
  %7624 = vmatpush1.msra.mxu0 %v7405
  %7625 = vmatprep.subr.mxu0 0.0
  %7626 = vmatpush1.msra.mxu0 %v7406
  %7627 = vmatprep.subr.mxu0 0.0
  %7628 = vmatpush1.msra.mxu0 %v7407
  %7629 = vmatprep.subr.mxu0 0.0
  %7630 = vmatpush1.msra.mxu0 %v7408
  %7631 = vmatprep.subr.mxu0 0.0
  %7632 = vmatpush1.msra.mxu0 %v7409
  %7633 = vmatprep.subr.mxu0 0.0
  %7634 = vmatpush1.msra.mxu0 %v7410
  %7635 = vmatprep.subr.mxu0 0.0
  %7636 = vmatpush1.msra.mxu0 %v7411
  %7637 = vmatprep.subr.mxu0 0.0
  %7638 = vmatpush1.msra.mxu0 %v7412
  %7639 = vmatprep.subr.mxu0 0.0
  %7640 = vmatpush1.msra.mxu0 %v7413
  %7641 = vmatprep.subr.mxu0 0.0
  %7642 = vmatpush1.msra.mxu0 %v7414
  %7643 = vmatprep.subr.mxu0 0.0
  %7644 = vmatpush1.msra.mxu0 %v7415
  %7645 = vmatprep.subr.mxu0 0.0
  %7646 = vmatpush1.msra.mxu0 %v7416
  %7647 = vmatprep.subr.mxu0 0.0
  %7648 = vmatpush1.msra.mxu0 %v7417
  %7649 = vmatprep.subr.mxu0 0.0
  %7650 = vmatpush1.msra.mxu0 %v7418
  %7651 = vmatprep.subr.mxu0 0.0
  %7652 = vmatpush1.msra.mxu0 %v7419
  %7653 = vmatprep.subr.mxu0 0.0
  %7654 = vmatpush1.msra.mxu0 %v7420
  %7655 = vmatprep.subr.mxu0 0.0
  %7656 = vmatpush1.msra.mxu0 %v7421
  %7657 = vmatprep.subr.mxu0 0.0
  %7658 = vmatpush1.msra.mxu0 %v7422
  %7659 = vmatprep.subr.mxu0 0.0
  %7660 = vmatpush1.msra.mxu0 %v7423
  %7661 = vmatprep.subr.mxu0 0.0
  %7662 = vmatpush1.msra.mxu0 %v7424
  %7663 = vmatprep.subr.mxu0 0.0
  %7664 = vmatpush1.msra.mxu0 %v7425
  %7665 = vmatprep.subr.mxu0 0.0
  %7666 = vmatpush1.msra.mxu0 %v7426
  %7667 = vmatprep.subr.mxu0 0.0
  %7668 = vmatpush1.msra.mxu0 %v7427
  %7669 = vmatprep.subr.mxu0 0.0
  %7670 = vmatpush1.msra.mxu0 %v7428
  %7671 = vmatprep.subr.mxu0 0.0
  %7672 = vmatpush1.msra.mxu0 %v7429
  %7673 = vmatprep.subr.mxu0 0.0
  %7674 = vmatpush1.msra.mxu0 %v7430
  %7675 = vmatprep.mubr.f32.mxu0 %v5525
  %7676 = vmatmul.mubr.f32.gmra.mrb[0].mxu0 %v5210
  %v7677 = vpop.f32.mrb[0].mxu0
  %v7678 = vadd.f32 %v7578, %v7677
  %v7679 = vpop.f32.mrb[0].mxu0
  %7680 = vmatprep.mubr.f32.mxu0 %v5574
  %7681 = vmatmul.mubr.f32.gmra.mrb[0].mxu0 %v5259
  %v7682 = vpop.f32.mrb[0].mxu0
  %v7683 = vadd.f32 %v7583, %v7682
  %v7684 = vpop.f32.mrb[0].mxu0
  %7685 = vmatprep.mubr.f32.mxu0 %v5623
  %7686 = vmatmul.mubr.f32.gmra.mrb[0].mxu0 %v5308
  %v7687 = vpop.f32.mrb[0].mxu0
  %v7688 = vadd.f32 %v7588, %v7687
  %v7689 = vpop.f32.mrb[0].mxu0
  %7690 = vmatprep.mubr.f32.mxu0 %v5672
  %7691 = vmatmul.mubr.f32.gmra.mrb[0].mxu0 %v5357
  %v7692 = vpop.f32.mrb[0].mxu0
  %v7693 = vadd.f32 %v7593, %v7692
  %v7694 = vpop.f32.mrb[0].mxu0
  %7695 = vmatprep.mubr.f32.mxu0 %v5721
  %7696 = vmatmul.mubr.f32.gmra.mrb[0].mxu0 %v5406
  %v7697 = vpop.f32.mrb[0].mxu0
  %v7698 = vadd.f32 %v7598, %v7697
  %v7699 = vpop.f32.mrb[0].mxu0
  %7700 = vmatprep.mubr.f32.mxu0 %v5770
  %7701 = vmatmul.mubr.f32.gmra.mrb[0].mxu0 %v5455
  %v7702 = vpop.f32.mrb[0].mxu0
  %v7703 = vadd.f32 %v7603, %v7702
  %v7704 = vpop.f32.mrb[0].mxu0
  %7705 = vmatprep.mubr.f32.mxu0 %v5784
  %7706 = vmatmul.mubr.f32.gmra.mrb[0].mxu0 %v5469
  %v7707 = vpop.f32.mrb[0].mxu0
  %v7708 = vadd.f32 %v7608, %v7707
  %v7709 = vpop.f32.mrb[0].mxu0
  %7710 = vdwg.mxu0
  %7711 = vmatprep.subr.mxu0 0.0
  %7712 = vmatpush1.msra.mxu0 %v7431
  %7713 = vmatprep.subr.mxu0 0.0
  %7714 = vmatpush1.msra.mxu0 %v7432
  %7715 = vmatprep.subr.mxu0 0.0
  %7716 = vmatpush1.msra.mxu0 %v7433
  %7717 = vmatprep.subr.mxu0 0.0
  %7718 = vmatpush1.msra.mxu0 %v7434
  %7719 = vmatprep.subr.mxu0 0.0
  %7720 = vmatpush1.msra.mxu0 %v7435
  %7721 = vmatprep.subr.mxu0 0.0
  %7722 = vmatpush1.msra.mxu0 %v7436
  %7723 = vmatprep.subr.mxu0 0.0
  %7724 = vmatpush1.msra.mxu0 %v7437
  %7725 = vmatprep.subr.mxu0 0.0
  %7726 = vmatpush1.msra.mxu0 %v7438
  %7727 = vmatprep.subr.mxu0 0.0
  %7728 = vmatpush1.msra.mxu0 %v7439
  %7729 = vmatprep.subr.mxu0 0.0
  %7730 = vmatpush1.msra.mxu0 %v7440
  %7731 = vmatprep.subr.mxu0 0.0
  %7732 = vmatpush1.msra.mxu0 %v7441
  %7733 = vmatprep.subr.mxu0 0.0
  %7734 = vmatpush1.msra.mxu0 %v7442
  %7735 = vmatprep.subr.mxu0 0.0
  %7736 = vmatpush1.msra.mxu0 %v7443
  %7737 = vmatprep.subr.mxu0 0.0
  %7738 = vmatpush1.msra.mxu0 %v7444
  %7739 = vmatprep.subr.mxu0 0.0
  %7740 = vmatpush1.msra.mxu0 %v7445
  %7741 = vmatprep.subr.mxu0 0.0
  %7742 = vmatpush1.msra.mxu0 %v7446
  %7743 = vmatprep.subr.mxu0 0.0
  %7744 = vmatpush1.msra.mxu0 %v7447
  %7745 = vmatprep.subr.mxu0 0.0
  %7746 = vmatpush1.msra.mxu0 %v7448
  %7747 = vmatprep.subr.mxu0 0.0
  %7748 = vmatpush1.msra.mxu0 %v7449
  %7749 = vmatprep.subr.mxu0 0.0
  %7750 = vmatpush1.msra.mxu0 %v7450
  %7751 = vmatprep.subr.mxu0 0.0
  %7752 = vmatpush1.msra.mxu0 %v7451
  %7753 = vmatprep.subr.mxu0 0.0
  %7754 = vmatpush1.msra.mxu0 %v7452
  %7755 = vmatprep.subr.mxu0 0.0
  %7756 = vmatpush1.msra.mxu0 %v7453
  %7757 = vmatprep.subr.mxu0 0.0
  %7758 = vmatpush1.msra.mxu0 %v7454
  %7759 = vmatprep.subr.mxu0 0.0
  %7760 = vmatpush1.msra.mxu0 %v7455
  %7761 = vmatprep.subr.mxu0 0.0
  %7762 = vmatpush1.msra.mxu0 %v7456
  %7763 = vmatprep.subr.mxu0 0.0
  %7764 = vmatpush1.msra.mxu0 %v7457
  %7765 = vmatprep.subr.mxu0 0.0
  %7766 = vmatpush1.msra.mxu0 %v7458
  %7767 = vmatprep.subr.mxu0 0.0
  %7768 = vmatpush1.msra.mxu0 %v7459
  %7769 = vmatprep.subr.mxu0 0.0
  %7770 = vmatpush1.msra.mxu0 %v7460
  %7771 = vmatprep.subr.mxu0 0.0
  %7772 = vmatpush1.msra.mxu0 %v7461
  %7773 = vmatprep.subr.mxu0 0.0
  %7774 = vmatpush1.msra.mxu0 %v7462
  %7775 = vmatprep.mubr.f32.mxu0 %v6155
  %7776 = vmatmul.mubr.f32.gmra.mrb[0].mxu0 %v5840
  %v7777 = vpop.f32.mrb[0].mxu0
  %v7778 = vadd.f32 %v7678, %v7777
  %v7779 = vpop.f32.mrb[0].mxu0
  %7780 = vmatprep.mubr.f32.mxu0 %v6204
  %7781 = vmatmul.mubr.f32.gmra.mrb[0].mxu0 %v5889
  %v7782 = vpop.f32.mrb[0].mxu0
  %v7783 = vadd.f32 %v7683, %v7782
  %v7784 = vpop.f32.mrb[0].mxu0
  %7785 = vmatprep.mubr.f32.mxu0 %v6253
  %7786 = vmatmul.mubr.f32.gmra.mrb[0].mxu0 %v5938
  %v7787 = vpop.f32.mrb[0].mxu0
  %v7788 = vadd.f32 %v7688, %v7787
  %v7789 = vpop.f32.mrb[0].mxu0
  %7790 = vmatprep.mubr.f32.mxu0 %v6302
  %7791 = vmatmul.mubr.f32.gmra.mrb[0].mxu0 %v5987
  %v7792 = vpop.f32.mrb[0].mxu0
  %v7793 = vadd.f32 %v7693, %v7792
  %v7794 = vpop.f32.mrb[0].mxu0
  %7795 = vmatprep.mubr.f32.mxu0 %v6351
  %7796 = vmatmul.mubr.f32.gmra.mrb[0].mxu0 %v6036
  %v7797 = vpop.f32.mrb[0].mxu0
  %v7798 = vadd.f32 %v7698, %v7797
  %v7799 = vpop.f32.mrb[0].mxu0
  %7800 = vmatprep.mubr.f32.mxu0 %v6400
  %7801 = vmatmul.mubr.f32.gmra.mrb[0].mxu0 %v6085
  %v7802 = vpop.f32.mrb[0].mxu0
  %v7803 = vadd.f32 %v7703, %v7802
  %v7804 = vpop.f32.mrb[0].mxu0
  %7805 = vmatprep.mubr.f32.mxu0 %v6414
  %7806 = vmatmul.mubr.f32.gmra.mrb[0].mxu0 %v6099
  %v7807 = vpop.f32.mrb[0].mxu0
  %v7808 = vadd.f32 %v7708, %v7807
  %v7809 = vpop.f32.mrb[0].mxu0
  %7810 = vdwg.mxu0
  %7811 = vmatprep.subr.mxu0 0.0
  %7812 = vmatpush1.msra.mxu0 %v7463
  %7813 = vmatprep.subr.mxu0 0.0
  %7814 = vmatpush1.msra.mxu0 %v7464
  %7815 = vmatprep.subr.mxu0 0.0
  %7816 = vmatpush1.msra.mxu0 %v7465
  %7817 = vmatprep.subr.mxu0 0.0
  %7818 = vmatpush1.msra.mxu0 %v7466
  %7819 = vmatprep.subr.mxu0 0.0
  %7820 = vmatpush1.msra.mxu0 %v7467
  %7821 = vmatprep.subr.mxu0 0.0
  %7822 = vmatpush1.msra.mxu0 %v7468
  %7823 = vmatprep.subr.mxu0 0.0
  %7824 = vmatpush1.msra.mxu0 %v7469
  %7825 = vmatprep.subr.mxu0 0.0
  %7826 = vmatpush1.msra.mxu0 %v7470
  %7827 = vmatprep.subr.mxu0 0.0
  %7828 = vmatpush1.msra.mxu0 %v7471
  %7829 = vmatprep.subr.mxu0 0.0
  %7830 = vmatpush1.msra.mxu0 %v7472
  %7831 = vmatprep.subr.mxu0 0.0
  %7832 = vmatpush1.msra.mxu0 %v7473
  %7833 = vmatprep.subr.mxu0 0.0
  %7834 = vmatpush1.msra.mxu0 %v7474
  %7835 = vmatprep.subr.mxu0 0.0
  %7836 = vmatpush1.msra.mxu0 %v7475
  %7837 = vmatprep.subr.mxu0 0.0
  %7838 = vmatpush1.msra.mxu0 %v7476
  %7839 = vmatprep.subr.mxu0 0.0
  %7840 = vmatpush1.msra.mxu0 %v7477
  %7841 = vmatprep.subr.mxu0 0.0
  %7842 = vmatpush1.msra.mxu0 %v7478
  %7843 = vmatprep.subr.mxu0 0.0
  %7844 = vmatpush1.msra.mxu0 %v7479
  %7845 = vmatprep.subr.mxu0 0.0
  %7846 = vmatpush1.msra.mxu0 %v7480
  %7847 = vmatprep.subr.mxu0 0.0
  %7848 = vmatpush1.msra.mxu0 %v7481
  %7849 = vmatprep.subr.mxu0 0.0
  %7850 = vmatpush1.msra.mxu0 %v7482
  %7851 = vmatprep.subr.mxu0 0.0
  %7852 = vmatpush1.msra.mxu0 %v7483
  %7853 = vmatprep.subr.mxu0 0.0
  %7854 = vmatpush1.msra.mxu0 %v7484
  %7855 = vmatprep.subr.mxu0 0.0
  %7856 = vmatpush1.msra.mxu0 %v7485
  %7857 = vmatprep.subr.mxu0 0.0
  %7858 = vmatpush1.msra.mxu0 %v7486
  %7859 = vmatprep.subr.mxu0 0.0
  %7860 = vmatpush1.msra.mxu0 %v7487
  %7861 = vmatprep.subr.mxu0 0.0
  %7862 = vmatpush1.msra.mxu0 %v7488
  %7863 = vmatprep.subr.mxu0 0.0
  %7864 = vmatpush1.msra.mxu0 %v7489
  %7865 = vmatprep.subr.mxu0 0.0
  %7866 = vmatpush1.msra.mxu0 %v7490
  %7867 = vmatprep.subr.mxu0 0.0
  %7868 = vmatpush1.msra.mxu0 %v7491
  %7869 = vmatprep.subr.mxu0 0.0
  %7870 = vmatpush1.msra.mxu0 %v7492
  %7871 = vmatprep.subr.mxu0 0.0
  %7872 = vmatpush1.msra.mxu0 %v7493
  %7873 = vmatprep.subr.mxu0 0.0
  %7874 = vmatpush1.msra.mxu0 %v7494
  %7875 = vmatprep.mubr.f32.mxu0 %v6785
  %7876 = vmatmul.mubr.f32.gmra.mrb[0].mxu0 %v6470
  %v7877 = vpop.f32.mrb[0].mxu0
  %v7878 = vadd.f32 %v7778, %v7877
  %v7879 = vpop.f32.mrb[0].mxu0
  %7880 = vmatprep.mubr.f32.mxu0 %v6834
  %7881 = vmatmul.mubr.f32.gmra.mrb[0].mxu0 %v6519
  %v7882 = vpop.f32.mrb[0].mxu0
  %v7883 = vadd.f32 %v7783, %v7882
  %v7884 = vpop.f32.mrb[0].mxu0
  %7885 = vmatprep.mubr.f32.mxu0 %v6883
  %7886 = vmatmul.mubr.f32.gmra.mrb[0].mxu0 %v6568
  %v7887 = vpop.f32.mrb[0].mxu0
  %v7888 = vadd.f32 %v7788, %v7887
  %v7889 = vpop.f32.mrb[0].mxu0
  %7890 = vmatprep.mubr.f32.mxu0 %v6932
  %7891 = vmatmul.mubr.f32.gmra.mrb[0].mxu0 %v6617
  %v7892 = vpop.f32.mrb[0].mxu0
  %v7893 = vadd.f32 %v7793, %v7892
  %v7894 = vpop.f32.mrb[0].mxu0
  %7895 = vmatprep.mubr.f32.mxu0 %v6981
  %7896 = vmatmul.mubr.f32.gmra.mrb[0].mxu0 %v6666
  %v7897 = vpop.f32.mrb[0].mxu0
  %v7898 = vadd.f32 %v7798, %v7897
  %v7899 = vpop.f32.mrb[0].mxu0
  %7900 = vmatprep.mubr.f32.mxu0 %v7030
  %7901 = vmatmul.mubr.f32.gmra.mrb[0].mxu0 %v6715
  %v7902 = vpop.f32.mrb[0].mxu0
  %v7903 = vadd.f32 %v7803, %v7902
  %v7904 = vpop.f32.mrb[0].mxu0
  %7905 = vmatprep.mubr.f32.mxu0 %v7044
  %7906 = vmatmul.mubr.f32.gmra.mrb[0].mxu0 %v6729
  %v7907 = vpop.f32.mrb[0].mxu0
  %v7908 = vadd.f32 %v7808, %v7907
  %v7909 = vpop.f32.mrb[0].mxu0
  %7910 = vdwg.mxu0
  %7911 = vmatprep.subr.mxu0 0.0
  %7912 = vmatpush1.msra.mxu0 %v7495
  %7913 = vmatprep.subr.mxu0 0.0
  %7914 = vmatpush1.msra.mxu0 %v7496
  %7915 = vmatprep.subr.mxu0 0.0
  %7916 = vmatpush1.msra.mxu0 %v7497
  %7917 = vmatprep.subr.mxu0 0.0
  %7918 = vmatpush1.msra.mxu0 %v7498
  %7919 = vmatprep.subr.mxu0 0.0
  %7920 = vmatpush1.msra.mxu0 %v7499
  %7921 = vmatprep.subr.mxu0 0.0
  %7922 = vmatpush1.msra.mxu0 %v7500
  %7923 = vmatprep.subr.mxu0 0.0
  %7924 = vmatpush1.msra.mxu0 %v7501
  %7925 = vmatprep.subr.mxu0 0.0
  %7926 = vmatpush1.msra.mxu0 %v7502
  %7927 = vmatprep.subr.mxu0 0.0
  %7928 = vmatpush1.msra.mxu0 %v7503
  %7929 = vmatprep.subr.mxu0 0.0
  %7930 = vmatpush1.msra.mxu0 %v7504
  %7931 = vmatprep.subr.mxu0 0.0
  %7932 = vmatpush1.msra.mxu0 %v7505
  %7933 = vmatprep.subr.mxu0 0.0
  %7934 = vmatpush1.msra.mxu0 %v7506
  %7935 = vmatprep.subr.mxu0 0.0
  %7936 = vmatpush1.msra.mxu0 %v7507
  %7937 = vmatprep.subr.mxu0 0.0
  %7938 = vmatpush1.msra.mxu0 %v7508
  %7939 = vmatprep.subr.mxu0 0.0
  %7940 = vmatpush1.msra.mxu0 %v7509
  %7941 = vmatprep.subr.mxu0 0.0
  %7942 = vmatpush1.msra.mxu0 %v7510
  %7943 = vmatprep.subr.mxu0 0.0
  %7944 = vmatpush1.msra.mxu0 0.0
  %7945 = vmatprep.subr.mxu0 0.0
  %7946 = vmatpush1.msra.mxu0 0.0
  %7947 = vmatprep.subr.mxu0 0.0
  %7948 = vmatpush1.msra.mxu0 0.0
  %7949 = vmatprep.subr.mxu0 0.0
  %7950 = vmatpush1.msra.mxu0 0.0
  %7951 = vmatprep.subr.mxu0 0.0
  %7952 = vmatpush1.msra.mxu0 0.0
  %7953 = vmatprep.subr.mxu0 0.0
  %7954 = vmatpush1.msra.mxu0 0.0
  %7955 = vmatprep.subr.mxu0 0.0
  %7956 = vmatpush1.msra.mxu0 0.0
  %7957 = vmatprep.subr.mxu0 0.0
  %7958 = vmatpush1.msra.mxu0 0.0
  %7959 = vmatprep.subr.mxu0 0.0
  %7960 = vmatpush1.msra.mxu0 0.0
  %7961 = vmatprep.subr.mxu0 0.0
  %7962 = vmatpush1.msra.mxu0 0.0
  %7963 = vmatprep.subr.mxu0 0.0
  %7964 = vmatpush1.msra.mxu0 0.0
  %7965 = vmatprep.subr.mxu0 0.0
  %7966 = vmatpush1.msra.mxu0 0.0
  %7967 = vmatprep.subr.mxu0 0.0
  %7968 = vmatpush1.msra.mxu0 0.0
  %7969 = vmatprep.subr.mxu0 0.0
  %7970 = vmatpush1.msra.mxu0 0.0
  %7971 = vmatprep.subr.mxu0 0.0
  %7972 = vmatpush1.msra.mxu0 0.0
  %7973 = vmatprep.subr.mxu0 0.0
  %7974 = vmatpush1.msra.mxu0 0.0
  %7975 = vmatprep.mubr.f32.mxu0 0.0
  %7976 = vmatmul.mubr.f32.gmra.mrb[0].mxu0 %v7100
  %v7977 = vpop.f32.mrb[0].mxu0
  %v7978 = vadd.f32 %v7878, %v7977
  %v7979 = vpop.f32.mrb[0].mxu0
  %7980 = vmatprep.mubr.f32.mxu0 0.0
  %7981 = vmatmul.mubr.f32.gmra.mrb[0].mxu0 %v7149
  %v7982 = vpop.f32.mrb[0].mxu0
  %v7983 = vadd.f32 %v7883, %v7982
  %v7984 = vpop.f32.mrb[0].mxu0
  %7985 = vmatprep.mubr.f32.mxu0 0.0
  %7986 = vmatmul.mubr.f32.gmra.mrb[0].mxu0 %v7198
  %v7987 = vpop.f32.mrb[0].mxu0
  %v7988 = vadd.f32 %v7888, %v7987
  %v7989 = vpop.f32.mrb[0].mxu0
  %7990 = vmatprep.mubr.f32.mxu0 0.0
  %7991 = vmatmul.mubr.f32.gmra.mrb[0].mxu0 %v7247
  %v7992 = vpop.f32.mrb[0].mxu0
  %v7993 = vadd.f32 %v7893, %v7992
  %v7994 = vpop.f32.mrb[0].mxu0
  %7995 = vmatprep.mubr.f32.mxu0 0.0
  %7996 = vmatmul.mubr.f32.gmra.mrb[0].mxu0 %v7296
  %v7997 = vpop.f32.mrb[0].mxu0
  %v7998 = vadd.f32 %v7898, %v7997
  %v7999 = vpop.f32.mrb[0].mxu0
  %8000 = vmatprep.mubr.f32.mxu0 0.0
  %8001 = vmatmul.mubr.f32.gmra.mrb[0].mxu0 %v7345
  %v8002 = vpop.f32.mrb[0].mxu0
  %v8003 = vadd.f32 %v7903, %v8002
  %v8004 = vpop.f32.mrb[0].mxu0
  %8005 = vmatprep.mubr.f32.mxu0 0.0
  %8006 = vmatmul.mubr.f32.gmra.mrb[0].mxu0 %v7359
  %v8007 = vpop.f32.mrb[0].mxu0
  %v8008 = vadd.f32 %v7908, %v8007
  %v8009 = vpop.f32.mrb[0].mxu0
  %8010 = vdwg.mxu0
  %vm8011 = vcmask 261120
  %8012 = vst.msk [vmem:[%s5] sm:$0xff] %vm8011, %v7978
  %8013 = vst.msk [vmem:[%s5 + $0x8] sm:$0xff] %vm8011, %v7983
  %8014 = vst.msk [vmem:[%s5 + $0x10] sm:$0xff] %vm8011, %v7988
  %8015 = vst.msk [vmem:[%s5 + $0x18] sm:$0xff] %vm8011, %v7993
  %8016 = vst.msk [vmem:[%s5 + $0x20] sm:$0xff] %vm8011, %v7998
  %8017 = vst.msk [vmem:[%s5 + $0x28] sm:$0xff] %vm8011, %v8003
  %vm8018 = vcmask 253952
  %8019 = vst.msk [vmem:[%s5 + $0x30] sm:$0x1] %vm8018, %v8008
  // Predicated region
  $region22: #{tpu_custom_call.1} parent=0 // pred_check
    _
  $region23: #{tpu_custom_call.1} parent=0 // pred_check_branch
    %8021 = sbr.rel (0) target = $region25
  $region24: #{tpu_custom_call.1} parent=0 // pred_region
    _
  $region25: #{tpu_custom_call.1} parent=0 // pred_fallthru
    _
  // Predicated region
  $region26: #{tpu_custom_call.1} parent=0 // pred_check
    _
  $region27: #{tpu_custom_call.1} parent=0 // pred_check_branch
    %8023 = sbr.rel (0) target = $region29
  $region28: #{tpu_custom_call.1} parent=0 // pred_region
    _
  $region29: #{tpu_custom_call.1} parent=0 // pred_fallthru
    _

</llo_original>
